<compile_context>
chip_gen: v7x
topology: tpu7x:2x2x1
jax: 0.10.0
libtpu: 0.0.40
codegen_flags: <defaults>
</compile_context>

<pallas_src>
import functools
import math

import jax
import jax.numpy as jnp
from jax.experimental import pallas as pl
from jax.experimental.pallas import tpu as pltpu

# ---------------------------------------------------------------------------
# Small, consistent hyper-parameters:
#   d_model % (nhead // 4) == 0   and   seq_len >= num_hyperedges.
# ---------------------------------------------------------------------------
VOCAB_SIZE = 128
D_MODEL = 32
NHEAD = 8
NUM_LAYERS = 2
NUM_HYPEREDGES = 4
HYPEREDGE_SIZE = 3
SEQ_LEN = 8
BATCH = 2

NUM_SUB_ATTN = 4                       # semantic / composition / reasoning / research
HEADS_PER_ATTN = NHEAD // 4            # each sub-attention uses nhead // 4 heads
HEAD_DIM = D_MODEL // HEADS_PER_ATTN
D_FF = 4 * D_MODEL
LN_EPS = 1e-5


# ---------------------------------------------------------------------------
# In-kernel helpers
# ---------------------------------------------------------------------------
def _layer_norm(z, gamma, beta):
    mean = jnp.mean(z, axis=-1, keepdims=True)
    var = jnp.mean(jnp.square(z - mean), axis=-1, keepdims=True)
    return (z - mean) * jax.lax.rsqrt(var + LN_EPS) * gamma + beta


def _gelu_exact(h):
    # exact (erf) GELU, matching nn.GELU() default
    return 0.5 * h * (1.0 + jax.lax.erf(h * jnp.float32(1.0 / math.sqrt(2.0))))


# ---------------------------------------------------------------------------
# Single fused forward kernel: 2 layers + final projection
# ---------------------------------------------------------------------------
def _fused_forward_kernel(
    x_ref,
    wq_ref, bq_ref, wk_ref, bk_ref, wv_ref, bv_ref, wo_ref, bo_ref,
    bias_ref, n1g_ref, n1b_ref,
    w1_ref, b1_ref, w2_ref, b2_ref, wg_ref, bg_ref, ffg_ref, ffb_ref,
    n2g_ref, n2b_ref,
    ow_ref, ob_ref,
    o_ref,
):
    f32 = jnp.float32
    scale = f32(1.0 / math.sqrt(HEAD_DIM))
    x = x_ref[...]                                                    # (B*S, D) = (16, 32)

    for li in range(NUM_LAYERS):
        # ----- fused 4-way hypergraph attention: one lane-dense QKV matmul each -----
        q = jnp.dot(x, wq_ref[li], preferred_element_type=f32) + bq_ref[li]   # (16, 128)
        k = jnp.dot(x, wk_ref[li], preferred_element_type=f32) + bk_ref[li]   # (16, 128)
        v = jnp.dot(x, wv_ref[li], preferred_element_type=f32) + bv_ref[li]   # (16, 128)

        ctx_rows = []
        for b in range(BATCH):                                        # static unroll (B=2)
            r0 = b * SEQ_LEN
            ctx_cols = []
            for ai in range(NUM_SUB_ATTN):                            # 4 sub-attentions
                bias = bias_ref[li, ai]                               # (S, S), batch/head invariant
                for h in range(HEADS_PER_ATTN):                       # 2 heads each
                    c0 = ai * D_MODEL + h * HEAD_DIM
                    qh = q[r0:r0 + SEQ_LEN, c0:c0 + HEAD_DIM]         # (S, 16)
                    kh = k[r0:r0 + SEQ_LEN, c0:c0 + HEAD_DIM]
                    vh = v[r0:r0 + SEQ_LEN, c0:c0 + HEAD_DIM]
                    s = jnp.dot(qh, kh.T, preferred_element_type=f32) * scale + bias
                    p = jax.nn.softmax(s, axis=-1)
                    ctx_cols.append(jnp.dot(p, vh, preferred_element_type=f32))
            ctx_rows.append(jnp.concatenate(ctx_cols, axis=1))        # (S, 128)
        ctx_all = jnp.concatenate(ctx_rows, axis=0)                   # (16, 128)

        # one (16,128)@(128,32) out-projection = sum of the 4 per-branch out_projs;
        # bo_ref holds the pre-summed 4 output biases.  /4 average follows.
        attn_sum = jnp.dot(ctx_all, wo_ref[li], preferred_element_type=f32) + bo_ref[li]
        x = _layer_norm(x + attn_sum * f32(0.25), n1g_ref[li], n1b_ref[li])

        # ----- fused 4-way hypergraph feed-forward -----
        hcat = jnp.dot(x, w1_ref[li], preferred_element_type=f32) + b1_ref[li]    # (16, 512)
        hcat = _gelu_exact(hcat)
        gcat = jax.nn.sigmoid(
            jnp.dot(x, wg_ref[li], preferred_element_type=f32) + bg_ref[li])      # (16, 128)

        acc_ff = jnp.zeros((BATCH * SEQ_LEN, D_MODEL), f32)
        for ai in range(NUM_SUB_ATTN):
            hi = hcat[:, ai * D_FF:(ai + 1) * D_FF]                               # (16, 128)
            yi = jnp.dot(hi, w2_ref[li, ai], preferred_element_type=f32) + b2_ref[li, ai]
            yi = yi * gcat[:, ai * D_MODEL:(ai + 1) * D_MODEL]                    # sigmoid gate
            acc_ff = acc_ff + _layer_norm(yi, ffg_ref[li, ai], ffb_ref[li, ai])   # per-branch LN
        x = _layer_norm(x + acc_ff * f32(0.25), n2g_ref[li], n2b_ref[li])

    # ----- final vocab projection (lane-dense: V = 128) -----
    o_ref[...] = jnp.dot(x, ow_ref[...], preferred_element_type=f32) + ob_ref[...]


def fused_forward_pallas(x2, bias_all, params):
    M = x2.shape[0]
    return pl.pallas_call(
        _fused_forward_kernel,
        out_shape=jax.ShapeDtypeStruct((M, VOCAB_SIZE), jnp.float32),
        compiler_params=pltpu.CompilerParams(vmem_limit_bytes=32 * 1024 * 1024),
    )(x2,
      params["wq"], params["bq"], params["wk"], params["bk"],
      params["wv"], params["bv"], params["wo"], params["bo_sum"],
      bias_all, params["norm1_g"], params["norm1_b"],
      params["w1"], params["b1"], params["w2"], params["b2"],
      params["wg"], params["bg"], params["ff_g"], params["ff_b"],
      params["norm2_g"], params["norm2_b"],
      params["out_w"], params["out_b"])


# ---------------------------------------------------------------------------
# Parameter initialization (deterministic; mirrors _init_weights: Linear /
# Embedding weights ~ N(0, 0.02), biases zero; LayerNorm gamma=1, beta=0;
# edge_importance = ones).  Weights are stored pre-stacked in the fused layout.
# ---------------------------------------------------------------------------
def _init_linear_w(key, d_in, d_out):
    return (0.02 * jax.random.normal(key, (d_in, d_out))).astype(jnp.float32)


def positional_encoding(seq_len, d_model):
    position = jnp.arange(seq_len, dtype=jnp.float32)[:, None]
    div_term = jnp.exp(jnp.arange(0, d_model, 2, dtype=jnp.float32)
                       * (-math.log(10000.0) / d_model))
    pe = jnp.zeros((seq_len, d_model), jnp.float32)
    pe = pe.at[:, 0::2].set(jnp.sin(position * div_term))
    pe = pe.at[:, 1::2].set(jnp.cos(position * div_term))
    return pe


def make_hyperedge_base(key, seq_len, num_hyperedges, hyperedge_size):
    """Deterministic analogue of _create_hyperedge_attention (batch/head invariant).

    torch's `mask[indices] = 1/hyperedge_size` overwrites duplicate indices, so a
    membership test (any) matches the reference assignment semantics exactly.
    """
    idx = jax.random.randint(key, (num_hyperedges, seq_len, hyperedge_size),
                             0, seq_len)
    onehot = (idx[..., None] == jnp.arange(seq_len)).any(axis=-2)     # (NE, S, S)
    mask = onehot.astype(jnp.float32) / hyperedge_size
    return mask.sum(axis=0) / num_hyperedges                          # (S, S)


def init_params(key):
    pkey, hkey = jax.random.split(key)
    ek, ok, lk_all = jax.random.split(pkey, 3)

    embedding = (0.02 * jax.random.normal(ek, (VOCAB_SIZE, D_MODEL))).astype(jnp.float32)
    out_w = _init_linear_w(ok, D_MODEL, VOCAB_SIZE)
    out_b = jnp.zeros((1, VOCAB_SIZE), jnp.float32)

    layer_keys = jax.random.split(lk_all, NUM_LAYERS)
    wq, wk, wv, wo, w1, w2, wg = [], [], [], [], [], [], []
    for lk in layer_keys:
        aks = jax.random.split(lk, NUM_SUB_ATTN * 7)    # 4 attn linears + 3 ff linears per branch
        wq.append(jnp.concatenate(
            [_init_linear_w(aks[4 * ai + 0], D_MODEL, D_MODEL) for ai in range(NUM_SUB_ATTN)], axis=1))
        wk.append(jnp.concatenate(
            [_init_linear_w(aks[4 * ai + 1], D_MODEL, D_MODEL) for ai in range(NUM_SUB_ATTN)], axis=1))
        wv.append(jnp.concatenate(
            [_init_linear_w(aks[4 * ai + 2], D_MODEL, D_MODEL) for ai in range(NUM_SUB_ATTN)], axis=1))
        wo.append(jnp.concatenate(
            [_init_linear_w(aks[4 * ai + 3], D_MODEL, D_MODEL) for ai in range(NUM_SUB_ATTN)], axis=0))
        base = 4 * NUM_SUB_ATTN
        w1.append(jnp.concatenate(
            [_init_linear_w(aks[base + 3 * ai + 0], D_MODEL, D_FF) for ai in range(NUM_SUB_ATTN)], axis=1))
        w2.append(jnp.stack(
            [_init_linear_w(aks[base + 3 * ai + 1], D_FF, D_MODEL) for ai in range(NUM_SUB_ATTN)], axis=0))
        wg.append(jnp.concatenate(
            [_init_linear_w(aks[base + 3 * ai + 2], D_MODEL, D_MODEL) for ai in range(NUM_SUB_ATTN)], axis=1))
        # note: hyperedge_proj exists in the PyTorch module but is never used in forward

    params = dict(
        embedding=embedding,
        pe=positional_encoding(SEQ_LEN, D_MODEL),
        out_w=out_w, out_b=out_b,
        # stacked attention weights (L, 32, 128) / (L, 128, 32); biases are zero at init
        wq=jnp.stack(wq), bq=jnp.zeros((NUM_LAYERS, 1, NUM_SUB_ATTN * D_MODEL), jnp.float32),
        wk=jnp.stack(wk), bk=jnp.zeros((NUM_LAYERS, 1, NUM_SUB_ATTN * D_MODEL), jnp.float32),
        wv=jnp.stack(wv), bv=jnp.zeros((NUM_LAYERS, 1, NUM_SUB_ATTN * D_MODEL), jnp.float32),
        wo=jnp.stack(wo), bo_sum=jnp.zeros((NUM_LAYERS, 1, D_MODEL), jnp.float32),
        # stacked FFN weights
        w1=jnp.stack(w1), b1=jnp.zeros((NUM_LAYERS, 1, NUM_SUB_ATTN * D_FF), jnp.float32),
        w2=jnp.stack(w2), b2=jnp.zeros((NUM_LAYERS, NUM_SUB_ATTN, 1, D_MODEL), jnp.float32),
        wg=jnp.stack(wg), bg=jnp.zeros((NUM_LAYERS, 1, NUM_SUB_ATTN * D_MODEL), jnp.float32),
        ff_g=jnp.ones((NUM_LAYERS, NUM_SUB_ATTN, 1, D_MODEL), jnp.float32),
        ff_b=jnp.zeros((NUM_LAYERS, NUM_SUB_ATTN, 1, D_MODEL), jnp.float32),
        norm1_g=jnp.ones((NUM_LAYERS, 1, D_MODEL), jnp.float32),
        norm1_b=jnp.zeros((NUM_LAYERS, 1, D_MODEL), jnp.float32),
        norm2_g=jnp.ones((NUM_LAYERS, 1, D_MODEL), jnp.float32),
        norm2_b=jnp.zeros((NUM_LAYERS, 1, D_MODEL), jnp.float32),
        edge_importance=jnp.ones((NUM_LAYERS, NUM_HYPEREDGES), jnp.float32),
    )

    hkeys = jax.random.split(hkey, NUM_LAYERS * NUM_SUB_ATTN)
    hyper_bases = jnp.stack([
        make_hyperedge_base(hkeys[i], SEQ_LEN, NUM_HYPEREDGES, HYPEREDGE_SIZE)
        for i in range(NUM_LAYERS * NUM_SUB_ATTN)
    ]).reshape(NUM_LAYERS, NUM_SUB_ATTN, SEQ_LEN, SEQ_LEN)
    return params, hyper_bases


# ---------------------------------------------------------------------------
# Forward pass
# ---------------------------------------------------------------------------
@jax.jit
def hypergraph_transformer_forward(src, params, hyper_bases):
    # TODO(synk): attention_mask path not implemented (reference caller passes None).
    B, S = src.shape
    x = jnp.take(params["embedding"], src, axis=0) * math.sqrt(D_MODEL)   # (B, S, D)
    x = x + params["pe"][None, :S, :]
    x2 = x.reshape(B * S, D_MODEL).astype(jnp.float32)

    # hyperedge additive bias per (layer, sub-attention), edge-importance folded in:
    # bias[t, s] = base[t, s] * softmax(edge_importance)[edge_of_position(t)]
    edge_w = jax.nn.softmax(params["edge_importance"], axis=-1)           # (L, NE)
    ppe = S // NUM_HYPEREDGES
    edge_idx = jnp.minimum(jnp.arange(S) // ppe, NUM_HYPEREDGES - 1)      # (S,)
    row_w = edge_w[:, edge_idx]                                           # (L, S)
    bias_all = hyper_bases * row_w[:, None, :, None]                      # (L, 4, S, S)

    logits = fused_forward_pallas(x2, bias_all, params)                   # (B*S, V)
    return logits.reshape(B, S, VOCAB_SIZE)


# ---------------------------------------------------------------------------
if __name__ == "__main__":
    key = jax.random.PRNGKey(0)
    pkey, dkey = jax.random.split(key)
    params, hyper_bases = init_params(pkey)
    src = jax.random.randint(dkey, (BATCH, SEQ_LEN), 0, VOCAB_SIZE, dtype=jnp.int32)

    logits = hypergraph_transformer_forward(src, params, hyper_bases)
    logits = jax.block_until_ready(logits)

    assert logits.shape == (BATCH, SEQ_LEN, VOCAB_SIZE)
    assert logits.dtype == jnp.float32
    assert bool(jnp.all(jnp.isfinite(logits)))
    print("KERNEL_OK")
</pallas_src>

<mosaic_0001>
module attributes {stable_mosaic.version = 11 : i64} {
  func.func @_fused_forward_kernel(%arg0: memref<16x32xf32, #tpu.memory_space<vmem>>, %arg1: memref<2x32x128xf32, #tpu.memory_space<vmem>>, %arg2: memref<2x1x128xf32, #tpu.memory_space<vmem>>, %arg3: memref<2x32x128xf32, #tpu.memory_space<vmem>>, %arg4: memref<2x1x128xf32, #tpu.memory_space<vmem>>, %arg5: memref<2x32x128xf32, #tpu.memory_space<vmem>>, %arg6: memref<2x1x128xf32, #tpu.memory_space<vmem>>, %arg7: memref<2x128x32xf32, #tpu.memory_space<vmem>>, %arg8: memref<2x1x32xf32, #tpu.memory_space<vmem>>, %arg9: memref<2x4x8x8xf32, #tpu.memory_space<vmem>>, %arg10: memref<2x1x32xf32, #tpu.memory_space<vmem>>, %arg11: memref<2x1x32xf32, #tpu.memory_space<vmem>>, %arg12: memref<2x32x512xf32, #tpu.memory_space<vmem>>, %arg13: memref<2x1x512xf32, #tpu.memory_space<vmem>>, %arg14: memref<2x4x128x32xf32, #tpu.memory_space<vmem>>, %arg15: memref<2x4x1x32xf32, #tpu.memory_space<vmem>>, %arg16: memref<2x32x128xf32, #tpu.memory_space<vmem>>, %arg17: memref<2x1x128xf32, #tpu.memory_space<vmem>>, %arg18: memref<2x4x1x32xf32, #tpu.memory_space<vmem>>, %arg19: memref<2x4x1x32xf32, #tpu.memory_space<vmem>>, %arg20: memref<2x1x32xf32, #tpu.memory_space<vmem>>, %arg21: memref<2x1x32xf32, #tpu.memory_space<vmem>>, %arg22: memref<32x128xf32, #tpu.memory_space<vmem>>, %arg23: memref<1x128xf32, #tpu.memory_space<vmem>>, %arg24: memref<16x128xf32, #tpu.memory_space<vmem>>) attributes {dimension_semantics = [], scalar_prefetch = 0 : i64, scratch_operands = 0 : i64, tpu.core_type = #tpu.core_type<tc>} {
    %c0 = arith.constant 0 : index
    %c0_0 = arith.constant 0 : index
    %0 = vector.load %arg0[%c0, %c0_0] : memref<16x32xf32, #tpu.memory_space<vmem>>, vector<16x32xf32>
    %c0_1 = arith.constant 0 : index
    %c0_2 = arith.constant 0 : index
    %c0_3 = arith.constant 0 : index
    %1 = vector.load %arg1[%c0_1, %c0_2, %c0_3] : memref<2x32x128xf32, #tpu.memory_space<vmem>>, vector<1x32x128xf32>
    %2 = vector.shape_cast %1 : vector<1x32x128xf32> to vector<32x128xf32>
    %cst = arith.constant dense<0.000000e+00> : vector<16x128xf32>
    %3 = tpu.matmul %0, %2, %cst {dimension_numbers = #tpu.dot_dimension_numbers<[1], [0], [0], [1], [0, 0, 1, 1], [], []>} : vector<16x32xf32>, vector<32x128xf32>, vector<16x128xf32> -> vector<16x128xf32>
    %c0_4 = arith.constant 0 : index
    %c0_5 = arith.constant 0 : index
    %c0_6 = arith.constant 0 : index
    %4 = vector.load %arg2[%c0_4, %c0_5, %c0_6] : memref<2x1x128xf32, #tpu.memory_space<vmem>>, vector<1x1x128xf32>
    %5 = vector.shape_cast %4 : vector<1x1x128xf32> to vector<1x128xf32>
    %6 = vector.broadcast %5 : vector<1x128xf32> to vector<16x128xf32>
    %7 = arith.addf %3, %6 : vector<16x128xf32>
    %c0_7 = arith.constant 0 : index
    %c0_8 = arith.constant 0 : index
    %c0_9 = arith.constant 0 : index
    %8 = vector.load %arg3[%c0_7, %c0_8, %c0_9] : memref<2x32x128xf32, #tpu.memory_space<vmem>>, vector<1x32x128xf32>
    %9 = vector.shape_cast %8 : vector<1x32x128xf32> to vector<32x128xf32>
    %cst_10 = arith.constant dense<0.000000e+00> : vector<16x128xf32>
    %10 = tpu.matmul %0, %9, %cst_10 {dimension_numbers = #tpu.dot_dimension_numbers<[1], [0], [0], [1], [0, 0, 1, 1], [], []>} : vector<16x32xf32>, vector<32x128xf32>, vector<16x128xf32> -> vector<16x128xf32>
    %c0_11 = arith.constant 0 : index
    %c0_12 = arith.constant 0 : index
    %c0_13 = arith.constant 0 : index
    %11 = vector.load %arg4[%c0_11, %c0_12, %c0_13] : memref<2x1x128xf32, #tpu.memory_space<vmem>>, vector<1x1x128xf32>
    %12 = vector.shape_cast %11 : vector<1x1x128xf32> to vector<1x128xf32>
    %13 = vector.broadcast %12 : vector<1x128xf32> to vector<16x128xf32>
    %14 = arith.addf %10, %13 : vector<16x128xf32>
    %c0_14 = arith.constant 0 : index
    %c0_15 = arith.constant 0 : index
    %c0_16 = arith.constant 0 : index
    %15 = vector.load %arg5[%c0_14, %c0_15, %c0_16] : memref<2x32x128xf32, #tpu.memory_space<vmem>>, vector<1x32x128xf32>
    %16 = vector.shape_cast %15 : vector<1x32x128xf32> to vector<32x128xf32>
    %cst_17 = arith.constant dense<0.000000e+00> : vector<16x128xf32>
    %17 = tpu.matmul %0, %16, %cst_17 {dimension_numbers = #tpu.dot_dimension_numbers<[1], [0], [0], [1], [0, 0, 1, 1], [], []>} : vector<16x32xf32>, vector<32x128xf32>, vector<16x128xf32> -> vector<16x128xf32>
    %c0_18 = arith.constant 0 : index
    %c0_19 = arith.constant 0 : index
    %c0_20 = arith.constant 0 : index
    %18 = vector.load %arg6[%c0_18, %c0_19, %c0_20] : memref<2x1x128xf32, #tpu.memory_space<vmem>>, vector<1x1x128xf32>
    %19 = vector.shape_cast %18 : vector<1x1x128xf32> to vector<1x128xf32>
    %20 = vector.broadcast %19 : vector<1x128xf32> to vector<16x128xf32>
    %21 = arith.addf %17, %20 : vector<16x128xf32>
    %c0_21 = arith.constant 0 : index
    %c0_22 = arith.constant 0 : index
    %c0_23 = arith.constant 0 : index
    %c0_24 = arith.constant 0 : index
    %22 = vector.load %arg9[%c0_21, %c0_22, %c0_23, %c0_24] : memref<2x4x8x8xf32, #tpu.memory_space<vmem>>, vector<1x1x8x8xf32>
    %23 = vector.shape_cast %22 : vector<1x1x8x8xf32> to vector<8x8xf32>
    %24 = vector.extract_strided_slice %7 {offsets = [0, 0], sizes = [8, 16], strides = [1, 1]} : vector<16x128xf32> to vector<8x16xf32>
    %25 = vector.extract_strided_slice %14 {offsets = [0, 0], sizes = [8, 16], strides = [1, 1]} : vector<16x128xf32> to vector<8x16xf32>
    %26 = vector.extract_strided_slice %21 {offsets = [0, 0], sizes = [8, 16], strides = [1, 1]} : vector<16x128xf32> to vector<8x16xf32>
    %27 = tpu.transpose %25, [1, 0] : vector<8x16xf32> -> vector<16x8xf32>
    %cst_25 = arith.constant dense<0.000000e+00> : vector<8x8xf32>
    %28 = tpu.matmul %24, %27, %cst_25 {dimension_numbers = #tpu.dot_dimension_numbers<[1], [0], [0], [1], [0, 0, 1, 1], [], []>} : vector<8x16xf32>, vector<16x8xf32>, vector<8x8xf32> -> vector<8x8xf32>
    %cst_26 = arith.constant 2.500000e-01 : f32
    %29 = vector.broadcast %cst_26 : f32 to vector<8x8xf32>
    %30 = arith.mulf %28, %29 : vector<8x8xf32>
    %31 = arith.addf %30, %23 : vector<8x8xf32>
    %cst_27 = arith.constant dense<0xFF800000> : vector<8xf32>
    %32 = vector.multi_reduction <maximumf>, %31, %cst_27 [1] : vector<8x8xf32> to vector<8xf32>
    %cst_28 = arith.constant 0xFF800000 : f32
    %33 = vector.broadcast %cst_28 : f32 to vector<8xf32>
    %34 = arith.maximumf %33, %32 : vector<8xf32>
    %35 = vector.shape_cast %34 : vector<8xf32> to vector<8x1xf32>
    %36 = vector.broadcast %35 : vector<8x1xf32> to vector<8x8xf32>
    %37 = arith.subf %31, %36 : vector<8x8xf32>
    %38 = math.exp %37 : vector<8x8xf32>
    %cst_29 = arith.constant dense<0.000000e+00> : vector<8xf32>
    %39 = vector.multi_reduction <add>, %38, %cst_29 [1] : vector<8x8xf32> to vector<8xf32>
    %40 = vector.shape_cast %39 : vector<8xf32> to vector<8x1xf32>
    %41 = vector.broadcast %40 : vector<8x1xf32> to vector<8x8xf32>
    %42 = arith.divf %38, %41 : vector<8x8xf32>
    %cst_30 = arith.constant dense<0.000000e+00> : vector<8x16xf32>
    %43 = tpu.matmul %42, %26, %cst_30 {dimension_numbers = #tpu.dot_dimension_numbers<[1], [0], [0], [1], [0, 0, 1, 1], [], []>} : vector<8x8xf32>, vector<8x16xf32>, vector<8x16xf32> -> vector<8x16xf32>
    %44 = vector.extract_strided_slice %7 {offsets = [0, 16], sizes = [8, 16], strides = [1, 1]} : vector<16x128xf32> to vector<8x16xf32>
    %45 = vector.extract_strided_slice %14 {offsets = [0, 16], sizes = [8, 16], strides = [1, 1]} : vector<16x128xf32> to vector<8x16xf32>
    %46 = vector.extract_strided_slice %21 {offsets = [0, 16], sizes = [8, 16], strides = [1, 1]} : vector<16x128xf32> to vector<8x16xf32>
    %47 = tpu.transpose %45, [1, 0] : vector<8x16xf32> -> vector<16x8xf32>
    %cst_31 = arith.constant dense<0.000000e+00> : vector<8x8xf32>
    %48 = tpu.matmul %44, %47, %cst_31 {dimension_numbers = #tpu.dot_dimension_numbers<[1], [0], [0], [1], [0, 0, 1, 1], [], []>} : vector<8x16xf32>, vector<16x8xf32>, vector<8x8xf32> -> vector<8x8xf32>
    %cst_32 = arith.constant 2.500000e-01 : f32
    %49 = vector.broadcast %cst_32 : f32 to vector<8x8xf32>
    %50 = arith.mulf %48, %49 : vector<8x8xf32>
    %51 = arith.addf %50, %23 : vector<8x8xf32>
    %cst_33 = arith.constant dense<0xFF800000> : vector<8xf32>
    %52 = vector.multi_reduction <maximumf>, %51, %cst_33 [1] : vector<8x8xf32> to vector<8xf32>
    %cst_34 = arith.constant 0xFF800000 : f32
    %53 = vector.broadcast %cst_34 : f32 to vector<8xf32>
    %54 = arith.maximumf %53, %52 : vector<8xf32>
    %55 = vector.shape_cast %54 : vector<8xf32> to vector<8x1xf32>
    %56 = vector.broadcast %55 : vector<8x1xf32> to vector<8x8xf32>
    %57 = arith.subf %51, %56 : vector<8x8xf32>
    %58 = math.exp %57 : vector<8x8xf32>
    %cst_35 = arith.constant dense<0.000000e+00> : vector<8xf32>
    %59 = vector.multi_reduction <add>, %58, %cst_35 [1] : vector<8x8xf32> to vector<8xf32>
    %60 = vector.shape_cast %59 : vector<8xf32> to vector<8x1xf32>
    %61 = vector.broadcast %60 : vector<8x1xf32> to vector<8x8xf32>
    %62 = arith.divf %58, %61 : vector<8x8xf32>
    %cst_36 = arith.constant dense<0.000000e+00> : vector<8x16xf32>
    %63 = tpu.matmul %62, %46, %cst_36 {dimension_numbers = #tpu.dot_dimension_numbers<[1], [0], [0], [1], [0, 0, 1, 1], [], []>} : vector<8x8xf32>, vector<8x16xf32>, vector<8x16xf32> -> vector<8x16xf32>
    %c0_37 = arith.constant 0 : index
    %c1 = arith.constant 1 : index
    %c0_38 = arith.constant 0 : index
    %c0_39 = arith.constant 0 : index
    %64 = vector.load %arg9[%c0_37, %c1, %c0_38, %c0_39] : memref<2x4x8x8xf32, #tpu.memory_space<vmem>>, vector<1x1x8x8xf32>
    %65 = vector.shape_cast %64 : vector<1x1x8x8xf32> to vector<8x8xf32>
    %66 = vector.extract_strided_slice %7 {offsets = [0, 32], sizes = [8, 16], strides = [1, 1]} : vector<16x128xf32> to vector<8x16xf32>
    %67 = vector.extract_strided_slice %14 {offsets = [0, 32], sizes = [8, 16], strides = [1, 1]} : vector<16x128xf32> to vector<8x16xf32>
    %68 = vector.extract_strided_slice %21 {offsets = [0, 32], sizes = [8, 16], strides = [1, 1]} : vector<16x128xf32> to vector<8x16xf32>
    %69 = tpu.transpose %67, [1, 0] : vector<8x16xf32> -> vector<16x8xf32>
    %cst_40 = arith.constant dense<0.000000e+00> : vector<8x8xf32>
    %70 = tpu.matmul %66, %69, %cst_40 {dimension_numbers = #tpu.dot_dimension_numbers<[1], [0], [0], [1], [0, 0, 1, 1], [], []>} : vector<8x16xf32>, vector<16x8xf32>, vector<8x8xf32> -> vector<8x8xf32>
    %cst_41 = arith.constant 2.500000e-01 : f32
    %71 = vector.broadcast %cst_41 : f32 to vector<8x8xf32>
    %72 = arith.mulf %70, %71 : vector<8x8xf32>
    %73 = arith.addf %72, %65 : vector<8x8xf32>
    %cst_42 = arith.constant dense<0xFF800000> : vector<8xf32>
    %74 = vector.multi_reduction <maximumf>, %73, %cst_42 [1] : vector<8x8xf32> to vector<8xf32>
    %cst_43 = arith.constant 0xFF800000 : f32
    %75 = vector.broadcast %cst_43 : f32 to vector<8xf32>
    %76 = arith.maximumf %75, %74 : vector<8xf32>
    %77 = vector.shape_cast %76 : vector<8xf32> to vector<8x1xf32>
    %78 = vector.broadcast %77 : vector<8x1xf32> to vector<8x8xf32>
    %79 = arith.subf %73, %78 : vector<8x8xf32>
    %80 = math.exp %79 : vector<8x8xf32>
    %cst_44 = arith.constant dense<0.000000e+00> : vector<8xf32>
    %81 = vector.multi_reduction <add>, %80, %cst_44 [1] : vector<8x8xf32> to vector<8xf32>
    %82 = vector.shape_cast %81 : vector<8xf32> to vector<8x1xf32>
    %83 = vector.broadcast %82 : vector<8x1xf32> to vector<8x8xf32>
    %84 = arith.divf %80, %83 : vector<8x8xf32>
    %cst_45 = arith.constant dense<0.000000e+00> : vector<8x16xf32>
    %85 = tpu.matmul %84, %68, %cst_45 {dimension_numbers = #tpu.dot_dimension_numbers<[1], [0], [0], [1], [0, 0, 1, 1], [], []>} : vector<8x8xf32>, vector<8x16xf32>, vector<8x16xf32> -> vector<8x16xf32>
    %86 = vector.extract_strided_slice %7 {offsets = [0, 48], sizes = [8, 16], strides = [1, 1]} : vector<16x128xf32> to vector<8x16xf32>
    %87 = vector.extract_strided_slice %14 {offsets = [0, 48], sizes = [8, 16], strides = [1, 1]} : vector<16x128xf32> to vector<8x16xf32>
    %88 = vector.extract_strided_slice %21 {offsets = [0, 48], sizes = [8, 16], strides = [1, 1]} : vector<16x128xf32> to vector<8x16xf32>
    %89 = tpu.transpose %87, [1, 0] : vector<8x16xf32> -> vector<16x8xf32>
    %cst_46 = arith.constant dense<0.000000e+00> : vector<8x8xf32>
    %90 = tpu.matmul %86, %89, %cst_46 {dimension_numbers = #tpu.dot_dimension_numbers<[1], [0], [0], [1], [0, 0, 1, 1], [], []>} : vector<8x16xf32>, vector<16x8xf32>, vector<8x8xf32> -> vector<8x8xf32>
    %cst_47 = arith.constant 2.500000e-01 : f32
    %91 = vector.broadcast %cst_47 : f32 to vector<8x8xf32>
    %92 = arith.mulf %90, %91 : vector<8x8xf32>
    %93 = arith.addf %92, %65 : vector<8x8xf32>
    %cst_48 = arith.constant dense<0xFF800000> : vector<8xf32>
    %94 = vector.multi_reduction <maximumf>, %93, %cst_48 [1] : vector<8x8xf32> to vector<8xf32>
    %cst_49 = arith.constant 0xFF800000 : f32
    %95 = vector.broadcast %cst_49 : f32 to vector<8xf32>
    %96 = arith.maximumf %95, %94 : vector<8xf32>
    %97 = vector.shape_cast %96 : vector<8xf32> to vector<8x1xf32>
    %98 = vector.broadcast %97 : vector<8x1xf32> to vector<8x8xf32>
    %99 = arith.subf %93, %98 : vector<8x8xf32>
    %100 = math.exp %99 : vector<8x8xf32>
    %cst_50 = arith.constant dense<0.000000e+00> : vector<8xf32>
    %101 = vector.multi_reduction <add>, %100, %cst_50 [1] : vector<8x8xf32> to vector<8xf32>
    %102 = vector.shape_cast %101 : vector<8xf32> to vector<8x1xf32>
    %103 = vector.broadcast %102 : vector<8x1xf32> to vector<8x8xf32>
    %104 = arith.divf %100, %103 : vector<8x8xf32>
    %cst_51 = arith.constant dense<0.000000e+00> : vector<8x16xf32>
    %105 = tpu.matmul %104, %88, %cst_51 {dimension_numbers = #tpu.dot_dimension_numbers<[1], [0], [0], [1], [0, 0, 1, 1], [], []>} : vector<8x8xf32>, vector<8x16xf32>, vector<8x16xf32> -> vector<8x16xf32>
    %c0_52 = arith.constant 0 : index
    %c2 = arith.constant 2 : index
    %c0_53 = arith.constant 0 : index
    %c0_54 = arith.constant 0 : index
    %106 = vector.load %arg9[%c0_52, %c2, %c0_53, %c0_54] : memref<2x4x8x8xf32, #tpu.memory_space<vmem>>, vector<1x1x8x8xf32>
    %107 = vector.shape_cast %106 : vector<1x1x8x8xf32> to vector<8x8xf32>
    %108 = vector.extract_strided_slice %7 {offsets = [0, 64], sizes = [8, 16], strides = [1, 1]} : vector<16x128xf32> to vector<8x16xf32>
    %109 = vector.extract_strided_slice %14 {offsets = [0, 64], sizes = [8, 16], strides = [1, 1]} : vector<16x128xf32> to vector<8x16xf32>
    %110 = vector.extract_strided_slice %21 {offsets = [0, 64], sizes = [8, 16], strides = [1, 1]} : vector<16x128xf32> to vector<8x16xf32>
    %111 = tpu.transpose %109, [1, 0] : vector<8x16xf32> -> vector<16x8xf32>
    %cst_55 = arith.constant dense<0.000000e+00> : vector<8x8xf32>
    %112 = tpu.matmul %108, %111, %cst_55 {dimension_numbers = #tpu.dot_dimension_numbers<[1], [0], [0], [1], [0, 0, 1, 1], [], []>} : vector<8x16xf32>, vector<16x8xf32>, vector<8x8xf32> -> vector<8x8xf32>
    %cst_56 = arith.constant 2.500000e-01 : f32
    %113 = vector.broadcast %cst_56 : f32 to vector<8x8xf32>
    %114 = arith.mulf %112, %113 : vector<8x8xf32>
    %115 = arith.addf %114, %107 : vector<8x8xf32>
    %cst_57 = arith.constant dense<0xFF800000> : vector<8xf32>
    %116 = vector.multi_reduction <maximumf>, %115, %cst_57 [1] : vector<8x8xf32> to vector<8xf32>
    %cst_58 = arith.constant 0xFF800000 : f32
    %117 = vector.broadcast %cst_58 : f32 to vector<8xf32>
    %118 = arith.maximumf %117, %116 : vector<8xf32>
    %119 = vector.shape_cast %118 : vector<8xf32> to vector<8x1xf32>
    %120 = vector.broadcast %119 : vector<8x1xf32> to vector<8x8xf32>
    %121 = arith.subf %115, %120 : vector<8x8xf32>
    %122 = math.exp %121 : vector<8x8xf32>
    %cst_59 = arith.constant dense<0.000000e+00> : vector<8xf32>
    %123 = vector.multi_reduction <add>, %122, %cst_59 [1] : vector<8x8xf32> to vector<8xf32>
    %124 = vector.shape_cast %123 : vector<8xf32> to vector<8x1xf32>
    %125 = vector.broadcast %124 : vector<8x1xf32> to vector<8x8xf32>
    %126 = arith.divf %122, %125 : vector<8x8xf32>
    %cst_60 = arith.constant dense<0.000000e+00> : vector<8x16xf32>
    %127 = tpu.matmul %126, %110, %cst_60 {dimension_numbers = #tpu.dot_dimension_numbers<[1], [0], [0], [1], [0, 0, 1, 1], [], []>} : vector<8x8xf32>, vector<8x16xf32>, vector<8x16xf32> -> vector<8x16xf32>
    %128 = vector.extract_strided_slice %7 {offsets = [0, 80], sizes = [8, 16], strides = [1, 1]} : vector<16x128xf32> to vector<8x16xf32>
    %129 = vector.extract_strided_slice %14 {offsets = [0, 80], sizes = [8, 16], strides = [1, 1]} : vector<16x128xf32> to vector<8x16xf32>
    %130 = vector.extract_strided_slice %21 {offsets = [0, 80], sizes = [8, 16], strides = [1, 1]} : vector<16x128xf32> to vector<8x16xf32>
    %131 = tpu.transpose %129, [1, 0] : vector<8x16xf32> -> vector<16x8xf32>
    %cst_61 = arith.constant dense<0.000000e+00> : vector<8x8xf32>
    %132 = tpu.matmul %128, %131, %cst_61 {dimension_numbers = #tpu.dot_dimension_numbers<[1], [0], [0], [1], [0, 0, 1, 1], [], []>} : vector<8x16xf32>, vector<16x8xf32>, vector<8x8xf32> -> vector<8x8xf32>
    %cst_62 = arith.constant 2.500000e-01 : f32
    %133 = vector.broadcast %cst_62 : f32 to vector<8x8xf32>
    %134 = arith.mulf %132, %133 : vector<8x8xf32>
    %135 = arith.addf %134, %107 : vector<8x8xf32>
    %cst_63 = arith.constant dense<0xFF800000> : vector<8xf32>
    %136 = vector.multi_reduction <maximumf>, %135, %cst_63 [1] : vector<8x8xf32> to vector<8xf32>
    %cst_64 = arith.constant 0xFF800000 : f32
    %137 = vector.broadcast %cst_64 : f32 to vector<8xf32>
    %138 = arith.maximumf %137, %136 : vector<8xf32>
    %139 = vector.shape_cast %138 : vector<8xf32> to vector<8x1xf32>
    %140 = vector.broadcast %139 : vector<8x1xf32> to vector<8x8xf32>
    %141 = arith.subf %135, %140 : vector<8x8xf32>
    %142 = math.exp %141 : vector<8x8xf32>
    %cst_65 = arith.constant dense<0.000000e+00> : vector<8xf32>
    %143 = vector.multi_reduction <add>, %142, %cst_65 [1] : vector<8x8xf32> to vector<8xf32>
    %144 = vector.shape_cast %143 : vector<8xf32> to vector<8x1xf32>
    %145 = vector.broadcast %144 : vector<8x1xf32> to vector<8x8xf32>
    %146 = arith.divf %142, %145 : vector<8x8xf32>
    %cst_66 = arith.constant dense<0.000000e+00> : vector<8x16xf32>
    %147 = tpu.matmul %146, %130, %cst_66 {dimension_numbers = #tpu.dot_dimension_numbers<[1], [0], [0], [1], [0, 0, 1, 1], [], []>} : vector<8x8xf32>, vector<8x16xf32>, vector<8x16xf32> -> vector<8x16xf32>
    %c0_67 = arith.constant 0 : index
    %c3 = arith.constant 3 : index
    %c0_68 = arith.constant 0 : index
    %c0_69 = arith.constant 0 : index
    %148 = vector.load %arg9[%c0_67, %c3, %c0_68, %c0_69] : memref<2x4x8x8xf32, #tpu.memory_space<vmem>>, vector<1x1x8x8xf32>
    %149 = vector.shape_cast %148 : vector<1x1x8x8xf32> to vector<8x8xf32>
    %150 = vector.extract_strided_slice %7 {offsets = [0, 96], sizes = [8, 16], strides = [1, 1]} : vector<16x128xf32> to vector<8x16xf32>
    %151 = vector.extract_strided_slice %14 {offsets = [0, 96], sizes = [8, 16], strides = [1, 1]} : vector<16x128xf32> to vector<8x16xf32>
    %152 = vector.extract_strided_slice %21 {offsets = [0, 96], sizes = [8, 16], strides = [1, 1]} : vector<16x128xf32> to vector<8x16xf32>
    %153 = tpu.transpose %151, [1, 0] : vector<8x16xf32> -> vector<16x8xf32>
    %cst_70 = arith.constant dense<0.000000e+00> : vector<8x8xf32>
    %154 = tpu.matmul %150, %153, %cst_70 {dimension_numbers = #tpu.dot_dimension_numbers<[1], [0], [0], [1], [0, 0, 1, 1], [], []>} : vector<8x16xf32>, vector<16x8xf32>, vector<8x8xf32> -> vector<8x8xf32>
    %cst_71 = arith.constant 2.500000e-01 : f32
    %155 = vector.broadcast %cst_71 : f32 to vector<8x8xf32>
    %156 = arith.mulf %154, %155 : vector<8x8xf32>
    %157 = arith.addf %156, %149 : vector<8x8xf32>
    %cst_72 = arith.constant dense<0xFF800000> : vector<8xf32>
    %158 = vector.multi_reduction <maximumf>, %157, %cst_72 [1] : vector<8x8xf32> to vector<8xf32>
    %cst_73 = arith.constant 0xFF800000 : f32
    %159 = vector.broadcast %cst_73 : f32 to vector<8xf32>
    %160 = arith.maximumf %159, %158 : vector<8xf32>
    %161 = vector.shape_cast %160 : vector<8xf32> to vector<8x1xf32>
    %162 = vector.broadcast %161 : vector<8x1xf32> to vector<8x8xf32>
    %163 = arith.subf %157, %162 : vector<8x8xf32>
    %164 = math.exp %163 : vector<8x8xf32>
    %cst_74 = arith.constant dense<0.000000e+00> : vector<8xf32>
    %165 = vector.multi_reduction <add>, %164, %cst_74 [1] : vector<8x8xf32> to vector<8xf32>
    %166 = vector.shape_cast %165 : vector<8xf32> to vector<8x1xf32>
    %167 = vector.broadcast %166 : vector<8x1xf32> to vector<8x8xf32>
    %168 = arith.divf %164, %167 : vector<8x8xf32>
    %cst_75 = arith.constant dense<0.000000e+00> : vector<8x16xf32>
    %169 = tpu.matmul %168, %152, %cst_75 {dimension_numbers = #tpu.dot_dimension_numbers<[1], [0], [0], [1], [0, 0, 1, 1], [], []>} : vector<8x8xf32>, vector<8x16xf32>, vector<8x16xf32> -> vector<8x16xf32>
    %170 = vector.extract_strided_slice %7 {offsets = [0, 112], sizes = [8, 16], strides = [1, 1]} : vector<16x128xf32> to vector<8x16xf32>
    %171 = vector.extract_strided_slice %14 {offsets = [0, 112], sizes = [8, 16], strides = [1, 1]} : vector<16x128xf32> to vector<8x16xf32>
    %172 = vector.extract_strided_slice %21 {offsets = [0, 112], sizes = [8, 16], strides = [1, 1]} : vector<16x128xf32> to vector<8x16xf32>
    %173 = tpu.transpose %171, [1, 0] : vector<8x16xf32> -> vector<16x8xf32>
    %cst_76 = arith.constant dense<0.000000e+00> : vector<8x8xf32>
    %174 = tpu.matmul %170, %173, %cst_76 {dimension_numbers = #tpu.dot_dimension_numbers<[1], [0], [0], [1], [0, 0, 1, 1], [], []>} : vector<8x16xf32>, vector<16x8xf32>, vector<8x8xf32> -> vector<8x8xf32>
    %cst_77 = arith.constant 2.500000e-01 : f32
    %175 = vector.broadcast %cst_77 : f32 to vector<8x8xf32>
    %176 = arith.mulf %174, %175 : vector<8x8xf32>
    %177 = arith.addf %176, %149 : vector<8x8xf32>
    %cst_78 = arith.constant dense<0xFF800000> : vector<8xf32>
    %178 = vector.multi_reduction <maximumf>, %177, %cst_78 [1] : vector<8x8xf32> to vector<8xf32>
    %cst_79 = arith.constant 0xFF800000 : f32
    %179 = vector.broadcast %cst_79 : f32 to vector<8xf32>
    %180 = arith.maximumf %179, %178 : vector<8xf32>
    %181 = vector.shape_cast %180 : vector<8xf32> to vector<8x1xf32>
    %182 = vector.broadcast %181 : vector<8x1xf32> to vector<8x8xf32>
    %183 = arith.subf %177, %182 : vector<8x8xf32>
    %184 = math.exp %183 : vector<8x8xf32>
    %cst_80 = arith.constant dense<0.000000e+00> : vector<8xf32>
    %185 = vector.multi_reduction <add>, %184, %cst_80 [1] : vector<8x8xf32> to vector<8xf32>
    %186 = vector.shape_cast %185 : vector<8xf32> to vector<8x1xf32>
    %187 = vector.broadcast %186 : vector<8x1xf32> to vector<8x8xf32>
    %188 = arith.divf %184, %187 : vector<8x8xf32>
    %cst_81 = arith.constant dense<0.000000e+00> : vector<8x16xf32>
    %189 = tpu.matmul %188, %172, %cst_81 {dimension_numbers = #tpu.dot_dimension_numbers<[1], [0], [0], [1], [0, 0, 1, 1], [], []>} : vector<8x8xf32>, vector<8x16xf32>, vector<8x16xf32> -> vector<8x16xf32>
    %190 = tpu.concatenate %43, %63, %85, %105, %127, %147, %169, %189 in 1 : vector<8x16xf32>, vector<8x16xf32>, vector<8x16xf32>, vector<8x16xf32>, vector<8x16xf32>, vector<8x16xf32>, vector<8x16xf32>, vector<8x16xf32> -> vector<8x128xf32>
    %c0_82 = arith.constant 0 : index
    %c0_83 = arith.constant 0 : index
    %c0_84 = arith.constant 0 : index
    %c0_85 = arith.constant 0 : index
    %191 = vector.load %arg9[%c0_82, %c0_83, %c0_84, %c0_85] : memref<2x4x8x8xf32, #tpu.memory_space<vmem>>, vector<1x1x8x8xf32>
    %192 = vector.shape_cast %191 : vector<1x1x8x8xf32> to vector<8x8xf32>
    %193 = vector.extract_strided_slice %7 {offsets = [8, 0], sizes = [8, 16], strides = [1, 1]} : vector<16x128xf32> to vector<8x16xf32>
    %194 = vector.extract_strided_slice %14 {offsets = [8, 0], sizes = [8, 16], strides = [1, 1]} : vector<16x128xf32> to vector<8x16xf32>
    %195 = vector.extract_strided_slice %21 {offsets = [8, 0], sizes = [8, 16], strides = [1, 1]} : vector<16x128xf32> to vector<8x16xf32>
    %196 = tpu.transpose %194, [1, 0] : vector<8x16xf32> -> vector<16x8xf32>
    %cst_86 = arith.constant dense<0.000000e+00> : vector<8x8xf32>
    %197 = tpu.matmul %193, %196, %cst_86 {dimension_numbers = #tpu.dot_dimension_numbers<[1], [0], [0], [1], [0, 0, 1, 1], [], []>} : vector<8x16xf32>, vector<16x8xf32>, vector<8x8xf32> -> vector<8x8xf32>
    %cst_87 = arith.constant 2.500000e-01 : f32
    %198 = vector.broadcast %cst_87 : f32 to vector<8x8xf32>
    %199 = arith.mulf %197, %198 : vector<8x8xf32>
    %200 = arith.addf %199, %192 : vector<8x8xf32>
    %cst_88 = arith.constant dense<0xFF800000> : vector<8xf32>
    %201 = vector.multi_reduction <maximumf>, %200, %cst_88 [1] : vector<8x8xf32> to vector<8xf32>
    %cst_89 = arith.constant 0xFF800000 : f32
    %202 = vector.broadcast %cst_89 : f32 to vector<8xf32>
    %203 = arith.maximumf %202, %201 : vector<8xf32>
    %204 = vector.shape_cast %203 : vector<8xf32> to vector<8x1xf32>
    %205 = vector.broadcast %204 : vector<8x1xf32> to vector<8x8xf32>
    %206 = arith.subf %200, %205 : vector<8x8xf32>
    %207 = math.exp %206 : vector<8x8xf32>
    %cst_90 = arith.constant dense<0.000000e+00> : vector<8xf32>
    %208 = vector.multi_reduction <add>, %207, %cst_90 [1] : vector<8x8xf32> to vector<8xf32>
    %209 = vector.shape_cast %208 : vector<8xf32> to vector<8x1xf32>
    %210 = vector.broadcast %209 : vector<8x1xf32> to vector<8x8xf32>
    %211 = arith.divf %207, %210 : vector<8x8xf32>
    %cst_91 = arith.constant dense<0.000000e+00> : vector<8x16xf32>
    %212 = tpu.matmul %211, %195, %cst_91 {dimension_numbers = #tpu.dot_dimension_numbers<[1], [0], [0], [1], [0, 0, 1, 1], [], []>} : vector<8x8xf32>, vector<8x16xf32>, vector<8x16xf32> -> vector<8x16xf32>
    %213 = vector.extract_strided_slice %7 {offsets = [8, 16], sizes = [8, 16], strides = [1, 1]} : vector<16x128xf32> to vector<8x16xf32>
    %214 = vector.extract_strided_slice %14 {offsets = [8, 16], sizes = [8, 16], strides = [1, 1]} : vector<16x128xf32> to vector<8x16xf32>
    %215 = vector.extract_strided_slice %21 {offsets = [8, 16], sizes = [8, 16], strides = [1, 1]} : vector<16x128xf32> to vector<8x16xf32>
    %216 = tpu.transpose %214, [1, 0] : vector<8x16xf32> -> vector<16x8xf32>
    %cst_92 = arith.constant dense<0.000000e+00> : vector<8x8xf32>
    %217 = tpu.matmul %213, %216, %cst_92 {dimension_numbers = #tpu.dot_dimension_numbers<[1], [0], [0], [1], [0, 0, 1, 1], [], []>} : vector<8x16xf32>, vector<16x8xf32>, vector<8x8xf32> -> vector<8x8xf32>
    %cst_93 = arith.constant 2.500000e-01 : f32
    %218 = vector.broadcast %cst_93 : f32 to vector<8x8xf32>
    %219 = arith.mulf %217, %218 : vector<8x8xf32>
    %220 = arith.addf %219, %192 : vector<8x8xf32>
    %cst_94 = arith.constant dense<0xFF800000> : vector<8xf32>
    %221 = vector.multi_reduction <maximumf>, %220, %cst_94 [1] : vector<8x8xf32> to vector<8xf32>
    %cst_95 = arith.constant 0xFF800000 : f32
    %222 = vector.broadcast %cst_95 : f32 to vector<8xf32>
    %223 = arith.maximumf %222, %221 : vector<8xf32>
    %224 = vector.shape_cast %223 : vector<8xf32> to vector<8x1xf32>
    %225 = vector.broadcast %224 : vector<8x1xf32> to vector<8x8xf32>
    %226 = arith.subf %220, %225 : vector<8x8xf32>
    %227 = math.exp %226 : vector<8x8xf32>
    %cst_96 = arith.constant dense<0.000000e+00> : vector<8xf32>
    %228 = vector.multi_reduction <add>, %227, %cst_96 [1] : vector<8x8xf32> to vector<8xf32>
    %229 = vector.shape_cast %228 : vector<8xf32> to vector<8x1xf32>
    %230 = vector.broadcast %229 : vector<8x1xf32> to vector<8x8xf32>
    %231 = arith.divf %227, %230 : vector<8x8xf32>
    %cst_97 = arith.constant dense<0.000000e+00> : vector<8x16xf32>
    %232 = tpu.matmul %231, %215, %cst_97 {dimension_numbers = #tpu.dot_dimension_numbers<[1], [0], [0], [1], [0, 0, 1, 1], [], []>} : vector<8x8xf32>, vector<8x16xf32>, vector<8x16xf32> -> vector<8x16xf32>
    %c0_98 = arith.constant 0 : index
    %c1_99 = arith.constant 1 : index
    %c0_100 = arith.constant 0 : index
    %c0_101 = arith.constant 0 : index
    %233 = vector.load %arg9[%c0_98, %c1_99, %c0_100, %c0_101] : memref<2x4x8x8xf32, #tpu.memory_space<vmem>>, vector<1x1x8x8xf32>
    %234 = vector.shape_cast %233 : vector<1x1x8x8xf32> to vector<8x8xf32>
    %235 = vector.extract_strided_slice %7 {offsets = [8, 32], sizes = [8, 16], strides = [1, 1]} : vector<16x128xf32> to vector<8x16xf32>
    %236 = vector.extract_strided_slice %14 {offsets = [8, 32], sizes = [8, 16], strides = [1, 1]} : vector<16x128xf32> to vector<8x16xf32>
    %237 = vector.extract_strided_slice %21 {offsets = [8, 32], sizes = [8, 16], strides = [1, 1]} : vector<16x128xf32> to vector<8x16xf32>
    %238 = tpu.transpose %236, [1, 0] : vector<8x16xf32> -> vector<16x8xf32>
    %cst_102 = arith.constant dense<0.000000e+00> : vector<8x8xf32>
    %239 = tpu.matmul %235, %238, %cst_102 {dimension_numbers = #tpu.dot_dimension_numbers<[1], [0], [0], [1], [0, 0, 1, 1], [], []>} : vector<8x16xf32>, vector<16x8xf32>, vector<8x8xf32> -> vector<8x8xf32>
    %cst_103 = arith.constant 2.500000e-01 : f32
    %240 = vector.broadcast %cst_103 : f32 to vector<8x8xf32>
    %241 = arith.mulf %239, %240 : vector<8x8xf32>
    %242 = arith.addf %241, %234 : vector<8x8xf32>
    %cst_104 = arith.constant dense<0xFF800000> : vector<8xf32>
    %243 = vector.multi_reduction <maximumf>, %242, %cst_104 [1] : vector<8x8xf32> to vector<8xf32>
    %cst_105 = arith.constant 0xFF800000 : f32
    %244 = vector.broadcast %cst_105 : f32 to vector<8xf32>
    %245 = arith.maximumf %244, %243 : vector<8xf32>
    %246 = vector.shape_cast %245 : vector<8xf32> to vector<8x1xf32>
    %247 = vector.broadcast %246 : vector<8x1xf32> to vector<8x8xf32>
    %248 = arith.subf %242, %247 : vector<8x8xf32>
    %249 = math.exp %248 : vector<8x8xf32>
    %cst_106 = arith.constant dense<0.000000e+00> : vector<8xf32>
    %250 = vector.multi_reduction <add>, %249, %cst_106 [1] : vector<8x8xf32> to vector<8xf32>
    %251 = vector.shape_cast %250 : vector<8xf32> to vector<8x1xf32>
    %252 = vector.broadcast %251 : vector<8x1xf32> to vector<8x8xf32>
    %253 = arith.divf %249, %252 : vector<8x8xf32>
    %cst_107 = arith.constant dense<0.000000e+00> : vector<8x16xf32>
    %254 = tpu.matmul %253, %237, %cst_107 {dimension_numbers = #tpu.dot_dimension_numbers<[1], [0], [0], [1], [0, 0, 1, 1], [], []>} : vector<8x8xf32>, vector<8x16xf32>, vector<8x16xf32> -> vector<8x16xf32>
    %255 = vector.extract_strided_slice %7 {offsets = [8, 48], sizes = [8, 16], strides = [1, 1]} : vector<16x128xf32> to vector<8x16xf32>
    %256 = vector.extract_strided_slice %14 {offsets = [8, 48], sizes = [8, 16], strides = [1, 1]} : vector<16x128xf32> to vector<8x16xf32>
    %257 = vector.extract_strided_slice %21 {offsets = [8, 48], sizes = [8, 16], strides = [1, 1]} : vector<16x128xf32> to vector<8x16xf32>
    %258 = tpu.transpose %256, [1, 0] : vector<8x16xf32> -> vector<16x8xf32>
    %cst_108 = arith.constant dense<0.000000e+00> : vector<8x8xf32>
    %259 = tpu.matmul %255, %258, %cst_108 {dimension_numbers = #tpu.dot_dimension_numbers<[1], [0], [0], [1], [0, 0, 1, 1], [], []>} : vector<8x16xf32>, vector<16x8xf32>, vector<8x8xf32> -> vector<8x8xf32>
    %cst_109 = arith.constant 2.500000e-01 : f32
    %260 = vector.broadcast %cst_109 : f32 to vector<8x8xf32>
    %261 = arith.mulf %259, %260 : vector<8x8xf32>
    %262 = arith.addf %261, %234 : vector<8x8xf32>
    %cst_110 = arith.constant dense<0xFF800000> : vector<8xf32>
    %263 = vector.multi_reduction <maximumf>, %262, %cst_110 [1] : vector<8x8xf32> to vector<8xf32>
    %cst_111 = arith.constant 0xFF800000 : f32
    %264 = vector.broadcast %cst_111 : f32 to vector<8xf32>
    %265 = arith.maximumf %264, %263 : vector<8xf32>
    %266 = vector.shape_cast %265 : vector<8xf32> to vector<8x1xf32>
    %267 = vector.broadcast %266 : vector<8x1xf32> to vector<8x8xf32>
    %268 = arith.subf %262, %267 : vector<8x8xf32>
    %269 = math.exp %268 : vector<8x8xf32>
    %cst_112 = arith.constant dense<0.000000e+00> : vector<8xf32>
    %270 = vector.multi_reduction <add>, %269, %cst_112 [1] : vector<8x8xf32> to vector<8xf32>
    %271 = vector.shape_cast %270 : vector<8xf32> to vector<8x1xf32>
    %272 = vector.broadcast %271 : vector<8x1xf32> to vector<8x8xf32>
    %273 = arith.divf %269, %272 : vector<8x8xf32>
    %cst_113 = arith.constant dense<0.000000e+00> : vector<8x16xf32>
    %274 = tpu.matmul %273, %257, %cst_113 {dimension_numbers = #tpu.dot_dimension_numbers<[1], [0], [0], [1], [0, 0, 1, 1], [], []>} : vector<8x8xf32>, vector<8x16xf32>, vector<8x16xf32> -> vector<8x16xf32>
    %c0_114 = arith.constant 0 : index
    %c2_115 = arith.constant 2 : index
    %c0_116 = arith.constant 0 : index
    %c0_117 = arith.constant 0 : index
    %275 = vector.load %arg9[%c0_114, %c2_115, %c0_116, %c0_117] : memref<2x4x8x8xf32, #tpu.memory_space<vmem>>, vector<1x1x8x8xf32>
    %276 = vector.shape_cast %275 : vector<1x1x8x8xf32> to vector<8x8xf32>
    %277 = vector.extract_strided_slice %7 {offsets = [8, 64], sizes = [8, 16], strides = [1, 1]} : vector<16x128xf32> to vector<8x16xf32>
    %278 = vector.extract_strided_slice %14 {offsets = [8, 64], sizes = [8, 16], strides = [1, 1]} : vector<16x128xf32> to vector<8x16xf32>
    %279 = vector.extract_strided_slice %21 {offsets = [8, 64], sizes = [8, 16], strides = [1, 1]} : vector<16x128xf32> to vector<8x16xf32>
    %280 = tpu.transpose %278, [1, 0] : vector<8x16xf32> -> vector<16x8xf32>
    %cst_118 = arith.constant dense<0.000000e+00> : vector<8x8xf32>
    %281 = tpu.matmul %277, %280, %cst_118 {dimension_numbers = #tpu.dot_dimension_numbers<[1], [0], [0], [1], [0, 0, 1, 1], [], []>} : vector<8x16xf32>, vector<16x8xf32>, vector<8x8xf32> -> vector<8x8xf32>
    %cst_119 = arith.constant 2.500000e-01 : f32
    %282 = vector.broadcast %cst_119 : f32 to vector<8x8xf32>
    %283 = arith.mulf %281, %282 : vector<8x8xf32>
    %284 = arith.addf %283, %276 : vector<8x8xf32>
    %cst_120 = arith.constant dense<0xFF800000> : vector<8xf32>
    %285 = vector.multi_reduction <maximumf>, %284, %cst_120 [1] : vector<8x8xf32> to vector<8xf32>
    %cst_121 = arith.constant 0xFF800000 : f32
    %286 = vector.broadcast %cst_121 : f32 to vector<8xf32>
    %287 = arith.maximumf %286, %285 : vector<8xf32>
    %288 = vector.shape_cast %287 : vector<8xf32> to vector<8x1xf32>
    %289 = vector.broadcast %288 : vector<8x1xf32> to vector<8x8xf32>
    %290 = arith.subf %284, %289 : vector<8x8xf32>
    %291 = math.exp %290 : vector<8x8xf32>
    %cst_122 = arith.constant dense<0.000000e+00> : vector<8xf32>
    %292 = vector.multi_reduction <add>, %291, %cst_122 [1] : vector<8x8xf32> to vector<8xf32>
    %293 = vector.shape_cast %292 : vector<8xf32> to vector<8x1xf32>
    %294 = vector.broadcast %293 : vector<8x1xf32> to vector<8x8xf32>
    %295 = arith.divf %291, %294 : vector<8x8xf32>
    %cst_123 = arith.constant dense<0.000000e+00> : vector<8x16xf32>
    %296 = tpu.matmul %295, %279, %cst_123 {dimension_numbers = #tpu.dot_dimension_numbers<[1], [0], [0], [1], [0, 0, 1, 1], [], []>} : vector<8x8xf32>, vector<8x16xf32>, vector<8x16xf32> -> vector<8x16xf32>
    %297 = vector.extract_strided_slice %7 {offsets = [8, 80], sizes = [8, 16], strides = [1, 1]} : vector<16x128xf32> to vector<8x16xf32>
    %298 = vector.extract_strided_slice %14 {offsets = [8, 80], sizes = [8, 16], strides = [1, 1]} : vector<16x128xf32> to vector<8x16xf32>
    %299 = vector.extract_strided_slice %21 {offsets = [8, 80], sizes = [8, 16], strides = [1, 1]} : vector<16x128xf32> to vector<8x16xf32>
    %300 = tpu.transpose %298, [1, 0] : vector<8x16xf32> -> vector<16x8xf32>
    %cst_124 = arith.constant dense<0.000000e+00> : vector<8x8xf32>
    %301 = tpu.matmul %297, %300, %cst_124 {dimension_numbers = #tpu.dot_dimension_numbers<[1], [0], [0], [1], [0, 0, 1, 1], [], []>} : vector<8x16xf32>, vector<16x8xf32>, vector<8x8xf32> -> vector<8x8xf32>
    %cst_125 = arith.constant 2.500000e-01 : f32
    %302 = vector.broadcast %cst_125 : f32 to vector<8x8xf32>
    %303 = arith.mulf %301, %302 : vector<8x8xf32>
    %304 = arith.addf %303, %276 : vector<8x8xf32>
    %cst_126 = arith.constant dense<0xFF800000> : vector<8xf32>
    %305 = vector.multi_reduction <maximumf>, %304, %cst_126 [1] : vector<8x8xf32> to vector<8xf32>
    %cst_127 = arith.constant 0xFF800000 : f32
    %306 = vector.broadcast %cst_127 : f32 to vector<8xf32>
    %307 = arith.maximumf %306, %305 : vector<8xf32>
    %308 = vector.shape_cast %307 : vector<8xf32> to vector<8x1xf32>
    %309 = vector.broadcast %308 : vector<8x1xf32> to vector<8x8xf32>
    %310 = arith.subf %304, %309 : vector<8x8xf32>
    %311 = math.exp %310 : vector<8x8xf32>
    %cst_128 = arith.constant dense<0.000000e+00> : vector<8xf32>
    %312 = vector.multi_reduction <add>, %311, %cst_128 [1] : vector<8x8xf32> to vector<8xf32>
    %313 = vector.shape_cast %312 : vector<8xf32> to vector<8x1xf32>
    %314 = vector.broadcast %313 : vector<8x1xf32> to vector<8x8xf32>
    %315 = arith.divf %311, %314 : vector<8x8xf32>
    %cst_129 = arith.constant dense<0.000000e+00> : vector<8x16xf32>
    %316 = tpu.matmul %315, %299, %cst_129 {dimension_numbers = #tpu.dot_dimension_numbers<[1], [0], [0], [1], [0, 0, 1, 1], [], []>} : vector<8x8xf32>, vector<8x16xf32>, vector<8x16xf32> -> vector<8x16xf32>
    %c0_130 = arith.constant 0 : index
    %c3_131 = arith.constant 3 : index
    %c0_132 = arith.constant 0 : index
    %c0_133 = arith.constant 0 : index
    %317 = vector.load %arg9[%c0_130, %c3_131, %c0_132, %c0_133] : memref<2x4x8x8xf32, #tpu.memory_space<vmem>>, vector<1x1x8x8xf32>
    %318 = vector.shape_cast %317 : vector<1x1x8x8xf32> to vector<8x8xf32>
    %319 = vector.extract_strided_slice %7 {offsets = [8, 96], sizes = [8, 16], strides = [1, 1]} : vector<16x128xf32> to vector<8x16xf32>
    %320 = vector.extract_strided_slice %14 {offsets = [8, 96], sizes = [8, 16], strides = [1, 1]} : vector<16x128xf32> to vector<8x16xf32>
    %321 = vector.extract_strided_slice %21 {offsets = [8, 96], sizes = [8, 16], strides = [1, 1]} : vector<16x128xf32> to vector<8x16xf32>
    %322 = tpu.transpose %320, [1, 0] : vector<8x16xf32> -> vector<16x8xf32>
    %cst_134 = arith.constant dense<0.000000e+00> : vector<8x8xf32>
    %323 = tpu.matmul %319, %322, %cst_134 {dimension_numbers = #tpu.dot_dimension_numbers<[1], [0], [0], [1], [0, 0, 1, 1], [], []>} : vector<8x16xf32>, vector<16x8xf32>, vector<8x8xf32> -> vector<8x8xf32>
    %cst_135 = arith.constant 2.500000e-01 : f32
    %324 = vector.broadcast %cst_135 : f32 to vector<8x8xf32>
    %325 = arith.mulf %323, %324 : vector<8x8xf32>
    %326 = arith.addf %325, %318 : vector<8x8xf32>
    %cst_136 = arith.constant dense<0xFF800000> : vector<8xf32>
    %327 = vector.multi_reduction <maximumf>, %326, %cst_136 [1] : vector<8x8xf32> to vector<8xf32>
    %cst_137 = arith.constant 0xFF800000 : f32
    %328 = vector.broadcast %cst_137 : f32 to vector<8xf32>
    %329 = arith.maximumf %328, %327 : vector<8xf32>
    %330 = vector.shape_cast %329 : vector<8xf32> to vector<8x1xf32>
    %331 = vector.broadcast %330 : vector<8x1xf32> to vector<8x8xf32>
    %332 = arith.subf %326, %331 : vector<8x8xf32>
    %333 = math.exp %332 : vector<8x8xf32>
    %cst_138 = arith.constant dense<0.000000e+00> : vector<8xf32>
    %334 = vector.multi_reduction <add>, %333, %cst_138 [1] : vector<8x8xf32> to vector<8xf32>
    %335 = vector.shape_cast %334 : vector<8xf32> to vector<8x1xf32>
    %336 = vector.broadcast %335 : vector<8x1xf32> to vector<8x8xf32>
    %337 = arith.divf %333, %336 : vector<8x8xf32>
    %cst_139 = arith.constant dense<0.000000e+00> : vector<8x16xf32>
    %338 = tpu.matmul %337, %321, %cst_139 {dimension_numbers = #tpu.dot_dimension_numbers<[1], [0], [0], [1], [0, 0, 1, 1], [], []>} : vector<8x8xf32>, vector<8x16xf32>, vector<8x16xf32> -> vector<8x16xf32>
    %339 = vector.extract_strided_slice %7 {offsets = [8, 112], sizes = [8, 16], strides = [1, 1]} : vector<16x128xf32> to vector<8x16xf32>
    %340 = vector.extract_strided_slice %14 {offsets = [8, 112], sizes = [8, 16], strides = [1, 1]} : vector<16x128xf32> to vector<8x16xf32>
    %341 = vector.extract_strided_slice %21 {offsets = [8, 112], sizes = [8, 16], strides = [1, 1]} : vector<16x128xf32> to vector<8x16xf32>
    %342 = tpu.transpose %340, [1, 0] : vector<8x16xf32> -> vector<16x8xf32>
    %cst_140 = arith.constant dense<0.000000e+00> : vector<8x8xf32>
    %343 = tpu.matmul %339, %342, %cst_140 {dimension_numbers = #tpu.dot_dimension_numbers<[1], [0], [0], [1], [0, 0, 1, 1], [], []>} : vector<8x16xf32>, vector<16x8xf32>, vector<8x8xf32> -> vector<8x8xf32>
    %cst_141 = arith.constant 2.500000e-01 : f32
    %344 = vector.broadcast %cst_141 : f32 to vector<8x8xf32>
    %345 = arith.mulf %343, %344 : vector<8x8xf32>
    %346 = arith.addf %345, %318 : vector<8x8xf32>
    %cst_142 = arith.constant dense<0xFF800000> : vector<8xf32>
    %347 = vector.multi_reduction <maximumf>, %346, %cst_142 [1] : vector<8x8xf32> to vector<8xf32>
    %cst_143 = arith.constant 0xFF800000 : f32
    %348 = vector.broadcast %cst_143 : f32 to vector<8xf32>
    %349 = arith.maximumf %348, %347 : vector<8xf32>
    %350 = vector.shape_cast %349 : vector<8xf32> to vector<8x1xf32>
    %351 = vector.broadcast %350 : vector<8x1xf32> to vector<8x8xf32>
    %352 = arith.subf %346, %351 : vector<8x8xf32>
    %353 = math.exp %352 : vector<8x8xf32>
    %cst_144 = arith.constant dense<0.000000e+00> : vector<8xf32>
    %354 = vector.multi_reduction <add>, %353, %cst_144 [1] : vector<8x8xf32> to vector<8xf32>
    %355 = vector.shape_cast %354 : vector<8xf32> to vector<8x1xf32>
    %356 = vector.broadcast %355 : vector<8x1xf32> to vector<8x8xf32>
    %357 = arith.divf %353, %356 : vector<8x8xf32>
    %cst_145 = arith.constant dense<0.000000e+00> : vector<8x16xf32>
    %358 = tpu.matmul %357, %341, %cst_145 {dimension_numbers = #tpu.dot_dimension_numbers<[1], [0], [0], [1], [0, 0, 1, 1], [], []>} : vector<8x8xf32>, vector<8x16xf32>, vector<8x16xf32> -> vector<8x16xf32>
    %359 = tpu.concatenate %212, %232, %254, %274, %296, %316, %338, %358 in 1 : vector<8x16xf32>, vector<8x16xf32>, vector<8x16xf32>, vector<8x16xf32>, vector<8x16xf32>, vector<8x16xf32>, vector<8x16xf32>, vector<8x16xf32> -> vector<8x128xf32>
    %360 = tpu.concatenate %190, %359 in 0 : vector<8x128xf32>, vector<8x128xf32> -> vector<16x128xf32>
    %c0_146 = arith.constant 0 : index
    %c0_147 = arith.constant 0 : index
    %c0_148 = arith.constant 0 : index
    %361 = vector.load %arg7[%c0_146, %c0_147, %c0_148] : memref<2x128x32xf32, #tpu.memory_space<vmem>>, vector<1x128x32xf32>
    %362 = vector.shape_cast %361 : vector<1x128x32xf32> to vector<128x32xf32>
    %cst_149 = arith.constant dense<0.000000e+00> : vector<16x32xf32>
    %363 = tpu.matmul %360, %362, %cst_149 {dimension_numbers = #tpu.dot_dimension_numbers<[1], [0], [0], [1], [0, 0, 1, 1], [], []>} : vector<16x128xf32>, vector<128x32xf32>, vector<16x32xf32> -> vector<16x32xf32>
    %c0_150 = arith.constant 0 : index
    %c0_151 = arith.constant 0 : index
    %c0_152 = arith.constant 0 : index
    %364 = vector.load %arg8[%c0_150, %c0_151, %c0_152] : memref<2x1x32xf32, #tpu.memory_space<vmem>>, vector<1x1x32xf32>
    %365 = vector.shape_cast %364 : vector<1x1x32xf32> to vector<1x32xf32>
    %366 = vector.broadcast %365 : vector<1x32xf32> to vector<16x32xf32>
    %367 = arith.addf %363, %366 : vector<16x32xf32>
    %cst_153 = arith.constant 2.500000e-01 : f32
    %368 = vector.broadcast %cst_153 : f32 to vector<16x32xf32>
    %369 = arith.mulf %367, %368 : vector<16x32xf32>
    %370 = arith.addf %0, %369 : vector<16x32xf32>
    %c0_154 = arith.constant 0 : index
    %c0_155 = arith.constant 0 : index
    %c0_156 = arith.constant 0 : index
    %371 = vector.load %arg10[%c0_154, %c0_155, %c0_156] : memref<2x1x32xf32, #tpu.memory_space<vmem>>, vector<1x1x32xf32>
    %372 = vector.shape_cast %371 : vector<1x1x32xf32> to vector<1x32xf32>
    %c0_157 = arith.constant 0 : index
    %c0_158 = arith.constant 0 : index
    %c0_159 = arith.constant 0 : index
    %373 = vector.load %arg11[%c0_157, %c0_158, %c0_159] : memref<2x1x32xf32, #tpu.memory_space<vmem>>, vector<1x1x32xf32>
    %374 = vector.shape_cast %373 : vector<1x1x32xf32> to vector<1x32xf32>
    %cst_160 = arith.constant dense<0.000000e+00> : vector<16xf32>
    %375 = vector.multi_reduction <add>, %370, %cst_160 [1] : vector<16x32xf32> to vector<16xf32>
    %376 = vector.shape_cast %375 : vector<16xf32> to vector<16x1xf32>
    %cst_161 = arith.constant 3.200000e+01 : f32
    %377 = vector.broadcast %cst_161 : f32 to vector<16x1xf32>
    %378 = arith.divf %376, %377 : vector<16x1xf32>
    %379 = vector.broadcast %378 : vector<16x1xf32> to vector<16x32xf32>
    %380 = arith.subf %370, %379 : vector<16x32xf32>
    %381 = arith.mulf %380, %380 : vector<16x32xf32>
    %cst_162 = arith.constant dense<0.000000e+00> : vector<16xf32>
    %382 = vector.multi_reduction <add>, %381, %cst_162 [1] : vector<16x32xf32> to vector<16xf32>
    %383 = vector.shape_cast %382 : vector<16xf32> to vector<16x1xf32>
    %cst_163 = arith.constant 3.200000e+01 : f32
    %384 = vector.broadcast %cst_163 : f32 to vector<16x1xf32>
    %385 = arith.divf %383, %384 : vector<16x1xf32>
    %386 = vector.broadcast %378 : vector<16x1xf32> to vector<16x32xf32>
    %387 = arith.subf %370, %386 : vector<16x32xf32>
    %cst_164 = arith.constant 9.99999974E-6 : f32
    %388 = vector.broadcast %cst_164 : f32 to vector<16x1xf32>
    %389 = arith.addf %385, %388 : vector<16x1xf32>
    %390 = math.rsqrt %389 : vector<16x1xf32>
    %391 = vector.broadcast %390 : vector<16x1xf32> to vector<16x32xf32>
    %392 = arith.mulf %387, %391 : vector<16x32xf32>
    %393 = vector.broadcast %372 : vector<1x32xf32> to vector<16x32xf32>
    %394 = arith.mulf %392, %393 : vector<16x32xf32>
    %395 = vector.broadcast %374 : vector<1x32xf32> to vector<16x32xf32>
    %396 = arith.addf %394, %395 : vector<16x32xf32>
    %c0_165 = arith.constant 0 : index
    %c0_166 = arith.constant 0 : index
    %c0_167 = arith.constant 0 : index
    %397 = vector.load %arg12[%c0_165, %c0_166, %c0_167] : memref<2x32x512xf32, #tpu.memory_space<vmem>>, vector<1x32x512xf32>
    %398 = vector.shape_cast %397 : vector<1x32x512xf32> to vector<32x512xf32>
    %cst_168 = arith.constant dense<0.000000e+00> : vector<16x512xf32>
    %399 = tpu.matmul %396, %398, %cst_168 {dimension_numbers = #tpu.dot_dimension_numbers<[1], [0], [0], [1], [0, 0, 1, 1], [], []>} : vector<16x32xf32>, vector<32x512xf32>, vector<16x512xf32> -> vector<16x512xf32>
    %c0_169 = arith.constant 0 : index
    %c0_170 = arith.constant 0 : index
    %c0_171 = arith.constant 0 : index
    %400 = vector.load %arg13[%c0_169, %c0_170, %c0_171] : memref<2x1x512xf32, #tpu.memory_space<vmem>>, vector<1x1x512xf32>
    %401 = vector.shape_cast %400 : vector<1x1x512xf32> to vector<1x512xf32>
    %402 = vector.broadcast %401 : vector<1x512xf32> to vector<16x512xf32>
    %403 = arith.addf %399, %402 : vector<16x512xf32>
    %cst_172 = arith.constant 5.000000e-01 : f32
    %404 = vector.broadcast %cst_172 : f32 to vector<16x512xf32>
    %405 = arith.mulf %404, %403 : vector<16x512xf32>
    %cst_173 = arith.constant 0.707106769 : f32
    %406 = vector.broadcast %cst_173 : f32 to vector<16x512xf32>
    %407 = arith.mulf %403, %406 : vector<16x512xf32>
    %408 = math.erf %407 : vector<16x512xf32>
    %cst_174 = arith.constant 1.000000e+00 : f32
    %409 = vector.broadcast %cst_174 : f32 to vector<16x512xf32>
    %410 = arith.addf %409, %408 : vector<16x512xf32>
    %411 = arith.mulf %405, %410 : vector<16x512xf32>
    %c0_175 = arith.constant 0 : index
    %c0_176 = arith.constant 0 : index
    %c0_177 = arith.constant 0 : index
    %412 = vector.load %arg16[%c0_175, %c0_176, %c0_177] : memref<2x32x128xf32, #tpu.memory_space<vmem>>, vector<1x32x128xf32>
    %413 = vector.shape_cast %412 : vector<1x32x128xf32> to vector<32x128xf32>
    %cst_178 = arith.constant dense<0.000000e+00> : vector<16x128xf32>
    %414 = tpu.matmul %396, %413, %cst_178 {dimension_numbers = #tpu.dot_dimension_numbers<[1], [0], [0], [1], [0, 0, 1, 1], [], []>} : vector<16x32xf32>, vector<32x128xf32>, vector<16x128xf32> -> vector<16x128xf32>
    %c0_179 = arith.constant 0 : index
    %c0_180 = arith.constant 0 : index
    %c0_181 = arith.constant 0 : index
    %415 = vector.load %arg17[%c0_179, %c0_180, %c0_181] : memref<2x1x128xf32, #tpu.memory_space<vmem>>, vector<1x1x128xf32>
    %416 = vector.shape_cast %415 : vector<1x1x128xf32> to vector<1x128xf32>
    %417 = vector.broadcast %416 : vector<1x128xf32> to vector<16x128xf32>
    %418 = arith.addf %414, %417 : vector<16x128xf32>
    %419 = arith.negf %418 : vector<16x128xf32>
    %420 = math.exp %419 : vector<16x128xf32>
    %cst_182 = arith.constant 1.000000e+00 : f32
    %421 = vector.broadcast %cst_182 : f32 to vector<16x128xf32>
    %422 = arith.addf %421, %420 : vector<16x128xf32>
    %423 = arith.divf %421, %422 : vector<16x128xf32>
    %cst_183 = arith.constant 0.000000e+00 : f32
    %424 = vector.broadcast %cst_183 : f32 to vector<16x32xf32>
    %425 = vector.extract_strided_slice %411 {offsets = [0, 0], sizes = [16, 128], strides = [1, 1]} : vector<16x512xf32> to vector<16x128xf32>
    %c0_184 = arith.constant 0 : index
    %c0_185 = arith.constant 0 : index
    %c0_186 = arith.constant 0 : index
    %c0_187 = arith.constant 0 : index
    %426 = vector.load %arg14[%c0_184, %c0_185, %c0_186, %c0_187] : memref<2x4x128x32xf32, #tpu.memory_space<vmem>>, vector<1x1x128x32xf32>
    %427 = vector.shape_cast %426 : vector<1x1x128x32xf32> to vector<128x32xf32>
    %cst_188 = arith.constant dense<0.000000e+00> : vector<16x32xf32>
    %428 = tpu.matmul %425, %427, %cst_188 {dimension_numbers = #tpu.dot_dimension_numbers<[1], [0], [0], [1], [0, 0, 1, 1], [], []>} : vector<16x128xf32>, vector<128x32xf32>, vector<16x32xf32> -> vector<16x32xf32>
    %c0_189 = arith.constant 0 : index
    %c0_190 = arith.constant 0 : index
    %c0_191 = arith.constant 0 : index
    %c0_192 = arith.constant 0 : index
    %429 = vector.load %arg15[%c0_189, %c0_190, %c0_191, %c0_192] : memref<2x4x1x32xf32, #tpu.memory_space<vmem>>, vector<1x1x1x32xf32>
    %430 = vector.shape_cast %429 : vector<1x1x1x32xf32> to vector<1x32xf32>
    %431 = vector.broadcast %430 : vector<1x32xf32> to vector<16x32xf32>
    %432 = arith.addf %428, %431 : vector<16x32xf32>
    %433 = vector.extract_strided_slice %423 {offsets = [0, 0], sizes = [16, 32], strides = [1, 1]} : vector<16x128xf32> to vector<16x32xf32>
    %434 = arith.mulf %432, %433 : vector<16x32xf32>
    %c0_193 = arith.constant 0 : index
    %c0_194 = arith.constant 0 : index
    %c0_195 = arith.constant 0 : index
    %c0_196 = arith.constant 0 : index
    %435 = vector.load %arg18[%c0_193, %c0_194, %c0_195, %c0_196] : memref<2x4x1x32xf32, #tpu.memory_space<vmem>>, vector<1x1x1x32xf32>
    %436 = vector.shape_cast %435 : vector<1x1x1x32xf32> to vector<1x32xf32>
    %c0_197 = arith.constant 0 : index
    %c0_198 = arith.constant 0 : index
    %c0_199 = arith.constant 0 : index
    %c0_200 = arith.constant 0 : index
    %437 = vector.load %arg19[%c0_197, %c0_198, %c0_199, %c0_200] : memref<2x4x1x32xf32, #tpu.memory_space<vmem>>, vector<1x1x1x32xf32>
    %438 = vector.shape_cast %437 : vector<1x1x1x32xf32> to vector<1x32xf32>
    %cst_201 = arith.constant dense<0.000000e+00> : vector<16xf32>
    %439 = vector.multi_reduction <add>, %434, %cst_201 [1] : vector<16x32xf32> to vector<16xf32>
    %440 = vector.shape_cast %439 : vector<16xf32> to vector<16x1xf32>
    %cst_202 = arith.constant 3.200000e+01 : f32
    %441 = vector.broadcast %cst_202 : f32 to vector<16x1xf32>
    %442 = arith.divf %440, %441 : vector<16x1xf32>
    %443 = vector.broadcast %442 : vector<16x1xf32> to vector<16x32xf32>
    %444 = arith.subf %434, %443 : vector<16x32xf32>
    %445 = arith.mulf %444, %444 : vector<16x32xf32>
    %cst_203 = arith.constant dense<0.000000e+00> : vector<16xf32>
    %446 = vector.multi_reduction <add>, %445, %cst_203 [1] : vector<16x32xf32> to vector<16xf32>
    %447 = vector.shape_cast %446 : vector<16xf32> to vector<16x1xf32>
    %cst_204 = arith.constant 3.200000e+01 : f32
    %448 = vector.broadcast %cst_204 : f32 to vector<16x1xf32>
    %449 = arith.divf %447, %448 : vector<16x1xf32>
    %450 = vector.broadcast %442 : vector<16x1xf32> to vector<16x32xf32>
    %451 = arith.subf %434, %450 : vector<16x32xf32>
    %cst_205 = arith.constant 9.99999974E-6 : f32
    %452 = vector.broadcast %cst_205 : f32 to vector<16x1xf32>
    %453 = arith.addf %449, %452 : vector<16x1xf32>
    %454 = math.rsqrt %453 : vector<16x1xf32>
    %455 = vector.broadcast %454 : vector<16x1xf32> to vector<16x32xf32>
    %456 = arith.mulf %451, %455 : vector<16x32xf32>
    %457 = vector.broadcast %436 : vector<1x32xf32> to vector<16x32xf32>
    %458 = arith.mulf %456, %457 : vector<16x32xf32>
    %459 = vector.broadcast %438 : vector<1x32xf32> to vector<16x32xf32>
    %460 = arith.addf %458, %459 : vector<16x32xf32>
    %461 = arith.addf %424, %460 : vector<16x32xf32>
    %462 = vector.extract_strided_slice %411 {offsets = [0, 128], sizes = [16, 128], strides = [1, 1]} : vector<16x512xf32> to vector<16x128xf32>
    %c0_206 = arith.constant 0 : index
    %c1_207 = arith.constant 1 : index
    %c0_208 = arith.constant 0 : index
    %c0_209 = arith.constant 0 : index
    %463 = vector.load %arg14[%c0_206, %c1_207, %c0_208, %c0_209] : memref<2x4x128x32xf32, #tpu.memory_space<vmem>>, vector<1x1x128x32xf32>
    %464 = vector.shape_cast %463 : vector<1x1x128x32xf32> to vector<128x32xf32>
    %cst_210 = arith.constant dense<0.000000e+00> : vector<16x32xf32>
    %465 = tpu.matmul %462, %464, %cst_210 {dimension_numbers = #tpu.dot_dimension_numbers<[1], [0], [0], [1], [0, 0, 1, 1], [], []>} : vector<16x128xf32>, vector<128x32xf32>, vector<16x32xf32> -> vector<16x32xf32>
    %c0_211 = arith.constant 0 : index
    %c1_212 = arith.constant 1 : index
    %c0_213 = arith.constant 0 : index
    %c0_214 = arith.constant 0 : index
    %466 = vector.load %arg15[%c0_211, %c1_212, %c0_213, %c0_214] : memref<2x4x1x32xf32, #tpu.memory_space<vmem>>, vector<1x1x1x32xf32>
    %467 = vector.shape_cast %466 : vector<1x1x1x32xf32> to vector<1x32xf32>
    %468 = vector.broadcast %467 : vector<1x32xf32> to vector<16x32xf32>
    %469 = arith.addf %465, %468 : vector<16x32xf32>
    %470 = vector.extract_strided_slice %423 {offsets = [0, 32], sizes = [16, 32], strides = [1, 1]} : vector<16x128xf32> to vector<16x32xf32>
    %471 = arith.mulf %469, %470 : vector<16x32xf32>
    %c0_215 = arith.constant 0 : index
    %c1_216 = arith.constant 1 : index
    %c0_217 = arith.constant 0 : index
    %c0_218 = arith.constant 0 : index
    %472 = vector.load %arg18[%c0_215, %c1_216, %c0_217, %c0_218] : memref<2x4x1x32xf32, #tpu.memory_space<vmem>>, vector<1x1x1x32xf32>
    %473 = vector.shape_cast %472 : vector<1x1x1x32xf32> to vector<1x32xf32>
    %c0_219 = arith.constant 0 : index
    %c1_220 = arith.constant 1 : index
    %c0_221 = arith.constant 0 : index
    %c0_222 = arith.constant 0 : index
    %474 = vector.load %arg19[%c0_219, %c1_220, %c0_221, %c0_222] : memref<2x4x1x32xf32, #tpu.memory_space<vmem>>, vector<1x1x1x32xf32>
    %475 = vector.shape_cast %474 : vector<1x1x1x32xf32> to vector<1x32xf32>
    %cst_223 = arith.constant dense<0.000000e+00> : vector<16xf32>
    %476 = vector.multi_reduction <add>, %471, %cst_223 [1] : vector<16x32xf32> to vector<16xf32>
    %477 = vector.shape_cast %476 : vector<16xf32> to vector<16x1xf32>
    %cst_224 = arith.constant 3.200000e+01 : f32
    %478 = vector.broadcast %cst_224 : f32 to vector<16x1xf32>
    %479 = arith.divf %477, %478 : vector<16x1xf32>
    %480 = vector.broadcast %479 : vector<16x1xf32> to vector<16x32xf32>
    %481 = arith.subf %471, %480 : vector<16x32xf32>
    %482 = arith.mulf %481, %481 : vector<16x32xf32>
    %cst_225 = arith.constant dense<0.000000e+00> : vector<16xf32>
    %483 = vector.multi_reduction <add>, %482, %cst_225 [1] : vector<16x32xf32> to vector<16xf32>
    %484 = vector.shape_cast %483 : vector<16xf32> to vector<16x1xf32>
    %cst_226 = arith.constant 3.200000e+01 : f32
    %485 = vector.broadcast %cst_226 : f32 to vector<16x1xf32>
    %486 = arith.divf %484, %485 : vector<16x1xf32>
    %487 = vector.broadcast %479 : vector<16x1xf32> to vector<16x32xf32>
    %488 = arith.subf %471, %487 : vector<16x32xf32>
    %cst_227 = arith.constant 9.99999974E-6 : f32
    %489 = vector.broadcast %cst_227 : f32 to vector<16x1xf32>
    %490 = arith.addf %486, %489 : vector<16x1xf32>
    %491 = math.rsqrt %490 : vector<16x1xf32>
    %492 = vector.broadcast %491 : vector<16x1xf32> to vector<16x32xf32>
    %493 = arith.mulf %488, %492 : vector<16x32xf32>
    %494 = vector.broadcast %473 : vector<1x32xf32> to vector<16x32xf32>
    %495 = arith.mulf %493, %494 : vector<16x32xf32>
    %496 = vector.broadcast %475 : vector<1x32xf32> to vector<16x32xf32>
    %497 = arith.addf %495, %496 : vector<16x32xf32>
    %498 = arith.addf %461, %497 : vector<16x32xf32>
    %499 = vector.extract_strided_slice %411 {offsets = [0, 256], sizes = [16, 128], strides = [1, 1]} : vector<16x512xf32> to vector<16x128xf32>
    %c0_228 = arith.constant 0 : index
    %c2_229 = arith.constant 2 : index
    %c0_230 = arith.constant 0 : index
    %c0_231 = arith.constant 0 : index
    %500 = vector.load %arg14[%c0_228, %c2_229, %c0_230, %c0_231] : memref<2x4x128x32xf32, #tpu.memory_space<vmem>>, vector<1x1x128x32xf32>
    %501 = vector.shape_cast %500 : vector<1x1x128x32xf32> to vector<128x32xf32>
    %cst_232 = arith.constant dense<0.000000e+00> : vector<16x32xf32>
    %502 = tpu.matmul %499, %501, %cst_232 {dimension_numbers = #tpu.dot_dimension_numbers<[1], [0], [0], [1], [0, 0, 1, 1], [], []>} : vector<16x128xf32>, vector<128x32xf32>, vector<16x32xf32> -> vector<16x32xf32>
    %c0_233 = arith.constant 0 : index
    %c2_234 = arith.constant 2 : index
    %c0_235 = arith.constant 0 : index
    %c0_236 = arith.constant 0 : index
    %503 = vector.load %arg15[%c0_233, %c2_234, %c0_235, %c0_236] : memref<2x4x1x32xf32, #tpu.memory_space<vmem>>, vector<1x1x1x32xf32>
    %504 = vector.shape_cast %503 : vector<1x1x1x32xf32> to vector<1x32xf32>
    %505 = vector.broadcast %504 : vector<1x32xf32> to vector<16x32xf32>
    %506 = arith.addf %502, %505 : vector<16x32xf32>
    %507 = vector.extract_strided_slice %423 {offsets = [0, 64], sizes = [16, 32], strides = [1, 1]} : vector<16x128xf32> to vector<16x32xf32>
    %508 = arith.mulf %506, %507 : vector<16x32xf32>
    %c0_237 = arith.constant 0 : index
    %c2_238 = arith.constant 2 : index
    %c0_239 = arith.constant 0 : index
    %c0_240 = arith.constant 0 : index
    %509 = vector.load %arg18[%c0_237, %c2_238, %c0_239, %c0_240] : memref<2x4x1x32xf32, #tpu.memory_space<vmem>>, vector<1x1x1x32xf32>
    %510 = vector.shape_cast %509 : vector<1x1x1x32xf32> to vector<1x32xf32>
    %c0_241 = arith.constant 0 : index
    %c2_242 = arith.constant 2 : index
    %c0_243 = arith.constant 0 : index
    %c0_244 = arith.constant 0 : index
    %511 = vector.load %arg19[%c0_241, %c2_242, %c0_243, %c0_244] : memref<2x4x1x32xf32, #tpu.memory_space<vmem>>, vector<1x1x1x32xf32>
    %512 = vector.shape_cast %511 : vector<1x1x1x32xf32> to vector<1x32xf32>
    %cst_245 = arith.constant dense<0.000000e+00> : vector<16xf32>
    %513 = vector.multi_reduction <add>, %508, %cst_245 [1] : vector<16x32xf32> to vector<16xf32>
    %514 = vector.shape_cast %513 : vector<16xf32> to vector<16x1xf32>
    %cst_246 = arith.constant 3.200000e+01 : f32
    %515 = vector.broadcast %cst_246 : f32 to vector<16x1xf32>
    %516 = arith.divf %514, %515 : vector<16x1xf32>
    %517 = vector.broadcast %516 : vector<16x1xf32> to vector<16x32xf32>
    %518 = arith.subf %508, %517 : vector<16x32xf32>
    %519 = arith.mulf %518, %518 : vector<16x32xf32>
    %cst_247 = arith.constant dense<0.000000e+00> : vector<16xf32>
    %520 = vector.multi_reduction <add>, %519, %cst_247 [1] : vector<16x32xf32> to vector<16xf32>
    %521 = vector.shape_cast %520 : vector<16xf32> to vector<16x1xf32>
    %cst_248 = arith.constant 3.200000e+01 : f32
    %522 = vector.broadcast %cst_248 : f32 to vector<16x1xf32>
    %523 = arith.divf %521, %522 : vector<16x1xf32>
    %524 = vector.broadcast %516 : vector<16x1xf32> to vector<16x32xf32>
    %525 = arith.subf %508, %524 : vector<16x32xf32>
    %cst_249 = arith.constant 9.99999974E-6 : f32
    %526 = vector.broadcast %cst_249 : f32 to vector<16x1xf32>
    %527 = arith.addf %523, %526 : vector<16x1xf32>
    %528 = math.rsqrt %527 : vector<16x1xf32>
    %529 = vector.broadcast %528 : vector<16x1xf32> to vector<16x32xf32>
    %530 = arith.mulf %525, %529 : vector<16x32xf32>
    %531 = vector.broadcast %510 : vector<1x32xf32> to vector<16x32xf32>
    %532 = arith.mulf %530, %531 : vector<16x32xf32>
    %533 = vector.broadcast %512 : vector<1x32xf32> to vector<16x32xf32>
    %534 = arith.addf %532, %533 : vector<16x32xf32>
    %535 = arith.addf %498, %534 : vector<16x32xf32>
    %536 = vector.extract_strided_slice %411 {offsets = [0, 384], sizes = [16, 128], strides = [1, 1]} : vector<16x512xf32> to vector<16x128xf32>
    %c0_250 = arith.constant 0 : index
    %c3_251 = arith.constant 3 : index
    %c0_252 = arith.constant 0 : index
    %c0_253 = arith.constant 0 : index
    %537 = vector.load %arg14[%c0_250, %c3_251, %c0_252, %c0_253] : memref<2x4x128x32xf32, #tpu.memory_space<vmem>>, vector<1x1x128x32xf32>
    %538 = vector.shape_cast %537 : vector<1x1x128x32xf32> to vector<128x32xf32>
    %cst_254 = arith.constant dense<0.000000e+00> : vector<16x32xf32>
    %539 = tpu.matmul %536, %538, %cst_254 {dimension_numbers = #tpu.dot_dimension_numbers<[1], [0], [0], [1], [0, 0, 1, 1], [], []>} : vector<16x128xf32>, vector<128x32xf32>, vector<16x32xf32> -> vector<16x32xf32>
    %c0_255 = arith.constant 0 : index
    %c3_256 = arith.constant 3 : index
    %c0_257 = arith.constant 0 : index
    %c0_258 = arith.constant 0 : index
    %540 = vector.load %arg15[%c0_255, %c3_256, %c0_257, %c0_258] : memref<2x4x1x32xf32, #tpu.memory_space<vmem>>, vector<1x1x1x32xf32>
    %541 = vector.shape_cast %540 : vector<1x1x1x32xf32> to vector<1x32xf32>
    %542 = vector.broadcast %541 : vector<1x32xf32> to vector<16x32xf32>
    %543 = arith.addf %539, %542 : vector<16x32xf32>
    %544 = vector.extract_strided_slice %423 {offsets = [0, 96], sizes = [16, 32], strides = [1, 1]} : vector<16x128xf32> to vector<16x32xf32>
    %545 = arith.mulf %543, %544 : vector<16x32xf32>
    %c0_259 = arith.constant 0 : index
    %c3_260 = arith.constant 3 : index
    %c0_261 = arith.constant 0 : index
    %c0_262 = arith.constant 0 : index
    %546 = vector.load %arg18[%c0_259, %c3_260, %c0_261, %c0_262] : memref<2x4x1x32xf32, #tpu.memory_space<vmem>>, vector<1x1x1x32xf32>
    %547 = vector.shape_cast %546 : vector<1x1x1x32xf32> to vector<1x32xf32>
    %c0_263 = arith.constant 0 : index
    %c3_264 = arith.constant 3 : index
    %c0_265 = arith.constant 0 : index
    %c0_266 = arith.constant 0 : index
    %548 = vector.load %arg19[%c0_263, %c3_264, %c0_265, %c0_266] : memref<2x4x1x32xf32, #tpu.memory_space<vmem>>, vector<1x1x1x32xf32>
    %549 = vector.shape_cast %548 : vector<1x1x1x32xf32> to vector<1x32xf32>
    %cst_267 = arith.constant dense<0.000000e+00> : vector<16xf32>
    %550 = vector.multi_reduction <add>, %545, %cst_267 [1] : vector<16x32xf32> to vector<16xf32>
    %551 = vector.shape_cast %550 : vector<16xf32> to vector<16x1xf32>
    %cst_268 = arith.constant 3.200000e+01 : f32
    %552 = vector.broadcast %cst_268 : f32 to vector<16x1xf32>
    %553 = arith.divf %551, %552 : vector<16x1xf32>
    %554 = vector.broadcast %553 : vector<16x1xf32> to vector<16x32xf32>
    %555 = arith.subf %545, %554 : vector<16x32xf32>
    %556 = arith.mulf %555, %555 : vector<16x32xf32>
    %cst_269 = arith.constant dense<0.000000e+00> : vector<16xf32>
    %557 = vector.multi_reduction <add>, %556, %cst_269 [1] : vector<16x32xf32> to vector<16xf32>
    %558 = vector.shape_cast %557 : vector<16xf32> to vector<16x1xf32>
    %cst_270 = arith.constant 3.200000e+01 : f32
    %559 = vector.broadcast %cst_270 : f32 to vector<16x1xf32>
    %560 = arith.divf %558, %559 : vector<16x1xf32>
    %561 = vector.broadcast %553 : vector<16x1xf32> to vector<16x32xf32>
    %562 = arith.subf %545, %561 : vector<16x32xf32>
    %cst_271 = arith.constant 9.99999974E-6 : f32
    %563 = vector.broadcast %cst_271 : f32 to vector<16x1xf32>
    %564 = arith.addf %560, %563 : vector<16x1xf32>
    %565 = math.rsqrt %564 : vector<16x1xf32>
    %566 = vector.broadcast %565 : vector<16x1xf32> to vector<16x32xf32>
    %567 = arith.mulf %562, %566 : vector<16x32xf32>
    %568 = vector.broadcast %547 : vector<1x32xf32> to vector<16x32xf32>
    %569 = arith.mulf %567, %568 : vector<16x32xf32>
    %570 = vector.broadcast %549 : vector<1x32xf32> to vector<16x32xf32>
    %571 = arith.addf %569, %570 : vector<16x32xf32>
    %572 = arith.addf %535, %571 : vector<16x32xf32>
    %cst_272 = arith.constant 2.500000e-01 : f32
    %573 = vector.broadcast %cst_272 : f32 to vector<16x32xf32>
    %574 = arith.mulf %572, %573 : vector<16x32xf32>
    %575 = arith.addf %396, %574 : vector<16x32xf32>
    %c0_273 = arith.constant 0 : index
    %c0_274 = arith.constant 0 : index
    %c0_275 = arith.constant 0 : index
    %576 = vector.load %arg20[%c0_273, %c0_274, %c0_275] : memref<2x1x32xf32, #tpu.memory_space<vmem>>, vector<1x1x32xf32>
    %577 = vector.shape_cast %576 : vector<1x1x32xf32> to vector<1x32xf32>
    %c0_276 = arith.constant 0 : index
    %c0_277 = arith.constant 0 : index
    %c0_278 = arith.constant 0 : index
    %578 = vector.load %arg21[%c0_276, %c0_277, %c0_278] : memref<2x1x32xf32, #tpu.memory_space<vmem>>, vector<1x1x32xf32>
    %579 = vector.shape_cast %578 : vector<1x1x32xf32> to vector<1x32xf32>
    %cst_279 = arith.constant dense<0.000000e+00> : vector<16xf32>
    %580 = vector.multi_reduction <add>, %575, %cst_279 [1] : vector<16x32xf32> to vector<16xf32>
    %581 = vector.shape_cast %580 : vector<16xf32> to vector<16x1xf32>
    %cst_280 = arith.constant 3.200000e+01 : f32
    %582 = vector.broadcast %cst_280 : f32 to vector<16x1xf32>
    %583 = arith.divf %581, %582 : vector<16x1xf32>
    %584 = vector.broadcast %583 : vector<16x1xf32> to vector<16x32xf32>
    %585 = arith.subf %575, %584 : vector<16x32xf32>
    %586 = arith.mulf %585, %585 : vector<16x32xf32>
    %cst_281 = arith.constant dense<0.000000e+00> : vector<16xf32>
    %587 = vector.multi_reduction <add>, %586, %cst_281 [1] : vector<16x32xf32> to vector<16xf32>
    %588 = vector.shape_cast %587 : vector<16xf32> to vector<16x1xf32>
    %cst_282 = arith.constant 3.200000e+01 : f32
    %589 = vector.broadcast %cst_282 : f32 to vector<16x1xf32>
    %590 = arith.divf %588, %589 : vector<16x1xf32>
    %591 = vector.broadcast %583 : vector<16x1xf32> to vector<16x32xf32>
    %592 = arith.subf %575, %591 : vector<16x32xf32>
    %cst_283 = arith.constant 9.99999974E-6 : f32
    %593 = vector.broadcast %cst_283 : f32 to vector<16x1xf32>
    %594 = arith.addf %590, %593 : vector<16x1xf32>
    %595 = math.rsqrt %594 : vector<16x1xf32>
    %596 = vector.broadcast %595 : vector<16x1xf32> to vector<16x32xf32>
    %597 = arith.mulf %592, %596 : vector<16x32xf32>
    %598 = vector.broadcast %577 : vector<1x32xf32> to vector<16x32xf32>
    %599 = arith.mulf %597, %598 : vector<16x32xf32>
    %600 = vector.broadcast %579 : vector<1x32xf32> to vector<16x32xf32>
    %601 = arith.addf %599, %600 : vector<16x32xf32>
    %c1_284 = arith.constant 1 : index
    %c0_285 = arith.constant 0 : index
    %c0_286 = arith.constant 0 : index
    %602 = vector.load %arg1[%c1_284, %c0_285, %c0_286] : memref<2x32x128xf32, #tpu.memory_space<vmem>>, vector<1x32x128xf32>
    %603 = vector.shape_cast %602 : vector<1x32x128xf32> to vector<32x128xf32>
    %cst_287 = arith.constant dense<0.000000e+00> : vector<16x128xf32>
    %604 = tpu.matmul %601, %603, %cst_287 {dimension_numbers = #tpu.dot_dimension_numbers<[1], [0], [0], [1], [0, 0, 1, 1], [], []>} : vector<16x32xf32>, vector<32x128xf32>, vector<16x128xf32> -> vector<16x128xf32>
    %c1_288 = arith.constant 1 : index
    %c0_289 = arith.constant 0 : index
    %c0_290 = arith.constant 0 : index
    %605 = vector.load %arg2[%c1_288, %c0_289, %c0_290] : memref<2x1x128xf32, #tpu.memory_space<vmem>>, vector<1x1x128xf32>
    %606 = vector.shape_cast %605 : vector<1x1x128xf32> to vector<1x128xf32>
    %607 = vector.broadcast %606 : vector<1x128xf32> to vector<16x128xf32>
    %608 = arith.addf %604, %607 : vector<16x128xf32>
    %c1_291 = arith.constant 1 : index
    %c0_292 = arith.constant 0 : index
    %c0_293 = arith.constant 0 : index
    %609 = vector.load %arg3[%c1_291, %c0_292, %c0_293] : memref<2x32x128xf32, #tpu.memory_space<vmem>>, vector<1x32x128xf32>
    %610 = vector.shape_cast %609 : vector<1x32x128xf32> to vector<32x128xf32>
    %cst_294 = arith.constant dense<0.000000e+00> : vector<16x128xf32>
    %611 = tpu.matmul %601, %610, %cst_294 {dimension_numbers = #tpu.dot_dimension_numbers<[1], [0], [0], [1], [0, 0, 1, 1], [], []>} : vector<16x32xf32>, vector<32x128xf32>, vector<16x128xf32> -> vector<16x128xf32>
    %c1_295 = arith.constant 1 : index
    %c0_296 = arith.constant 0 : index
    %c0_297 = arith.constant 0 : index
    %612 = vector.load %arg4[%c1_295, %c0_296, %c0_297] : memref<2x1x128xf32, #tpu.memory_space<vmem>>, vector<1x1x128xf32>
    %613 = vector.shape_cast %612 : vector<1x1x128xf32> to vector<1x128xf32>
    %614 = vector.broadcast %613 : vector<1x128xf32> to vector<16x128xf32>
    %615 = arith.addf %611, %614 : vector<16x128xf32>
    %c1_298 = arith.constant 1 : index
    %c0_299 = arith.constant 0 : index
    %c0_300 = arith.constant 0 : index
    %616 = vector.load %arg5[%c1_298, %c0_299, %c0_300] : memref<2x32x128xf32, #tpu.memory_space<vmem>>, vector<1x32x128xf32>
    %617 = vector.shape_cast %616 : vector<1x32x128xf32> to vector<32x128xf32>
    %cst_301 = arith.constant dense<0.000000e+00> : vector<16x128xf32>
    %618 = tpu.matmul %601, %617, %cst_301 {dimension_numbers = #tpu.dot_dimension_numbers<[1], [0], [0], [1], [0, 0, 1, 1], [], []>} : vector<16x32xf32>, vector<32x128xf32>, vector<16x128xf32> -> vector<16x128xf32>
    %c1_302 = arith.constant 1 : index
    %c0_303 = arith.constant 0 : index
    %c0_304 = arith.constant 0 : index
    %619 = vector.load %arg6[%c1_302, %c0_303, %c0_304] : memref<2x1x128xf32, #tpu.memory_space<vmem>>, vector<1x1x128xf32>
    %620 = vector.shape_cast %619 : vector<1x1x128xf32> to vector<1x128xf32>
    %621 = vector.broadcast %620 : vector<1x128xf32> to vector<16x128xf32>
    %622 = arith.addf %618, %621 : vector<16x128xf32>
    %c1_305 = arith.constant 1 : index
    %c0_306 = arith.constant 0 : index
    %c0_307 = arith.constant 0 : index
    %c0_308 = arith.constant 0 : index
    %623 = vector.load %arg9[%c1_305, %c0_306, %c0_307, %c0_308] : memref<2x4x8x8xf32, #tpu.memory_space<vmem>>, vector<1x1x8x8xf32>
    %624 = vector.shape_cast %623 : vector<1x1x8x8xf32> to vector<8x8xf32>
    %625 = vector.extract_strided_slice %608 {offsets = [0, 0], sizes = [8, 16], strides = [1, 1]} : vector<16x128xf32> to vector<8x16xf32>
    %626 = vector.extract_strided_slice %615 {offsets = [0, 0], sizes = [8, 16], strides = [1, 1]} : vector<16x128xf32> to vector<8x16xf32>
    %627 = vector.extract_strided_slice %622 {offsets = [0, 0], sizes = [8, 16], strides = [1, 1]} : vector<16x128xf32> to vector<8x16xf32>
    %628 = tpu.transpose %626, [1, 0] : vector<8x16xf32> -> vector<16x8xf32>
    %cst_309 = arith.constant dense<0.000000e+00> : vector<8x8xf32>
    %629 = tpu.matmul %625, %628, %cst_309 {dimension_numbers = #tpu.dot_dimension_numbers<[1], [0], [0], [1], [0, 0, 1, 1], [], []>} : vector<8x16xf32>, vector<16x8xf32>, vector<8x8xf32> -> vector<8x8xf32>
    %cst_310 = arith.constant 2.500000e-01 : f32
    %630 = vector.broadcast %cst_310 : f32 to vector<8x8xf32>
    %631 = arith.mulf %629, %630 : vector<8x8xf32>
    %632 = arith.addf %631, %624 : vector<8x8xf32>
    %cst_311 = arith.constant dense<0xFF800000> : vector<8xf32>
    %633 = vector.multi_reduction <maximumf>, %632, %cst_311 [1] : vector<8x8xf32> to vector<8xf32>
    %cst_312 = arith.constant 0xFF800000 : f32
    %634 = vector.broadcast %cst_312 : f32 to vector<8xf32>
    %635 = arith.maximumf %634, %633 : vector<8xf32>
    %636 = vector.shape_cast %635 : vector<8xf32> to vector<8x1xf32>
    %637 = vector.broadcast %636 : vector<8x1xf32> to vector<8x8xf32>
    %638 = arith.subf %632, %637 : vector<8x8xf32>
    %639 = math.exp %638 : vector<8x8xf32>
    %cst_313 = arith.constant dense<0.000000e+00> : vector<8xf32>
    %640 = vector.multi_reduction <add>, %639, %cst_313 [1] : vector<8x8xf32> to vector<8xf32>
    %641 = vector.shape_cast %640 : vector<8xf32> to vector<8x1xf32>
    %642 = vector.broadcast %641 : vector<8x1xf32> to vector<8x8xf32>
    %643 = arith.divf %639, %642 : vector<8x8xf32>
    %cst_314 = arith.constant dense<0.000000e+00> : vector<8x16xf32>
    %644 = tpu.matmul %643, %627, %cst_314 {dimension_numbers = #tpu.dot_dimension_numbers<[1], [0], [0], [1], [0, 0, 1, 1], [], []>} : vector<8x8xf32>, vector<8x16xf32>, vector<8x16xf32> -> vector<8x16xf32>
    %645 = vector.extract_strided_slice %608 {offsets = [0, 16], sizes = [8, 16], strides = [1, 1]} : vector<16x128xf32> to vector<8x16xf32>
    %646 = vector.extract_strided_slice %615 {offsets = [0, 16], sizes = [8, 16], strides = [1, 1]} : vector<16x128xf32> to vector<8x16xf32>
    %647 = vector.extract_strided_slice %622 {offsets = [0, 16], sizes = [8, 16], strides = [1, 1]} : vector<16x128xf32> to vector<8x16xf32>
    %648 = tpu.transpose %646, [1, 0] : vector<8x16xf32> -> vector<16x8xf32>
    %cst_315 = arith.constant dense<0.000000e+00> : vector<8x8xf32>
    %649 = tpu.matmul %645, %648, %cst_315 {dimension_numbers = #tpu.dot_dimension_numbers<[1], [0], [0], [1], [0, 0, 1, 1], [], []>} : vector<8x16xf32>, vector<16x8xf32>, vector<8x8xf32> -> vector<8x8xf32>
    %cst_316 = arith.constant 2.500000e-01 : f32
    %650 = vector.broadcast %cst_316 : f32 to vector<8x8xf32>
    %651 = arith.mulf %649, %650 : vector<8x8xf32>
    %652 = arith.addf %651, %624 : vector<8x8xf32>
    %cst_317 = arith.constant dense<0xFF800000> : vector<8xf32>
    %653 = vector.multi_reduction <maximumf>, %652, %cst_317 [1] : vector<8x8xf32> to vector<8xf32>
    %cst_318 = arith.constant 0xFF800000 : f32
    %654 = vector.broadcast %cst_318 : f32 to vector<8xf32>
    %655 = arith.maximumf %654, %653 : vector<8xf32>
    %656 = vector.shape_cast %655 : vector<8xf32> to vector<8x1xf32>
    %657 = vector.broadcast %656 : vector<8x1xf32> to vector<8x8xf32>
    %658 = arith.subf %652, %657 : vector<8x8xf32>
    %659 = math.exp %658 : vector<8x8xf32>
    %cst_319 = arith.constant dense<0.000000e+00> : vector<8xf32>
    %660 = vector.multi_reduction <add>, %659, %cst_319 [1] : vector<8x8xf32> to vector<8xf32>
    %661 = vector.shape_cast %660 : vector<8xf32> to vector<8x1xf32>
    %662 = vector.broadcast %661 : vector<8x1xf32> to vector<8x8xf32>
    %663 = arith.divf %659, %662 : vector<8x8xf32>
    %cst_320 = arith.constant dense<0.000000e+00> : vector<8x16xf32>
    %664 = tpu.matmul %663, %647, %cst_320 {dimension_numbers = #tpu.dot_dimension_numbers<[1], [0], [0], [1], [0, 0, 1, 1], [], []>} : vector<8x8xf32>, vector<8x16xf32>, vector<8x16xf32> -> vector<8x16xf32>
    %c1_321 = arith.constant 1 : index
    %c1_322 = arith.constant 1 : index
    %c0_323 = arith.constant 0 : index
    %c0_324 = arith.constant 0 : index
    %665 = vector.load %arg9[%c1_321, %c1_322, %c0_323, %c0_324] : memref<2x4x8x8xf32, #tpu.memory_space<vmem>>, vector<1x1x8x8xf32>
    %666 = vector.shape_cast %665 : vector<1x1x8x8xf32> to vector<8x8xf32>
    %667 = vector.extract_strided_slice %608 {offsets = [0, 32], sizes = [8, 16], strides = [1, 1]} : vector<16x128xf32> to vector<8x16xf32>
    %668 = vector.extract_strided_slice %615 {offsets = [0, 32], sizes = [8, 16], strides = [1, 1]} : vector<16x128xf32> to vector<8x16xf32>
    %669 = vector.extract_strided_slice %622 {offsets = [0, 32], sizes = [8, 16], strides = [1, 1]} : vector<16x128xf32> to vector<8x16xf32>
    %670 = tpu.transpose %668, [1, 0] : vector<8x16xf32> -> vector<16x8xf32>
    %cst_325 = arith.constant dense<0.000000e+00> : vector<8x8xf32>
    %671 = tpu.matmul %667, %670, %cst_325 {dimension_numbers = #tpu.dot_dimension_numbers<[1], [0], [0], [1], [0, 0, 1, 1], [], []>} : vector<8x16xf32>, vector<16x8xf32>, vector<8x8xf32> -> vector<8x8xf32>
    %cst_326 = arith.constant 2.500000e-01 : f32
    %672 = vector.broadcast %cst_326 : f32 to vector<8x8xf32>
    %673 = arith.mulf %671, %672 : vector<8x8xf32>
    %674 = arith.addf %673, %666 : vector<8x8xf32>
    %cst_327 = arith.constant dense<0xFF800000> : vector<8xf32>
    %675 = vector.multi_reduction <maximumf>, %674, %cst_327 [1] : vector<8x8xf32> to vector<8xf32>
    %cst_328 = arith.constant 0xFF800000 : f32
    %676 = vector.broadcast %cst_328 : f32 to vector<8xf32>
    %677 = arith.maximumf %676, %675 : vector<8xf32>
    %678 = vector.shape_cast %677 : vector<8xf32> to vector<8x1xf32>
    %679 = vector.broadcast %678 : vector<8x1xf32> to vector<8x8xf32>
    %680 = arith.subf %674, %679 : vector<8x8xf32>
    %681 = math.exp %680 : vector<8x8xf32>
    %cst_329 = arith.constant dense<0.000000e+00> : vector<8xf32>
    %682 = vector.multi_reduction <add>, %681, %cst_329 [1] : vector<8x8xf32> to vector<8xf32>
    %683 = vector.shape_cast %682 : vector<8xf32> to vector<8x1xf32>
    %684 = vector.broadcast %683 : vector<8x1xf32> to vector<8x8xf32>
    %685 = arith.divf %681, %684 : vector<8x8xf32>
    %cst_330 = arith.constant dense<0.000000e+00> : vector<8x16xf32>
    %686 = tpu.matmul %685, %669, %cst_330 {dimension_numbers = #tpu.dot_dimension_numbers<[1], [0], [0], [1], [0, 0, 1, 1], [], []>} : vector<8x8xf32>, vector<8x16xf32>, vector<8x16xf32> -> vector<8x16xf32>
    %687 = vector.extract_strided_slice %608 {offsets = [0, 48], sizes = [8, 16], strides = [1, 1]} : vector<16x128xf32> to vector<8x16xf32>
    %688 = vector.extract_strided_slice %615 {offsets = [0, 48], sizes = [8, 16], strides = [1, 1]} : vector<16x128xf32> to vector<8x16xf32>
    %689 = vector.extract_strided_slice %622 {offsets = [0, 48], sizes = [8, 16], strides = [1, 1]} : vector<16x128xf32> to vector<8x16xf32>
    %690 = tpu.transpose %688, [1, 0] : vector<8x16xf32> -> vector<16x8xf32>
    %cst_331 = arith.constant dense<0.000000e+00> : vector<8x8xf32>
    %691 = tpu.matmul %687, %690, %cst_331 {dimension_numbers = #tpu.dot_dimension_numbers<[1], [0], [0], [1], [0, 0, 1, 1], [], []>} : vector<8x16xf32>, vector<16x8xf32>, vector<8x8xf32> -> vector<8x8xf32>
    %cst_332 = arith.constant 2.500000e-01 : f32
    %692 = vector.broadcast %cst_332 : f32 to vector<8x8xf32>
    %693 = arith.mulf %691, %692 : vector<8x8xf32>
    %694 = arith.addf %693, %666 : vector<8x8xf32>
    %cst_333 = arith.constant dense<0xFF800000> : vector<8xf32>
    %695 = vector.multi_reduction <maximumf>, %694, %cst_333 [1] : vector<8x8xf32> to vector<8xf32>
    %cst_334 = arith.constant 0xFF800000 : f32
    %696 = vector.broadcast %cst_334 : f32 to vector<8xf32>
    %697 = arith.maximumf %696, %695 : vector<8xf32>
    %698 = vector.shape_cast %697 : vector<8xf32> to vector<8x1xf32>
    %699 = vector.broadcast %698 : vector<8x1xf32> to vector<8x8xf32>
    %700 = arith.subf %694, %699 : vector<8x8xf32>
    %701 = math.exp %700 : vector<8x8xf32>
    %cst_335 = arith.constant dense<0.000000e+00> : vector<8xf32>
    %702 = vector.multi_reduction <add>, %701, %cst_335 [1] : vector<8x8xf32> to vector<8xf32>
    %703 = vector.shape_cast %702 : vector<8xf32> to vector<8x1xf32>
    %704 = vector.broadcast %703 : vector<8x1xf32> to vector<8x8xf32>
    %705 = arith.divf %701, %704 : vector<8x8xf32>
    %cst_336 = arith.constant dense<0.000000e+00> : vector<8x16xf32>
    %706 = tpu.matmul %705, %689, %cst_336 {dimension_numbers = #tpu.dot_dimension_numbers<[1], [0], [0], [1], [0, 0, 1, 1], [], []>} : vector<8x8xf32>, vector<8x16xf32>, vector<8x16xf32> -> vector<8x16xf32>
    %c1_337 = arith.constant 1 : index
    %c2_338 = arith.constant 2 : index
    %c0_339 = arith.constant 0 : index
    %c0_340 = arith.constant 0 : index
    %707 = vector.load %arg9[%c1_337, %c2_338, %c0_339, %c0_340] : memref<2x4x8x8xf32, #tpu.memory_space<vmem>>, vector<1x1x8x8xf32>
    %708 = vector.shape_cast %707 : vector<1x1x8x8xf32> to vector<8x8xf32>
    %709 = vector.extract_strided_slice %608 {offsets = [0, 64], sizes = [8, 16], strides = [1, 1]} : vector<16x128xf32> to vector<8x16xf32>
    %710 = vector.extract_strided_slice %615 {offsets = [0, 64], sizes = [8, 16], strides = [1, 1]} : vector<16x128xf32> to vector<8x16xf32>
    %711 = vector.extract_strided_slice %622 {offsets = [0, 64], sizes = [8, 16], strides = [1, 1]} : vector<16x128xf32> to vector<8x16xf32>
    %712 = tpu.transpose %710, [1, 0] : vector<8x16xf32> -> vector<16x8xf32>
    %cst_341 = arith.constant dense<0.000000e+00> : vector<8x8xf32>
    %713 = tpu.matmul %709, %712, %cst_341 {dimension_numbers = #tpu.dot_dimension_numbers<[1], [0], [0], [1], [0, 0, 1, 1], [], []>} : vector<8x16xf32>, vector<16x8xf32>, vector<8x8xf32> -> vector<8x8xf32>
    %cst_342 = arith.constant 2.500000e-01 : f32
    %714 = vector.broadcast %cst_342 : f32 to vector<8x8xf32>
    %715 = arith.mulf %713, %714 : vector<8x8xf32>
    %716 = arith.addf %715, %708 : vector<8x8xf32>
    %cst_343 = arith.constant dense<0xFF800000> : vector<8xf32>
    %717 = vector.multi_reduction <maximumf>, %716, %cst_343 [1] : vector<8x8xf32> to vector<8xf32>
    %cst_344 = arith.constant 0xFF800000 : f32
    %718 = vector.broadcast %cst_344 : f32 to vector<8xf32>
    %719 = arith.maximumf %718, %717 : vector<8xf32>
    %720 = vector.shape_cast %719 : vector<8xf32> to vector<8x1xf32>
    %721 = vector.broadcast %720 : vector<8x1xf32> to vector<8x8xf32>
    %722 = arith.subf %716, %721 : vector<8x8xf32>
    %723 = math.exp %722 : vector<8x8xf32>
    %cst_345 = arith.constant dense<0.000000e+00> : vector<8xf32>
    %724 = vector.multi_reduction <add>, %723, %cst_345 [1] : vector<8x8xf32> to vector<8xf32>
    %725 = vector.shape_cast %724 : vector<8xf32> to vector<8x1xf32>
    %726 = vector.broadcast %725 : vector<8x1xf32> to vector<8x8xf32>
    %727 = arith.divf %723, %726 : vector<8x8xf32>
    %cst_346 = arith.constant dense<0.000000e+00> : vector<8x16xf32>
    %728 = tpu.matmul %727, %711, %cst_346 {dimension_numbers = #tpu.dot_dimension_numbers<[1], [0], [0], [1], [0, 0, 1, 1], [], []>} : vector<8x8xf32>, vector<8x16xf32>, vector<8x16xf32> -> vector<8x16xf32>
    %729 = vector.extract_strided_slice %608 {offsets = [0, 80], sizes = [8, 16], strides = [1, 1]} : vector<16x128xf32> to vector<8x16xf32>
    %730 = vector.extract_strided_slice %615 {offsets = [0, 80], sizes = [8, 16], strides = [1, 1]} : vector<16x128xf32> to vector<8x16xf32>
    %731 = vector.extract_strided_slice %622 {offsets = [0, 80], sizes = [8, 16], strides = [1, 1]} : vector<16x128xf32> to vector<8x16xf32>
    %732 = tpu.transpose %730, [1, 0] : vector<8x16xf32> -> vector<16x8xf32>
    %cst_347 = arith.constant dense<0.000000e+00> : vector<8x8xf32>
    %733 = tpu.matmul %729, %732, %cst_347 {dimension_numbers = #tpu.dot_dimension_numbers<[1], [0], [0], [1], [0, 0, 1, 1], [], []>} : vector<8x16xf32>, vector<16x8xf32>, vector<8x8xf32> -> vector<8x8xf32>
    %cst_348 = arith.constant 2.500000e-01 : f32
    %734 = vector.broadcast %cst_348 : f32 to vector<8x8xf32>
    %735 = arith.mulf %733, %734 : vector<8x8xf32>
    %736 = arith.addf %735, %708 : vector<8x8xf32>
    %cst_349 = arith.constant dense<0xFF800000> : vector<8xf32>
    %737 = vector.multi_reduction <maximumf>, %736, %cst_349 [1] : vector<8x8xf32> to vector<8xf32>
    %cst_350 = arith.constant 0xFF800000 : f32
    %738 = vector.broadcast %cst_350 : f32 to vector<8xf32>
    %739 = arith.maximumf %738, %737 : vector<8xf32>
    %740 = vector.shape_cast %739 : vector<8xf32> to vector<8x1xf32>
    %741 = vector.broadcast %740 : vector<8x1xf32> to vector<8x8xf32>
    %742 = arith.subf %736, %741 : vector<8x8xf32>
    %743 = math.exp %742 : vector<8x8xf32>
    %cst_351 = arith.constant dense<0.000000e+00> : vector<8xf32>
    %744 = vector.multi_reduction <add>, %743, %cst_351 [1] : vector<8x8xf32> to vector<8xf32>
    %745 = vector.shape_cast %744 : vector<8xf32> to vector<8x1xf32>
    %746 = vector.broadcast %745 : vector<8x1xf32> to vector<8x8xf32>
    %747 = arith.divf %743, %746 : vector<8x8xf32>
    %cst_352 = arith.constant dense<0.000000e+00> : vector<8x16xf32>
    %748 = tpu.matmul %747, %731, %cst_352 {dimension_numbers = #tpu.dot_dimension_numbers<[1], [0], [0], [1], [0, 0, 1, 1], [], []>} : vector<8x8xf32>, vector<8x16xf32>, vector<8x16xf32> -> vector<8x16xf32>
    %c1_353 = arith.constant 1 : index
    %c3_354 = arith.constant 3 : index
    %c0_355 = arith.constant 0 : index
    %c0_356 = arith.constant 0 : index
    %749 = vector.load %arg9[%c1_353, %c3_354, %c0_355, %c0_356] : memref<2x4x8x8xf32, #tpu.memory_space<vmem>>, vector<1x1x8x8xf32>
    %750 = vector.shape_cast %749 : vector<1x1x8x8xf32> to vector<8x8xf32>
    %751 = vector.extract_strided_slice %608 {offsets = [0, 96], sizes = [8, 16], strides = [1, 1]} : vector<16x128xf32> to vector<8x16xf32>
    %752 = vector.extract_strided_slice %615 {offsets = [0, 96], sizes = [8, 16], strides = [1, 1]} : vector<16x128xf32> to vector<8x16xf32>
    %753 = vector.extract_strided_slice %622 {offsets = [0, 96], sizes = [8, 16], strides = [1, 1]} : vector<16x128xf32> to vector<8x16xf32>
    %754 = tpu.transpose %752, [1, 0] : vector<8x16xf32> -> vector<16x8xf32>
    %cst_357 = arith.constant dense<0.000000e+00> : vector<8x8xf32>
    %755 = tpu.matmul %751, %754, %cst_357 {dimension_numbers = #tpu.dot_dimension_numbers<[1], [0], [0], [1], [0, 0, 1, 1], [], []>} : vector<8x16xf32>, vector<16x8xf32>, vector<8x8xf32> -> vector<8x8xf32>
    %cst_358 = arith.constant 2.500000e-01 : f32
    %756 = vector.broadcast %cst_358 : f32 to vector<8x8xf32>
    %757 = arith.mulf %755, %756 : vector<8x8xf32>
    %758 = arith.addf %757, %750 : vector<8x8xf32>
    %cst_359 = arith.constant dense<0xFF800000> : vector<8xf32>
    %759 = vector.multi_reduction <maximumf>, %758, %cst_359 [1] : vector<8x8xf32> to vector<8xf32>
    %cst_360 = arith.constant 0xFF800000 : f32
    %760 = vector.broadcast %cst_360 : f32 to vector<8xf32>
    %761 = arith.maximumf %760, %759 : vector<8xf32>
    %762 = vector.shape_cast %761 : vector<8xf32> to vector<8x1xf32>
    %763 = vector.broadcast %762 : vector<8x1xf32> to vector<8x8xf32>
    %764 = arith.subf %758, %763 : vector<8x8xf32>
    %765 = math.exp %764 : vector<8x8xf32>
    %cst_361 = arith.constant dense<0.000000e+00> : vector<8xf32>
    %766 = vector.multi_reduction <add>, %765, %cst_361 [1] : vector<8x8xf32> to vector<8xf32>
    %767 = vector.shape_cast %766 : vector<8xf32> to vector<8x1xf32>
    %768 = vector.broadcast %767 : vector<8x1xf32> to vector<8x8xf32>
    %769 = arith.divf %765, %768 : vector<8x8xf32>
    %cst_362 = arith.constant dense<0.000000e+00> : vector<8x16xf32>
    %770 = tpu.matmul %769, %753, %cst_362 {dimension_numbers = #tpu.dot_dimension_numbers<[1], [0], [0], [1], [0, 0, 1, 1], [], []>} : vector<8x8xf32>, vector<8x16xf32>, vector<8x16xf32> -> vector<8x16xf32>
    %771 = vector.extract_strided_slice %608 {offsets = [0, 112], sizes = [8, 16], strides = [1, 1]} : vector<16x128xf32> to vector<8x16xf32>
    %772 = vector.extract_strided_slice %615 {offsets = [0, 112], sizes = [8, 16], strides = [1, 1]} : vector<16x128xf32> to vector<8x16xf32>
    %773 = vector.extract_strided_slice %622 {offsets = [0, 112], sizes = [8, 16], strides = [1, 1]} : vector<16x128xf32> to vector<8x16xf32>
    %774 = tpu.transpose %772, [1, 0] : vector<8x16xf32> -> vector<16x8xf32>
    %cst_363 = arith.constant dense<0.000000e+00> : vector<8x8xf32>
    %775 = tpu.matmul %771, %774, %cst_363 {dimension_numbers = #tpu.dot_dimension_numbers<[1], [0], [0], [1], [0, 0, 1, 1], [], []>} : vector<8x16xf32>, vector<16x8xf32>, vector<8x8xf32> -> vector<8x8xf32>
    %cst_364 = arith.constant 2.500000e-01 : f32
    %776 = vector.broadcast %cst_364 : f32 to vector<8x8xf32>
    %777 = arith.mulf %775, %776 : vector<8x8xf32>
    %778 = arith.addf %777, %750 : vector<8x8xf32>
    %cst_365 = arith.constant dense<0xFF800000> : vector<8xf32>
    %779 = vector.multi_reduction <maximumf>, %778, %cst_365 [1] : vector<8x8xf32> to vector<8xf32>
    %cst_366 = arith.constant 0xFF800000 : f32
    %780 = vector.broadcast %cst_366 : f32 to vector<8xf32>
    %781 = arith.maximumf %780, %779 : vector<8xf32>
    %782 = vector.shape_cast %781 : vector<8xf32> to vector<8x1xf32>
    %783 = vector.broadcast %782 : vector<8x1xf32> to vector<8x8xf32>
    %784 = arith.subf %778, %783 : vector<8x8xf32>
    %785 = math.exp %784 : vector<8x8xf32>
    %cst_367 = arith.constant dense<0.000000e+00> : vector<8xf32>
    %786 = vector.multi_reduction <add>, %785, %cst_367 [1] : vector<8x8xf32> to vector<8xf32>
    %787 = vector.shape_cast %786 : vector<8xf32> to vector<8x1xf32>
    %788 = vector.broadcast %787 : vector<8x1xf32> to vector<8x8xf32>
    %789 = arith.divf %785, %788 : vector<8x8xf32>
    %cst_368 = arith.constant dense<0.000000e+00> : vector<8x16xf32>
    %790 = tpu.matmul %789, %773, %cst_368 {dimension_numbers = #tpu.dot_dimension_numbers<[1], [0], [0], [1], [0, 0, 1, 1], [], []>} : vector<8x8xf32>, vector<8x16xf32>, vector<8x16xf32> -> vector<8x16xf32>
    %791 = tpu.concatenate %644, %664, %686, %706, %728, %748, %770, %790 in 1 : vector<8x16xf32>, vector<8x16xf32>, vector<8x16xf32>, vector<8x16xf32>, vector<8x16xf32>, vector<8x16xf32>, vector<8x16xf32>, vector<8x16xf32> -> vector<8x128xf32>
    %c1_369 = arith.constant 1 : index
    %c0_370 = arith.constant 0 : index
    %c0_371 = arith.constant 0 : index
    %c0_372 = arith.constant 0 : index
    %792 = vector.load %arg9[%c1_369, %c0_370, %c0_371, %c0_372] : memref<2x4x8x8xf32, #tpu.memory_space<vmem>>, vector<1x1x8x8xf32>
    %793 = vector.shape_cast %792 : vector<1x1x8x8xf32> to vector<8x8xf32>
    %794 = vector.extract_strided_slice %608 {offsets = [8, 0], sizes = [8, 16], strides = [1, 1]} : vector<16x128xf32> to vector<8x16xf32>
    %795 = vector.extract_strided_slice %615 {offsets = [8, 0], sizes = [8, 16], strides = [1, 1]} : vector<16x128xf32> to vector<8x16xf32>
    %796 = vector.extract_strided_slice %622 {offsets = [8, 0], sizes = [8, 16], strides = [1, 1]} : vector<16x128xf32> to vector<8x16xf32>
    %797 = tpu.transpose %795, [1, 0] : vector<8x16xf32> -> vector<16x8xf32>
    %cst_373 = arith.constant dense<0.000000e+00> : vector<8x8xf32>
    %798 = tpu.matmul %794, %797, %cst_373 {dimension_numbers = #tpu.dot_dimension_numbers<[1], [0], [0], [1], [0, 0, 1, 1], [], []>} : vector<8x16xf32>, vector<16x8xf32>, vector<8x8xf32> -> vector<8x8xf32>
    %cst_374 = arith.constant 2.500000e-01 : f32
    %799 = vector.broadcast %cst_374 : f32 to vector<8x8xf32>
    %800 = arith.mulf %798, %799 : vector<8x8xf32>
    %801 = arith.addf %800, %793 : vector<8x8xf32>
    %cst_375 = arith.constant dense<0xFF800000> : vector<8xf32>
    %802 = vector.multi_reduction <maximumf>, %801, %cst_375 [1] : vector<8x8xf32> to vector<8xf32>
    %cst_376 = arith.constant 0xFF800000 : f32
    %803 = vector.broadcast %cst_376 : f32 to vector<8xf32>
    %804 = arith.maximumf %803, %802 : vector<8xf32>
    %805 = vector.shape_cast %804 : vector<8xf32> to vector<8x1xf32>
    %806 = vector.broadcast %805 : vector<8x1xf32> to vector<8x8xf32>
    %807 = arith.subf %801, %806 : vector<8x8xf32>
    %808 = math.exp %807 : vector<8x8xf32>
    %cst_377 = arith.constant dense<0.000000e+00> : vector<8xf32>
    %809 = vector.multi_reduction <add>, %808, %cst_377 [1] : vector<8x8xf32> to vector<8xf32>
    %810 = vector.shape_cast %809 : vector<8xf32> to vector<8x1xf32>
    %811 = vector.broadcast %810 : vector<8x1xf32> to vector<8x8xf32>
    %812 = arith.divf %808, %811 : vector<8x8xf32>
    %cst_378 = arith.constant dense<0.000000e+00> : vector<8x16xf32>
    %813 = tpu.matmul %812, %796, %cst_378 {dimension_numbers = #tpu.dot_dimension_numbers<[1], [0], [0], [1], [0, 0, 1, 1], [], []>} : vector<8x8xf32>, vector<8x16xf32>, vector<8x16xf32> -> vector<8x16xf32>
    %814 = vector.extract_strided_slice %608 {offsets = [8, 16], sizes = [8, 16], strides = [1, 1]} : vector<16x128xf32> to vector<8x16xf32>
    %815 = vector.extract_strided_slice %615 {offsets = [8, 16], sizes = [8, 16], strides = [1, 1]} : vector<16x128xf32> to vector<8x16xf32>
    %816 = vector.extract_strided_slice %622 {offsets = [8, 16], sizes = [8, 16], strides = [1, 1]} : vector<16x128xf32> to vector<8x16xf32>
    %817 = tpu.transpose %815, [1, 0] : vector<8x16xf32> -> vector<16x8xf32>
    %cst_379 = arith.constant dense<0.000000e+00> : vector<8x8xf32>
    %818 = tpu.matmul %814, %817, %cst_379 {dimension_numbers = #tpu.dot_dimension_numbers<[1], [0], [0], [1], [0, 0, 1, 1], [], []>} : vector<8x16xf32>, vector<16x8xf32>, vector<8x8xf32> -> vector<8x8xf32>
    %cst_380 = arith.constant 2.500000e-01 : f32
    %819 = vector.broadcast %cst_380 : f32 to vector<8x8xf32>
    %820 = arith.mulf %818, %819 : vector<8x8xf32>
    %821 = arith.addf %820, %793 : vector<8x8xf32>
    %cst_381 = arith.constant dense<0xFF800000> : vector<8xf32>
    %822 = vector.multi_reduction <maximumf>, %821, %cst_381 [1] : vector<8x8xf32> to vector<8xf32>
    %cst_382 = arith.constant 0xFF800000 : f32
    %823 = vector.broadcast %cst_382 : f32 to vector<8xf32>
    %824 = arith.maximumf %823, %822 : vector<8xf32>
    %825 = vector.shape_cast %824 : vector<8xf32> to vector<8x1xf32>
    %826 = vector.broadcast %825 : vector<8x1xf32> to vector<8x8xf32>
    %827 = arith.subf %821, %826 : vector<8x8xf32>
    %828 = math.exp %827 : vector<8x8xf32>
    %cst_383 = arith.constant dense<0.000000e+00> : vector<8xf32>
    %829 = vector.multi_reduction <add>, %828, %cst_383 [1] : vector<8x8xf32> to vector<8xf32>
    %830 = vector.shape_cast %829 : vector<8xf32> to vector<8x1xf32>
    %831 = vector.broadcast %830 : vector<8x1xf32> to vector<8x8xf32>
    %832 = arith.divf %828, %831 : vector<8x8xf32>
    %cst_384 = arith.constant dense<0.000000e+00> : vector<8x16xf32>
    %833 = tpu.matmul %832, %816, %cst_384 {dimension_numbers = #tpu.dot_dimension_numbers<[1], [0], [0], [1], [0, 0, 1, 1], [], []>} : vector<8x8xf32>, vector<8x16xf32>, vector<8x16xf32> -> vector<8x16xf32>
    %c1_385 = arith.constant 1 : index
    %c1_386 = arith.constant 1 : index
    %c0_387 = arith.constant 0 : index
    %c0_388 = arith.constant 0 : index
    %834 = vector.load %arg9[%c1_385, %c1_386, %c0_387, %c0_388] : memref<2x4x8x8xf32, #tpu.memory_space<vmem>>, vector<1x1x8x8xf32>
    %835 = vector.shape_cast %834 : vector<1x1x8x8xf32> to vector<8x8xf32>
    %836 = vector.extract_strided_slice %608 {offsets = [8, 32], sizes = [8, 16], strides = [1, 1]} : vector<16x128xf32> to vector<8x16xf32>
    %837 = vector.extract_strided_slice %615 {offsets = [8, 32], sizes = [8, 16], strides = [1, 1]} : vector<16x128xf32> to vector<8x16xf32>
    %838 = vector.extract_strided_slice %622 {offsets = [8, 32], sizes = [8, 16], strides = [1, 1]} : vector<16x128xf32> to vector<8x16xf32>
    %839 = tpu.transpose %837, [1, 0] : vector<8x16xf32> -> vector<16x8xf32>
    %cst_389 = arith.constant dense<0.000000e+00> : vector<8x8xf32>
    %840 = tpu.matmul %836, %839, %cst_389 {dimension_numbers = #tpu.dot_dimension_numbers<[1], [0], [0], [1], [0, 0, 1, 1], [], []>} : vector<8x16xf32>, vector<16x8xf32>, vector<8x8xf32> -> vector<8x8xf32>
    %cst_390 = arith.constant 2.500000e-01 : f32
    %841 = vector.broadcast %cst_390 : f32 to vector<8x8xf32>
    %842 = arith.mulf %840, %841 : vector<8x8xf32>
    %843 = arith.addf %842, %835 : vector<8x8xf32>
    %cst_391 = arith.constant dense<0xFF800000> : vector<8xf32>
    %844 = vector.multi_reduction <maximumf>, %843, %cst_391 [1] : vector<8x8xf32> to vector<8xf32>
    %cst_392 = arith.constant 0xFF800000 : f32
    %845 = vector.broadcast %cst_392 : f32 to vector<8xf32>
    %846 = arith.maximumf %845, %844 : vector<8xf32>
    %847 = vector.shape_cast %846 : vector<8xf32> to vector<8x1xf32>
    %848 = vector.broadcast %847 : vector<8x1xf32> to vector<8x8xf32>
    %849 = arith.subf %843, %848 : vector<8x8xf32>
    %850 = math.exp %849 : vector<8x8xf32>
    %cst_393 = arith.constant dense<0.000000e+00> : vector<8xf32>
    %851 = vector.multi_reduction <add>, %850, %cst_393 [1] : vector<8x8xf32> to vector<8xf32>
    %852 = vector.shape_cast %851 : vector<8xf32> to vector<8x1xf32>
    %853 = vector.broadcast %852 : vector<8x1xf32> to vector<8x8xf32>
    %854 = arith.divf %850, %853 : vector<8x8xf32>
    %cst_394 = arith.constant dense<0.000000e+00> : vector<8x16xf32>
    %855 = tpu.matmul %854, %838, %cst_394 {dimension_numbers = #tpu.dot_dimension_numbers<[1], [0], [0], [1], [0, 0, 1, 1], [], []>} : vector<8x8xf32>, vector<8x16xf32>, vector<8x16xf32> -> vector<8x16xf32>
    %856 = vector.extract_strided_slice %608 {offsets = [8, 48], sizes = [8, 16], strides = [1, 1]} : vector<16x128xf32> to vector<8x16xf32>
    %857 = vector.extract_strided_slice %615 {offsets = [8, 48], sizes = [8, 16], strides = [1, 1]} : vector<16x128xf32> to vector<8x16xf32>
    %858 = vector.extract_strided_slice %622 {offsets = [8, 48], sizes = [8, 16], strides = [1, 1]} : vector<16x128xf32> to vector<8x16xf32>
    %859 = tpu.transpose %857, [1, 0] : vector<8x16xf32> -> vector<16x8xf32>
    %cst_395 = arith.constant dense<0.000000e+00> : vector<8x8xf32>
    %860 = tpu.matmul %856, %859, %cst_395 {dimension_numbers = #tpu.dot_dimension_numbers<[1], [0], [0], [1], [0, 0, 1, 1], [], []>} : vector<8x16xf32>, vector<16x8xf32>, vector<8x8xf32> -> vector<8x8xf32>
    %cst_396 = arith.constant 2.500000e-01 : f32
    %861 = vector.broadcast %cst_396 : f32 to vector<8x8xf32>
    %862 = arith.mulf %860, %861 : vector<8x8xf32>
    %863 = arith.addf %862, %835 : vector<8x8xf32>
    %cst_397 = arith.constant dense<0xFF800000> : vector<8xf32>
    %864 = vector.multi_reduction <maximumf>, %863, %cst_397 [1] : vector<8x8xf32> to vector<8xf32>
    %cst_398 = arith.constant 0xFF800000 : f32
    %865 = vector.broadcast %cst_398 : f32 to vector<8xf32>
    %866 = arith.maximumf %865, %864 : vector<8xf32>
    %867 = vector.shape_cast %866 : vector<8xf32> to vector<8x1xf32>
    %868 = vector.broadcast %867 : vector<8x1xf32> to vector<8x8xf32>
    %869 = arith.subf %863, %868 : vector<8x8xf32>
    %870 = math.exp %869 : vector<8x8xf32>
    %cst_399 = arith.constant dense<0.000000e+00> : vector<8xf32>
    %871 = vector.multi_reduction <add>, %870, %cst_399 [1] : vector<8x8xf32> to vector<8xf32>
    %872 = vector.shape_cast %871 : vector<8xf32> to vector<8x1xf32>
    %873 = vector.broadcast %872 : vector<8x1xf32> to vector<8x8xf32>
    %874 = arith.divf %870, %873 : vector<8x8xf32>
    %cst_400 = arith.constant dense<0.000000e+00> : vector<8x16xf32>
    %875 = tpu.matmul %874, %858, %cst_400 {dimension_numbers = #tpu.dot_dimension_numbers<[1], [0], [0], [1], [0, 0, 1, 1], [], []>} : vector<8x8xf32>, vector<8x16xf32>, vector<8x16xf32> -> vector<8x16xf32>
    %c1_401 = arith.constant 1 : index
    %c2_402 = arith.constant 2 : index
    %c0_403 = arith.constant 0 : index
    %c0_404 = arith.constant 0 : index
    %876 = vector.load %arg9[%c1_401, %c2_402, %c0_403, %c0_404] : memref<2x4x8x8xf32, #tpu.memory_space<vmem>>, vector<1x1x8x8xf32>
    %877 = vector.shape_cast %876 : vector<1x1x8x8xf32> to vector<8x8xf32>
    %878 = vector.extract_strided_slice %608 {offsets = [8, 64], sizes = [8, 16], strides = [1, 1]} : vector<16x128xf32> to vector<8x16xf32>
    %879 = vector.extract_strided_slice %615 {offsets = [8, 64], sizes = [8, 16], strides = [1, 1]} : vector<16x128xf32> to vector<8x16xf32>
    %880 = vector.extract_strided_slice %622 {offsets = [8, 64], sizes = [8, 16], strides = [1, 1]} : vector<16x128xf32> to vector<8x16xf32>
    %881 = tpu.transpose %879, [1, 0] : vector<8x16xf32> -> vector<16x8xf32>
    %cst_405 = arith.constant dense<0.000000e+00> : vector<8x8xf32>
    %882 = tpu.matmul %878, %881, %cst_405 {dimension_numbers = #tpu.dot_dimension_numbers<[1], [0], [0], [1], [0, 0, 1, 1], [], []>} : vector<8x16xf32>, vector<16x8xf32>, vector<8x8xf32> -> vector<8x8xf32>
    %cst_406 = arith.constant 2.500000e-01 : f32
    %883 = vector.broadcast %cst_406 : f32 to vector<8x8xf32>
    %884 = arith.mulf %882, %883 : vector<8x8xf32>
    %885 = arith.addf %884, %877 : vector<8x8xf32>
    %cst_407 = arith.constant dense<0xFF800000> : vector<8xf32>
    %886 = vector.multi_reduction <maximumf>, %885, %cst_407 [1] : vector<8x8xf32> to vector<8xf32>
    %cst_408 = arith.constant 0xFF800000 : f32
    %887 = vector.broadcast %cst_408 : f32 to vector<8xf32>
    %888 = arith.maximumf %887, %886 : vector<8xf32>
    %889 = vector.shape_cast %888 : vector<8xf32> to vector<8x1xf32>
    %890 = vector.broadcast %889 : vector<8x1xf32> to vector<8x8xf32>
    %891 = arith.subf %885, %890 : vector<8x8xf32>
    %892 = math.exp %891 : vector<8x8xf32>
    %cst_409 = arith.constant dense<0.000000e+00> : vector<8xf32>
    %893 = vector.multi_reduction <add>, %892, %cst_409 [1] : vector<8x8xf32> to vector<8xf32>
    %894 = vector.shape_cast %893 : vector<8xf32> to vector<8x1xf32>
    %895 = vector.broadcast %894 : vector<8x1xf32> to vector<8x8xf32>
    %896 = arith.divf %892, %895 : vector<8x8xf32>
    %cst_410 = arith.constant dense<0.000000e+00> : vector<8x16xf32>
    %897 = tpu.matmul %896, %880, %cst_410 {dimension_numbers = #tpu.dot_dimension_numbers<[1], [0], [0], [1], [0, 0, 1, 1], [], []>} : vector<8x8xf32>, vector<8x16xf32>, vector<8x16xf32> -> vector<8x16xf32>
    %898 = vector.extract_strided_slice %608 {offsets = [8, 80], sizes = [8, 16], strides = [1, 1]} : vector<16x128xf32> to vector<8x16xf32>
    %899 = vector.extract_strided_slice %615 {offsets = [8, 80], sizes = [8, 16], strides = [1, 1]} : vector<16x128xf32> to vector<8x16xf32>
    %900 = vector.extract_strided_slice %622 {offsets = [8, 80], sizes = [8, 16], strides = [1, 1]} : vector<16x128xf32> to vector<8x16xf32>
    %901 = tpu.transpose %899, [1, 0] : vector<8x16xf32> -> vector<16x8xf32>
    %cst_411 = arith.constant dense<0.000000e+00> : vector<8x8xf32>
    %902 = tpu.matmul %898, %901, %cst_411 {dimension_numbers = #tpu.dot_dimension_numbers<[1], [0], [0], [1], [0, 0, 1, 1], [], []>} : vector<8x16xf32>, vector<16x8xf32>, vector<8x8xf32> -> vector<8x8xf32>
    %cst_412 = arith.constant 2.500000e-01 : f32
    %903 = vector.broadcast %cst_412 : f32 to vector<8x8xf32>
    %904 = arith.mulf %902, %903 : vector<8x8xf32>
    %905 = arith.addf %904, %877 : vector<8x8xf32>
    %cst_413 = arith.constant dense<0xFF800000> : vector<8xf32>
    %906 = vector.multi_reduction <maximumf>, %905, %cst_413 [1] : vector<8x8xf32> to vector<8xf32>
    %cst_414 = arith.constant 0xFF800000 : f32
    %907 = vector.broadcast %cst_414 : f32 to vector<8xf32>
    %908 = arith.maximumf %907, %906 : vector<8xf32>
    %909 = vector.shape_cast %908 : vector<8xf32> to vector<8x1xf32>
    %910 = vector.broadcast %909 : vector<8x1xf32> to vector<8x8xf32>
    %911 = arith.subf %905, %910 : vector<8x8xf32>
    %912 = math.exp %911 : vector<8x8xf32>
    %cst_415 = arith.constant dense<0.000000e+00> : vector<8xf32>
    %913 = vector.multi_reduction <add>, %912, %cst_415 [1] : vector<8x8xf32> to vector<8xf32>
    %914 = vector.shape_cast %913 : vector<8xf32> to vector<8x1xf32>
    %915 = vector.broadcast %914 : vector<8x1xf32> to vector<8x8xf32>
    %916 = arith.divf %912, %915 : vector<8x8xf32>
    %cst_416 = arith.constant dense<0.000000e+00> : vector<8x16xf32>
    %917 = tpu.matmul %916, %900, %cst_416 {dimension_numbers = #tpu.dot_dimension_numbers<[1], [0], [0], [1], [0, 0, 1, 1], [], []>} : vector<8x8xf32>, vector<8x16xf32>, vector<8x16xf32> -> vector<8x16xf32>
    %c1_417 = arith.constant 1 : index
    %c3_418 = arith.constant 3 : index
    %c0_419 = arith.constant 0 : index
    %c0_420 = arith.constant 0 : index
    %918 = vector.load %arg9[%c1_417, %c3_418, %c0_419, %c0_420] : memref<2x4x8x8xf32, #tpu.memory_space<vmem>>, vector<1x1x8x8xf32>
    %919 = vector.shape_cast %918 : vector<1x1x8x8xf32> to vector<8x8xf32>
    %920 = vector.extract_strided_slice %608 {offsets = [8, 96], sizes = [8, 16], strides = [1, 1]} : vector<16x128xf32> to vector<8x16xf32>
    %921 = vector.extract_strided_slice %615 {offsets = [8, 96], sizes = [8, 16], strides = [1, 1]} : vector<16x128xf32> to vector<8x16xf32>
    %922 = vector.extract_strided_slice %622 {offsets = [8, 96], sizes = [8, 16], strides = [1, 1]} : vector<16x128xf32> to vector<8x16xf32>
    %923 = tpu.transpose %921, [1, 0] : vector<8x16xf32> -> vector<16x8xf32>
    %cst_421 = arith.constant dense<0.000000e+00> : vector<8x8xf32>
    %924 = tpu.matmul %920, %923, %cst_421 {dimension_numbers = #tpu.dot_dimension_numbers<[1], [0], [0], [1], [0, 0, 1, 1], [], []>} : vector<8x16xf32>, vector<16x8xf32>, vector<8x8xf32> -> vector<8x8xf32>
    %cst_422 = arith.constant 2.500000e-01 : f32
    %925 = vector.broadcast %cst_422 : f32 to vector<8x8xf32>
    %926 = arith.mulf %924, %925 : vector<8x8xf32>
    %927 = arith.addf %926, %919 : vector<8x8xf32>
    %cst_423 = arith.constant dense<0xFF800000> : vector<8xf32>
    %928 = vector.multi_reduction <maximumf>, %927, %cst_423 [1] : vector<8x8xf32> to vector<8xf32>
    %cst_424 = arith.constant 0xFF800000 : f32
    %929 = vector.broadcast %cst_424 : f32 to vector<8xf32>
    %930 = arith.maximumf %929, %928 : vector<8xf32>
    %931 = vector.shape_cast %930 : vector<8xf32> to vector<8x1xf32>
    %932 = vector.broadcast %931 : vector<8x1xf32> to vector<8x8xf32>
    %933 = arith.subf %927, %932 : vector<8x8xf32>
    %934 = math.exp %933 : vector<8x8xf32>
    %cst_425 = arith.constant dense<0.000000e+00> : vector<8xf32>
    %935 = vector.multi_reduction <add>, %934, %cst_425 [1] : vector<8x8xf32> to vector<8xf32>
    %936 = vector.shape_cast %935 : vector<8xf32> to vector<8x1xf32>
    %937 = vector.broadcast %936 : vector<8x1xf32> to vector<8x8xf32>
    %938 = arith.divf %934, %937 : vector<8x8xf32>
    %cst_426 = arith.constant dense<0.000000e+00> : vector<8x16xf32>
    %939 = tpu.matmul %938, %922, %cst_426 {dimension_numbers = #tpu.dot_dimension_numbers<[1], [0], [0], [1], [0, 0, 1, 1], [], []>} : vector<8x8xf32>, vector<8x16xf32>, vector<8x16xf32> -> vector<8x16xf32>
    %940 = vector.extract_strided_slice %608 {offsets = [8, 112], sizes = [8, 16], strides = [1, 1]} : vector<16x128xf32> to vector<8x16xf32>
    %941 = vector.extract_strided_slice %615 {offsets = [8, 112], sizes = [8, 16], strides = [1, 1]} : vector<16x128xf32> to vector<8x16xf32>
    %942 = vector.extract_strided_slice %622 {offsets = [8, 112], sizes = [8, 16], strides = [1, 1]} : vector<16x128xf32> to vector<8x16xf32>
    %943 = tpu.transpose %941, [1, 0] : vector<8x16xf32> -> vector<16x8xf32>
    %cst_427 = arith.constant dense<0.000000e+00> : vector<8x8xf32>
    %944 = tpu.matmul %940, %943, %cst_427 {dimension_numbers = #tpu.dot_dimension_numbers<[1], [0], [0], [1], [0, 0, 1, 1], [], []>} : vector<8x16xf32>, vector<16x8xf32>, vector<8x8xf32> -> vector<8x8xf32>
    %cst_428 = arith.constant 2.500000e-01 : f32
    %945 = vector.broadcast %cst_428 : f32 to vector<8x8xf32>
    %946 = arith.mulf %944, %945 : vector<8x8xf32>
    %947 = arith.addf %946, %919 : vector<8x8xf32>
    %cst_429 = arith.constant dense<0xFF800000> : vector<8xf32>
    %948 = vector.multi_reduction <maximumf>, %947, %cst_429 [1] : vector<8x8xf32> to vector<8xf32>
    %cst_430 = arith.constant 0xFF800000 : f32
    %949 = vector.broadcast %cst_430 : f32 to vector<8xf32>
    %950 = arith.maximumf %949, %948 : vector<8xf32>
    %951 = vector.shape_cast %950 : vector<8xf32> to vector<8x1xf32>
    %952 = vector.broadcast %951 : vector<8x1xf32> to vector<8x8xf32>
    %953 = arith.subf %947, %952 : vector<8x8xf32>
    %954 = math.exp %953 : vector<8x8xf32>
    %cst_431 = arith.constant dense<0.000000e+00> : vector<8xf32>
    %955 = vector.multi_reduction <add>, %954, %cst_431 [1] : vector<8x8xf32> to vector<8xf32>
    %956 = vector.shape_cast %955 : vector<8xf32> to vector<8x1xf32>
    %957 = vector.broadcast %956 : vector<8x1xf32> to vector<8x8xf32>
    %958 = arith.divf %954, %957 : vector<8x8xf32>
    %cst_432 = arith.constant dense<0.000000e+00> : vector<8x16xf32>
    %959 = tpu.matmul %958, %942, %cst_432 {dimension_numbers = #tpu.dot_dimension_numbers<[1], [0], [0], [1], [0, 0, 1, 1], [], []>} : vector<8x8xf32>, vector<8x16xf32>, vector<8x16xf32> -> vector<8x16xf32>
    %960 = tpu.concatenate %813, %833, %855, %875, %897, %917, %939, %959 in 1 : vector<8x16xf32>, vector<8x16xf32>, vector<8x16xf32>, vector<8x16xf32>, vector<8x16xf32>, vector<8x16xf32>, vector<8x16xf32>, vector<8x16xf32> -> vector<8x128xf32>
    %961 = tpu.concatenate %791, %960 in 0 : vector<8x128xf32>, vector<8x128xf32> -> vector<16x128xf32>
    %c1_433 = arith.constant 1 : index
    %c0_434 = arith.constant 0 : index
    %c0_435 = arith.constant 0 : index
    %962 = vector.load %arg7[%c1_433, %c0_434, %c0_435] : memref<2x128x32xf32, #tpu.memory_space<vmem>>, vector<1x128x32xf32>
    %963 = vector.shape_cast %962 : vector<1x128x32xf32> to vector<128x32xf32>
    %cst_436 = arith.constant dense<0.000000e+00> : vector<16x32xf32>
    %964 = tpu.matmul %961, %963, %cst_436 {dimension_numbers = #tpu.dot_dimension_numbers<[1], [0], [0], [1], [0, 0, 1, 1], [], []>} : vector<16x128xf32>, vector<128x32xf32>, vector<16x32xf32> -> vector<16x32xf32>
    %c1_437 = arith.constant 1 : index
    %c0_438 = arith.constant 0 : index
    %c0_439 = arith.constant 0 : index
    %965 = vector.load %arg8[%c1_437, %c0_438, %c0_439] : memref<2x1x32xf32, #tpu.memory_space<vmem>>, vector<1x1x32xf32>
    %966 = vector.shape_cast %965 : vector<1x1x32xf32> to vector<1x32xf32>
    %967 = vector.broadcast %966 : vector<1x32xf32> to vector<16x32xf32>
    %968 = arith.addf %964, %967 : vector<16x32xf32>
    %cst_440 = arith.constant 2.500000e-01 : f32
    %969 = vector.broadcast %cst_440 : f32 to vector<16x32xf32>
    %970 = arith.mulf %968, %969 : vector<16x32xf32>
    %971 = arith.addf %601, %970 : vector<16x32xf32>
    %c1_441 = arith.constant 1 : index
    %c0_442 = arith.constant 0 : index
    %c0_443 = arith.constant 0 : index
    %972 = vector.load %arg10[%c1_441, %c0_442, %c0_443] : memref<2x1x32xf32, #tpu.memory_space<vmem>>, vector<1x1x32xf32>
    %973 = vector.shape_cast %972 : vector<1x1x32xf32> to vector<1x32xf32>
    %c1_444 = arith.constant 1 : index
    %c0_445 = arith.constant 0 : index
    %c0_446 = arith.constant 0 : index
    %974 = vector.load %arg11[%c1_444, %c0_445, %c0_446] : memref<2x1x32xf32, #tpu.memory_space<vmem>>, vector<1x1x32xf32>
    %975 = vector.shape_cast %974 : vector<1x1x32xf32> to vector<1x32xf32>
    %cst_447 = arith.constant dense<0.000000e+00> : vector<16xf32>
    %976 = vector.multi_reduction <add>, %971, %cst_447 [1] : vector<16x32xf32> to vector<16xf32>
    %977 = vector.shape_cast %976 : vector<16xf32> to vector<16x1xf32>
    %cst_448 = arith.constant 3.200000e+01 : f32
    %978 = vector.broadcast %cst_448 : f32 to vector<16x1xf32>
    %979 = arith.divf %977, %978 : vector<16x1xf32>
    %980 = vector.broadcast %979 : vector<16x1xf32> to vector<16x32xf32>
    %981 = arith.subf %971, %980 : vector<16x32xf32>
    %982 = arith.mulf %981, %981 : vector<16x32xf32>
    %cst_449 = arith.constant dense<0.000000e+00> : vector<16xf32>
    %983 = vector.multi_reduction <add>, %982, %cst_449 [1] : vector<16x32xf32> to vector<16xf32>
    %984 = vector.shape_cast %983 : vector<16xf32> to vector<16x1xf32>
    %cst_450 = arith.constant 3.200000e+01 : f32
    %985 = vector.broadcast %cst_450 : f32 to vector<16x1xf32>
    %986 = arith.divf %984, %985 : vector<16x1xf32>
    %987 = vector.broadcast %979 : vector<16x1xf32> to vector<16x32xf32>
    %988 = arith.subf %971, %987 : vector<16x32xf32>
    %cst_451 = arith.constant 9.99999974E-6 : f32
    %989 = vector.broadcast %cst_451 : f32 to vector<16x1xf32>
    %990 = arith.addf %986, %989 : vector<16x1xf32>
    %991 = math.rsqrt %990 : vector<16x1xf32>
    %992 = vector.broadcast %991 : vector<16x1xf32> to vector<16x32xf32>
    %993 = arith.mulf %988, %992 : vector<16x32xf32>
    %994 = vector.broadcast %973 : vector<1x32xf32> to vector<16x32xf32>
    %995 = arith.mulf %993, %994 : vector<16x32xf32>
    %996 = vector.broadcast %975 : vector<1x32xf32> to vector<16x32xf32>
    %997 = arith.addf %995, %996 : vector<16x32xf32>
    %c1_452 = arith.constant 1 : index
    %c0_453 = arith.constant 0 : index
    %c0_454 = arith.constant 0 : index
    %998 = vector.load %arg12[%c1_452, %c0_453, %c0_454] : memref<2x32x512xf32, #tpu.memory_space<vmem>>, vector<1x32x512xf32>
    %999 = vector.shape_cast %998 : vector<1x32x512xf32> to vector<32x512xf32>
    %cst_455 = arith.constant dense<0.000000e+00> : vector<16x512xf32>
    %1000 = tpu.matmul %997, %999, %cst_455 {dimension_numbers = #tpu.dot_dimension_numbers<[1], [0], [0], [1], [0, 0, 1, 1], [], []>} : vector<16x32xf32>, vector<32x512xf32>, vector<16x512xf32> -> vector<16x512xf32>
    %c1_456 = arith.constant 1 : index
    %c0_457 = arith.constant 0 : index
    %c0_458 = arith.constant 0 : index
    %1001 = vector.load %arg13[%c1_456, %c0_457, %c0_458] : memref<2x1x512xf32, #tpu.memory_space<vmem>>, vector<1x1x512xf32>
    %1002 = vector.shape_cast %1001 : vector<1x1x512xf32> to vector<1x512xf32>
    %1003 = vector.broadcast %1002 : vector<1x512xf32> to vector<16x512xf32>
    %1004 = arith.addf %1000, %1003 : vector<16x512xf32>
    %cst_459 = arith.constant 5.000000e-01 : f32
    %1005 = vector.broadcast %cst_459 : f32 to vector<16x512xf32>
    %1006 = arith.mulf %1005, %1004 : vector<16x512xf32>
    %cst_460 = arith.constant 0.707106769 : f32
    %1007 = vector.broadcast %cst_460 : f32 to vector<16x512xf32>
    %1008 = arith.mulf %1004, %1007 : vector<16x512xf32>
    %1009 = math.erf %1008 : vector<16x512xf32>
    %cst_461 = arith.constant 1.000000e+00 : f32
    %1010 = vector.broadcast %cst_461 : f32 to vector<16x512xf32>
    %1011 = arith.addf %1010, %1009 : vector<16x512xf32>
    %1012 = arith.mulf %1006, %1011 : vector<16x512xf32>
    %c1_462 = arith.constant 1 : index
    %c0_463 = arith.constant 0 : index
    %c0_464 = arith.constant 0 : index
    %1013 = vector.load %arg16[%c1_462, %c0_463, %c0_464] : memref<2x32x128xf32, #tpu.memory_space<vmem>>, vector<1x32x128xf32>
    %1014 = vector.shape_cast %1013 : vector<1x32x128xf32> to vector<32x128xf32>
    %cst_465 = arith.constant dense<0.000000e+00> : vector<16x128xf32>
    %1015 = tpu.matmul %997, %1014, %cst_465 {dimension_numbers = #tpu.dot_dimension_numbers<[1], [0], [0], [1], [0, 0, 1, 1], [], []>} : vector<16x32xf32>, vector<32x128xf32>, vector<16x128xf32> -> vector<16x128xf32>
    %c1_466 = arith.constant 1 : index
    %c0_467 = arith.constant 0 : index
    %c0_468 = arith.constant 0 : index
    %1016 = vector.load %arg17[%c1_466, %c0_467, %c0_468] : memref<2x1x128xf32, #tpu.memory_space<vmem>>, vector<1x1x128xf32>
    %1017 = vector.shape_cast %1016 : vector<1x1x128xf32> to vector<1x128xf32>
    %1018 = vector.broadcast %1017 : vector<1x128xf32> to vector<16x128xf32>
    %1019 = arith.addf %1015, %1018 : vector<16x128xf32>
    %1020 = arith.negf %1019 : vector<16x128xf32>
    %1021 = math.exp %1020 : vector<16x128xf32>
    %cst_469 = arith.constant 1.000000e+00 : f32
    %1022 = vector.broadcast %cst_469 : f32 to vector<16x128xf32>
    %1023 = arith.addf %1022, %1021 : vector<16x128xf32>
    %1024 = arith.divf %1022, %1023 : vector<16x128xf32>
    %cst_470 = arith.constant 0.000000e+00 : f32
    %1025 = vector.broadcast %cst_470 : f32 to vector<16x32xf32>
    %1026 = vector.extract_strided_slice %1012 {offsets = [0, 0], sizes = [16, 128], strides = [1, 1]} : vector<16x512xf32> to vector<16x128xf32>
    %c1_471 = arith.constant 1 : index
    %c0_472 = arith.constant 0 : index
    %c0_473 = arith.constant 0 : index
    %c0_474 = arith.constant 0 : index
    %1027 = vector.load %arg14[%c1_471, %c0_472, %c0_473, %c0_474] : memref<2x4x128x32xf32, #tpu.memory_space<vmem>>, vector<1x1x128x32xf32>
    %1028 = vector.shape_cast %1027 : vector<1x1x128x32xf32> to vector<128x32xf32>
    %cst_475 = arith.constant dense<0.000000e+00> : vector<16x32xf32>
    %1029 = tpu.matmul %1026, %1028, %cst_475 {dimension_numbers = #tpu.dot_dimension_numbers<[1], [0], [0], [1], [0, 0, 1, 1], [], []>} : vector<16x128xf32>, vector<128x32xf32>, vector<16x32xf32> -> vector<16x32xf32>
    %c1_476 = arith.constant 1 : index
    %c0_477 = arith.constant 0 : index
    %c0_478 = arith.constant 0 : index
    %c0_479 = arith.constant 0 : index
    %1030 = vector.load %arg15[%c1_476, %c0_477, %c0_478, %c0_479] : memref<2x4x1x32xf32, #tpu.memory_space<vmem>>, vector<1x1x1x32xf32>
    %1031 = vector.shape_cast %1030 : vector<1x1x1x32xf32> to vector<1x32xf32>
    %1032 = vector.broadcast %1031 : vector<1x32xf32> to vector<16x32xf32>
    %1033 = arith.addf %1029, %1032 : vector<16x32xf32>
    %1034 = vector.extract_strided_slice %1024 {offsets = [0, 0], sizes = [16, 32], strides = [1, 1]} : vector<16x128xf32> to vector<16x32xf32>
    %1035 = arith.mulf %1033, %1034 : vector<16x32xf32>
    %c1_480 = arith.constant 1 : index
    %c0_481 = arith.constant 0 : index
    %c0_482 = arith.constant 0 : index
    %c0_483 = arith.constant 0 : index
    %1036 = vector.load %arg18[%c1_480, %c0_481, %c0_482, %c0_483] : memref<2x4x1x32xf32, #tpu.memory_space<vmem>>, vector<1x1x1x32xf32>
    %1037 = vector.shape_cast %1036 : vector<1x1x1x32xf32> to vector<1x32xf32>
    %c1_484 = arith.constant 1 : index
    %c0_485 = arith.constant 0 : index
    %c0_486 = arith.constant 0 : index
    %c0_487 = arith.constant 0 : index
    %1038 = vector.load %arg19[%c1_484, %c0_485, %c0_486, %c0_487] : memref<2x4x1x32xf32, #tpu.memory_space<vmem>>, vector<1x1x1x32xf32>
    %1039 = vector.shape_cast %1038 : vector<1x1x1x32xf32> to vector<1x32xf32>
    %cst_488 = arith.constant dense<0.000000e+00> : vector<16xf32>
    %1040 = vector.multi_reduction <add>, %1035, %cst_488 [1] : vector<16x32xf32> to vector<16xf32>
    %1041 = vector.shape_cast %1040 : vector<16xf32> to vector<16x1xf32>
    %cst_489 = arith.constant 3.200000e+01 : f32
    %1042 = vector.broadcast %cst_489 : f32 to vector<16x1xf32>
    %1043 = arith.divf %1041, %1042 : vector<16x1xf32>
    %1044 = vector.broadcast %1043 : vector<16x1xf32> to vector<16x32xf32>
    %1045 = arith.subf %1035, %1044 : vector<16x32xf32>
    %1046 = arith.mulf %1045, %1045 : vector<16x32xf32>
    %cst_490 = arith.constant dense<0.000000e+00> : vector<16xf32>
    %1047 = vector.multi_reduction <add>, %1046, %cst_490 [1] : vector<16x32xf32> to vector<16xf32>
    %1048 = vector.shape_cast %1047 : vector<16xf32> to vector<16x1xf32>
    %cst_491 = arith.constant 3.200000e+01 : f32
    %1049 = vector.broadcast %cst_491 : f32 to vector<16x1xf32>
    %1050 = arith.divf %1048, %1049 : vector<16x1xf32>
    %1051 = vector.broadcast %1043 : vector<16x1xf32> to vector<16x32xf32>
    %1052 = arith.subf %1035, %1051 : vector<16x32xf32>
    %cst_492 = arith.constant 9.99999974E-6 : f32
    %1053 = vector.broadcast %cst_492 : f32 to vector<16x1xf32>
    %1054 = arith.addf %1050, %1053 : vector<16x1xf32>
    %1055 = math.rsqrt %1054 : vector<16x1xf32>
    %1056 = vector.broadcast %1055 : vector<16x1xf32> to vector<16x32xf32>
    %1057 = arith.mulf %1052, %1056 : vector<16x32xf32>
    %1058 = vector.broadcast %1037 : vector<1x32xf32> to vector<16x32xf32>
    %1059 = arith.mulf %1057, %1058 : vector<16x32xf32>
    %1060 = vector.broadcast %1039 : vector<1x32xf32> to vector<16x32xf32>
    %1061 = arith.addf %1059, %1060 : vector<16x32xf32>
    %1062 = arith.addf %1025, %1061 : vector<16x32xf32>
    %1063 = vector.extract_strided_slice %1012 {offsets = [0, 128], sizes = [16, 128], strides = [1, 1]} : vector<16x512xf32> to vector<16x128xf32>
    %c1_493 = arith.constant 1 : index
    %c1_494 = arith.constant 1 : index
    %c0_495 = arith.constant 0 : index
    %c0_496 = arith.constant 0 : index
    %1064 = vector.load %arg14[%c1_493, %c1_494, %c0_495, %c0_496] : memref<2x4x128x32xf32, #tpu.memory_space<vmem>>, vector<1x1x128x32xf32>
    %1065 = vector.shape_cast %1064 : vector<1x1x128x32xf32> to vector<128x32xf32>
    %cst_497 = arith.constant dense<0.000000e+00> : vector<16x32xf32>
    %1066 = tpu.matmul %1063, %1065, %cst_497 {dimension_numbers = #tpu.dot_dimension_numbers<[1], [0], [0], [1], [0, 0, 1, 1], [], []>} : vector<16x128xf32>, vector<128x32xf32>, vector<16x32xf32> -> vector<16x32xf32>
    %c1_498 = arith.constant 1 : index
    %c1_499 = arith.constant 1 : index
    %c0_500 = arith.constant 0 : index
    %c0_501 = arith.constant 0 : index
    %1067 = vector.load %arg15[%c1_498, %c1_499, %c0_500, %c0_501] : memref<2x4x1x32xf32, #tpu.memory_space<vmem>>, vector<1x1x1x32xf32>
    %1068 = vector.shape_cast %1067 : vector<1x1x1x32xf32> to vector<1x32xf32>
    %1069 = vector.broadcast %1068 : vector<1x32xf32> to vector<16x32xf32>
    %1070 = arith.addf %1066, %1069 : vector<16x32xf32>
    %1071 = vector.extract_strided_slice %1024 {offsets = [0, 32], sizes = [16, 32], strides = [1, 1]} : vector<16x128xf32> to vector<16x32xf32>
    %1072 = arith.mulf %1070, %1071 : vector<16x32xf32>
    %c1_502 = arith.constant 1 : index
    %c1_503 = arith.constant 1 : index
    %c0_504 = arith.constant 0 : index
    %c0_505 = arith.constant 0 : index
    %1073 = vector.load %arg18[%c1_502, %c1_503, %c0_504, %c0_505] : memref<2x4x1x32xf32, #tpu.memory_space<vmem>>, vector<1x1x1x32xf32>
    %1074 = vector.shape_cast %1073 : vector<1x1x1x32xf32> to vector<1x32xf32>
    %c1_506 = arith.constant 1 : index
    %c1_507 = arith.constant 1 : index
    %c0_508 = arith.constant 0 : index
    %c0_509 = arith.constant 0 : index
    %1075 = vector.load %arg19[%c1_506, %c1_507, %c0_508, %c0_509] : memref<2x4x1x32xf32, #tpu.memory_space<vmem>>, vector<1x1x1x32xf32>
    %1076 = vector.shape_cast %1075 : vector<1x1x1x32xf32> to vector<1x32xf32>
    %cst_510 = arith.constant dense<0.000000e+00> : vector<16xf32>
    %1077 = vector.multi_reduction <add>, %1072, %cst_510 [1] : vector<16x32xf32> to vector<16xf32>
    %1078 = vector.shape_cast %1077 : vector<16xf32> to vector<16x1xf32>
    %cst_511 = arith.constant 3.200000e+01 : f32
    %1079 = vector.broadcast %cst_511 : f32 to vector<16x1xf32>
    %1080 = arith.divf %1078, %1079 : vector<16x1xf32>
    %1081 = vector.broadcast %1080 : vector<16x1xf32> to vector<16x32xf32>
    %1082 = arith.subf %1072, %1081 : vector<16x32xf32>
    %1083 = arith.mulf %1082, %1082 : vector<16x32xf32>
    %cst_512 = arith.constant dense<0.000000e+00> : vector<16xf32>
    %1084 = vector.multi_reduction <add>, %1083, %cst_512 [1] : vector<16x32xf32> to vector<16xf32>
    %1085 = vector.shape_cast %1084 : vector<16xf32> to vector<16x1xf32>
    %cst_513 = arith.constant 3.200000e+01 : f32
    %1086 = vector.broadcast %cst_513 : f32 to vector<16x1xf32>
    %1087 = arith.divf %1085, %1086 : vector<16x1xf32>
    %1088 = vector.broadcast %1080 : vector<16x1xf32> to vector<16x32xf32>
    %1089 = arith.subf %1072, %1088 : vector<16x32xf32>
    %cst_514 = arith.constant 9.99999974E-6 : f32
    %1090 = vector.broadcast %cst_514 : f32 to vector<16x1xf32>
    %1091 = arith.addf %1087, %1090 : vector<16x1xf32>
    %1092 = math.rsqrt %1091 : vector<16x1xf32>
    %1093 = vector.broadcast %1092 : vector<16x1xf32> to vector<16x32xf32>
    %1094 = arith.mulf %1089, %1093 : vector<16x32xf32>
    %1095 = vector.broadcast %1074 : vector<1x32xf32> to vector<16x32xf32>
    %1096 = arith.mulf %1094, %1095 : vector<16x32xf32>
    %1097 = vector.broadcast %1076 : vector<1x32xf32> to vector<16x32xf32>
    %1098 = arith.addf %1096, %1097 : vector<16x32xf32>
    %1099 = arith.addf %1062, %1098 : vector<16x32xf32>
    %1100 = vector.extract_strided_slice %1012 {offsets = [0, 256], sizes = [16, 128], strides = [1, 1]} : vector<16x512xf32> to vector<16x128xf32>
    %c1_515 = arith.constant 1 : index
    %c2_516 = arith.constant 2 : index
    %c0_517 = arith.constant 0 : index
    %c0_518 = arith.constant 0 : index
    %1101 = vector.load %arg14[%c1_515, %c2_516, %c0_517, %c0_518] : memref<2x4x128x32xf32, #tpu.memory_space<vmem>>, vector<1x1x128x32xf32>
    %1102 = vector.shape_cast %1101 : vector<1x1x128x32xf32> to vector<128x32xf32>
    %cst_519 = arith.constant dense<0.000000e+00> : vector<16x32xf32>
    %1103 = tpu.matmul %1100, %1102, %cst_519 {dimension_numbers = #tpu.dot_dimension_numbers<[1], [0], [0], [1], [0, 0, 1, 1], [], []>} : vector<16x128xf32>, vector<128x32xf32>, vector<16x32xf32> -> vector<16x32xf32>
    %c1_520 = arith.constant 1 : index
    %c2_521 = arith.constant 2 : index
    %c0_522 = arith.constant 0 : index
    %c0_523 = arith.constant 0 : index
    %1104 = vector.load %arg15[%c1_520, %c2_521, %c0_522, %c0_523] : memref<2x4x1x32xf32, #tpu.memory_space<vmem>>, vector<1x1x1x32xf32>
    %1105 = vector.shape_cast %1104 : vector<1x1x1x32xf32> to vector<1x32xf32>
    %1106 = vector.broadcast %1105 : vector<1x32xf32> to vector<16x32xf32>
    %1107 = arith.addf %1103, %1106 : vector<16x32xf32>
    %1108 = vector.extract_strided_slice %1024 {offsets = [0, 64], sizes = [16, 32], strides = [1, 1]} : vector<16x128xf32> to vector<16x32xf32>
    %1109 = arith.mulf %1107, %1108 : vector<16x32xf32>
    %c1_524 = arith.constant 1 : index
    %c2_525 = arith.constant 2 : index
    %c0_526 = arith.constant 0 : index
    %c0_527 = arith.constant 0 : index
    %1110 = vector.load %arg18[%c1_524, %c2_525, %c0_526, %c0_527] : memref<2x4x1x32xf32, #tpu.memory_space<vmem>>, vector<1x1x1x32xf32>
    %1111 = vector.shape_cast %1110 : vector<1x1x1x32xf32> to vector<1x32xf32>
    %c1_528 = arith.constant 1 : index
    %c2_529 = arith.constant 2 : index
    %c0_530 = arith.constant 0 : index
    %c0_531 = arith.constant 0 : index
    %1112 = vector.load %arg19[%c1_528, %c2_529, %c0_530, %c0_531] : memref<2x4x1x32xf32, #tpu.memory_space<vmem>>, vector<1x1x1x32xf32>
    %1113 = vector.shape_cast %1112 : vector<1x1x1x32xf32> to vector<1x32xf32>
    %cst_532 = arith.constant dense<0.000000e+00> : vector<16xf32>
    %1114 = vector.multi_reduction <add>, %1109, %cst_532 [1] : vector<16x32xf32> to vector<16xf32>
    %1115 = vector.shape_cast %1114 : vector<16xf32> to vector<16x1xf32>
    %cst_533 = arith.constant 3.200000e+01 : f32
    %1116 = vector.broadcast %cst_533 : f32 to vector<16x1xf32>
    %1117 = arith.divf %1115, %1116 : vector<16x1xf32>
    %1118 = vector.broadcast %1117 : vector<16x1xf32> to vector<16x32xf32>
    %1119 = arith.subf %1109, %1118 : vector<16x32xf32>
    %1120 = arith.mulf %1119, %1119 : vector<16x32xf32>
    %cst_534 = arith.constant dense<0.000000e+00> : vector<16xf32>
    %1121 = vector.multi_reduction <add>, %1120, %cst_534 [1] : vector<16x32xf32> to vector<16xf32>
    %1122 = vector.shape_cast %1121 : vector<16xf32> to vector<16x1xf32>
    %cst_535 = arith.constant 3.200000e+01 : f32
    %1123 = vector.broadcast %cst_535 : f32 to vector<16x1xf32>
    %1124 = arith.divf %1122, %1123 : vector<16x1xf32>
    %1125 = vector.broadcast %1117 : vector<16x1xf32> to vector<16x32xf32>
    %1126 = arith.subf %1109, %1125 : vector<16x32xf32>
    %cst_536 = arith.constant 9.99999974E-6 : f32
    %1127 = vector.broadcast %cst_536 : f32 to vector<16x1xf32>
    %1128 = arith.addf %1124, %1127 : vector<16x1xf32>
    %1129 = math.rsqrt %1128 : vector<16x1xf32>
    %1130 = vector.broadcast %1129 : vector<16x1xf32> to vector<16x32xf32>
    %1131 = arith.mulf %1126, %1130 : vector<16x32xf32>
    %1132 = vector.broadcast %1111 : vector<1x32xf32> to vector<16x32xf32>
    %1133 = arith.mulf %1131, %1132 : vector<16x32xf32>
    %1134 = vector.broadcast %1113 : vector<1x32xf32> to vector<16x32xf32>
    %1135 = arith.addf %1133, %1134 : vector<16x32xf32>
    %1136 = arith.addf %1099, %1135 : vector<16x32xf32>
    %1137 = vector.extract_strided_slice %1012 {offsets = [0, 384], sizes = [16, 128], strides = [1, 1]} : vector<16x512xf32> to vector<16x128xf32>
    %c1_537 = arith.constant 1 : index
    %c3_538 = arith.constant 3 : index
    %c0_539 = arith.constant 0 : index
    %c0_540 = arith.constant 0 : index
    %1138 = vector.load %arg14[%c1_537, %c3_538, %c0_539, %c0_540] : memref<2x4x128x32xf32, #tpu.memory_space<vmem>>, vector<1x1x128x32xf32>
    %1139 = vector.shape_cast %1138 : vector<1x1x128x32xf32> to vector<128x32xf32>
    %cst_541 = arith.constant dense<0.000000e+00> : vector<16x32xf32>
    %1140 = tpu.matmul %1137, %1139, %cst_541 {dimension_numbers = #tpu.dot_dimension_numbers<[1], [0], [0], [1], [0, 0, 1, 1], [], []>} : vector<16x128xf32>, vector<128x32xf32>, vector<16x32xf32> -> vector<16x32xf32>
    %c1_542 = arith.constant 1 : index
    %c3_543 = arith.constant 3 : index
    %c0_544 = arith.constant 0 : index
    %c0_545 = arith.constant 0 : index
    %1141 = vector.load %arg15[%c1_542, %c3_543, %c0_544, %c0_545] : memref<2x4x1x32xf32, #tpu.memory_space<vmem>>, vector<1x1x1x32xf32>
    %1142 = vector.shape_cast %1141 : vector<1x1x1x32xf32> to vector<1x32xf32>
    %1143 = vector.broadcast %1142 : vector<1x32xf32> to vector<16x32xf32>
    %1144 = arith.addf %1140, %1143 : vector<16x32xf32>
    %1145 = vector.extract_strided_slice %1024 {offsets = [0, 96], sizes = [16, 32], strides = [1, 1]} : vector<16x128xf32> to vector<16x32xf32>
    %1146 = arith.mulf %1144, %1145 : vector<16x32xf32>
    %c1_546 = arith.constant 1 : index
    %c3_547 = arith.constant 3 : index
    %c0_548 = arith.constant 0 : index
    %c0_549 = arith.constant 0 : index
    %1147 = vector.load %arg18[%c1_546, %c3_547, %c0_548, %c0_549] : memref<2x4x1x32xf32, #tpu.memory_space<vmem>>, vector<1x1x1x32xf32>
    %1148 = vector.shape_cast %1147 : vector<1x1x1x32xf32> to vector<1x32xf32>
    %c1_550 = arith.constant 1 : index
    %c3_551 = arith.constant 3 : index
    %c0_552 = arith.constant 0 : index
    %c0_553 = arith.constant 0 : index
    %1149 = vector.load %arg19[%c1_550, %c3_551, %c0_552, %c0_553] : memref<2x4x1x32xf32, #tpu.memory_space<vmem>>, vector<1x1x1x32xf32>
    %1150 = vector.shape_cast %1149 : vector<1x1x1x32xf32> to vector<1x32xf32>
    %cst_554 = arith.constant dense<0.000000e+00> : vector<16xf32>
    %1151 = vector.multi_reduction <add>, %1146, %cst_554 [1] : vector<16x32xf32> to vector<16xf32>
    %1152 = vector.shape_cast %1151 : vector<16xf32> to vector<16x1xf32>
    %cst_555 = arith.constant 3.200000e+01 : f32
    %1153 = vector.broadcast %cst_555 : f32 to vector<16x1xf32>
    %1154 = arith.divf %1152, %1153 : vector<16x1xf32>
    %1155 = vector.broadcast %1154 : vector<16x1xf32> to vector<16x32xf32>
    %1156 = arith.subf %1146, %1155 : vector<16x32xf32>
    %1157 = arith.mulf %1156, %1156 : vector<16x32xf32>
    %cst_556 = arith.constant dense<0.000000e+00> : vector<16xf32>
    %1158 = vector.multi_reduction <add>, %1157, %cst_556 [1] : vector<16x32xf32> to vector<16xf32>
    %1159 = vector.shape_cast %1158 : vector<16xf32> to vector<16x1xf32>
    %cst_557 = arith.constant 3.200000e+01 : f32
    %1160 = vector.broadcast %cst_557 : f32 to vector<16x1xf32>
    %1161 = arith.divf %1159, %1160 : vector<16x1xf32>
    %1162 = vector.broadcast %1154 : vector<16x1xf32> to vector<16x32xf32>
    %1163 = arith.subf %1146, %1162 : vector<16x32xf32>
    %cst_558 = arith.constant 9.99999974E-6 : f32
    %1164 = vector.broadcast %cst_558 : f32 to vector<16x1xf32>
    %1165 = arith.addf %1161, %1164 : vector<16x1xf32>
    %1166 = math.rsqrt %1165 : vector<16x1xf32>
    %1167 = vector.broadcast %1166 : vector<16x1xf32> to vector<16x32xf32>
    %1168 = arith.mulf %1163, %1167 : vector<16x32xf32>
    %1169 = vector.broadcast %1148 : vector<1x32xf32> to vector<16x32xf32>
    %1170 = arith.mulf %1168, %1169 : vector<16x32xf32>
    %1171 = vector.broadcast %1150 : vector<1x32xf32> to vector<16x32xf32>
    %1172 = arith.addf %1170, %1171 : vector<16x32xf32>
    %1173 = arith.addf %1136, %1172 : vector<16x32xf32>
    %cst_559 = arith.constant 2.500000e-01 : f32
    %1174 = vector.broadcast %cst_559 : f32 to vector<16x32xf32>
    %1175 = arith.mulf %1173, %1174 : vector<16x32xf32>
    %1176 = arith.addf %997, %1175 : vector<16x32xf32>
    %c1_560 = arith.constant 1 : index
    %c0_561 = arith.constant 0 : index
    %c0_562 = arith.constant 0 : index
    %1177 = vector.load %arg20[%c1_560, %c0_561, %c0_562] : memref<2x1x32xf32, #tpu.memory_space<vmem>>, vector<1x1x32xf32>
    %1178 = vector.shape_cast %1177 : vector<1x1x32xf32> to vector<1x32xf32>
    %c1_563 = arith.constant 1 : index
    %c0_564 = arith.constant 0 : index
    %c0_565 = arith.constant 0 : index
    %1179 = vector.load %arg21[%c1_563, %c0_564, %c0_565] : memref<2x1x32xf32, #tpu.memory_space<vmem>>, vector<1x1x32xf32>
    %1180 = vector.shape_cast %1179 : vector<1x1x32xf32> to vector<1x32xf32>
    %cst_566 = arith.constant dense<0.000000e+00> : vector<16xf32>
    %1181 = vector.multi_reduction <add>, %1176, %cst_566 [1] : vector<16x32xf32> to vector<16xf32>
    %1182 = vector.shape_cast %1181 : vector<16xf32> to vector<16x1xf32>
    %cst_567 = arith.constant 3.200000e+01 : f32
    %1183 = vector.broadcast %cst_567 : f32 to vector<16x1xf32>
    %1184 = arith.divf %1182, %1183 : vector<16x1xf32>
    %1185 = vector.broadcast %1184 : vector<16x1xf32> to vector<16x32xf32>
    %1186 = arith.subf %1176, %1185 : vector<16x32xf32>
    %1187 = arith.mulf %1186, %1186 : vector<16x32xf32>
    %cst_568 = arith.constant dense<0.000000e+00> : vector<16xf32>
    %1188 = vector.multi_reduction <add>, %1187, %cst_568 [1] : vector<16x32xf32> to vector<16xf32>
    %1189 = vector.shape_cast %1188 : vector<16xf32> to vector<16x1xf32>
    %cst_569 = arith.constant 3.200000e+01 : f32
    %1190 = vector.broadcast %cst_569 : f32 to vector<16x1xf32>
    %1191 = arith.divf %1189, %1190 : vector<16x1xf32>
    %1192 = vector.broadcast %1184 : vector<16x1xf32> to vector<16x32xf32>
    %1193 = arith.subf %1176, %1192 : vector<16x32xf32>
    %cst_570 = arith.constant 9.99999974E-6 : f32
    %1194 = vector.broadcast %cst_570 : f32 to vector<16x1xf32>
    %1195 = arith.addf %1191, %1194 : vector<16x1xf32>
    %1196 = math.rsqrt %1195 : vector<16x1xf32>
    %1197 = vector.broadcast %1196 : vector<16x1xf32> to vector<16x32xf32>
    %1198 = arith.mulf %1193, %1197 : vector<16x32xf32>
    %1199 = vector.broadcast %1178 : vector<1x32xf32> to vector<16x32xf32>
    %1200 = arith.mulf %1198, %1199 : vector<16x32xf32>
    %1201 = vector.broadcast %1180 : vector<1x32xf32> to vector<16x32xf32>
    %1202 = arith.addf %1200, %1201 : vector<16x32xf32>
    %c0_571 = arith.constant 0 : index
    %c0_572 = arith.constant 0 : index
    %1203 = vector.load %arg22[%c0_571, %c0_572] : memref<32x128xf32, #tpu.memory_space<vmem>>, vector<32x128xf32>
    %cst_573 = arith.constant dense<0.000000e+00> : vector<16x128xf32>
    %1204 = tpu.matmul %1202, %1203, %cst_573 {dimension_numbers = #tpu.dot_dimension_numbers<[1], [0], [0], [1], [0, 0, 1, 1], [], []>} : vector<16x32xf32>, vector<32x128xf32>, vector<16x128xf32> -> vector<16x128xf32>
    %c0_574 = arith.constant 0 : index
    %c0_575 = arith.constant 0 : index
    %1205 = vector.load %arg23[%c0_574, %c0_575] : memref<1x128xf32, #tpu.memory_space<vmem>>, vector<1x128xf32>
    %1206 = vector.broadcast %1205 : vector<1x128xf32> to vector<16x128xf32>
    %1207 = arith.addf %1204, %1206 : vector<16x128xf32>
    %c0_576 = arith.constant 0 : index
    %c0_577 = arith.constant 0 : index
    %1208 = vector.load %arg24[%c0_576, %c0_577] : memref<16x128xf32, #tpu.memory_space<vmem>>, vector<16x128xf32>
    tpu.vector_store %arg24[%c0_576, %c0_577], %1207 {strides = array<i32>} : memref<16x128xf32, #tpu.memory_space<vmem>>, vector<16x128xf32>,
    return
  }
}

</mosaic_0001>

<llo_original>
// kernel: hypergraph_transformer_forward.1
$region0: #{hypergraph_transformer_forward.1}
  #allocation0 [shape = 'u32[]', space=smem, size = 0x4, offset = 0x4, fixed_abs, tag = 'smem constant byte address 0x4 - core index']
  #allocation1 [shape = 'u32[144,128]{1,0:T(1,128)}', space=vmem, size = 0x12000, scoped, tag = 'internal scratch']
  %s0 = inlined_call_operand.vmem [shape: f32[16,32], index: 0, kind: input, shape index: {}]
  %s1 = inlined_call_operand.vmem [shape: f32[2,32,128], index: 1, kind: input, shape index: {}]
  %s2 = inlined_call_operand.vmem [shape: f32[2,1,128], index: 2, kind: input, shape index: {}]
  %s3 = inlined_call_operand.vmem [shape: f32[2,32,128], index: 3, kind: input, shape index: {}]
  %s4 = inlined_call_operand.vmem [shape: f32[2,1,128], index: 4, kind: input, shape index: {}]
  %s5 = inlined_call_operand.vmem [shape: f32[2,32,128], index: 5, kind: input, shape index: {}]
  %s6 = inlined_call_operand.vmem [shape: f32[2,1,128], index: 6, kind: input, shape index: {}]
  %s7 = inlined_call_operand.vmem [shape: f32[2,128,32], index: 7, kind: input, shape index: {}]
  %s8 = inlined_call_operand.vmem [shape: f32[2,1,32], index: 8, kind: input, shape index: {}]
  %s9 = inlined_call_operand.vmem [shape: f32[2,4,8,8], index: 9, kind: input, shape index: {}]
  %s10 = inlined_call_operand.vmem [shape: f32[2,1,32], index: 10, kind: input, shape index: {}]
  %s11 = inlined_call_operand.vmem [shape: f32[2,1,32], index: 11, kind: input, shape index: {}]
  %s12 = inlined_call_operand.vmem [shape: f32[2,32,512], index: 12, kind: input, shape index: {}]
  %s13 = inlined_call_operand.vmem [shape: f32[2,1,512], index: 13, kind: input, shape index: {}]
  %s14 = inlined_call_operand.vmem [shape: f32[2,4,128,32], index: 14, kind: input, shape index: {}]
  %s15 = inlined_call_operand.vmem [shape: f32[2,4,1,32], index: 15, kind: input, shape index: {}]
  %s16 = inlined_call_operand.vmem [shape: f32[2,32,128], index: 16, kind: input, shape index: {}]
  %s17 = inlined_call_operand.vmem [shape: f32[2,1,128], index: 17, kind: input, shape index: {}]
  %s18 = inlined_call_operand.vmem [shape: f32[2,4,1,32], index: 18, kind: input, shape index: {}]
  %s19 = inlined_call_operand.vmem [shape: f32[2,4,1,32], index: 19, kind: input, shape index: {}]
  %s20 = inlined_call_operand.vmem [shape: f32[2,1,32], index: 20, kind: input, shape index: {}]
  %s21 = inlined_call_operand.vmem [shape: f32[2,1,32], index: 21, kind: input, shape index: {}]
  %s22 = inlined_call_operand.vmem [shape: f32[32,128], index: 22, kind: input, shape index: {}]
  %s23 = inlined_call_operand.vmem [shape: f32[1,128], index: 23, kind: input, shape index: {}]
  %s24 = inlined_call_operand.hbm [shape: f32[16,128], index: 24, kind: output, shape index: {}]
  %s25 = sld [smem:[#allocation0]]
  $region106: #{hypergraph_transformer_forward.1} parent=0
    _
  %s27 = ssub.s32 1, %s25
  %s28 = scalar_select 0, %s27, %s25
  $region1: #{hypergraph_transformer_forward.1} parent=0
    #allocation2 [shape = 'u8[8192]{0}', space=vmem, size = 0x2000, scoped, tag = 'output window, operand 0, single buffered']
    #allocation3 [shape = 's32[1]{0}', space=sflag, size = 0x4, scoped, tag = 'scoped memory for hypergraph_transformer_forward.1']
    %29 = vsyncpa [#allocation3], 0
    // Predicated region
    $region2: #{hypergraph_transformer_forward.1} parent=1 // pred_check
      _
    $region3: #{hypergraph_transformer_forward.1} parent=1 // pred_check_branch
      %31 = sbr.rel (0) target = $region5
    $region4: #{hypergraph_transformer_forward.1} parent=1 // pred_region
      _
    $region5: #{hypergraph_transformer_forward.1} parent=1 // pred_fallthru
      _
    // Predicated region
    $region6: #{hypergraph_transformer_forward.1} parent=1 // pred_check
      _
    $region7: #{hypergraph_transformer_forward.1} parent=1 // pred_check_branch
      %33 = sbr.rel (0) target = $region9
    $region8: #{hypergraph_transformer_forward.1} parent=1 // pred_region
      _
    $region9: #{hypergraph_transformer_forward.1} parent=1 // pred_fallthru
      _
    // Predicated region
    $region10: #{hypergraph_transformer_forward.1} parent=1 // pred_check
      _
    $region11: #{hypergraph_transformer_forward.1} parent=1 // pred_check_branch
      %35 = sbr.rel (0) target = $region13
    $region12: #{hypergraph_transformer_forward.1} parent=1 // pred_region
      _
    $region13: #{hypergraph_transformer_forward.1} parent=1 // pred_fallthru
      _
    // Predicated region
    $region14: #{hypergraph_transformer_forward.1} parent=1 // pred_check
      _
    $region15: #{hypergraph_transformer_forward.1} parent=1 // pred_check_branch
      %37 = sbr.rel (0) target = $region17
    $region16: #{hypergraph_transformer_forward.1} parent=1 // pred_region
      _
    $region17: #{hypergraph_transformer_forward.1} parent=1 // pred_fallthru
      _
    // Predicated region
    $region18: #{hypergraph_transformer_forward.1} parent=1 // pred_check
      _
    $region19: #{hypergraph_transformer_forward.1} parent=1 // pred_check_branch
      %39 = sbr.rel (0) target = $region21
    $region20: #{hypergraph_transformer_forward.1} parent=1 // pred_region
      _
    $region21: #{hypergraph_transformer_forward.1} parent=1 // pred_fallthru
      _
    // Predicated region
    $region22: #{hypergraph_transformer_forward.1} parent=1 // pred_check
      _
    $region23: #{hypergraph_transformer_forward.1} parent=1 // pred_check_branch
      %41 = sbr.rel (0) target = $region25
    $region24: #{hypergraph_transformer_forward.1} parent=1 // pred_region
      _
    $region25: #{hypergraph_transformer_forward.1} parent=1 // pred_fallthru
      _
    // Predicated region
    $region26: #{hypergraph_transformer_forward.1} parent=1 // pred_check
      _
    $region27: #{hypergraph_transformer_forward.1} parent=1 // pred_check_branch
      %43 = sbr.rel (0) target = $region29
    $region28: #{hypergraph_transformer_forward.1} parent=1 // pred_region
      _
    $region29: #{hypergraph_transformer_forward.1} parent=1 // pred_fallthru
      _
    // Predicated region
    $region30: #{hypergraph_transformer_forward.1} parent=1 // pred_check
      _
    $region31: #{hypergraph_transformer_forward.1} parent=1 // pred_check_branch
      %45 = sbr.rel (0) target = $region33
    $region32: #{hypergraph_transformer_forward.1} parent=1 // pred_region
      _
    $region33: #{hypergraph_transformer_forward.1} parent=1 // pred_fallthru
      _
    // Predicated region
    $region34: #{hypergraph_transformer_forward.1} parent=1 // pred_check
      _
    $region35: #{hypergraph_transformer_forward.1} parent=1 // pred_check_branch
      %47 = sbr.rel (0) target = $region37
    $region36: #{hypergraph_transformer_forward.1} parent=1 // pred_region
      _
    $region37: #{hypergraph_transformer_forward.1} parent=1 // pred_fallthru
      _
    // Predicated region
    $region38: #{hypergraph_transformer_forward.1} parent=1 // pred_check
      _
    $region39: #{hypergraph_transformer_forward.1} parent=1 // pred_check_branch
      %49 = sbr.rel (0) target = $region41
    $region40: #{hypergraph_transformer_forward.1} parent=1 // pred_region
      _
    $region41: #{hypergraph_transformer_forward.1} parent=1 // pred_fallthru
      _
    // Predicated region
    $region42: #{hypergraph_transformer_forward.1} parent=1 // pred_check
      _
    $region43: #{hypergraph_transformer_forward.1} parent=1 // pred_check_branch
      %51 = sbr.rel (0) target = $region45
    $region44: #{hypergraph_transformer_forward.1} parent=1 // pred_region
      _
    $region45: #{hypergraph_transformer_forward.1} parent=1 // pred_fallthru
      _
    // Predicated region
    $region46: #{hypergraph_transformer_forward.1} parent=1 // pred_check
      _
    $region47: #{hypergraph_transformer_forward.1} parent=1 // pred_check_branch
      %53 = sbr.rel (0) target = $region49
    $region48: #{hypergraph_transformer_forward.1} parent=1 // pred_region
      _
    $region49: #{hypergraph_transformer_forward.1} parent=1 // pred_fallthru
      _
    // Predicated region
    $region50: #{hypergraph_transformer_forward.1} parent=1 // pred_check
      _
    $region51: #{hypergraph_transformer_forward.1} parent=1 // pred_check_branch
      %55 = sbr.rel (0) target = $region53
    $region52: #{hypergraph_transformer_forward.1} parent=1 // pred_region
      _
    $region53: #{hypergraph_transformer_forward.1} parent=1 // pred_fallthru
      _
    // Predicated region
    $region54: #{hypergraph_transformer_forward.1} parent=1 // pred_check
      _
    $region55: #{hypergraph_transformer_forward.1} parent=1 // pred_check_branch
      %57 = sbr.rel (0) target = $region57
    $region56: #{hypergraph_transformer_forward.1} parent=1 // pred_region
      _
    $region57: #{hypergraph_transformer_forward.1} parent=1 // pred_fallthru
      _
    // Predicated region
    $region58: #{hypergraph_transformer_forward.1} parent=1 // pred_check
      _
    $region59: #{hypergraph_transformer_forward.1} parent=1 // pred_check_branch
      %59 = sbr.rel (0) target = $region61
    $region60: #{hypergraph_transformer_forward.1} parent=1 // pred_region
      _
    $region61: #{hypergraph_transformer_forward.1} parent=1 // pred_fallthru
      _
    // Predicated region
    $region62: #{hypergraph_transformer_forward.1} parent=1 // pred_check
      _
    $region63: #{hypergraph_transformer_forward.1} parent=1 // pred_check_branch
      %61 = sbr.rel (0) target = $region65
    $region64: #{hypergraph_transformer_forward.1} parent=1 // pred_region
      _
    $region65: #{hypergraph_transformer_forward.1} parent=1 // pred_fallthru
      _
    // Predicated region
    $region66: #{hypergraph_transformer_forward.1} parent=1 // pred_check
      _
    $region67: #{hypergraph_transformer_forward.1} parent=1 // pred_check_branch
      %63 = sbr.rel (0) target = $region69
    $region68: #{hypergraph_transformer_forward.1} parent=1 // pred_region
      _
    $region69: #{hypergraph_transformer_forward.1} parent=1 // pred_fallthru
      _
    // Predicated region
    $region70: #{hypergraph_transformer_forward.1} parent=1 // pred_check
      _
    $region71: #{hypergraph_transformer_forward.1} parent=1 // pred_check_branch
      %65 = sbr.rel (0) target = $region73
    $region72: #{hypergraph_transformer_forward.1} parent=1 // pred_region
      _
    $region73: #{hypergraph_transformer_forward.1} parent=1 // pred_fallthru
      _
    // Predicated region
    $region74: #{hypergraph_transformer_forward.1} parent=1 // pred_check
      _
    $region75: #{hypergraph_transformer_forward.1} parent=1 // pred_check_branch
      %67 = sbr.rel (0) target = $region77
    $region76: #{hypergraph_transformer_forward.1} parent=1 // pred_region
      _
    $region77: #{hypergraph_transformer_forward.1} parent=1 // pred_fallthru
      _
    // Predicated region
    $region78: #{hypergraph_transformer_forward.1} parent=1 // pred_check
      _
    $region79: #{hypergraph_transformer_forward.1} parent=1 // pred_check_branch
      %69 = sbr.rel (0) target = $region81
    $region80: #{hypergraph_transformer_forward.1} parent=1 // pred_region
      _
    $region81: #{hypergraph_transformer_forward.1} parent=1 // pred_fallthru
      _
    // Predicated region
    $region82: #{hypergraph_transformer_forward.1} parent=1 // pred_check
      _
    $region83: #{hypergraph_transformer_forward.1} parent=1 // pred_check_branch
      %71 = sbr.rel (0) target = $region85
    $region84: #{hypergraph_transformer_forward.1} parent=1 // pred_region
      _
    $region85: #{hypergraph_transformer_forward.1} parent=1 // pred_fallthru
      _
    // Predicated region
    $region86: #{hypergraph_transformer_forward.1} parent=1 // pred_check
      _
    $region87: #{hypergraph_transformer_forward.1} parent=1 // pred_check_branch
      %73 = sbr.rel (0) target = $region89
    $region88: #{hypergraph_transformer_forward.1} parent=1 // pred_region
      _
    $region89: #{hypergraph_transformer_forward.1} parent=1 // pred_fallthru
      _
    // Predicated region
    $region90: #{hypergraph_transformer_forward.1} parent=1 // pred_check
      _
    $region91: #{hypergraph_transformer_forward.1} parent=1 // pred_check_branch
      %75 = sbr.rel (0) target = $region93
    $region92: #{hypergraph_transformer_forward.1} parent=1 // pred_region
      _
    $region93: #{hypergraph_transformer_forward.1} parent=1 // pred_fallthru
      _
    // Predicated region
    $region94: #{hypergraph_transformer_forward.1} parent=1 // pred_check
      _
    $region95: #{hypergraph_transformer_forward.1} parent=1 // pred_check_branch
      %77 = sbr.rel (0) target = $region97
    $region96: #{hypergraph_transformer_forward.1} parent=1 // pred_region
      _
    $region97: #{hypergraph_transformer_forward.1} parent=1 // pred_fallthru
      _
    %v78 = vld [vmem:[%s0] sm:$0xff]
    %v79 = vld [vmem:[%s0 + $0x8] sm:$0xff]
    %v80 = vld [vmem:[%s1] sm:$0xff]
    %v81 = vld [vmem:[%s1 + $0x8] sm:$0xff]
    %v82 = vld [vmem:[%s1 + $0x10] sm:$0xff]
    %v83 = vld [vmem:[%s1 + $0x18] sm:$0xff]
    %v84 = vld [vmem:[%s2] sm:$0x1]
    %v86 = vlaneseq
    %v87 = vshrl.u32 %v86, 7
    %v88 = vsub.s32 0, %v87
    %v89 = vrot.slane %v84, %v88
    %vm91 = vcmask 261120
    %v93 = vsel %vm91, %v78, 0
    %v96 = vsel %vm91, %v79, 0
    %98 = vmatprep.subr.mxu0 0.0
    %99 = vmatpush1.msra.mxu0 %v80
    %100 = vmatprep.subr.mxu0 0.0
    %101 = vmatpush1.msra.mxu0 %v81
    %102 = vmatprep.subr.mxu0 0.0
    %103 = vmatpush1.msra.mxu0 %v82
    %104 = vmatprep.subr.mxu0 0.0
    %105 = vmatpush1.msra.mxu0 %v83
    %106 = vmatprep.subr.mxu0 0.0
    %107 = vmatpush1.msra.mxu0 0.0
    %108 = vmatprep.subr.mxu0 0.0
    %109 = vmatpush1.msra.mxu0 0.0
    %110 = vmatprep.subr.mxu0 0.0
    %111 = vmatpush1.msra.mxu0 0.0
    %112 = vmatprep.subr.mxu0 0.0
    %113 = vmatpush1.msra.mxu0 0.0
    %114 = vmatprep.subr.mxu0 0.0
    %115 = vmatpush1.msra.mxu0 0.0
    %116 = vmatprep.subr.mxu0 0.0
    %117 = vmatpush1.msra.mxu0 0.0
    %118 = vmatprep.subr.mxu0 0.0
    %119 = vmatpush1.msra.mxu0 0.0
    %120 = vmatprep.subr.mxu0 0.0
    %121 = vmatpush1.msra.mxu0 0.0
    %122 = vmatprep.subr.mxu0 0.0
    %123 = vmatpush1.msra.mxu0 0.0
    %124 = vmatprep.subr.mxu0 0.0
    %125 = vmatpush1.msra.mxu0 0.0
    %126 = vmatprep.subr.mxu0 0.0
    %127 = vmatpush1.msra.mxu0 0.0
    %128 = vmatprep.subr.mxu0 0.0
    %129 = vmatpush1.msra.mxu0 0.0
    %130 = vmatprep.subr.mxu0 0.0
    %131 = vmatpush1.msra.mxu0 0.0
    %132 = vmatprep.subr.mxu0 0.0
    %133 = vmatpush1.msra.mxu0 0.0
    %134 = vmatprep.subr.mxu0 0.0
    %135 = vmatpush1.msra.mxu0 0.0
    %136 = vmatprep.subr.mxu0 0.0
    %137 = vmatpush1.msra.mxu0 0.0
    %138 = vmatprep.subr.mxu0 0.0
    %139 = vmatpush1.msra.mxu0 0.0
    %140 = vmatprep.subr.mxu0 0.0
    %141 = vmatpush1.msra.mxu0 0.0
    %142 = vmatprep.subr.mxu0 0.0
    %143 = vmatpush1.msra.mxu0 0.0
    %144 = vmatprep.subr.mxu0 0.0
    %145 = vmatpush1.msra.mxu0 0.0
    %146 = vmatprep.subr.mxu0 0.0
    %147 = vmatpush1.msra.mxu0 0.0
    %148 = vmatprep.subr.mxu0 0.0
    %149 = vmatpush1.msra.mxu0 0.0
    %150 = vmatprep.subr.mxu0 0.0
    %151 = vmatpush1.msra.mxu0 0.0
    %152 = vmatprep.subr.mxu0 0.0
    %153 = vmatpush1.msra.mxu0 0.0
    %154 = vmatprep.subr.mxu0 0.0
    %155 = vmatpush1.msra.mxu0 0.0
    %156 = vmatprep.subr.mxu0 0.0
    %157 = vmatpush1.msra.mxu0 0.0
    %158 = vmatprep.subr.mxu0 0.0
    %159 = vmatpush1.msra.mxu0 0.0
    %160 = vmatprep.subr.mxu0 0.0
    %161 = vmatpush1.msra.mxu0 0.0
    %162 = vmatprep.mubr.f32.mxu0 0.0
    %163 = vmatmul.mubr.f32.gmra.mrb[0].mxu0 %v93
    %v164 = vpop.f32.mrb[0].mxu0
    %v165 = vadd.f32 %v89, %v164
    %v166 = vpop.f32.mrb[0].mxu0
    %167 = vmatprep.mubr.f32.mxu0 0.0
    %168 = vmatmul.mubr.f32.gmra.mrb[0].mxu0 %v96
    %v169 = vpop.f32.mrb[0].mxu0
    %v170 = vadd.f32 %v89, %v169
    %v171 = vpop.f32.mrb[0].mxu0
    %172 = vdwg.mxu0
    %v173 = vld [vmem:[%s3] sm:$0xff]
    %v174 = vld [vmem:[%s3 + $0x8] sm:$0xff]
    %v175 = vld [vmem:[%s3 + $0x10] sm:$0xff]
    %v176 = vld [vmem:[%s3 + $0x18] sm:$0xff]
    %v177 = vld [vmem:[%s4] sm:$0x1]
    %v179 = vlaneseq
    %v180 = vshrl.u32 %v179, 7
    %v181 = vsub.s32 0, %v180
    %v182 = vrot.slane %v177, %v181
    %184 = vmatprep.subr.mxu0 0.0
    %185 = vmatpush1.msra.mxu0 %v173
    %186 = vmatprep.subr.mxu0 0.0
    %187 = vmatpush1.msra.mxu0 %v174
    %188 = vmatprep.subr.mxu0 0.0
    %189 = vmatpush1.msra.mxu0 %v175
    %190 = vmatprep.subr.mxu0 0.0
    %191 = vmatpush1.msra.mxu0 %v176
    %192 = vmatprep.subr.mxu0 0.0
    %193 = vmatpush1.msra.mxu0 0.0
    %194 = vmatprep.subr.mxu0 0.0
    %195 = vmatpush1.msra.mxu0 0.0
    %196 = vmatprep.subr.mxu0 0.0
    %197 = vmatpush1.msra.mxu0 0.0
    %198 = vmatprep.subr.mxu0 0.0
    %199 = vmatpush1.msra.mxu0 0.0
    %200 = vmatprep.subr.mxu0 0.0
    %201 = vmatpush1.msra.mxu0 0.0
    %202 = vmatprep.subr.mxu0 0.0
    %203 = vmatpush1.msra.mxu0 0.0
    %204 = vmatprep.subr.mxu0 0.0
    %205 = vmatpush1.msra.mxu0 0.0
    %206 = vmatprep.subr.mxu0 0.0
    %207 = vmatpush1.msra.mxu0 0.0
    %208 = vmatprep.subr.mxu0 0.0
    %209 = vmatpush1.msra.mxu0 0.0
    %210 = vmatprep.subr.mxu0 0.0
    %211 = vmatpush1.msra.mxu0 0.0
    %212 = vmatprep.subr.mxu0 0.0
    %213 = vmatpush1.msra.mxu0 0.0
    %214 = vmatprep.subr.mxu0 0.0
    %215 = vmatpush1.msra.mxu0 0.0
    %216 = vmatprep.subr.mxu0 0.0
    %217 = vmatpush1.msra.mxu0 0.0
    %218 = vmatprep.subr.mxu0 0.0
    %219 = vmatpush1.msra.mxu0 0.0
    %220 = vmatprep.subr.mxu0 0.0
    %221 = vmatpush1.msra.mxu0 0.0
    %222 = vmatprep.subr.mxu0 0.0
    %223 = vmatpush1.msra.mxu0 0.0
    %224 = vmatprep.subr.mxu0 0.0
    %225 = vmatpush1.msra.mxu0 0.0
    %226 = vmatprep.subr.mxu0 0.0
    %227 = vmatpush1.msra.mxu0 0.0
    %228 = vmatprep.subr.mxu0 0.0
    %229 = vmatpush1.msra.mxu0 0.0
    %230 = vmatprep.subr.mxu0 0.0
    %231 = vmatpush1.msra.mxu0 0.0
    %232 = vmatprep.subr.mxu0 0.0
    %233 = vmatpush1.msra.mxu0 0.0
    %234 = vmatprep.subr.mxu0 0.0
    %235 = vmatpush1.msra.mxu0 0.0
    %236 = vmatprep.subr.mxu0 0.0
    %237 = vmatpush1.msra.mxu0 0.0
    %238 = vmatprep.subr.mxu0 0.0
    %239 = vmatpush1.msra.mxu0 0.0
    %240 = vmatprep.subr.mxu0 0.0
    %241 = vmatpush1.msra.mxu0 0.0
    %242 = vmatprep.subr.mxu0 0.0
    %243 = vmatpush1.msra.mxu0 0.0
    %244 = vmatprep.subr.mxu0 0.0
    %245 = vmatpush1.msra.mxu0 0.0
    %246 = vmatprep.subr.mxu0 0.0
    %247 = vmatpush1.msra.mxu0 0.0
    %248 = vmatprep.mubr.f32.mxu0 0.0
    %249 = vmatmul.mubr.f32.gmra.mrb[0].mxu0 %v93
    %v250 = vpop.f32.mrb[0].mxu0
    %v251 = vadd.f32 %v182, %v250
    %v252 = vpop.f32.mrb[0].mxu0
    %253 = vmatprep.mubr.f32.mxu0 0.0
    %254 = vmatmul.mubr.f32.gmra.mrb[0].mxu0 %v96
    %v255 = vpop.f32.mrb[0].mxu0
    %v256 = vadd.f32 %v182, %v255
    %v257 = vpop.f32.mrb[0].mxu0
    %258 = vdwg.mxu0
    %v259 = vld [vmem:[%s5] sm:$0xff]
    %v260 = vld [vmem:[%s5 + $0x8] sm:$0xff]
    %v261 = vld [vmem:[%s5 + $0x10] sm:$0xff]
    %v262 = vld [vmem:[%s5 + $0x18] sm:$0xff]
    %v263 = vld [vmem:[%s6] sm:$0x1]
    %v265 = vlaneseq
    %v266 = vshrl.u32 %v265, 7
    %v267 = vsub.s32 0, %v266
    %v268 = vrot.slane %v263, %v267
    %270 = vmatprep.subr.mxu0 0.0
    %271 = vmatpush1.msra.mxu0 %v259
    %272 = vmatprep.subr.mxu0 0.0
    %273 = vmatpush1.msra.mxu0 %v260
    %274 = vmatprep.subr.mxu0 0.0
    %275 = vmatpush1.msra.mxu0 %v261
    %276 = vmatprep.subr.mxu0 0.0
    %277 = vmatpush1.msra.mxu0 %v262
    %278 = vmatprep.subr.mxu0 0.0
    %279 = vmatpush1.msra.mxu0 0.0
    %280 = vmatprep.subr.mxu0 0.0
    %281 = vmatpush1.msra.mxu0 0.0
    %282 = vmatprep.subr.mxu0 0.0
    %283 = vmatpush1.msra.mxu0 0.0
    %284 = vmatprep.subr.mxu0 0.0
    %285 = vmatpush1.msra.mxu0 0.0
    %286 = vmatprep.subr.mxu0 0.0
    %287 = vmatpush1.msra.mxu0 0.0
    %288 = vmatprep.subr.mxu0 0.0
    %289 = vmatpush1.msra.mxu0 0.0
    %290 = vmatprep.subr.mxu0 0.0
    %291 = vmatpush1.msra.mxu0 0.0
    %292 = vmatprep.subr.mxu0 0.0
    %293 = vmatpush1.msra.mxu0 0.0
    %294 = vmatprep.subr.mxu0 0.0
    %295 = vmatpush1.msra.mxu0 0.0
    %296 = vmatprep.subr.mxu0 0.0
    %297 = vmatpush1.msra.mxu0 0.0
    %298 = vmatprep.subr.mxu0 0.0
    %299 = vmatpush1.msra.mxu0 0.0
    %300 = vmatprep.subr.mxu0 0.0
    %301 = vmatpush1.msra.mxu0 0.0
    %302 = vmatprep.subr.mxu0 0.0
    %303 = vmatpush1.msra.mxu0 0.0
    %304 = vmatprep.subr.mxu0 0.0
    %305 = vmatpush1.msra.mxu0 0.0
    %306 = vmatprep.subr.mxu0 0.0
    %307 = vmatpush1.msra.mxu0 0.0
    %308 = vmatprep.subr.mxu0 0.0
    %309 = vmatpush1.msra.mxu0 0.0
    %310 = vmatprep.subr.mxu0 0.0
    %311 = vmatpush1.msra.mxu0 0.0
    %312 = vmatprep.subr.mxu0 0.0
    %313 = vmatpush1.msra.mxu0 0.0
    %314 = vmatprep.subr.mxu0 0.0
    %315 = vmatpush1.msra.mxu0 0.0
    %316 = vmatprep.subr.mxu0 0.0
    %317 = vmatpush1.msra.mxu0 0.0
    %318 = vmatprep.subr.mxu0 0.0
    %319 = vmatpush1.msra.mxu0 0.0
    %320 = vmatprep.subr.mxu0 0.0
    %321 = vmatpush1.msra.mxu0 0.0
    %322 = vmatprep.subr.mxu0 0.0
    %323 = vmatpush1.msra.mxu0 0.0
    %324 = vmatprep.subr.mxu0 0.0
    %325 = vmatpush1.msra.mxu0 0.0
    %326 = vmatprep.subr.mxu0 0.0
    %327 = vmatpush1.msra.mxu0 0.0
    %328 = vmatprep.subr.mxu0 0.0
    %329 = vmatpush1.msra.mxu0 0.0
    %330 = vmatprep.subr.mxu0 0.0
    %331 = vmatpush1.msra.mxu0 0.0
    %332 = vmatprep.subr.mxu0 0.0
    %333 = vmatpush1.msra.mxu0 0.0
    %334 = vmatprep.mubr.f32.mxu0 0.0
    %335 = vmatmul.mubr.f32.gmra.mrb[0].mxu0 %v93
    %v336 = vpop.f32.mrb[0].mxu0
    %v337 = vadd.f32 %v268, %v336
    %v338 = vpop.f32.mrb[0].mxu0
    %339 = vmatprep.mubr.f32.mxu0 0.0
    %340 = vmatmul.mubr.f32.gmra.mrb[0].mxu0 %v96
    %v341 = vpop.f32.mrb[0].mxu0
    %v342 = vadd.f32 %v268, %v341
    %v343 = vpop.f32.mrb[0].mxu0
    %344 = vdwg.mxu0
    %v345 = vld [vmem:[%s9] sm:$0xff]
    %vm346 = vcmask 130048
    %v348 = vsel %vm346, %v165, 0
    %v351 = vsel %vm346, %v251, 0
    %353 = vmatprep.subr.mxu0 0.0
    %354 = vmatpush1.xpose.msra.mxu0 %v351
    %355 = vmatprep.subr.mxu0 0.0
    %356 = vmatpush1.xpose.msra.mxu0 0.0
    %357 = vmatprep.subr.mxu0 0.0
    %358 = vmatpush1.xpose.msra.mxu0 0.0
    %359 = vmatprep.subr.mxu0 0.0
    %360 = vmatpush1.xpose.msra.mxu0 0.0
    %361 = vmatprep.subr.mxu0 0.0
    %362 = vmatpush1.xpose.msra.mxu0 0.0
    %363 = vmatprep.subr.mxu0 0.0
    %364 = vmatpush1.xpose.msra.mxu0 0.0
    %365 = vmatprep.subr.mxu0 0.0
    %366 = vmatpush1.xpose.msra.mxu0 0.0
    %367 = vmatprep.subr.mxu0 0.0
    %368 = vmatpush1.xpose.msra.mxu0 0.0
    %369 = vmatprep.subr.mxu0 0.0
    %370 = vmatpush1.xpose.msra.mxu0 0.0
    %371 = vmatprep.subr.mxu0 0.0
    %372 = vmatpush1.xpose.msra.mxu0 0.0
    %373 = vmatprep.subr.mxu0 0.0
    %374 = vmatpush1.xpose.msra.mxu0 0.0
    %375 = vmatprep.subr.mxu0 0.0
    %376 = vmatpush1.xpose.msra.mxu0 0.0
    %377 = vmatprep.subr.mxu0 0.0
    %378 = vmatpush1.xpose.msra.mxu0 0.0
    %379 = vmatprep.subr.mxu0 0.0
    %380 = vmatpush1.xpose.msra.mxu0 0.0
    %381 = vmatprep.subr.mxu0 0.0
    %382 = vmatpush1.xpose.msra.mxu0 0.0
    %383 = vmatprep.subr.mxu0 0.0
    %384 = vmatpush1.xpose.msra.mxu0 0.0
    %385 = vmatprep.subr.mxu0 0.0
    %386 = vmatpush1.xpose.msra.mxu0 0.0
    %387 = vmatprep.subr.mxu0 0.0
    %388 = vmatpush1.xpose.msra.mxu0 0.0
    %389 = vmatprep.subr.mxu0 0.0
    %390 = vmatpush1.xpose.msra.mxu0 0.0
    %391 = vmatprep.subr.mxu0 0.0
    %392 = vmatpush1.xpose.msra.mxu0 0.0
    %393 = vmatprep.subr.mxu0 0.0
    %394 = vmatpush1.xpose.msra.mxu0 0.0
    %395 = vmatprep.subr.mxu0 0.0
    %396 = vmatpush1.xpose.msra.mxu0 0.0
    %397 = vmatprep.subr.mxu0 0.0
    %398 = vmatpush1.xpose.msra.mxu0 0.0
    %399 = vmatprep.subr.mxu0 0.0
    %400 = vmatpush1.xpose.msra.mxu0 0.0
    %401 = vmatprep.subr.mxu0 0.0
    %402 = vmatpush1.xpose.msra.mxu0 0.0
    %403 = vmatprep.subr.mxu0 0.0
    %404 = vmatpush1.xpose.msra.mxu0 0.0
    %405 = vmatprep.subr.mxu0 0.0
    %406 = vmatpush1.xpose.msra.mxu0 0.0
    %407 = vmatprep.subr.mxu0 0.0
    %408 = vmatpush1.xpose.msra.mxu0 0.0
    %409 = vmatprep.subr.mxu0 0.0
    %410 = vmatpush1.xpose.msra.mxu0 0.0
    %411 = vmatprep.subr.mxu0 0.0
    %412 = vmatpush1.xpose.msra.mxu0 0.0
    %413 = vmatprep.subr.mxu0 0.0
    %414 = vmatpush1.xpose.msra.mxu0 0.0
    %415 = vmatprep.subr.mxu0 0.0
    %416 = vmatpush1.xpose.msra.mxu0 0.0
    %417 = vmatprep.mubr.f32.mxu0 0.0
    %418 = vmatmul.mubr.f32.gmra.mrb[0].mxu0 %v348
    %v419 = vpop.f32.mrb[0].mxu0
    %v420 = vadd.f32 0.0, %v419
    %v421 = vpop.f32.mrb[0].mxu0
    %422 = vdwg.mxu0
    %v423 = vmul.f32 %v420, 0.25
    %v424 = vadd.f32 %v423, %v345
    %vm425 = vcmask 64512
    %v426 = vsel %vm425, %v424, -inf
    %427 = vmax.xlane.f32.xlu0 %v426
    %v428 = vpop.xlane.xlu0 %427
    %v429 = vsub.f32 %v424, %v428
    %v430 = vmul.f32 %v429, 1.442695
    %v431 = vpow.pop %v430
    %v432 = vsel %vm425, %v431, 0.0
    %433 = vadd.xlane.f32.xlu0 %v432
    %v434 = vpop.xlane.xlu0 %433
    %v435 = vrcp.pop %v434
    %v436 = vmul.f32 %v431, %v435
    %v438 = vsel %vm425, %v436, 0
    %440 = vmatprep.subr.mxu0 0.0
    %441 = vmatpush1.msra.mxu0 %v337
    %442 = vmatprep.subr.mxu0 0.0
    %443 = vmatpush1.msra.mxu0 0.0
    %444 = vmatprep.subr.mxu0 0.0
    %445 = vmatpush1.msra.mxu0 0.0
    %446 = vmatprep.subr.mxu0 0.0
    %447 = vmatpush1.msra.mxu0 0.0
    %448 = vmatprep.subr.mxu0 0.0
    %449 = vmatpush1.msra.mxu0 0.0
    %450 = vmatprep.subr.mxu0 0.0
    %451 = vmatpush1.msra.mxu0 0.0
    %452 = vmatprep.subr.mxu0 0.0
    %453 = vmatpush1.msra.mxu0 0.0
    %454 = vmatprep.subr.mxu0 0.0
    %455 = vmatpush1.msra.mxu0 0.0
    %456 = vmatprep.subr.mxu0 0.0
    %457 = vmatpush1.msra.mxu0 0.0
    %458 = vmatprep.subr.mxu0 0.0
    %459 = vmatpush1.msra.mxu0 0.0
    %460 = vmatprep.subr.mxu0 0.0
    %461 = vmatpush1.msra.mxu0 0.0
    %462 = vmatprep.subr.mxu0 0.0
    %463 = vmatpush1.msra.mxu0 0.0
    %464 = vmatprep.subr.mxu0 0.0
    %465 = vmatpush1.msra.mxu0 0.0
    %466 = vmatprep.subr.mxu0 0.0
    %467 = vmatpush1.msra.mxu0 0.0
    %468 = vmatprep.subr.mxu0 0.0
    %469 = vmatpush1.msra.mxu0 0.0
    %470 = vmatprep.subr.mxu0 0.0
    %471 = vmatpush1.msra.mxu0 0.0
    %472 = vmatprep.subr.mxu0 0.0
    %473 = vmatpush1.msra.mxu0 0.0
    %474 = vmatprep.subr.mxu0 0.0
    %475 = vmatpush1.msra.mxu0 0.0
    %476 = vmatprep.subr.mxu0 0.0
    %477 = vmatpush1.msra.mxu0 0.0
    %478 = vmatprep.subr.mxu0 0.0
    %479 = vmatpush1.msra.mxu0 0.0
    %480 = vmatprep.subr.mxu0 0.0
    %481 = vmatpush1.msra.mxu0 0.0
    %482 = vmatprep.subr.mxu0 0.0
    %483 = vmatpush1.msra.mxu0 0.0
    %484 = vmatprep.subr.mxu0 0.0
    %485 = vmatpush1.msra.mxu0 0.0
    %486 = vmatprep.subr.mxu0 0.0
    %487 = vmatpush1.msra.mxu0 0.0
    %488 = vmatprep.subr.mxu0 0.0
    %489 = vmatpush1.msra.mxu0 0.0
    %490 = vmatprep.subr.mxu0 0.0
    %491 = vmatpush1.msra.mxu0 0.0
    %492 = vmatprep.subr.mxu0 0.0
    %493 = vmatpush1.msra.mxu0 0.0
    %494 = vmatprep.subr.mxu0 0.0
    %495 = vmatpush1.msra.mxu0 0.0
    %496 = vmatprep.subr.mxu0 0.0
    %497 = vmatpush1.msra.mxu0 0.0
    %498 = vmatprep.subr.mxu0 0.0
    %499 = vmatpush1.msra.mxu0 0.0
    %500 = vmatprep.subr.mxu0 0.0
    %501 = vmatpush1.msra.mxu0 0.0
    %502 = vmatprep.subr.mxu0 0.0
    %503 = vmatpush1.msra.mxu0 0.0
    %504 = vmatprep.mubr.f32.mxu0 0.0
    %505 = vmatmul.mubr.f32.gmra.mrb[0].mxu0 %v438
    %v506 = vpop.f32.mrb[0].mxu0
    %v507 = vadd.f32 0.0, %v506
    %v508 = vpop.f32.mrb[0].mxu0
    %509 = vdwg.mxu0
    %510 = vrot.lane.b32.xlu0 %v165, 112
    %v511 = vpop.permute.xlu0 %510
    %512 = vrot.lane.b32.xlu0 %v251, 112
    %v513 = vpop.permute.xlu0 %512
    %v514 = vsel %vm346, %v511, 0
    %v516 = vsel %vm346, %v513, 0
    %518 = vmatprep.subr.mxu0 0.0
    %519 = vmatpush1.xpose.msra.mxu0 %v516
    %520 = vmatprep.subr.mxu0 0.0
    %521 = vmatpush1.xpose.msra.mxu0 0.0
    %522 = vmatprep.subr.mxu0 0.0
    %523 = vmatpush1.xpose.msra.mxu0 0.0
    %524 = vmatprep.subr.mxu0 0.0
    %525 = vmatpush1.xpose.msra.mxu0 0.0
    %526 = vmatprep.subr.mxu0 0.0
    %527 = vmatpush1.xpose.msra.mxu0 0.0
    %528 = vmatprep.subr.mxu0 0.0
    %529 = vmatpush1.xpose.msra.mxu0 0.0
    %530 = vmatprep.subr.mxu0 0.0
    %531 = vmatpush1.xpose.msra.mxu0 0.0
    %532 = vmatprep.subr.mxu0 0.0
    %533 = vmatpush1.xpose.msra.mxu0 0.0
    %534 = vmatprep.subr.mxu0 0.0
    %535 = vmatpush1.xpose.msra.mxu0 0.0
    %536 = vmatprep.subr.mxu0 0.0
    %537 = vmatpush1.xpose.msra.mxu0 0.0
    %538 = vmatprep.subr.mxu0 0.0
    %539 = vmatpush1.xpose.msra.mxu0 0.0
    %540 = vmatprep.subr.mxu0 0.0
    %541 = vmatpush1.xpose.msra.mxu0 0.0
    %542 = vmatprep.subr.mxu0 0.0
    %543 = vmatpush1.xpose.msra.mxu0 0.0
    %544 = vmatprep.subr.mxu0 0.0
    %545 = vmatpush1.xpose.msra.mxu0 0.0
    %546 = vmatprep.subr.mxu0 0.0
    %547 = vmatpush1.xpose.msra.mxu0 0.0
    %548 = vmatprep.subr.mxu0 0.0
    %549 = vmatpush1.xpose.msra.mxu0 0.0
    %550 = vmatprep.subr.mxu0 0.0
    %551 = vmatpush1.xpose.msra.mxu0 0.0
    %552 = vmatprep.subr.mxu0 0.0
    %553 = vmatpush1.xpose.msra.mxu0 0.0
    %554 = vmatprep.subr.mxu0 0.0
    %555 = vmatpush1.xpose.msra.mxu0 0.0
    %556 = vmatprep.subr.mxu0 0.0
    %557 = vmatpush1.xpose.msra.mxu0 0.0
    %558 = vmatprep.subr.mxu0 0.0
    %559 = vmatpush1.xpose.msra.mxu0 0.0
    %560 = vmatprep.subr.mxu0 0.0
    %561 = vmatpush1.xpose.msra.mxu0 0.0
    %562 = vmatprep.subr.mxu0 0.0
    %563 = vmatpush1.xpose.msra.mxu0 0.0
    %564 = vmatprep.subr.mxu0 0.0
    %565 = vmatpush1.xpose.msra.mxu0 0.0
    %566 = vmatprep.subr.mxu0 0.0
    %567 = vmatpush1.xpose.msra.mxu0 0.0
    %568 = vmatprep.subr.mxu0 0.0
    %569 = vmatpush1.xpose.msra.mxu0 0.0
    %570 = vmatprep.subr.mxu0 0.0
    %571 = vmatpush1.xpose.msra.mxu0 0.0
    %572 = vmatprep.subr.mxu0 0.0
    %573 = vmatpush1.xpose.msra.mxu0 0.0
    %574 = vmatprep.subr.mxu0 0.0
    %575 = vmatpush1.xpose.msra.mxu0 0.0
    %576 = vmatprep.subr.mxu0 0.0
    %577 = vmatpush1.xpose.msra.mxu0 0.0
    %578 = vmatprep.subr.mxu0 0.0
    %579 = vmatpush1.xpose.msra.mxu0 0.0
    %580 = vmatprep.subr.mxu0 0.0
    %581 = vmatpush1.xpose.msra.mxu0 0.0
    %582 = vmatprep.mubr.f32.mxu0 0.0
    %583 = vmatmul.mubr.f32.gmra.mrb[0].mxu0 %v514
    %v584 = vpop.f32.mrb[0].mxu0
    %v585 = vadd.f32 0.0, %v584
    %v586 = vpop.f32.mrb[0].mxu0
    %587 = vdwg.mxu0
    %v588 = vmul.f32 %v585, 0.25
    %v589 = vadd.f32 %v588, %v345
    %v590 = vsel %vm425, %v589, -inf
    %591 = vmax.xlane.f32.xlu0 %v590
    %v592 = vpop.xlane.xlu0 %591
    %v593 = vsub.f32 %v589, %v592
    %v594 = vmul.f32 %v593, 1.442695
    %v595 = vpow.pop %v594
    %v596 = vsel %vm425, %v595, 0.0
    %597 = vadd.xlane.f32.xlu0 %v596
    %v598 = vpop.xlane.xlu0 %597
    %v599 = vrcp.pop %v598
    %v600 = vmul.f32 %v595, %v599
    %602 = vrot.lane.b32.xlu0 %v337, 112
    %v603 = vpop.permute.xlu0 %602
    %v606 = vsel %vm425, %v600, 0
    %608 = vmatprep.subr.mxu0 0.0
    %609 = vmatpush1.msra.mxu0 %v603
    %610 = vmatprep.subr.mxu0 0.0
    %611 = vmatpush1.msra.mxu0 0.0
    %612 = vmatprep.subr.mxu0 0.0
    %613 = vmatpush1.msra.mxu0 0.0
    %614 = vmatprep.subr.mxu0 0.0
    %615 = vmatpush1.msra.mxu0 0.0
    %616 = vmatprep.subr.mxu0 0.0
    %617 = vmatpush1.msra.mxu0 0.0
    %618 = vmatprep.subr.mxu0 0.0
    %619 = vmatpush1.msra.mxu0 0.0
    %620 = vmatprep.subr.mxu0 0.0
    %621 = vmatpush1.msra.mxu0 0.0
    %622 = vmatprep.subr.mxu0 0.0
    %623 = vmatpush1.msra.mxu0 0.0
    %624 = vmatprep.subr.mxu0 0.0
    %625 = vmatpush1.msra.mxu0 0.0
    %626 = vmatprep.subr.mxu0 0.0
    %627 = vmatpush1.msra.mxu0 0.0
    %628 = vmatprep.subr.mxu0 0.0
    %629 = vmatpush1.msra.mxu0 0.0
    %630 = vmatprep.subr.mxu0 0.0
    %631 = vmatpush1.msra.mxu0 0.0
    %632 = vmatprep.subr.mxu0 0.0
    %633 = vmatpush1.msra.mxu0 0.0
    %634 = vmatprep.subr.mxu0 0.0
    %635 = vmatpush1.msra.mxu0 0.0
    %636 = vmatprep.subr.mxu0 0.0
    %637 = vmatpush1.msra.mxu0 0.0
    %638 = vmatprep.subr.mxu0 0.0
    %639 = vmatpush1.msra.mxu0 0.0
    %640 = vmatprep.subr.mxu0 0.0
    %641 = vmatpush1.msra.mxu0 0.0
    %642 = vmatprep.subr.mxu0 0.0
    %643 = vmatpush1.msra.mxu0 0.0
    %644 = vmatprep.subr.mxu0 0.0
    %645 = vmatpush1.msra.mxu0 0.0
    %646 = vmatprep.subr.mxu0 0.0
    %647 = vmatpush1.msra.mxu0 0.0
    %648 = vmatprep.subr.mxu0 0.0
    %649 = vmatpush1.msra.mxu0 0.0
    %650 = vmatprep.subr.mxu0 0.0
    %651 = vmatpush1.msra.mxu0 0.0
    %652 = vmatprep.subr.mxu0 0.0
    %653 = vmatpush1.msra.mxu0 0.0
    %654 = vmatprep.subr.mxu0 0.0
    %655 = vmatpush1.msra.mxu0 0.0
    %656 = vmatprep.subr.mxu0 0.0
    %657 = vmatpush1.msra.mxu0 0.0
    %658 = vmatprep.subr.mxu0 0.0
    %659 = vmatpush1.msra.mxu0 0.0
    %660 = vmatprep.subr.mxu0 0.0
    %661 = vmatpush1.msra.mxu0 0.0
    %662 = vmatprep.subr.mxu0 0.0
    %663 = vmatpush1.msra.mxu0 0.0
    %664 = vmatprep.subr.mxu0 0.0
    %665 = vmatpush1.msra.mxu0 0.0
    %666 = vmatprep.subr.mxu0 0.0
    %667 = vmatpush1.msra.mxu0 0.0
    %668 = vmatprep.subr.mxu0 0.0
    %669 = vmatpush1.msra.mxu0 0.0
    %670 = vmatprep.subr.mxu0 0.0
    %671 = vmatpush1.msra.mxu0 0.0
    %672 = vmatprep.mubr.f32.mxu0 0.0
    %673 = vmatmul.mubr.f32.gmra.mrb[0].mxu0 %v606
    %v674 = vpop.f32.mrb[0].mxu0
    %v675 = vadd.f32 0.0, %v674
    %v676 = vpop.f32.mrb[0].mxu0
    %677 = vdwg.mxu0
    %s678 = scalar_lea.vmem %s9, 8
    %v679 = vld [vmem:[%s678] sm:$0xff]
    %680 = vrot.lane.b32.xlu0 %v165, 96
    %v681 = vpop.permute.xlu0 %680
    %682 = vrot.lane.b32.xlu0 %v251, 96
    %v683 = vpop.permute.xlu0 %682
    %v684 = vsel %vm346, %v681, 0
    %v686 = vsel %vm346, %v683, 0
    %688 = vmatprep.subr.mxu0 0.0
    %689 = vmatpush1.xpose.msra.mxu0 %v686
    %690 = vmatprep.subr.mxu0 0.0
    %691 = vmatpush1.xpose.msra.mxu0 0.0
    %692 = vmatprep.subr.mxu0 0.0
    %693 = vmatpush1.xpose.msra.mxu0 0.0
    %694 = vmatprep.subr.mxu0 0.0
    %695 = vmatpush1.xpose.msra.mxu0 0.0
    %696 = vmatprep.subr.mxu0 0.0
    %697 = vmatpush1.xpose.msra.mxu0 0.0
    %698 = vmatprep.subr.mxu0 0.0
    %699 = vmatpush1.xpose.msra.mxu0 0.0
    %700 = vmatprep.subr.mxu0 0.0
    %701 = vmatpush1.xpose.msra.mxu0 0.0
    %702 = vmatprep.subr.mxu0 0.0
    %703 = vmatpush1.xpose.msra.mxu0 0.0
    %704 = vmatprep.subr.mxu0 0.0
    %705 = vmatpush1.xpose.msra.mxu0 0.0
    %706 = vmatprep.subr.mxu0 0.0
    %707 = vmatpush1.xpose.msra.mxu0 0.0
    %708 = vmatprep.subr.mxu0 0.0
    %709 = vmatpush1.xpose.msra.mxu0 0.0
    %710 = vmatprep.subr.mxu0 0.0
    %711 = vmatpush1.xpose.msra.mxu0 0.0
    %712 = vmatprep.subr.mxu0 0.0
    %713 = vmatpush1.xpose.msra.mxu0 0.0
    %714 = vmatprep.subr.mxu0 0.0
    %715 = vmatpush1.xpose.msra.mxu0 0.0
    %716 = vmatprep.subr.mxu0 0.0
    %717 = vmatpush1.xpose.msra.mxu0 0.0
    %718 = vmatprep.subr.mxu0 0.0
    %719 = vmatpush1.xpose.msra.mxu0 0.0
    %720 = vmatprep.subr.mxu0 0.0
    %721 = vmatpush1.xpose.msra.mxu0 0.0
    %722 = vmatprep.subr.mxu0 0.0
    %723 = vmatpush1.xpose.msra.mxu0 0.0
    %724 = vmatprep.subr.mxu0 0.0
    %725 = vmatpush1.xpose.msra.mxu0 0.0
    %726 = vmatprep.subr.mxu0 0.0
    %727 = vmatpush1.xpose.msra.mxu0 0.0
    %728 = vmatprep.subr.mxu0 0.0
    %729 = vmatpush1.xpose.msra.mxu0 0.0
    %730 = vmatprep.subr.mxu0 0.0
    %731 = vmatpush1.xpose.msra.mxu0 0.0
    %732 = vmatprep.subr.mxu0 0.0
    %733 = vmatpush1.xpose.msra.mxu0 0.0
    %734 = vmatprep.subr.mxu0 0.0
    %735 = vmatpush1.xpose.msra.mxu0 0.0
    %736 = vmatprep.subr.mxu0 0.0
    %737 = vmatpush1.xpose.msra.mxu0 0.0
    %738 = vmatprep.subr.mxu0 0.0
    %739 = vmatpush1.xpose.msra.mxu0 0.0
    %740 = vmatprep.subr.mxu0 0.0
    %741 = vmatpush1.xpose.msra.mxu0 0.0
    %742 = vmatprep.subr.mxu0 0.0
    %743 = vmatpush1.xpose.msra.mxu0 0.0
    %744 = vmatprep.subr.mxu0 0.0
    %745 = vmatpush1.xpose.msra.mxu0 0.0
    %746 = vmatprep.subr.mxu0 0.0
    %747 = vmatpush1.xpose.msra.mxu0 0.0
    %748 = vmatprep.subr.mxu0 0.0
    %749 = vmatpush1.xpose.msra.mxu0 0.0
    %750 = vmatprep.subr.mxu0 0.0
    %751 = vmatpush1.xpose.msra.mxu0 0.0
    %752 = vmatprep.mubr.f32.mxu0 0.0
    %753 = vmatmul.mubr.f32.gmra.mrb[0].mxu0 %v684
    %v754 = vpop.f32.mrb[0].mxu0
    %v755 = vadd.f32 0.0, %v754
    %v756 = vpop.f32.mrb[0].mxu0
    %757 = vdwg.mxu0
    %v758 = vmul.f32 %v755, 0.25
    %v759 = vadd.f32 %v758, %v679
    %v760 = vsel %vm425, %v759, -inf
    %761 = vmax.xlane.f32.xlu0 %v760
    %v762 = vpop.xlane.xlu0 %761
    %v763 = vsub.f32 %v759, %v762
    %v764 = vmul.f32 %v763, 1.442695
    %v765 = vpow.pop %v764
    %v766 = vsel %vm425, %v765, 0.0
    %767 = vadd.xlane.f32.xlu0 %v766
    %v768 = vpop.xlane.xlu0 %767
    %v769 = vrcp.pop %v768
    %v770 = vmul.f32 %v765, %v769
    %771 = vrot.lane.b32.xlu0 %v337, 96
    %v772 = vpop.permute.xlu0 %771
    %v775 = vsel %vm425, %v770, 0
    %777 = vmatprep.subr.mxu0 0.0
    %778 = vmatpush1.msra.mxu0 %v772
    %779 = vmatprep.subr.mxu0 0.0
    %780 = vmatpush1.msra.mxu0 0.0
    %781 = vmatprep.subr.mxu0 0.0
    %782 = vmatpush1.msra.mxu0 0.0
    %783 = vmatprep.subr.mxu0 0.0
    %784 = vmatpush1.msra.mxu0 0.0
    %785 = vmatprep.subr.mxu0 0.0
    %786 = vmatpush1.msra.mxu0 0.0
    %787 = vmatprep.subr.mxu0 0.0
    %788 = vmatpush1.msra.mxu0 0.0
    %789 = vmatprep.subr.mxu0 0.0
    %790 = vmatpush1.msra.mxu0 0.0
    %791 = vmatprep.subr.mxu0 0.0
    %792 = vmatpush1.msra.mxu0 0.0
    %793 = vmatprep.subr.mxu0 0.0
    %794 = vmatpush1.msra.mxu0 0.0
    %795 = vmatprep.subr.mxu0 0.0
    %796 = vmatpush1.msra.mxu0 0.0
    %797 = vmatprep.subr.mxu0 0.0
    %798 = vmatpush1.msra.mxu0 0.0
    %799 = vmatprep.subr.mxu0 0.0
    %800 = vmatpush1.msra.mxu0 0.0
    %801 = vmatprep.subr.mxu0 0.0
    %802 = vmatpush1.msra.mxu0 0.0
    %803 = vmatprep.subr.mxu0 0.0
    %804 = vmatpush1.msra.mxu0 0.0
    %805 = vmatprep.subr.mxu0 0.0
    %806 = vmatpush1.msra.mxu0 0.0
    %807 = vmatprep.subr.mxu0 0.0
    %808 = vmatpush1.msra.mxu0 0.0
    %809 = vmatprep.subr.mxu0 0.0
    %810 = vmatpush1.msra.mxu0 0.0
    %811 = vmatprep.subr.mxu0 0.0
    %812 = vmatpush1.msra.mxu0 0.0
    %813 = vmatprep.subr.mxu0 0.0
    %814 = vmatpush1.msra.mxu0 0.0
    %815 = vmatprep.subr.mxu0 0.0
    %816 = vmatpush1.msra.mxu0 0.0
    %817 = vmatprep.subr.mxu0 0.0
    %818 = vmatpush1.msra.mxu0 0.0
    %819 = vmatprep.subr.mxu0 0.0
    %820 = vmatpush1.msra.mxu0 0.0
    %821 = vmatprep.subr.mxu0 0.0
    %822 = vmatpush1.msra.mxu0 0.0
    %823 = vmatprep.subr.mxu0 0.0
    %824 = vmatpush1.msra.mxu0 0.0
    %825 = vmatprep.subr.mxu0 0.0
    %826 = vmatpush1.msra.mxu0 0.0
    %827 = vmatprep.subr.mxu0 0.0
    %828 = vmatpush1.msra.mxu0 0.0
    %829 = vmatprep.subr.mxu0 0.0
    %830 = vmatpush1.msra.mxu0 0.0
    %831 = vmatprep.subr.mxu0 0.0
    %832 = vmatpush1.msra.mxu0 0.0
    %833 = vmatprep.subr.mxu0 0.0
    %834 = vmatpush1.msra.mxu0 0.0
    %835 = vmatprep.subr.mxu0 0.0
    %836 = vmatpush1.msra.mxu0 0.0
    %837 = vmatprep.subr.mxu0 0.0
    %838 = vmatpush1.msra.mxu0 0.0
    %839 = vmatprep.subr.mxu0 0.0
    %840 = vmatpush1.msra.mxu0 0.0
    %841 = vmatprep.mubr.f32.mxu0 0.0
    %842 = vmatmul.mubr.f32.gmra.mrb[0].mxu0 %v775
    %v843 = vpop.f32.mrb[0].mxu0
    %v844 = vadd.f32 0.0, %v843
    %v845 = vpop.f32.mrb[0].mxu0
    %846 = vdwg.mxu0
    %847 = vrot.lane.b32.xlu0 %v165, 80
    %v848 = vpop.permute.xlu0 %847
    %849 = vrot.lane.b32.xlu0 %v251, 80
    %v850 = vpop.permute.xlu0 %849
    %v851 = vsel %vm346, %v848, 0
    %v853 = vsel %vm346, %v850, 0
    %855 = vmatprep.subr.mxu0 0.0
    %856 = vmatpush1.xpose.msra.mxu0 %v853
    %857 = vmatprep.subr.mxu0 0.0
    %858 = vmatpush1.xpose.msra.mxu0 0.0
    %859 = vmatprep.subr.mxu0 0.0
    %860 = vmatpush1.xpose.msra.mxu0 0.0
    %861 = vmatprep.subr.mxu0 0.0
    %862 = vmatpush1.xpose.msra.mxu0 0.0
    %863 = vmatprep.subr.mxu0 0.0
    %864 = vmatpush1.xpose.msra.mxu0 0.0
    %865 = vmatprep.subr.mxu0 0.0
    %866 = vmatpush1.xpose.msra.mxu0 0.0
    %867 = vmatprep.subr.mxu0 0.0
    %868 = vmatpush1.xpose.msra.mxu0 0.0
    %869 = vmatprep.subr.mxu0 0.0
    %870 = vmatpush1.xpose.msra.mxu0 0.0
    %871 = vmatprep.subr.mxu0 0.0
    %872 = vmatpush1.xpose.msra.mxu0 0.0
    %873 = vmatprep.subr.mxu0 0.0
    %874 = vmatpush1.xpose.msra.mxu0 0.0
    %875 = vmatprep.subr.mxu0 0.0
    %876 = vmatpush1.xpose.msra.mxu0 0.0
    %877 = vmatprep.subr.mxu0 0.0
    %878 = vmatpush1.xpose.msra.mxu0 0.0
    %879 = vmatprep.subr.mxu0 0.0
    %880 = vmatpush1.xpose.msra.mxu0 0.0
    %881 = vmatprep.subr.mxu0 0.0
    %882 = vmatpush1.xpose.msra.mxu0 0.0
    %883 = vmatprep.subr.mxu0 0.0
    %884 = vmatpush1.xpose.msra.mxu0 0.0
    %885 = vmatprep.subr.mxu0 0.0
    %886 = vmatpush1.xpose.msra.mxu0 0.0
    %887 = vmatprep.subr.mxu0 0.0
    %888 = vmatpush1.xpose.msra.mxu0 0.0
    %889 = vmatprep.subr.mxu0 0.0
    %890 = vmatpush1.xpose.msra.mxu0 0.0
    %891 = vmatprep.subr.mxu0 0.0
    %892 = vmatpush1.xpose.msra.mxu0 0.0
    %893 = vmatprep.subr.mxu0 0.0
    %894 = vmatpush1.xpose.msra.mxu0 0.0
    %895 = vmatprep.subr.mxu0 0.0
    %896 = vmatpush1.xpose.msra.mxu0 0.0
    %897 = vmatprep.subr.mxu0 0.0
    %898 = vmatpush1.xpose.msra.mxu0 0.0
    %899 = vmatprep.subr.mxu0 0.0
    %900 = vmatpush1.xpose.msra.mxu0 0.0
    %901 = vmatprep.subr.mxu0 0.0
    %902 = vmatpush1.xpose.msra.mxu0 0.0
    %903 = vmatprep.subr.mxu0 0.0
    %904 = vmatpush1.xpose.msra.mxu0 0.0
    %905 = vmatprep.subr.mxu0 0.0
    %906 = vmatpush1.xpose.msra.mxu0 0.0
    %907 = vmatprep.subr.mxu0 0.0
    %908 = vmatpush1.xpose.msra.mxu0 0.0
    %909 = vmatprep.subr.mxu0 0.0
    %910 = vmatpush1.xpose.msra.mxu0 0.0
    %911 = vmatprep.subr.mxu0 0.0
    %912 = vmatpush1.xpose.msra.mxu0 0.0
    %913 = vmatprep.subr.mxu0 0.0
    %914 = vmatpush1.xpose.msra.mxu0 0.0
    %915 = vmatprep.subr.mxu0 0.0
    %916 = vmatpush1.xpose.msra.mxu0 0.0
    %917 = vmatprep.subr.mxu0 0.0
    %918 = vmatpush1.xpose.msra.mxu0 0.0
    %919 = vmatprep.mubr.f32.mxu0 0.0
    %920 = vmatmul.mubr.f32.gmra.mrb[0].mxu0 %v851
    %v921 = vpop.f32.mrb[0].mxu0
    %v922 = vadd.f32 0.0, %v921
    %v923 = vpop.f32.mrb[0].mxu0
    %924 = vdwg.mxu0
    %v925 = vmul.f32 %v922, 0.25
    %v926 = vadd.f32 %v925, %v679
    %v927 = vsel %vm425, %v926, -inf
    %928 = vmax.xlane.f32.xlu0 %v927
    %v929 = vpop.xlane.xlu0 %928
    %v930 = vsub.f32 %v926, %v929
    %v931 = vmul.f32 %v930, 1.442695
    %v932 = vpow.pop %v931
    %v933 = vsel %vm425, %v932, 0.0
    %934 = vadd.xlane.f32.xlu0 %v933
    %v935 = vpop.xlane.xlu0 %934
    %v936 = vrcp.pop %v935
    %v937 = vmul.f32 %v932, %v936
    %938 = vrot.lane.b32.xlu0 %v337, 80
    %v939 = vpop.permute.xlu0 %938
    %v942 = vsel %vm425, %v937, 0
    %944 = vmatprep.subr.mxu0 0.0
    %945 = vmatpush1.msra.mxu0 %v939
    %946 = vmatprep.subr.mxu0 0.0
    %947 = vmatpush1.msra.mxu0 0.0
    %948 = vmatprep.subr.mxu0 0.0
    %949 = vmatpush1.msra.mxu0 0.0
    %950 = vmatprep.subr.mxu0 0.0
    %951 = vmatpush1.msra.mxu0 0.0
    %952 = vmatprep.subr.mxu0 0.0
    %953 = vmatpush1.msra.mxu0 0.0
    %954 = vmatprep.subr.mxu0 0.0
    %955 = vmatpush1.msra.mxu0 0.0
    %956 = vmatprep.subr.mxu0 0.0
    %957 = vmatpush1.msra.mxu0 0.0
    %958 = vmatprep.subr.mxu0 0.0
    %959 = vmatpush1.msra.mxu0 0.0
    %960 = vmatprep.subr.mxu0 0.0
    %961 = vmatpush1.msra.mxu0 0.0
    %962 = vmatprep.subr.mxu0 0.0
    %963 = vmatpush1.msra.mxu0 0.0
    %964 = vmatprep.subr.mxu0 0.0
    %965 = vmatpush1.msra.mxu0 0.0
    %966 = vmatprep.subr.mxu0 0.0
    %967 = vmatpush1.msra.mxu0 0.0
    %968 = vmatprep.subr.mxu0 0.0
    %969 = vmatpush1.msra.mxu0 0.0
    %970 = vmatprep.subr.mxu0 0.0
    %971 = vmatpush1.msra.mxu0 0.0
    %972 = vmatprep.subr.mxu0 0.0
    %973 = vmatpush1.msra.mxu0 0.0
    %974 = vmatprep.subr.mxu0 0.0
    %975 = vmatpush1.msra.mxu0 0.0
    %976 = vmatprep.subr.mxu0 0.0
    %977 = vmatpush1.msra.mxu0 0.0
    %978 = vmatprep.subr.mxu0 0.0
    %979 = vmatpush1.msra.mxu0 0.0
    %980 = vmatprep.subr.mxu0 0.0
    %981 = vmatpush1.msra.mxu0 0.0
    %982 = vmatprep.subr.mxu0 0.0
    %983 = vmatpush1.msra.mxu0 0.0
    %984 = vmatprep.subr.mxu0 0.0
    %985 = vmatpush1.msra.mxu0 0.0
    %986 = vmatprep.subr.mxu0 0.0
    %987 = vmatpush1.msra.mxu0 0.0
    %988 = vmatprep.subr.mxu0 0.0
    %989 = vmatpush1.msra.mxu0 0.0
    %990 = vmatprep.subr.mxu0 0.0
    %991 = vmatpush1.msra.mxu0 0.0
    %992 = vmatprep.subr.mxu0 0.0
    %993 = vmatpush1.msra.mxu0 0.0
    %994 = vmatprep.subr.mxu0 0.0
    %995 = vmatpush1.msra.mxu0 0.0
    %996 = vmatprep.subr.mxu0 0.0
    %997 = vmatpush1.msra.mxu0 0.0
    %998 = vmatprep.subr.mxu0 0.0
    %999 = vmatpush1.msra.mxu0 0.0
    %1000 = vmatprep.subr.mxu0 0.0
    %1001 = vmatpush1.msra.mxu0 0.0
    %1002 = vmatprep.subr.mxu0 0.0
    %1003 = vmatpush1.msra.mxu0 0.0
    %1004 = vmatprep.subr.mxu0 0.0
    %1005 = vmatpush1.msra.mxu0 0.0
    %1006 = vmatprep.subr.mxu0 0.0
    %1007 = vmatpush1.msra.mxu0 0.0
    %1008 = vmatprep.mubr.f32.mxu0 0.0
    %1009 = vmatmul.mubr.f32.gmra.mrb[0].mxu0 %v942
    %v1010 = vpop.f32.mrb[0].mxu0
    %v1011 = vadd.f32 0.0, %v1010
    %v1012 = vpop.f32.mrb[0].mxu0
    %1013 = vdwg.mxu0
    %s1014 = scalar_lea.vmem %s9, 16
    %v1015 = vld [vmem:[%s1014] sm:$0xff]
    %1016 = vrot.lane.b32.xlu0 %v165, 64
    %v1017 = vpop.permute.xlu0 %1016
    %1018 = vrot.lane.b32.xlu0 %v251, 64
    %v1019 = vpop.permute.xlu0 %1018
    %v1020 = vsel %vm346, %v1017, 0
    %v1022 = vsel %vm346, %v1019, 0
    %1024 = vmatprep.subr.mxu0 0.0
    %1025 = vmatpush1.xpose.msra.mxu0 %v1022
    %1026 = vmatprep.subr.mxu0 0.0
    %1027 = vmatpush1.xpose.msra.mxu0 0.0
    %1028 = vmatprep.subr.mxu0 0.0
    %1029 = vmatpush1.xpose.msra.mxu0 0.0
    %1030 = vmatprep.subr.mxu0 0.0
    %1031 = vmatpush1.xpose.msra.mxu0 0.0
    %1032 = vmatprep.subr.mxu0 0.0
    %1033 = vmatpush1.xpose.msra.mxu0 0.0
    %1034 = vmatprep.subr.mxu0 0.0
    %1035 = vmatpush1.xpose.msra.mxu0 0.0
    %1036 = vmatprep.subr.mxu0 0.0
    %1037 = vmatpush1.xpose.msra.mxu0 0.0
    %1038 = vmatprep.subr.mxu0 0.0
    %1039 = vmatpush1.xpose.msra.mxu0 0.0
    %1040 = vmatprep.subr.mxu0 0.0
    %1041 = vmatpush1.xpose.msra.mxu0 0.0
    %1042 = vmatprep.subr.mxu0 0.0
    %1043 = vmatpush1.xpose.msra.mxu0 0.0
    %1044 = vmatprep.subr.mxu0 0.0
    %1045 = vmatpush1.xpose.msra.mxu0 0.0
    %1046 = vmatprep.subr.mxu0 0.0
    %1047 = vmatpush1.xpose.msra.mxu0 0.0
    %1048 = vmatprep.subr.mxu0 0.0
    %1049 = vmatpush1.xpose.msra.mxu0 0.0
    %1050 = vmatprep.subr.mxu0 0.0
    %1051 = vmatpush1.xpose.msra.mxu0 0.0
    %1052 = vmatprep.subr.mxu0 0.0
    %1053 = vmatpush1.xpose.msra.mxu0 0.0
    %1054 = vmatprep.subr.mxu0 0.0
    %1055 = vmatpush1.xpose.msra.mxu0 0.0
    %1056 = vmatprep.subr.mxu0 0.0
    %1057 = vmatpush1.xpose.msra.mxu0 0.0
    %1058 = vmatprep.subr.mxu0 0.0
    %1059 = vmatpush1.xpose.msra.mxu0 0.0
    %1060 = vmatprep.subr.mxu0 0.0
    %1061 = vmatpush1.xpose.msra.mxu0 0.0
    %1062 = vmatprep.subr.mxu0 0.0
    %1063 = vmatpush1.xpose.msra.mxu0 0.0
    %1064 = vmatprep.subr.mxu0 0.0
    %1065 = vmatpush1.xpose.msra.mxu0 0.0
    %1066 = vmatprep.subr.mxu0 0.0
    %1067 = vmatpush1.xpose.msra.mxu0 0.0
    %1068 = vmatprep.subr.mxu0 0.0
    %1069 = vmatpush1.xpose.msra.mxu0 0.0
    %1070 = vmatprep.subr.mxu0 0.0
    %1071 = vmatpush1.xpose.msra.mxu0 0.0
    %1072 = vmatprep.subr.mxu0 0.0
    %1073 = vmatpush1.xpose.msra.mxu0 0.0
    %1074 = vmatprep.subr.mxu0 0.0
    %1075 = vmatpush1.xpose.msra.mxu0 0.0
    %1076 = vmatprep.subr.mxu0 0.0
    %1077 = vmatpush1.xpose.msra.mxu0 0.0
    %1078 = vmatprep.subr.mxu0 0.0
    %1079 = vmatpush1.xpose.msra.mxu0 0.0
    %1080 = vmatprep.subr.mxu0 0.0
    %1081 = vmatpush1.xpose.msra.mxu0 0.0
    %1082 = vmatprep.subr.mxu0 0.0
    %1083 = vmatpush1.xpose.msra.mxu0 0.0
    %1084 = vmatprep.subr.mxu0 0.0
    %1085 = vmatpush1.xpose.msra.mxu0 0.0
    %1086 = vmatprep.subr.mxu0 0.0
    %1087 = vmatpush1.xpose.msra.mxu0 0.0
    %1088 = vmatprep.mubr.f32.mxu0 0.0
    %1089 = vmatmul.mubr.f32.gmra.mrb[0].mxu0 %v1020
    %v1090 = vpop.f32.mrb[0].mxu0
    %v1091 = vadd.f32 0.0, %v1090
    %v1092 = vpop.f32.mrb[0].mxu0
    %1093 = vdwg.mxu0
    %v1094 = vmul.f32 %v1091, 0.25
    %v1095 = vadd.f32 %v1094, %v1015
    %v1096 = vsel %vm425, %v1095, -inf
    %1097 = vmax.xlane.f32.xlu0 %v1096
    %v1098 = vpop.xlane.xlu0 %1097
    %v1099 = vsub.f32 %v1095, %v1098
    %v1100 = vmul.f32 %v1099, 1.442695
    %v1101 = vpow.pop %v1100
    %v1102 = vsel %vm425, %v1101, 0.0
    %1103 = vadd.xlane.f32.xlu0 %v1102
    %v1104 = vpop.xlane.xlu0 %1103
    %v1105 = vrcp.pop %v1104
    %v1106 = vmul.f32 %v1101, %v1105
    %1107 = vrot.lane.b32.xlu0 %v337, 64
    %v1108 = vpop.permute.xlu0 %1107
    %v1111 = vsel %vm425, %v1106, 0
    %1113 = vmatprep.subr.mxu0 0.0
    %1114 = vmatpush1.msra.mxu0 %v1108
    %1115 = vmatprep.subr.mxu0 0.0
    %1116 = vmatpush1.msra.mxu0 0.0
    %1117 = vmatprep.subr.mxu0 0.0
    %1118 = vmatpush1.msra.mxu0 0.0
    %1119 = vmatprep.subr.mxu0 0.0
    %1120 = vmatpush1.msra.mxu0 0.0
    %1121 = vmatprep.subr.mxu0 0.0
    %1122 = vmatpush1.msra.mxu0 0.0
    %1123 = vmatprep.subr.mxu0 0.0
    %1124 = vmatpush1.msra.mxu0 0.0
    %1125 = vmatprep.subr.mxu0 0.0
    %1126 = vmatpush1.msra.mxu0 0.0
    %1127 = vmatprep.subr.mxu0 0.0
    %1128 = vmatpush1.msra.mxu0 0.0
    %1129 = vmatprep.subr.mxu0 0.0
    %1130 = vmatpush1.msra.mxu0 0.0
    %1131 = vmatprep.subr.mxu0 0.0
    %1132 = vmatpush1.msra.mxu0 0.0
    %1133 = vmatprep.subr.mxu0 0.0
    %1134 = vmatpush1.msra.mxu0 0.0
    %1135 = vmatprep.subr.mxu0 0.0
    %1136 = vmatpush1.msra.mxu0 0.0
    %1137 = vmatprep.subr.mxu0 0.0
    %1138 = vmatpush1.msra.mxu0 0.0
    %1139 = vmatprep.subr.mxu0 0.0
    %1140 = vmatpush1.msra.mxu0 0.0
    %1141 = vmatprep.subr.mxu0 0.0
    %1142 = vmatpush1.msra.mxu0 0.0
    %1143 = vmatprep.subr.mxu0 0.0
    %1144 = vmatpush1.msra.mxu0 0.0
    %1145 = vmatprep.subr.mxu0 0.0
    %1146 = vmatpush1.msra.mxu0 0.0
    %1147 = vmatprep.subr.mxu0 0.0
    %1148 = vmatpush1.msra.mxu0 0.0
    %1149 = vmatprep.subr.mxu0 0.0
    %1150 = vmatpush1.msra.mxu0 0.0
    %1151 = vmatprep.subr.mxu0 0.0
    %1152 = vmatpush1.msra.mxu0 0.0
    %1153 = vmatprep.subr.mxu0 0.0
    %1154 = vmatpush1.msra.mxu0 0.0
    %1155 = vmatprep.subr.mxu0 0.0
    %1156 = vmatpush1.msra.mxu0 0.0
    %1157 = vmatprep.subr.mxu0 0.0
    %1158 = vmatpush1.msra.mxu0 0.0
    %1159 = vmatprep.subr.mxu0 0.0
    %1160 = vmatpush1.msra.mxu0 0.0
    %1161 = vmatprep.subr.mxu0 0.0
    %1162 = vmatpush1.msra.mxu0 0.0
    %1163 = vmatprep.subr.mxu0 0.0
    %1164 = vmatpush1.msra.mxu0 0.0
    %1165 = vmatprep.subr.mxu0 0.0
    %1166 = vmatpush1.msra.mxu0 0.0
    %1167 = vmatprep.subr.mxu0 0.0
    %1168 = vmatpush1.msra.mxu0 0.0
    %1169 = vmatprep.subr.mxu0 0.0
    %1170 = vmatpush1.msra.mxu0 0.0
    %1171 = vmatprep.subr.mxu0 0.0
    %1172 = vmatpush1.msra.mxu0 0.0
    %1173 = vmatprep.subr.mxu0 0.0
    %1174 = vmatpush1.msra.mxu0 0.0
    %1175 = vmatprep.subr.mxu0 0.0
    %1176 = vmatpush1.msra.mxu0 0.0
    %1177 = vmatprep.mubr.f32.mxu0 0.0
    %1178 = vmatmul.mubr.f32.gmra.mrb[0].mxu0 %v1111
    %v1179 = vpop.f32.mrb[0].mxu0
    %v1180 = vadd.f32 0.0, %v1179
    %v1181 = vpop.f32.mrb[0].mxu0
    %1182 = vdwg.mxu0
    %1183 = vrot.lane.b32.xlu0 %v165, 48
    %v1184 = vpop.permute.xlu0 %1183
    %1185 = vrot.lane.b32.xlu0 %v251, 48
    %v1186 = vpop.permute.xlu0 %1185
    %v1187 = vsel %vm346, %v1184, 0
    %v1189 = vsel %vm346, %v1186, 0
    %1191 = vmatprep.subr.mxu0 0.0
    %1192 = vmatpush1.xpose.msra.mxu0 %v1189
    %1193 = vmatprep.subr.mxu0 0.0
    %1194 = vmatpush1.xpose.msra.mxu0 0.0
    %1195 = vmatprep.subr.mxu0 0.0
    %1196 = vmatpush1.xpose.msra.mxu0 0.0
    %1197 = vmatprep.subr.mxu0 0.0
    %1198 = vmatpush1.xpose.msra.mxu0 0.0
    %1199 = vmatprep.subr.mxu0 0.0
    %1200 = vmatpush1.xpose.msra.mxu0 0.0
    %1201 = vmatprep.subr.mxu0 0.0
    %1202 = vmatpush1.xpose.msra.mxu0 0.0
    %1203 = vmatprep.subr.mxu0 0.0
    %1204 = vmatpush1.xpose.msra.mxu0 0.0
    %1205 = vmatprep.subr.mxu0 0.0
    %1206 = vmatpush1.xpose.msra.mxu0 0.0
    %1207 = vmatprep.subr.mxu0 0.0
    %1208 = vmatpush1.xpose.msra.mxu0 0.0
    %1209 = vmatprep.subr.mxu0 0.0
    %1210 = vmatpush1.xpose.msra.mxu0 0.0
    %1211 = vmatprep.subr.mxu0 0.0
    %1212 = vmatpush1.xpose.msra.mxu0 0.0
    %1213 = vmatprep.subr.mxu0 0.0
    %1214 = vmatpush1.xpose.msra.mxu0 0.0
    %1215 = vmatprep.subr.mxu0 0.0
    %1216 = vmatpush1.xpose.msra.mxu0 0.0
    %1217 = vmatprep.subr.mxu0 0.0
    %1218 = vmatpush1.xpose.msra.mxu0 0.0
    %1219 = vmatprep.subr.mxu0 0.0
    %1220 = vmatpush1.xpose.msra.mxu0 0.0
    %1221 = vmatprep.subr.mxu0 0.0
    %1222 = vmatpush1.xpose.msra.mxu0 0.0
    %1223 = vmatprep.subr.mxu0 0.0
    %1224 = vmatpush1.xpose.msra.mxu0 0.0
    %1225 = vmatprep.subr.mxu0 0.0
    %1226 = vmatpush1.xpose.msra.mxu0 0.0
    %1227 = vmatprep.subr.mxu0 0.0
    %1228 = vmatpush1.xpose.msra.mxu0 0.0
    %1229 = vmatprep.subr.mxu0 0.0
    %1230 = vmatpush1.xpose.msra.mxu0 0.0
    %1231 = vmatprep.subr.mxu0 0.0
    %1232 = vmatpush1.xpose.msra.mxu0 0.0
    %1233 = vmatprep.subr.mxu0 0.0
    %1234 = vmatpush1.xpose.msra.mxu0 0.0
    %1235 = vmatprep.subr.mxu0 0.0
    %1236 = vmatpush1.xpose.msra.mxu0 0.0
    %1237 = vmatprep.subr.mxu0 0.0
    %1238 = vmatpush1.xpose.msra.mxu0 0.0
    %1239 = vmatprep.subr.mxu0 0.0
    %1240 = vmatpush1.xpose.msra.mxu0 0.0
    %1241 = vmatprep.subr.mxu0 0.0
    %1242 = vmatpush1.xpose.msra.mxu0 0.0
    %1243 = vmatprep.subr.mxu0 0.0
    %1244 = vmatpush1.xpose.msra.mxu0 0.0
    %1245 = vmatprep.subr.mxu0 0.0
    %1246 = vmatpush1.xpose.msra.mxu0 0.0
    %1247 = vmatprep.subr.mxu0 0.0
    %1248 = vmatpush1.xpose.msra.mxu0 0.0
    %1249 = vmatprep.subr.mxu0 0.0
    %1250 = vmatpush1.xpose.msra.mxu0 0.0
    %1251 = vmatprep.subr.mxu0 0.0
    %1252 = vmatpush1.xpose.msra.mxu0 0.0
    %1253 = vmatprep.subr.mxu0 0.0
    %1254 = vmatpush1.xpose.msra.mxu0 0.0
    %1255 = vmatprep.mubr.f32.mxu0 0.0
    %1256 = vmatmul.mubr.f32.gmra.mrb[0].mxu0 %v1187
    %v1257 = vpop.f32.mrb[0].mxu0
    %v1258 = vadd.f32 0.0, %v1257
    %v1259 = vpop.f32.mrb[0].mxu0
    %1260 = vdwg.mxu0
    %v1261 = vmul.f32 %v1258, 0.25
    %v1262 = vadd.f32 %v1261, %v1015
    %v1263 = vsel %vm425, %v1262, -inf
    %1264 = vmax.xlane.f32.xlu0 %v1263
    %v1265 = vpop.xlane.xlu0 %1264
    %v1266 = vsub.f32 %v1262, %v1265
    %v1267 = vmul.f32 %v1266, 1.442695
    %v1268 = vpow.pop %v1267
    %v1269 = vsel %vm425, %v1268, 0.0
    %1270 = vadd.xlane.f32.xlu0 %v1269
    %v1271 = vpop.xlane.xlu0 %1270
    %v1272 = vrcp.pop %v1271
    %v1273 = vmul.f32 %v1268, %v1272
    %1274 = vrot.lane.b32.xlu0 %v337, 48
    %v1275 = vpop.permute.xlu0 %1274
    %v1278 = vsel %vm425, %v1273, 0
    %1280 = vmatprep.subr.mxu0 0.0
    %1281 = vmatpush1.msra.mxu0 %v1275
    %1282 = vmatprep.subr.mxu0 0.0
    %1283 = vmatpush1.msra.mxu0 0.0
    %1284 = vmatprep.subr.mxu0 0.0
    %1285 = vmatpush1.msra.mxu0 0.0
    %1286 = vmatprep.subr.mxu0 0.0
    %1287 = vmatpush1.msra.mxu0 0.0
    %1288 = vmatprep.subr.mxu0 0.0
    %1289 = vmatpush1.msra.mxu0 0.0
    %1290 = vmatprep.subr.mxu0 0.0
    %1291 = vmatpush1.msra.mxu0 0.0
    %1292 = vmatprep.subr.mxu0 0.0
    %1293 = vmatpush1.msra.mxu0 0.0
    %1294 = vmatprep.subr.mxu0 0.0
    %1295 = vmatpush1.msra.mxu0 0.0
    %1296 = vmatprep.subr.mxu0 0.0
    %1297 = vmatpush1.msra.mxu0 0.0
    %1298 = vmatprep.subr.mxu0 0.0
    %1299 = vmatpush1.msra.mxu0 0.0
    %1300 = vmatprep.subr.mxu0 0.0
    %1301 = vmatpush1.msra.mxu0 0.0
    %1302 = vmatprep.subr.mxu0 0.0
    %1303 = vmatpush1.msra.mxu0 0.0
    %1304 = vmatprep.subr.mxu0 0.0
    %1305 = vmatpush1.msra.mxu0 0.0
    %1306 = vmatprep.subr.mxu0 0.0
    %1307 = vmatpush1.msra.mxu0 0.0
    %1308 = vmatprep.subr.mxu0 0.0
    %1309 = vmatpush1.msra.mxu0 0.0
    %1310 = vmatprep.subr.mxu0 0.0
    %1311 = vmatpush1.msra.mxu0 0.0
    %1312 = vmatprep.subr.mxu0 0.0
    %1313 = vmatpush1.msra.mxu0 0.0
    %1314 = vmatprep.subr.mxu0 0.0
    %1315 = vmatpush1.msra.mxu0 0.0
    %1316 = vmatprep.subr.mxu0 0.0
    %1317 = vmatpush1.msra.mxu0 0.0
    %1318 = vmatprep.subr.mxu0 0.0
    %1319 = vmatpush1.msra.mxu0 0.0
    %1320 = vmatprep.subr.mxu0 0.0
    %1321 = vmatpush1.msra.mxu0 0.0
    %1322 = vmatprep.subr.mxu0 0.0
    %1323 = vmatpush1.msra.mxu0 0.0
    %1324 = vmatprep.subr.mxu0 0.0
    %1325 = vmatpush1.msra.mxu0 0.0
    %1326 = vmatprep.subr.mxu0 0.0
    %1327 = vmatpush1.msra.mxu0 0.0
    %1328 = vmatprep.subr.mxu0 0.0
    %1329 = vmatpush1.msra.mxu0 0.0
    %1330 = vmatprep.subr.mxu0 0.0
    %1331 = vmatpush1.msra.mxu0 0.0
    %1332 = vmatprep.subr.mxu0 0.0
    %1333 = vmatpush1.msra.mxu0 0.0
    %1334 = vmatprep.subr.mxu0 0.0
    %1335 = vmatpush1.msra.mxu0 0.0
    %1336 = vmatprep.subr.mxu0 0.0
    %1337 = vmatpush1.msra.mxu0 0.0
    %1338 = vmatprep.subr.mxu0 0.0
    %1339 = vmatpush1.msra.mxu0 0.0
    %1340 = vmatprep.subr.mxu0 0.0
    %1341 = vmatpush1.msra.mxu0 0.0
    %1342 = vmatprep.subr.mxu0 0.0
    %1343 = vmatpush1.msra.mxu0 0.0
    %1344 = vmatprep.mubr.f32.mxu0 0.0
    %1345 = vmatmul.mubr.f32.gmra.mrb[0].mxu0 %v1278
    %v1346 = vpop.f32.mrb[0].mxu0
    %v1347 = vadd.f32 0.0, %v1346
    %v1348 = vpop.f32.mrb[0].mxu0
    %1349 = vdwg.mxu0
    %s1350 = scalar_lea.vmem %s9, 24
    %v1351 = vld [vmem:[%s1350] sm:$0xff]
    %1352 = vrot.lane.b32.xlu0 %v165, 32
    %v1353 = vpop.permute.xlu0 %1352
    %1354 = vrot.lane.b32.xlu0 %v251, 32
    %v1355 = vpop.permute.xlu0 %1354
    %v1356 = vsel %vm346, %v1353, 0
    %v1358 = vsel %vm346, %v1355, 0
    %1360 = vmatprep.subr.mxu0 0.0
    %1361 = vmatpush1.xpose.msra.mxu0 %v1358
    %1362 = vmatprep.subr.mxu0 0.0
    %1363 = vmatpush1.xpose.msra.mxu0 0.0
    %1364 = vmatprep.subr.mxu0 0.0
    %1365 = vmatpush1.xpose.msra.mxu0 0.0
    %1366 = vmatprep.subr.mxu0 0.0
    %1367 = vmatpush1.xpose.msra.mxu0 0.0
    %1368 = vmatprep.subr.mxu0 0.0
    %1369 = vmatpush1.xpose.msra.mxu0 0.0
    %1370 = vmatprep.subr.mxu0 0.0
    %1371 = vmatpush1.xpose.msra.mxu0 0.0
    %1372 = vmatprep.subr.mxu0 0.0
    %1373 = vmatpush1.xpose.msra.mxu0 0.0
    %1374 = vmatprep.subr.mxu0 0.0
    %1375 = vmatpush1.xpose.msra.mxu0 0.0
    %1376 = vmatprep.subr.mxu0 0.0
    %1377 = vmatpush1.xpose.msra.mxu0 0.0
    %1378 = vmatprep.subr.mxu0 0.0
    %1379 = vmatpush1.xpose.msra.mxu0 0.0
    %1380 = vmatprep.subr.mxu0 0.0
    %1381 = vmatpush1.xpose.msra.mxu0 0.0
    %1382 = vmatprep.subr.mxu0 0.0
    %1383 = vmatpush1.xpose.msra.mxu0 0.0
    %1384 = vmatprep.subr.mxu0 0.0
    %1385 = vmatpush1.xpose.msra.mxu0 0.0
    %1386 = vmatprep.subr.mxu0 0.0
    %1387 = vmatpush1.xpose.msra.mxu0 0.0
    %1388 = vmatprep.subr.mxu0 0.0
    %1389 = vmatpush1.xpose.msra.mxu0 0.0
    %1390 = vmatprep.subr.mxu0 0.0
    %1391 = vmatpush1.xpose.msra.mxu0 0.0
    %1392 = vmatprep.subr.mxu0 0.0
    %1393 = vmatpush1.xpose.msra.mxu0 0.0
    %1394 = vmatprep.subr.mxu0 0.0
    %1395 = vmatpush1.xpose.msra.mxu0 0.0
    %1396 = vmatprep.subr.mxu0 0.0
    %1397 = vmatpush1.xpose.msra.mxu0 0.0
    %1398 = vmatprep.subr.mxu0 0.0
    %1399 = vmatpush1.xpose.msra.mxu0 0.0
    %1400 = vmatprep.subr.mxu0 0.0
    %1401 = vmatpush1.xpose.msra.mxu0 0.0
    %1402 = vmatprep.subr.mxu0 0.0
    %1403 = vmatpush1.xpose.msra.mxu0 0.0
    %1404 = vmatprep.subr.mxu0 0.0
    %1405 = vmatpush1.xpose.msra.mxu0 0.0
    %1406 = vmatprep.subr.mxu0 0.0
    %1407 = vmatpush1.xpose.msra.mxu0 0.0
    %1408 = vmatprep.subr.mxu0 0.0
    %1409 = vmatpush1.xpose.msra.mxu0 0.0
    %1410 = vmatprep.subr.mxu0 0.0
    %1411 = vmatpush1.xpose.msra.mxu0 0.0
    %1412 = vmatprep.subr.mxu0 0.0
    %1413 = vmatpush1.xpose.msra.mxu0 0.0
    %1414 = vmatprep.subr.mxu0 0.0
    %1415 = vmatpush1.xpose.msra.mxu0 0.0
    %1416 = vmatprep.subr.mxu0 0.0
    %1417 = vmatpush1.xpose.msra.mxu0 0.0
    %1418 = vmatprep.subr.mxu0 0.0
    %1419 = vmatpush1.xpose.msra.mxu0 0.0
    %1420 = vmatprep.subr.mxu0 0.0
    %1421 = vmatpush1.xpose.msra.mxu0 0.0
    %1422 = vmatprep.subr.mxu0 0.0
    %1423 = vmatpush1.xpose.msra.mxu0 0.0
    %1424 = vmatprep.mubr.f32.mxu0 0.0
    %1425 = vmatmul.mubr.f32.gmra.mrb[0].mxu0 %v1356
    %v1426 = vpop.f32.mrb[0].mxu0
    %v1427 = vadd.f32 0.0, %v1426
    %v1428 = vpop.f32.mrb[0].mxu0
    %1429 = vdwg.mxu0
    %v1430 = vmul.f32 %v1427, 0.25
    %v1431 = vadd.f32 %v1430, %v1351
    %v1432 = vsel %vm425, %v1431, -inf
    %1433 = vmax.xlane.f32.xlu0 %v1432
    %v1434 = vpop.xlane.xlu0 %1433
    %v1435 = vsub.f32 %v1431, %v1434
    %v1436 = vmul.f32 %v1435, 1.442695
    %v1437 = vpow.pop %v1436
    %v1438 = vsel %vm425, %v1437, 0.0
    %1439 = vadd.xlane.f32.xlu0 %v1438
    %v1440 = vpop.xlane.xlu0 %1439
    %v1441 = vrcp.pop %v1440
    %v1442 = vmul.f32 %v1437, %v1441
    %1443 = vrot.lane.b32.xlu0 %v337, 32
    %v1444 = vpop.permute.xlu0 %1443
    %v1447 = vsel %vm425, %v1442, 0
    %1449 = vmatprep.subr.mxu0 0.0
    %1450 = vmatpush1.msra.mxu0 %v1444
    %1451 = vmatprep.subr.mxu0 0.0
    %1452 = vmatpush1.msra.mxu0 0.0
    %1453 = vmatprep.subr.mxu0 0.0
    %1454 = vmatpush1.msra.mxu0 0.0
    %1455 = vmatprep.subr.mxu0 0.0
    %1456 = vmatpush1.msra.mxu0 0.0
    %1457 = vmatprep.subr.mxu0 0.0
    %1458 = vmatpush1.msra.mxu0 0.0
    %1459 = vmatprep.subr.mxu0 0.0
    %1460 = vmatpush1.msra.mxu0 0.0
    %1461 = vmatprep.subr.mxu0 0.0
    %1462 = vmatpush1.msra.mxu0 0.0
    %1463 = vmatprep.subr.mxu0 0.0
    %1464 = vmatpush1.msra.mxu0 0.0
    %1465 = vmatprep.subr.mxu0 0.0
    %1466 = vmatpush1.msra.mxu0 0.0
    %1467 = vmatprep.subr.mxu0 0.0
    %1468 = vmatpush1.msra.mxu0 0.0
    %1469 = vmatprep.subr.mxu0 0.0
    %1470 = vmatpush1.msra.mxu0 0.0
    %1471 = vmatprep.subr.mxu0 0.0
    %1472 = vmatpush1.msra.mxu0 0.0
    %1473 = vmatprep.subr.mxu0 0.0
    %1474 = vmatpush1.msra.mxu0 0.0
    %1475 = vmatprep.subr.mxu0 0.0
    %1476 = vmatpush1.msra.mxu0 0.0
    %1477 = vmatprep.subr.mxu0 0.0
    %1478 = vmatpush1.msra.mxu0 0.0
    %1479 = vmatprep.subr.mxu0 0.0
    %1480 = vmatpush1.msra.mxu0 0.0
    %1481 = vmatprep.subr.mxu0 0.0
    %1482 = vmatpush1.msra.mxu0 0.0
    %1483 = vmatprep.subr.mxu0 0.0
    %1484 = vmatpush1.msra.mxu0 0.0
    %1485 = vmatprep.subr.mxu0 0.0
    %1486 = vmatpush1.msra.mxu0 0.0
    %1487 = vmatprep.subr.mxu0 0.0
    %1488 = vmatpush1.msra.mxu0 0.0
    %1489 = vmatprep.subr.mxu0 0.0
    %1490 = vmatpush1.msra.mxu0 0.0
    %1491 = vmatprep.subr.mxu0 0.0
    %1492 = vmatpush1.msra.mxu0 0.0
    %1493 = vmatprep.subr.mxu0 0.0
    %1494 = vmatpush1.msra.mxu0 0.0
    %1495 = vmatprep.subr.mxu0 0.0
    %1496 = vmatpush1.msra.mxu0 0.0
    %1497 = vmatprep.subr.mxu0 0.0
    %1498 = vmatpush1.msra.mxu0 0.0
    %1499 = vmatprep.subr.mxu0 0.0
    %1500 = vmatpush1.msra.mxu0 0.0
    %1501 = vmatprep.subr.mxu0 0.0
    %1502 = vmatpush1.msra.mxu0 0.0
    %1503 = vmatprep.subr.mxu0 0.0
    %1504 = vmatpush1.msra.mxu0 0.0
    %1505 = vmatprep.subr.mxu0 0.0
    %1506 = vmatpush1.msra.mxu0 0.0
    %1507 = vmatprep.subr.mxu0 0.0
    %1508 = vmatpush1.msra.mxu0 0.0
    %1509 = vmatprep.subr.mxu0 0.0
    %1510 = vmatpush1.msra.mxu0 0.0
    %1511 = vmatprep.subr.mxu0 0.0
    %1512 = vmatpush1.msra.mxu0 0.0
    %1513 = vmatprep.mubr.f32.mxu0 0.0
    %1514 = vmatmul.mubr.f32.gmra.mrb[0].mxu0 %v1447
    %v1515 = vpop.f32.mrb[0].mxu0
    %v1516 = vadd.f32 0.0, %v1515
    %v1517 = vpop.f32.mrb[0].mxu0
    %1518 = vdwg.mxu0
    %1519 = vrot.lane.b32.xlu0 %v165, 16
    %v1520 = vpop.permute.xlu0 %1519
    %1521 = vrot.lane.b32.xlu0 %v251, 16
    %v1522 = vpop.permute.xlu0 %1521
    %v1523 = vsel %vm346, %v1520, 0
    %v1525 = vsel %vm346, %v1522, 0
    %1527 = vmatprep.subr.mxu0 0.0
    %1528 = vmatpush1.xpose.msra.mxu0 %v1525
    %1529 = vmatprep.subr.mxu0 0.0
    %1530 = vmatpush1.xpose.msra.mxu0 0.0
    %1531 = vmatprep.subr.mxu0 0.0
    %1532 = vmatpush1.xpose.msra.mxu0 0.0
    %1533 = vmatprep.subr.mxu0 0.0
    %1534 = vmatpush1.xpose.msra.mxu0 0.0
    %1535 = vmatprep.subr.mxu0 0.0
    %1536 = vmatpush1.xpose.msra.mxu0 0.0
    %1537 = vmatprep.subr.mxu0 0.0
    %1538 = vmatpush1.xpose.msra.mxu0 0.0
    %1539 = vmatprep.subr.mxu0 0.0
    %1540 = vmatpush1.xpose.msra.mxu0 0.0
    %1541 = vmatprep.subr.mxu0 0.0
    %1542 = vmatpush1.xpose.msra.mxu0 0.0
    %1543 = vmatprep.subr.mxu0 0.0
    %1544 = vmatpush1.xpose.msra.mxu0 0.0
    %1545 = vmatprep.subr.mxu0 0.0
    %1546 = vmatpush1.xpose.msra.mxu0 0.0
    %1547 = vmatprep.subr.mxu0 0.0
    %1548 = vmatpush1.xpose.msra.mxu0 0.0
    %1549 = vmatprep.subr.mxu0 0.0
    %1550 = vmatpush1.xpose.msra.mxu0 0.0
    %1551 = vmatprep.subr.mxu0 0.0
    %1552 = vmatpush1.xpose.msra.mxu0 0.0
    %1553 = vmatprep.subr.mxu0 0.0
    %1554 = vmatpush1.xpose.msra.mxu0 0.0
    %1555 = vmatprep.subr.mxu0 0.0
    %1556 = vmatpush1.xpose.msra.mxu0 0.0
    %1557 = vmatprep.subr.mxu0 0.0
    %1558 = vmatpush1.xpose.msra.mxu0 0.0
    %1559 = vmatprep.subr.mxu0 0.0
    %1560 = vmatpush1.xpose.msra.mxu0 0.0
    %1561 = vmatprep.subr.mxu0 0.0
    %1562 = vmatpush1.xpose.msra.mxu0 0.0
    %1563 = vmatprep.subr.mxu0 0.0
    %1564 = vmatpush1.xpose.msra.mxu0 0.0
    %1565 = vmatprep.subr.mxu0 0.0
    %1566 = vmatpush1.xpose.msra.mxu0 0.0
    %1567 = vmatprep.subr.mxu0 0.0
    %1568 = vmatpush1.xpose.msra.mxu0 0.0
    %1569 = vmatprep.subr.mxu0 0.0
    %1570 = vmatpush1.xpose.msra.mxu0 0.0
    %1571 = vmatprep.subr.mxu0 0.0
    %1572 = vmatpush1.xpose.msra.mxu0 0.0
    %1573 = vmatprep.subr.mxu0 0.0
    %1574 = vmatpush1.xpose.msra.mxu0 0.0
    %1575 = vmatprep.subr.mxu0 0.0
    %1576 = vmatpush1.xpose.msra.mxu0 0.0
    %1577 = vmatprep.subr.mxu0 0.0
    %1578 = vmatpush1.xpose.msra.mxu0 0.0
    %1579 = vmatprep.subr.mxu0 0.0
    %1580 = vmatpush1.xpose.msra.mxu0 0.0
    %1581 = vmatprep.subr.mxu0 0.0
    %1582 = vmatpush1.xpose.msra.mxu0 0.0
    %1583 = vmatprep.subr.mxu0 0.0
    %1584 = vmatpush1.xpose.msra.mxu0 0.0
    %1585 = vmatprep.subr.mxu0 0.0
    %1586 = vmatpush1.xpose.msra.mxu0 0.0
    %1587 = vmatprep.subr.mxu0 0.0
    %1588 = vmatpush1.xpose.msra.mxu0 0.0
    %1589 = vmatprep.subr.mxu0 0.0
    %1590 = vmatpush1.xpose.msra.mxu0 0.0
    %1591 = vmatprep.mubr.f32.mxu0 0.0
    %1592 = vmatmul.mubr.f32.gmra.mrb[0].mxu0 %v1523
    %v1593 = vpop.f32.mrb[0].mxu0
    %v1594 = vadd.f32 0.0, %v1593
    %v1595 = vpop.f32.mrb[0].mxu0
    %1596 = vdwg.mxu0
    %v1597 = vmul.f32 %v1594, 0.25
    %v1598 = vadd.f32 %v1597, %v1351
    %v1599 = vsel %vm425, %v1598, -inf
    %1600 = vmax.xlane.f32.xlu0 %v1599
    %v1601 = vpop.xlane.xlu0 %1600
    %v1602 = vsub.f32 %v1598, %v1601
    %v1603 = vmul.f32 %v1602, 1.442695
    %v1604 = vpow.pop %v1603
    %v1605 = vsel %vm425, %v1604, 0.0
    %1606 = vadd.xlane.f32.xlu0 %v1605
    %v1607 = vpop.xlane.xlu0 %1606
    %v1608 = vrcp.pop %v1607
    %v1609 = vmul.f32 %v1604, %v1608
    %1610 = vrot.lane.b32.xlu0 %v337, 16
    %v1611 = vpop.permute.xlu0 %1610
    %v1614 = vsel %vm425, %v1609, 0
    %1616 = vmatprep.subr.mxu0 0.0
    %1617 = vmatpush1.msra.mxu0 %v1611
    %1618 = vmatprep.subr.mxu0 0.0
    %1619 = vmatpush1.msra.mxu0 0.0
    %1620 = vmatprep.subr.mxu0 0.0
    %1621 = vmatpush1.msra.mxu0 0.0
    %1622 = vmatprep.subr.mxu0 0.0
    %1623 = vmatpush1.msra.mxu0 0.0
    %1624 = vmatprep.subr.mxu0 0.0
    %1625 = vmatpush1.msra.mxu0 0.0
    %1626 = vmatprep.subr.mxu0 0.0
    %1627 = vmatpush1.msra.mxu0 0.0
    %1628 = vmatprep.subr.mxu0 0.0
    %1629 = vmatpush1.msra.mxu0 0.0
    %1630 = vmatprep.subr.mxu0 0.0
    %1631 = vmatpush1.msra.mxu0 0.0
    %1632 = vmatprep.subr.mxu0 0.0
    %1633 = vmatpush1.msra.mxu0 0.0
    %1634 = vmatprep.subr.mxu0 0.0
    %1635 = vmatpush1.msra.mxu0 0.0
    %1636 = vmatprep.subr.mxu0 0.0
    %1637 = vmatpush1.msra.mxu0 0.0
    %1638 = vmatprep.subr.mxu0 0.0
    %1639 = vmatpush1.msra.mxu0 0.0
    %1640 = vmatprep.subr.mxu0 0.0
    %1641 = vmatpush1.msra.mxu0 0.0
    %1642 = vmatprep.subr.mxu0 0.0
    %1643 = vmatpush1.msra.mxu0 0.0
    %1644 = vmatprep.subr.mxu0 0.0
    %1645 = vmatpush1.msra.mxu0 0.0
    %1646 = vmatprep.subr.mxu0 0.0
    %1647 = vmatpush1.msra.mxu0 0.0
    %1648 = vmatprep.subr.mxu0 0.0
    %1649 = vmatpush1.msra.mxu0 0.0
    %1650 = vmatprep.subr.mxu0 0.0
    %1651 = vmatpush1.msra.mxu0 0.0
    %1652 = vmatprep.subr.mxu0 0.0
    %1653 = vmatpush1.msra.mxu0 0.0
    %1654 = vmatprep.subr.mxu0 0.0
    %1655 = vmatpush1.msra.mxu0 0.0
    %1656 = vmatprep.subr.mxu0 0.0
    %1657 = vmatpush1.msra.mxu0 0.0
    %1658 = vmatprep.subr.mxu0 0.0
    %1659 = vmatpush1.msra.mxu0 0.0
    %1660 = vmatprep.subr.mxu0 0.0
    %1661 = vmatpush1.msra.mxu0 0.0
    %1662 = vmatprep.subr.mxu0 0.0
    %1663 = vmatpush1.msra.mxu0 0.0
    %1664 = vmatprep.subr.mxu0 0.0
    %1665 = vmatpush1.msra.mxu0 0.0
    %1666 = vmatprep.subr.mxu0 0.0
    %1667 = vmatpush1.msra.mxu0 0.0
    %1668 = vmatprep.subr.mxu0 0.0
    %1669 = vmatpush1.msra.mxu0 0.0
    %1670 = vmatprep.subr.mxu0 0.0
    %1671 = vmatpush1.msra.mxu0 0.0
    %1672 = vmatprep.subr.mxu0 0.0
    %1673 = vmatpush1.msra.mxu0 0.0
    %1674 = vmatprep.subr.mxu0 0.0
    %1675 = vmatpush1.msra.mxu0 0.0
    %1676 = vmatprep.subr.mxu0 0.0
    %1677 = vmatpush1.msra.mxu0 0.0
    %1678 = vmatprep.subr.mxu0 0.0
    %1679 = vmatpush1.msra.mxu0 0.0
    %1680 = vmatprep.mubr.f32.mxu0 0.0
    %1681 = vmatmul.mubr.f32.gmra.mrb[0].mxu0 %v1614
    %v1682 = vpop.f32.mrb[0].mxu0
    %v1683 = vadd.f32 0.0, %v1682
    %v1684 = vpop.f32.mrb[0].mxu0
    %1685 = vdwg.mxu0
    %1687 = vrot.lane.b32.xlu0 %v675, 16
    %v1688 = vpop.permute.xlu0 %1687
    %1691 = vrot.lane.b32.xlu0 %v844, 32
    %v1692 = vpop.permute.xlu0 %1691
    %1695 = vrot.lane.b32.xlu0 %v1011, 48
    %v1696 = vpop.permute.xlu0 %1695
    %1699 = vrot.lane.b32.xlu0 %v1180, 64
    %v1700 = vpop.permute.xlu0 %1699
    %1703 = vrot.lane.b32.xlu0 %v1347, 80
    %v1704 = vpop.permute.xlu0 %1703
    %1707 = vrot.lane.b32.xlu0 %v1516, 96
    %v1708 = vpop.permute.xlu0 %1707
    %1711 = vrot.lane.b32.xlu0 %v1683, 112
    %v1712 = vpop.permute.xlu0 %1711
    %v1714 = vsel %vm346, %v507, %v1688
    %v1715 = vsel %vm91, %v1714, %v1692
    %vm1716 = vcmask 392192
    %v1717 = vsel %vm1716, %v1715, %v1696
    %vm1718 = vcmask 523264
    %v1719 = vsel %vm1718, %v1717, %v1700
    %vm1720 = vcmask 654336
    %v1721 = vsel %vm1720, %v1719, %v1704
    %vm1722 = vcmask 785408
    %v1723 = vsel %vm1722, %v1721, %v1708
    %vm1724 = vcmask 916480
    %v1725 = vsel %vm1724, %v1723, %v1712
    %v1727 = vsel %vm346, %v170, 0
    %v1730 = vsel %vm346, %v256, 0
    %1732 = vmatprep.subr.mxu0 0.0
    %1733 = vmatpush1.xpose.msra.mxu0 %v1730
    %1734 = vmatprep.subr.mxu0 0.0
    %1735 = vmatpush1.xpose.msra.mxu0 0.0
    %1736 = vmatprep.subr.mxu0 0.0
    %1737 = vmatpush1.xpose.msra.mxu0 0.0
    %1738 = vmatprep.subr.mxu0 0.0
    %1739 = vmatpush1.xpose.msra.mxu0 0.0
    %1740 = vmatprep.subr.mxu0 0.0
    %1741 = vmatpush1.xpose.msra.mxu0 0.0
    %1742 = vmatprep.subr.mxu0 0.0
    %1743 = vmatpush1.xpose.msra.mxu0 0.0
    %1744 = vmatprep.subr.mxu0 0.0
    %1745 = vmatpush1.xpose.msra.mxu0 0.0
    %1746 = vmatprep.subr.mxu0 0.0
    %1747 = vmatpush1.xpose.msra.mxu0 0.0
    %1748 = vmatprep.subr.mxu0 0.0
    %1749 = vmatpush1.xpose.msra.mxu0 0.0
    %1750 = vmatprep.subr.mxu0 0.0
    %1751 = vmatpush1.xpose.msra.mxu0 0.0
    %1752 = vmatprep.subr.mxu0 0.0
    %1753 = vmatpush1.xpose.msra.mxu0 0.0
    %1754 = vmatprep.subr.mxu0 0.0
    %1755 = vmatpush1.xpose.msra.mxu0 0.0
    %1756 = vmatprep.subr.mxu0 0.0
    %1757 = vmatpush1.xpose.msra.mxu0 0.0
    %1758 = vmatprep.subr.mxu0 0.0
    %1759 = vmatpush1.xpose.msra.mxu0 0.0
    %1760 = vmatprep.subr.mxu0 0.0
    %1761 = vmatpush1.xpose.msra.mxu0 0.0
    %1762 = vmatprep.subr.mxu0 0.0
    %1763 = vmatpush1.xpose.msra.mxu0 0.0
    %1764 = vmatprep.subr.mxu0 0.0
    %1765 = vmatpush1.xpose.msra.mxu0 0.0
    %1766 = vmatprep.subr.mxu0 0.0
    %1767 = vmatpush1.xpose.msra.mxu0 0.0
    %1768 = vmatprep.subr.mxu0 0.0
    %1769 = vmatpush1.xpose.msra.mxu0 0.0
    %1770 = vmatprep.subr.mxu0 0.0
    %1771 = vmatpush1.xpose.msra.mxu0 0.0
    %1772 = vmatprep.subr.mxu0 0.0
    %1773 = vmatpush1.xpose.msra.mxu0 0.0
    %1774 = vmatprep.subr.mxu0 0.0
    %1775 = vmatpush1.xpose.msra.mxu0 0.0
    %1776 = vmatprep.subr.mxu0 0.0
    %1777 = vmatpush1.xpose.msra.mxu0 0.0
    %1778 = vmatprep.subr.mxu0 0.0
    %1779 = vmatpush1.xpose.msra.mxu0 0.0
    %1780 = vmatprep.subr.mxu0 0.0
    %1781 = vmatpush1.xpose.msra.mxu0 0.0
    %1782 = vmatprep.subr.mxu0 0.0
    %1783 = vmatpush1.xpose.msra.mxu0 0.0
    %1784 = vmatprep.subr.mxu0 0.0
    %1785 = vmatpush1.xpose.msra.mxu0 0.0
    %1786 = vmatprep.subr.mxu0 0.0
    %1787 = vmatpush1.xpose.msra.mxu0 0.0
    %1788 = vmatprep.subr.mxu0 0.0
    %1789 = vmatpush1.xpose.msra.mxu0 0.0
    %1790 = vmatprep.subr.mxu0 0.0
    %1791 = vmatpush1.xpose.msra.mxu0 0.0
    %1792 = vmatprep.subr.mxu0 0.0
    %1793 = vmatpush1.xpose.msra.mxu0 0.0
    %1794 = vmatprep.subr.mxu0 0.0
    %1795 = vmatpush1.xpose.msra.mxu0 0.0
    %1796 = vmatprep.mubr.f32.mxu0 0.0
    %1797 = vmatmul.mubr.f32.gmra.mrb[0].mxu0 %v1727
    %v1798 = vpop.f32.mrb[0].mxu0
    %v1799 = vadd.f32 0.0, %v1798
    %v1800 = vpop.f32.mrb[0].mxu0
    %1801 = vdwg.mxu0
    %v1802 = vmul.f32 %v1799, 0.25
    %v1803 = vadd.f32 %v1802, %v345
    %v1804 = vsel %vm425, %v1803, -inf
    %1805 = vmax.xlane.f32.xlu0 %v1804
    %v1806 = vpop.xlane.xlu0 %1805
    %v1807 = vsub.f32 %v1803, %v1806
    %v1808 = vmul.f32 %v1807, 1.442695
    %v1809 = vpow.pop %v1808
    %v1810 = vsel %vm425, %v1809, 0.0
    %1811 = vadd.xlane.f32.xlu0 %v1810
    %v1812 = vpop.xlane.xlu0 %1811
    %v1813 = vrcp.pop %v1812
    %v1814 = vmul.f32 %v1809, %v1813
    %v1816 = vsel %vm425, %v1814, 0
    %1818 = vmatprep.subr.mxu0 0.0
    %1819 = vmatpush1.msra.mxu0 %v342
    %1820 = vmatprep.subr.mxu0 0.0
    %1821 = vmatpush1.msra.mxu0 0.0
    %1822 = vmatprep.subr.mxu0 0.0
    %1823 = vmatpush1.msra.mxu0 0.0
    %1824 = vmatprep.subr.mxu0 0.0
    %1825 = vmatpush1.msra.mxu0 0.0
    %1826 = vmatprep.subr.mxu0 0.0
    %1827 = vmatpush1.msra.mxu0 0.0
    %1828 = vmatprep.subr.mxu0 0.0
    %1829 = vmatpush1.msra.mxu0 0.0
    %1830 = vmatprep.subr.mxu0 0.0
    %1831 = vmatpush1.msra.mxu0 0.0
    %1832 = vmatprep.subr.mxu0 0.0
    %1833 = vmatpush1.msra.mxu0 0.0
    %1834 = vmatprep.subr.mxu0 0.0
    %1835 = vmatpush1.msra.mxu0 0.0
    %1836 = vmatprep.subr.mxu0 0.0
    %1837 = vmatpush1.msra.mxu0 0.0
    %1838 = vmatprep.subr.mxu0 0.0
    %1839 = vmatpush1.msra.mxu0 0.0
    %1840 = vmatprep.subr.mxu0 0.0
    %1841 = vmatpush1.msra.mxu0 0.0
    %1842 = vmatprep.subr.mxu0 0.0
    %1843 = vmatpush1.msra.mxu0 0.0
    %1844 = vmatprep.subr.mxu0 0.0
    %1845 = vmatpush1.msra.mxu0 0.0
    %1846 = vmatprep.subr.mxu0 0.0
    %1847 = vmatpush1.msra.mxu0 0.0
    %1848 = vmatprep.subr.mxu0 0.0
    %1849 = vmatpush1.msra.mxu0 0.0
    %1850 = vmatprep.subr.mxu0 0.0
    %1851 = vmatpush1.msra.mxu0 0.0
    %1852 = vmatprep.subr.mxu0 0.0
    %1853 = vmatpush1.msra.mxu0 0.0
    %1854 = vmatprep.subr.mxu0 0.0
    %1855 = vmatpush1.msra.mxu0 0.0
    %1856 = vmatprep.subr.mxu0 0.0
    %1857 = vmatpush1.msra.mxu0 0.0
    %1858 = vmatprep.subr.mxu0 0.0
    %1859 = vmatpush1.msra.mxu0 0.0
    %1860 = vmatprep.subr.mxu0 0.0
    %1861 = vmatpush1.msra.mxu0 0.0
    %1862 = vmatprep.subr.mxu0 0.0
    %1863 = vmatpush1.msra.mxu0 0.0
    %1864 = vmatprep.subr.mxu0 0.0
    %1865 = vmatpush1.msra.mxu0 0.0
    %1866 = vmatprep.subr.mxu0 0.0
    %1867 = vmatpush1.msra.mxu0 0.0
    %1868 = vmatprep.subr.mxu0 0.0
    %1869 = vmatpush1.msra.mxu0 0.0
    %1870 = vmatprep.subr.mxu0 0.0
    %1871 = vmatpush1.msra.mxu0 0.0
    %1872 = vmatprep.subr.mxu0 0.0
    %1873 = vmatpush1.msra.mxu0 0.0
    %1874 = vmatprep.subr.mxu0 0.0
    %1875 = vmatpush1.msra.mxu0 0.0
    %1876 = vmatprep.subr.mxu0 0.0
    %1877 = vmatpush1.msra.mxu0 0.0
    %1878 = vmatprep.subr.mxu0 0.0
    %1879 = vmatpush1.msra.mxu0 0.0
    %1880 = vmatprep.subr.mxu0 0.0
    %1881 = vmatpush1.msra.mxu0 0.0
    %1882 = vmatprep.mubr.f32.mxu0 0.0
    %1883 = vmatmul.mubr.f32.gmra.mrb[0].mxu0 %v1816
    %v1884 = vpop.f32.mrb[0].mxu0
    %v1885 = vadd.f32 0.0, %v1884
    %v1886 = vpop.f32.mrb[0].mxu0
    %1887 = vdwg.mxu0
    %1888 = vrot.lane.b32.xlu0 %v170, 112
    %v1889 = vpop.permute.xlu0 %1888
    %1890 = vrot.lane.b32.xlu0 %v256, 112
    %v1891 = vpop.permute.xlu0 %1890
    %v1892 = vsel %vm346, %v1889, 0
    %v1894 = vsel %vm346, %v1891, 0
    %1896 = vmatprep.subr.mxu0 0.0
    %1897 = vmatpush1.xpose.msra.mxu0 %v1894
    %1898 = vmatprep.subr.mxu0 0.0
    %1899 = vmatpush1.xpose.msra.mxu0 0.0
    %1900 = vmatprep.subr.mxu0 0.0
    %1901 = vmatpush1.xpose.msra.mxu0 0.0
    %1902 = vmatprep.subr.mxu0 0.0
    %1903 = vmatpush1.xpose.msra.mxu0 0.0
    %1904 = vmatprep.subr.mxu0 0.0
    %1905 = vmatpush1.xpose.msra.mxu0 0.0
    %1906 = vmatprep.subr.mxu0 0.0
    %1907 = vmatpush1.xpose.msra.mxu0 0.0
    %1908 = vmatprep.subr.mxu0 0.0
    %1909 = vmatpush1.xpose.msra.mxu0 0.0
    %1910 = vmatprep.subr.mxu0 0.0
    %1911 = vmatpush1.xpose.msra.mxu0 0.0
    %1912 = vmatprep.subr.mxu0 0.0
    %1913 = vmatpush1.xpose.msra.mxu0 0.0
    %1914 = vmatprep.subr.mxu0 0.0
    %1915 = vmatpush1.xpose.msra.mxu0 0.0
    %1916 = vmatprep.subr.mxu0 0.0
    %1917 = vmatpush1.xpose.msra.mxu0 0.0
    %1918 = vmatprep.subr.mxu0 0.0
    %1919 = vmatpush1.xpose.msra.mxu0 0.0
    %1920 = vmatprep.subr.mxu0 0.0
    %1921 = vmatpush1.xpose.msra.mxu0 0.0
    %1922 = vmatprep.subr.mxu0 0.0
    %1923 = vmatpush1.xpose.msra.mxu0 0.0
    %1924 = vmatprep.subr.mxu0 0.0
    %1925 = vmatpush1.xpose.msra.mxu0 0.0
    %1926 = vmatprep.subr.mxu0 0.0
    %1927 = vmatpush1.xpose.msra.mxu0 0.0
    %1928 = vmatprep.subr.mxu0 0.0
    %1929 = vmatpush1.xpose.msra.mxu0 0.0
    %1930 = vmatprep.subr.mxu0 0.0
    %1931 = vmatpush1.xpose.msra.mxu0 0.0
    %1932 = vmatprep.subr.mxu0 0.0
    %1933 = vmatpush1.xpose.msra.mxu0 0.0
    %1934 = vmatprep.subr.mxu0 0.0
    %1935 = vmatpush1.xpose.msra.mxu0 0.0
    %1936 = vmatprep.subr.mxu0 0.0
    %1937 = vmatpush1.xpose.msra.mxu0 0.0
    %1938 = vmatprep.subr.mxu0 0.0
    %1939 = vmatpush1.xpose.msra.mxu0 0.0
    %1940 = vmatprep.subr.mxu0 0.0
    %1941 = vmatpush1.xpose.msra.mxu0 0.0
    %1942 = vmatprep.subr.mxu0 0.0
    %1943 = vmatpush1.xpose.msra.mxu0 0.0
    %1944 = vmatprep.subr.mxu0 0.0
    %1945 = vmatpush1.xpose.msra.mxu0 0.0
    %1946 = vmatprep.subr.mxu0 0.0
    %1947 = vmatpush1.xpose.msra.mxu0 0.0
    %1948 = vmatprep.subr.mxu0 0.0
    %1949 = vmatpush1.xpose.msra.mxu0 0.0
    %1950 = vmatprep.subr.mxu0 0.0
    %1951 = vmatpush1.xpose.msra.mxu0 0.0
    %1952 = vmatprep.subr.mxu0 0.0
    %1953 = vmatpush1.xpose.msra.mxu0 0.0
    %1954 = vmatprep.subr.mxu0 0.0
    %1955 = vmatpush1.xpose.msra.mxu0 0.0
    %1956 = vmatprep.subr.mxu0 0.0
    %1957 = vmatpush1.xpose.msra.mxu0 0.0
    %1958 = vmatprep.subr.mxu0 0.0
    %1959 = vmatpush1.xpose.msra.mxu0 0.0
    %1960 = vmatprep.mubr.f32.mxu0 0.0
    %1961 = vmatmul.mubr.f32.gmra.mrb[0].mxu0 %v1892
    %v1962 = vpop.f32.mrb[0].mxu0
    %v1963 = vadd.f32 0.0, %v1962
    %v1964 = vpop.f32.mrb[0].mxu0
    %1965 = vdwg.mxu0
    %v1966 = vmul.f32 %v1963, 0.25
    %v1967 = vadd.f32 %v1966, %v345
    %v1968 = vsel %vm425, %v1967, -inf
    %1969 = vmax.xlane.f32.xlu0 %v1968
    %v1970 = vpop.xlane.xlu0 %1969
    %v1971 = vsub.f32 %v1967, %v1970
    %v1972 = vmul.f32 %v1971, 1.442695
    %v1973 = vpow.pop %v1972
    %v1974 = vsel %vm425, %v1973, 0.0
    %1975 = vadd.xlane.f32.xlu0 %v1974
    %v1976 = vpop.xlane.xlu0 %1975
    %v1977 = vrcp.pop %v1976
    %v1978 = vmul.f32 %v1973, %v1977
    %1980 = vrot.lane.b32.xlu0 %v342, 112
    %v1981 = vpop.permute.xlu0 %1980
    %v1984 = vsel %vm425, %v1978, 0
    %1986 = vmatprep.subr.mxu0 0.0
    %1987 = vmatpush1.msra.mxu0 %v1981
    %1988 = vmatprep.subr.mxu0 0.0
    %1989 = vmatpush1.msra.mxu0 0.0
    %1990 = vmatprep.subr.mxu0 0.0
    %1991 = vmatpush1.msra.mxu0 0.0
    %1992 = vmatprep.subr.mxu0 0.0
    %1993 = vmatpush1.msra.mxu0 0.0
    %1994 = vmatprep.subr.mxu0 0.0
    %1995 = vmatpush1.msra.mxu0 0.0
    %1996 = vmatprep.subr.mxu0 0.0
    %1997 = vmatpush1.msra.mxu0 0.0
    %1998 = vmatprep.subr.mxu0 0.0
    %1999 = vmatpush1.msra.mxu0 0.0
    %2000 = vmatprep.subr.mxu0 0.0
    %2001 = vmatpush1.msra.mxu0 0.0
    %2002 = vmatprep.subr.mxu0 0.0
    %2003 = vmatpush1.msra.mxu0 0.0
    %2004 = vmatprep.subr.mxu0 0.0
    %2005 = vmatpush1.msra.mxu0 0.0
    %2006 = vmatprep.subr.mxu0 0.0
    %2007 = vmatpush1.msra.mxu0 0.0
    %2008 = vmatprep.subr.mxu0 0.0
    %2009 = vmatpush1.msra.mxu0 0.0
    %2010 = vmatprep.subr.mxu0 0.0
    %2011 = vmatpush1.msra.mxu0 0.0
    %2012 = vmatprep.subr.mxu0 0.0
    %2013 = vmatpush1.msra.mxu0 0.0
    %2014 = vmatprep.subr.mxu0 0.0
    %2015 = vmatpush1.msra.mxu0 0.0
    %2016 = vmatprep.subr.mxu0 0.0
    %2017 = vmatpush1.msra.mxu0 0.0
    %2018 = vmatprep.subr.mxu0 0.0
    %2019 = vmatpush1.msra.mxu0 0.0
    %2020 = vmatprep.subr.mxu0 0.0
    %2021 = vmatpush1.msra.mxu0 0.0
    %2022 = vmatprep.subr.mxu0 0.0
    %2023 = vmatpush1.msra.mxu0 0.0
    %2024 = vmatprep.subr.mxu0 0.0
    %2025 = vmatpush1.msra.mxu0 0.0
    %2026 = vmatprep.subr.mxu0 0.0
    %2027 = vmatpush1.msra.mxu0 0.0
    %2028 = vmatprep.subr.mxu0 0.0
    %2029 = vmatpush1.msra.mxu0 0.0
    %2030 = vmatprep.subr.mxu0 0.0
    %2031 = vmatpush1.msra.mxu0 0.0
    %2032 = vmatprep.subr.mxu0 0.0
    %2033 = vmatpush1.msra.mxu0 0.0
    %2034 = vmatprep.subr.mxu0 0.0
    %2035 = vmatpush1.msra.mxu0 0.0
    %2036 = vmatprep.subr.mxu0 0.0
    %2037 = vmatpush1.msra.mxu0 0.0
    %2038 = vmatprep.subr.mxu0 0.0
    %2039 = vmatpush1.msra.mxu0 0.0
    %2040 = vmatprep.subr.mxu0 0.0
    %2041 = vmatpush1.msra.mxu0 0.0
    %2042 = vmatprep.subr.mxu0 0.0
    %2043 = vmatpush1.msra.mxu0 0.0
    %2044 = vmatprep.subr.mxu0 0.0
    %2045 = vmatpush1.msra.mxu0 0.0
    %2046 = vmatprep.subr.mxu0 0.0
    %2047 = vmatpush1.msra.mxu0 0.0
    %2048 = vmatprep.subr.mxu0 0.0
    %2049 = vmatpush1.msra.mxu0 0.0
    %2050 = vmatprep.mubr.f32.mxu0 0.0
    %2051 = vmatmul.mubr.f32.gmra.mrb[0].mxu0 %v1984
    %v2052 = vpop.f32.mrb[0].mxu0
    %v2053 = vadd.f32 0.0, %v2052
    %v2054 = vpop.f32.mrb[0].mxu0
    %2055 = vdwg.mxu0
    %2056 = vrot.lane.b32.xlu0 %v170, 96
    %v2057 = vpop.permute.xlu0 %2056
    %2058 = vrot.lane.b32.xlu0 %v256, 96
    %v2059 = vpop.permute.xlu0 %2058
    %v2060 = vsel %vm346, %v2057, 0
    %v2062 = vsel %vm346, %v2059, 0
    %2064 = vmatprep.subr.mxu0 0.0
    %2065 = vmatpush1.xpose.msra.mxu0 %v2062
    %2066 = vmatprep.subr.mxu0 0.0
    %2067 = vmatpush1.xpose.msra.mxu0 0.0
    %2068 = vmatprep.subr.mxu0 0.0
    %2069 = vmatpush1.xpose.msra.mxu0 0.0
    %2070 = vmatprep.subr.mxu0 0.0
    %2071 = vmatpush1.xpose.msra.mxu0 0.0
    %2072 = vmatprep.subr.mxu0 0.0
    %2073 = vmatpush1.xpose.msra.mxu0 0.0
    %2074 = vmatprep.subr.mxu0 0.0
    %2075 = vmatpush1.xpose.msra.mxu0 0.0
    %2076 = vmatprep.subr.mxu0 0.0
    %2077 = vmatpush1.xpose.msra.mxu0 0.0
    %2078 = vmatprep.subr.mxu0 0.0
    %2079 = vmatpush1.xpose.msra.mxu0 0.0
    %2080 = vmatprep.subr.mxu0 0.0
    %2081 = vmatpush1.xpose.msra.mxu0 0.0
    %2082 = vmatprep.subr.mxu0 0.0
    %2083 = vmatpush1.xpose.msra.mxu0 0.0
    %2084 = vmatprep.subr.mxu0 0.0
    %2085 = vmatpush1.xpose.msra.mxu0 0.0
    %2086 = vmatprep.subr.mxu0 0.0
    %2087 = vmatpush1.xpose.msra.mxu0 0.0
    %2088 = vmatprep.subr.mxu0 0.0
    %2089 = vmatpush1.xpose.msra.mxu0 0.0
    %2090 = vmatprep.subr.mxu0 0.0
    %2091 = vmatpush1.xpose.msra.mxu0 0.0
    %2092 = vmatprep.subr.mxu0 0.0
    %2093 = vmatpush1.xpose.msra.mxu0 0.0
    %2094 = vmatprep.subr.mxu0 0.0
    %2095 = vmatpush1.xpose.msra.mxu0 0.0
    %2096 = vmatprep.subr.mxu0 0.0
    %2097 = vmatpush1.xpose.msra.mxu0 0.0
    %2098 = vmatprep.subr.mxu0 0.0
    %2099 = vmatpush1.xpose.msra.mxu0 0.0
    %2100 = vmatprep.subr.mxu0 0.0
    %2101 = vmatpush1.xpose.msra.mxu0 0.0
    %2102 = vmatprep.subr.mxu0 0.0
    %2103 = vmatpush1.xpose.msra.mxu0 0.0
    %2104 = vmatprep.subr.mxu0 0.0
    %2105 = vmatpush1.xpose.msra.mxu0 0.0
    %2106 = vmatprep.subr.mxu0 0.0
    %2107 = vmatpush1.xpose.msra.mxu0 0.0
    %2108 = vmatprep.subr.mxu0 0.0
    %2109 = vmatpush1.xpose.msra.mxu0 0.0
    %2110 = vmatprep.subr.mxu0 0.0
    %2111 = vmatpush1.xpose.msra.mxu0 0.0
    %2112 = vmatprep.subr.mxu0 0.0
    %2113 = vmatpush1.xpose.msra.mxu0 0.0
    %2114 = vmatprep.subr.mxu0 0.0
    %2115 = vmatpush1.xpose.msra.mxu0 0.0
    %2116 = vmatprep.subr.mxu0 0.0
    %2117 = vmatpush1.xpose.msra.mxu0 0.0
    %2118 = vmatprep.subr.mxu0 0.0
    %2119 = vmatpush1.xpose.msra.mxu0 0.0
    %2120 = vmatprep.subr.mxu0 0.0
    %2121 = vmatpush1.xpose.msra.mxu0 0.0
    %2122 = vmatprep.subr.mxu0 0.0
    %2123 = vmatpush1.xpose.msra.mxu0 0.0
    %2124 = vmatprep.subr.mxu0 0.0
    %2125 = vmatpush1.xpose.msra.mxu0 0.0
    %2126 = vmatprep.subr.mxu0 0.0
    %2127 = vmatpush1.xpose.msra.mxu0 0.0
    %2128 = vmatprep.mubr.f32.mxu0 0.0
    %2129 = vmatmul.mubr.f32.gmra.mrb[0].mxu0 %v2060
    %v2130 = vpop.f32.mrb[0].mxu0
    %v2131 = vadd.f32 0.0, %v2130
    %v2132 = vpop.f32.mrb[0].mxu0
    %2133 = vdwg.mxu0
    %v2134 = vmul.f32 %v2131, 0.25
    %v2135 = vadd.f32 %v2134, %v679
    %v2136 = vsel %vm425, %v2135, -inf
    %2137 = vmax.xlane.f32.xlu0 %v2136
    %v2138 = vpop.xlane.xlu0 %2137
    %v2139 = vsub.f32 %v2135, %v2138
    %v2140 = vmul.f32 %v2139, 1.442695
    %v2141 = vpow.pop %v2140
    %v2142 = vsel %vm425, %v2141, 0.0
    %2143 = vadd.xlane.f32.xlu0 %v2142
    %v2144 = vpop.xlane.xlu0 %2143
    %v2145 = vrcp.pop %v2144
    %v2146 = vmul.f32 %v2141, %v2145
    %2147 = vrot.lane.b32.xlu0 %v342, 96
    %v2148 = vpop.permute.xlu0 %2147
    %v2151 = vsel %vm425, %v2146, 0
    %2153 = vmatprep.subr.mxu0 0.0
    %2154 = vmatpush1.msra.mxu0 %v2148
    %2155 = vmatprep.subr.mxu0 0.0
    %2156 = vmatpush1.msra.mxu0 0.0
    %2157 = vmatprep.subr.mxu0 0.0
    %2158 = vmatpush1.msra.mxu0 0.0
    %2159 = vmatprep.subr.mxu0 0.0
    %2160 = vmatpush1.msra.mxu0 0.0
    %2161 = vmatprep.subr.mxu0 0.0
    %2162 = vmatpush1.msra.mxu0 0.0
    %2163 = vmatprep.subr.mxu0 0.0
    %2164 = vmatpush1.msra.mxu0 0.0
    %2165 = vmatprep.subr.mxu0 0.0
    %2166 = vmatpush1.msra.mxu0 0.0
    %2167 = vmatprep.subr.mxu0 0.0
    %2168 = vmatpush1.msra.mxu0 0.0
    %2169 = vmatprep.subr.mxu0 0.0
    %2170 = vmatpush1.msra.mxu0 0.0
    %2171 = vmatprep.subr.mxu0 0.0
    %2172 = vmatpush1.msra.mxu0 0.0
    %2173 = vmatprep.subr.mxu0 0.0
    %2174 = vmatpush1.msra.mxu0 0.0
    %2175 = vmatprep.subr.mxu0 0.0
    %2176 = vmatpush1.msra.mxu0 0.0
    %2177 = vmatprep.subr.mxu0 0.0
    %2178 = vmatpush1.msra.mxu0 0.0
    %2179 = vmatprep.subr.mxu0 0.0
    %2180 = vmatpush1.msra.mxu0 0.0
    %2181 = vmatprep.subr.mxu0 0.0
    %2182 = vmatpush1.msra.mxu0 0.0
    %2183 = vmatprep.subr.mxu0 0.0
    %2184 = vmatpush1.msra.mxu0 0.0
    %2185 = vmatprep.subr.mxu0 0.0
    %2186 = vmatpush1.msra.mxu0 0.0
    %2187 = vmatprep.subr.mxu0 0.0
    %2188 = vmatpush1.msra.mxu0 0.0
    %2189 = vmatprep.subr.mxu0 0.0
    %2190 = vmatpush1.msra.mxu0 0.0
    %2191 = vmatprep.subr.mxu0 0.0
    %2192 = vmatpush1.msra.mxu0 0.0
    %2193 = vmatprep.subr.mxu0 0.0
    %2194 = vmatpush1.msra.mxu0 0.0
    %2195 = vmatprep.subr.mxu0 0.0
    %2196 = vmatpush1.msra.mxu0 0.0
    %2197 = vmatprep.subr.mxu0 0.0
    %2198 = vmatpush1.msra.mxu0 0.0
    %2199 = vmatprep.subr.mxu0 0.0
    %2200 = vmatpush1.msra.mxu0 0.0
    %2201 = vmatprep.subr.mxu0 0.0
    %2202 = vmatpush1.msra.mxu0 0.0
    %2203 = vmatprep.subr.mxu0 0.0
    %2204 = vmatpush1.msra.mxu0 0.0
    %2205 = vmatprep.subr.mxu0 0.0
    %2206 = vmatpush1.msra.mxu0 0.0
    %2207 = vmatprep.subr.mxu0 0.0
    %2208 = vmatpush1.msra.mxu0 0.0
    %2209 = vmatprep.subr.mxu0 0.0
    %2210 = vmatpush1.msra.mxu0 0.0
    %2211 = vmatprep.subr.mxu0 0.0
    %2212 = vmatpush1.msra.mxu0 0.0
    %2213 = vmatprep.subr.mxu0 0.0
    %2214 = vmatpush1.msra.mxu0 0.0
    %2215 = vmatprep.subr.mxu0 0.0
    %2216 = vmatpush1.msra.mxu0 0.0
    %2217 = vmatprep.mubr.f32.mxu0 0.0
    %2218 = vmatmul.mubr.f32.gmra.mrb[0].mxu0 %v2151
    %v2219 = vpop.f32.mrb[0].mxu0
    %v2220 = vadd.f32 0.0, %v2219
    %v2221 = vpop.f32.mrb[0].mxu0
    %2222 = vdwg.mxu0
    %2223 = vrot.lane.b32.xlu0 %v170, 80
    %v2224 = vpop.permute.xlu0 %2223
    %2225 = vrot.lane.b32.xlu0 %v256, 80
    %v2226 = vpop.permute.xlu0 %2225
    %v2227 = vsel %vm346, %v2224, 0
    %v2229 = vsel %vm346, %v2226, 0
    %2231 = vmatprep.subr.mxu0 0.0
    %2232 = vmatpush1.xpose.msra.mxu0 %v2229
    %2233 = vmatprep.subr.mxu0 0.0
    %2234 = vmatpush1.xpose.msra.mxu0 0.0
    %2235 = vmatprep.subr.mxu0 0.0
    %2236 = vmatpush1.xpose.msra.mxu0 0.0
    %2237 = vmatprep.subr.mxu0 0.0
    %2238 = vmatpush1.xpose.msra.mxu0 0.0
    %2239 = vmatprep.subr.mxu0 0.0
    %2240 = vmatpush1.xpose.msra.mxu0 0.0
    %2241 = vmatprep.subr.mxu0 0.0
    %2242 = vmatpush1.xpose.msra.mxu0 0.0
    %2243 = vmatprep.subr.mxu0 0.0
    %2244 = vmatpush1.xpose.msra.mxu0 0.0
    %2245 = vmatprep.subr.mxu0 0.0
    %2246 = vmatpush1.xpose.msra.mxu0 0.0
    %2247 = vmatprep.subr.mxu0 0.0
    %2248 = vmatpush1.xpose.msra.mxu0 0.0
    %2249 = vmatprep.subr.mxu0 0.0
    %2250 = vmatpush1.xpose.msra.mxu0 0.0
    %2251 = vmatprep.subr.mxu0 0.0
    %2252 = vmatpush1.xpose.msra.mxu0 0.0
    %2253 = vmatprep.subr.mxu0 0.0
    %2254 = vmatpush1.xpose.msra.mxu0 0.0
    %2255 = vmatprep.subr.mxu0 0.0
    %2256 = vmatpush1.xpose.msra.mxu0 0.0
    %2257 = vmatprep.subr.mxu0 0.0
    %2258 = vmatpush1.xpose.msra.mxu0 0.0
    %2259 = vmatprep.subr.mxu0 0.0
    %2260 = vmatpush1.xpose.msra.mxu0 0.0
    %2261 = vmatprep.subr.mxu0 0.0
    %2262 = vmatpush1.xpose.msra.mxu0 0.0
    %2263 = vmatprep.subr.mxu0 0.0
    %2264 = vmatpush1.xpose.msra.mxu0 0.0
    %2265 = vmatprep.subr.mxu0 0.0
    %2266 = vmatpush1.xpose.msra.mxu0 0.0
    %2267 = vmatprep.subr.mxu0 0.0
    %2268 = vmatpush1.xpose.msra.mxu0 0.0
    %2269 = vmatprep.subr.mxu0 0.0
    %2270 = vmatpush1.xpose.msra.mxu0 0.0
    %2271 = vmatprep.subr.mxu0 0.0
    %2272 = vmatpush1.xpose.msra.mxu0 0.0
    %2273 = vmatprep.subr.mxu0 0.0
    %2274 = vmatpush1.xpose.msra.mxu0 0.0
    %2275 = vmatprep.subr.mxu0 0.0
    %2276 = vmatpush1.xpose.msra.mxu0 0.0
    %2277 = vmatprep.subr.mxu0 0.0
    %2278 = vmatpush1.xpose.msra.mxu0 0.0
    %2279 = vmatprep.subr.mxu0 0.0
    %2280 = vmatpush1.xpose.msra.mxu0 0.0
    %2281 = vmatprep.subr.mxu0 0.0
    %2282 = vmatpush1.xpose.msra.mxu0 0.0
    %2283 = vmatprep.subr.mxu0 0.0
    %2284 = vmatpush1.xpose.msra.mxu0 0.0
    %2285 = vmatprep.subr.mxu0 0.0
    %2286 = vmatpush1.xpose.msra.mxu0 0.0
    %2287 = vmatprep.subr.mxu0 0.0
    %2288 = vmatpush1.xpose.msra.mxu0 0.0
    %2289 = vmatprep.subr.mxu0 0.0
    %2290 = vmatpush1.xpose.msra.mxu0 0.0
    %2291 = vmatprep.subr.mxu0 0.0
    %2292 = vmatpush1.xpose.msra.mxu0 0.0
    %2293 = vmatprep.subr.mxu0 0.0
    %2294 = vmatpush1.xpose.msra.mxu0 0.0
    %2295 = vmatprep.mubr.f32.mxu0 0.0
    %2296 = vmatmul.mubr.f32.gmra.mrb[0].mxu0 %v2227
    %v2297 = vpop.f32.mrb[0].mxu0
    %v2298 = vadd.f32 0.0, %v2297
    %v2299 = vpop.f32.mrb[0].mxu0
    %2300 = vdwg.mxu0
    %v2301 = vmul.f32 %v2298, 0.25
    %v2302 = vadd.f32 %v2301, %v679
    %v2303 = vsel %vm425, %v2302, -inf
    %2304 = vmax.xlane.f32.xlu0 %v2303
    %v2305 = vpop.xlane.xlu0 %2304
    %v2306 = vsub.f32 %v2302, %v2305
    %v2307 = vmul.f32 %v2306, 1.442695
    %v2308 = vpow.pop %v2307
    %v2309 = vsel %vm425, %v2308, 0.0
    %2310 = vadd.xlane.f32.xlu0 %v2309
    %v2311 = vpop.xlane.xlu0 %2310
    %v2312 = vrcp.pop %v2311
    %v2313 = vmul.f32 %v2308, %v2312
    %2314 = vrot.lane.b32.xlu0 %v342, 80
    %v2315 = vpop.permute.xlu0 %2314
    %v2318 = vsel %vm425, %v2313, 0
    %2320 = vmatprep.subr.mxu0 0.0
    %2321 = vmatpush1.msra.mxu0 %v2315
    %2322 = vmatprep.subr.mxu0 0.0
    %2323 = vmatpush1.msra.mxu0 0.0
    %2324 = vmatprep.subr.mxu0 0.0
    %2325 = vmatpush1.msra.mxu0 0.0
    %2326 = vmatprep.subr.mxu0 0.0
    %2327 = vmatpush1.msra.mxu0 0.0
    %2328 = vmatprep.subr.mxu0 0.0
    %2329 = vmatpush1.msra.mxu0 0.0
    %2330 = vmatprep.subr.mxu0 0.0
    %2331 = vmatpush1.msra.mxu0 0.0
    %2332 = vmatprep.subr.mxu0 0.0
    %2333 = vmatpush1.msra.mxu0 0.0
    %2334 = vmatprep.subr.mxu0 0.0
    %2335 = vmatpush1.msra.mxu0 0.0
    %2336 = vmatprep.subr.mxu0 0.0
    %2337 = vmatpush1.msra.mxu0 0.0
    %2338 = vmatprep.subr.mxu0 0.0
    %2339 = vmatpush1.msra.mxu0 0.0
    %2340 = vmatprep.subr.mxu0 0.0
    %2341 = vmatpush1.msra.mxu0 0.0
    %2342 = vmatprep.subr.mxu0 0.0
    %2343 = vmatpush1.msra.mxu0 0.0
    %2344 = vmatprep.subr.mxu0 0.0
    %2345 = vmatpush1.msra.mxu0 0.0
    %2346 = vmatprep.subr.mxu0 0.0
    %2347 = vmatpush1.msra.mxu0 0.0
    %2348 = vmatprep.subr.mxu0 0.0
    %2349 = vmatpush1.msra.mxu0 0.0
    %2350 = vmatprep.subr.mxu0 0.0
    %2351 = vmatpush1.msra.mxu0 0.0
    %2352 = vmatprep.subr.mxu0 0.0
    %2353 = vmatpush1.msra.mxu0 0.0
    %2354 = vmatprep.subr.mxu0 0.0
    %2355 = vmatpush1.msra.mxu0 0.0
    %2356 = vmatprep.subr.mxu0 0.0
    %2357 = vmatpush1.msra.mxu0 0.0
    %2358 = vmatprep.subr.mxu0 0.0
    %2359 = vmatpush1.msra.mxu0 0.0
    %2360 = vmatprep.subr.mxu0 0.0
    %2361 = vmatpush1.msra.mxu0 0.0
    %2362 = vmatprep.subr.mxu0 0.0
    %2363 = vmatpush1.msra.mxu0 0.0
    %2364 = vmatprep.subr.mxu0 0.0
    %2365 = vmatpush1.msra.mxu0 0.0
    %2366 = vmatprep.subr.mxu0 0.0
    %2367 = vmatpush1.msra.mxu0 0.0
    %2368 = vmatprep.subr.mxu0 0.0
    %2369 = vmatpush1.msra.mxu0 0.0
    %2370 = vmatprep.subr.mxu0 0.0
    %2371 = vmatpush1.msra.mxu0 0.0
    %2372 = vmatprep.subr.mxu0 0.0
    %2373 = vmatpush1.msra.mxu0 0.0
    %2374 = vmatprep.subr.mxu0 0.0
    %2375 = vmatpush1.msra.mxu0 0.0
    %2376 = vmatprep.subr.mxu0 0.0
    %2377 = vmatpush1.msra.mxu0 0.0
    %2378 = vmatprep.subr.mxu0 0.0
    %2379 = vmatpush1.msra.mxu0 0.0
    %2380 = vmatprep.subr.mxu0 0.0
    %2381 = vmatpush1.msra.mxu0 0.0
    %2382 = vmatprep.subr.mxu0 0.0
    %2383 = vmatpush1.msra.mxu0 0.0
    %2384 = vmatprep.mubr.f32.mxu0 0.0
    %2385 = vmatmul.mubr.f32.gmra.mrb[0].mxu0 %v2318
    %v2386 = vpop.f32.mrb[0].mxu0
    %v2387 = vadd.f32 0.0, %v2386
    %v2388 = vpop.f32.mrb[0].mxu0
    %2389 = vdwg.mxu0
    %2390 = vrot.lane.b32.xlu0 %v170, 64
    %v2391 = vpop.permute.xlu0 %2390
    %2392 = vrot.lane.b32.xlu0 %v256, 64
    %v2393 = vpop.permute.xlu0 %2392
    %v2394 = vsel %vm346, %v2391, 0
    %v2396 = vsel %vm346, %v2393, 0
    %2398 = vmatprep.subr.mxu0 0.0
    %2399 = vmatpush1.xpose.msra.mxu0 %v2396
    %2400 = vmatprep.subr.mxu0 0.0
    %2401 = vmatpush1.xpose.msra.mxu0 0.0
    %2402 = vmatprep.subr.mxu0 0.0
    %2403 = vmatpush1.xpose.msra.mxu0 0.0
    %2404 = vmatprep.subr.mxu0 0.0
    %2405 = vmatpush1.xpose.msra.mxu0 0.0
    %2406 = vmatprep.subr.mxu0 0.0
    %2407 = vmatpush1.xpose.msra.mxu0 0.0
    %2408 = vmatprep.subr.mxu0 0.0
    %2409 = vmatpush1.xpose.msra.mxu0 0.0
    %2410 = vmatprep.subr.mxu0 0.0
    %2411 = vmatpush1.xpose.msra.mxu0 0.0
    %2412 = vmatprep.subr.mxu0 0.0
    %2413 = vmatpush1.xpose.msra.mxu0 0.0
    %2414 = vmatprep.subr.mxu0 0.0
    %2415 = vmatpush1.xpose.msra.mxu0 0.0
    %2416 = vmatprep.subr.mxu0 0.0
    %2417 = vmatpush1.xpose.msra.mxu0 0.0
    %2418 = vmatprep.subr.mxu0 0.0
    %2419 = vmatpush1.xpose.msra.mxu0 0.0
    %2420 = vmatprep.subr.mxu0 0.0
    %2421 = vmatpush1.xpose.msra.mxu0 0.0
    %2422 = vmatprep.subr.mxu0 0.0
    %2423 = vmatpush1.xpose.msra.mxu0 0.0
    %2424 = vmatprep.subr.mxu0 0.0
    %2425 = vmatpush1.xpose.msra.mxu0 0.0
    %2426 = vmatprep.subr.mxu0 0.0
    %2427 = vmatpush1.xpose.msra.mxu0 0.0
    %2428 = vmatprep.subr.mxu0 0.0
    %2429 = vmatpush1.xpose.msra.mxu0 0.0
    %2430 = vmatprep.subr.mxu0 0.0
    %2431 = vmatpush1.xpose.msra.mxu0 0.0
    %2432 = vmatprep.subr.mxu0 0.0
    %2433 = vmatpush1.xpose.msra.mxu0 0.0
    %2434 = vmatprep.subr.mxu0 0.0
    %2435 = vmatpush1.xpose.msra.mxu0 0.0
    %2436 = vmatprep.subr.mxu0 0.0
    %2437 = vmatpush1.xpose.msra.mxu0 0.0
    %2438 = vmatprep.subr.mxu0 0.0
    %2439 = vmatpush1.xpose.msra.mxu0 0.0
    %2440 = vmatprep.subr.mxu0 0.0
    %2441 = vmatpush1.xpose.msra.mxu0 0.0
    %2442 = vmatprep.subr.mxu0 0.0
    %2443 = vmatpush1.xpose.msra.mxu0 0.0
    %2444 = vmatprep.subr.mxu0 0.0
    %2445 = vmatpush1.xpose.msra.mxu0 0.0
    %2446 = vmatprep.subr.mxu0 0.0
    %2447 = vmatpush1.xpose.msra.mxu0 0.0
    %2448 = vmatprep.subr.mxu0 0.0
    %2449 = vmatpush1.xpose.msra.mxu0 0.0
    %2450 = vmatprep.subr.mxu0 0.0
    %2451 = vmatpush1.xpose.msra.mxu0 0.0
    %2452 = vmatprep.subr.mxu0 0.0
    %2453 = vmatpush1.xpose.msra.mxu0 0.0
    %2454 = vmatprep.subr.mxu0 0.0
    %2455 = vmatpush1.xpose.msra.mxu0 0.0
    %2456 = vmatprep.subr.mxu0 0.0
    %2457 = vmatpush1.xpose.msra.mxu0 0.0
    %2458 = vmatprep.subr.mxu0 0.0
    %2459 = vmatpush1.xpose.msra.mxu0 0.0
    %2460 = vmatprep.subr.mxu0 0.0
    %2461 = vmatpush1.xpose.msra.mxu0 0.0
    %2462 = vmatprep.mubr.f32.mxu0 0.0
    %2463 = vmatmul.mubr.f32.gmra.mrb[0].mxu0 %v2394
    %v2464 = vpop.f32.mrb[0].mxu0
    %v2465 = vadd.f32 0.0, %v2464
    %v2466 = vpop.f32.mrb[0].mxu0
    %2467 = vdwg.mxu0
    %v2468 = vmul.f32 %v2465, 0.25
    %v2469 = vadd.f32 %v2468, %v1015
    %v2470 = vsel %vm425, %v2469, -inf
    %2471 = vmax.xlane.f32.xlu0 %v2470
    %v2472 = vpop.xlane.xlu0 %2471
    %v2473 = vsub.f32 %v2469, %v2472
    %v2474 = vmul.f32 %v2473, 1.442695
    %v2475 = vpow.pop %v2474
    %v2476 = vsel %vm425, %v2475, 0.0
    %2477 = vadd.xlane.f32.xlu0 %v2476
    %v2478 = vpop.xlane.xlu0 %2477
    %v2479 = vrcp.pop %v2478
    %v2480 = vmul.f32 %v2475, %v2479
    %2481 = vrot.lane.b32.xlu0 %v342, 64
    %v2482 = vpop.permute.xlu0 %2481
    %v2485 = vsel %vm425, %v2480, 0
    %2487 = vmatprep.subr.mxu0 0.0
    %2488 = vmatpush1.msra.mxu0 %v2482
    %2489 = vmatprep.subr.mxu0 0.0
    %2490 = vmatpush1.msra.mxu0 0.0
    %2491 = vmatprep.subr.mxu0 0.0
    %2492 = vmatpush1.msra.mxu0 0.0
    %2493 = vmatprep.subr.mxu0 0.0
    %2494 = vmatpush1.msra.mxu0 0.0
    %2495 = vmatprep.subr.mxu0 0.0
    %2496 = vmatpush1.msra.mxu0 0.0
    %2497 = vmatprep.subr.mxu0 0.0
    %2498 = vmatpush1.msra.mxu0 0.0
    %2499 = vmatprep.subr.mxu0 0.0
    %2500 = vmatpush1.msra.mxu0 0.0
    %2501 = vmatprep.subr.mxu0 0.0
    %2502 = vmatpush1.msra.mxu0 0.0
    %2503 = vmatprep.subr.mxu0 0.0
    %2504 = vmatpush1.msra.mxu0 0.0
    %2505 = vmatprep.subr.mxu0 0.0
    %2506 = vmatpush1.msra.mxu0 0.0
    %2507 = vmatprep.subr.mxu0 0.0
    %2508 = vmatpush1.msra.mxu0 0.0
    %2509 = vmatprep.subr.mxu0 0.0
    %2510 = vmatpush1.msra.mxu0 0.0
    %2511 = vmatprep.subr.mxu0 0.0
    %2512 = vmatpush1.msra.mxu0 0.0
    %2513 = vmatprep.subr.mxu0 0.0
    %2514 = vmatpush1.msra.mxu0 0.0
    %2515 = vmatprep.subr.mxu0 0.0
    %2516 = vmatpush1.msra.mxu0 0.0
    %2517 = vmatprep.subr.mxu0 0.0
    %2518 = vmatpush1.msra.mxu0 0.0
    %2519 = vmatprep.subr.mxu0 0.0
    %2520 = vmatpush1.msra.mxu0 0.0
    %2521 = vmatprep.subr.mxu0 0.0
    %2522 = vmatpush1.msra.mxu0 0.0
    %2523 = vmatprep.subr.mxu0 0.0
    %2524 = vmatpush1.msra.mxu0 0.0
    %2525 = vmatprep.subr.mxu0 0.0
    %2526 = vmatpush1.msra.mxu0 0.0
    %2527 = vmatprep.subr.mxu0 0.0
    %2528 = vmatpush1.msra.mxu0 0.0
    %2529 = vmatprep.subr.mxu0 0.0
    %2530 = vmatpush1.msra.mxu0 0.0
    %2531 = vmatprep.subr.mxu0 0.0
    %2532 = vmatpush1.msra.mxu0 0.0
    %2533 = vmatprep.subr.mxu0 0.0
    %2534 = vmatpush1.msra.mxu0 0.0
    %2535 = vmatprep.subr.mxu0 0.0
    %2536 = vmatpush1.msra.mxu0 0.0
    %2537 = vmatprep.subr.mxu0 0.0
    %2538 = vmatpush1.msra.mxu0 0.0
    %2539 = vmatprep.subr.mxu0 0.0
    %2540 = vmatpush1.msra.mxu0 0.0
    %2541 = vmatprep.subr.mxu0 0.0
    %2542 = vmatpush1.msra.mxu0 0.0
    %2543 = vmatprep.subr.mxu0 0.0
    %2544 = vmatpush1.msra.mxu0 0.0
    %2545 = vmatprep.subr.mxu0 0.0
    %2546 = vmatpush1.msra.mxu0 0.0
    %2547 = vmatprep.subr.mxu0 0.0
    %2548 = vmatpush1.msra.mxu0 0.0
    %2549 = vmatprep.subr.mxu0 0.0
    %2550 = vmatpush1.msra.mxu0 0.0
    %2551 = vmatprep.mubr.f32.mxu0 0.0
    %2552 = vmatmul.mubr.f32.gmra.mrb[0].mxu0 %v2485
    %v2553 = vpop.f32.mrb[0].mxu0
    %v2554 = vadd.f32 0.0, %v2553
    %v2555 = vpop.f32.mrb[0].mxu0
    %2556 = vdwg.mxu0
    %2557 = vrot.lane.b32.xlu0 %v170, 48
    %v2558 = vpop.permute.xlu0 %2557
    %2559 = vrot.lane.b32.xlu0 %v256, 48
    %v2560 = vpop.permute.xlu0 %2559
    %v2561 = vsel %vm346, %v2558, 0
    %v2563 = vsel %vm346, %v2560, 0
    %2565 = vmatprep.subr.mxu0 0.0
    %2566 = vmatpush1.xpose.msra.mxu0 %v2563
    %2567 = vmatprep.subr.mxu0 0.0
    %2568 = vmatpush1.xpose.msra.mxu0 0.0
    %2569 = vmatprep.subr.mxu0 0.0
    %2570 = vmatpush1.xpose.msra.mxu0 0.0
    %2571 = vmatprep.subr.mxu0 0.0
    %2572 = vmatpush1.xpose.msra.mxu0 0.0
    %2573 = vmatprep.subr.mxu0 0.0
    %2574 = vmatpush1.xpose.msra.mxu0 0.0
    %2575 = vmatprep.subr.mxu0 0.0
    %2576 = vmatpush1.xpose.msra.mxu0 0.0
    %2577 = vmatprep.subr.mxu0 0.0
    %2578 = vmatpush1.xpose.msra.mxu0 0.0
    %2579 = vmatprep.subr.mxu0 0.0
    %2580 = vmatpush1.xpose.msra.mxu0 0.0
    %2581 = vmatprep.subr.mxu0 0.0
    %2582 = vmatpush1.xpose.msra.mxu0 0.0
    %2583 = vmatprep.subr.mxu0 0.0
    %2584 = vmatpush1.xpose.msra.mxu0 0.0
    %2585 = vmatprep.subr.mxu0 0.0
    %2586 = vmatpush1.xpose.msra.mxu0 0.0
    %2587 = vmatprep.subr.mxu0 0.0
    %2588 = vmatpush1.xpose.msra.mxu0 0.0
    %2589 = vmatprep.subr.mxu0 0.0
    %2590 = vmatpush1.xpose.msra.mxu0 0.0
    %2591 = vmatprep.subr.mxu0 0.0
    %2592 = vmatpush1.xpose.msra.mxu0 0.0
    %2593 = vmatprep.subr.mxu0 0.0
    %2594 = vmatpush1.xpose.msra.mxu0 0.0
    %2595 = vmatprep.subr.mxu0 0.0
    %2596 = vmatpush1.xpose.msra.mxu0 0.0
    %2597 = vmatprep.subr.mxu0 0.0
    %2598 = vmatpush1.xpose.msra.mxu0 0.0
    %2599 = vmatprep.subr.mxu0 0.0
    %2600 = vmatpush1.xpose.msra.mxu0 0.0
    %2601 = vmatprep.subr.mxu0 0.0
    %2602 = vmatpush1.xpose.msra.mxu0 0.0
    %2603 = vmatprep.subr.mxu0 0.0
    %2604 = vmatpush1.xpose.msra.mxu0 0.0
    %2605 = vmatprep.subr.mxu0 0.0
    %2606 = vmatpush1.xpose.msra.mxu0 0.0
    %2607 = vmatprep.subr.mxu0 0.0
    %2608 = vmatpush1.xpose.msra.mxu0 0.0
    %2609 = vmatprep.subr.mxu0 0.0
    %2610 = vmatpush1.xpose.msra.mxu0 0.0
    %2611 = vmatprep.subr.mxu0 0.0
    %2612 = vmatpush1.xpose.msra.mxu0 0.0
    %2613 = vmatprep.subr.mxu0 0.0
    %2614 = vmatpush1.xpose.msra.mxu0 0.0
    %2615 = vmatprep.subr.mxu0 0.0
    %2616 = vmatpush1.xpose.msra.mxu0 0.0
    %2617 = vmatprep.subr.mxu0 0.0
    %2618 = vmatpush1.xpose.msra.mxu0 0.0
    %2619 = vmatprep.subr.mxu0 0.0
    %2620 = vmatpush1.xpose.msra.mxu0 0.0
    %2621 = vmatprep.subr.mxu0 0.0
    %2622 = vmatpush1.xpose.msra.mxu0 0.0
    %2623 = vmatprep.subr.mxu0 0.0
    %2624 = vmatpush1.xpose.msra.mxu0 0.0
    %2625 = vmatprep.subr.mxu0 0.0
    %2626 = vmatpush1.xpose.msra.mxu0 0.0
    %2627 = vmatprep.subr.mxu0 0.0
    %2628 = vmatpush1.xpose.msra.mxu0 0.0
    %2629 = vmatprep.mubr.f32.mxu0 0.0
    %2630 = vmatmul.mubr.f32.gmra.mrb[0].mxu0 %v2561
    %v2631 = vpop.f32.mrb[0].mxu0
    %v2632 = vadd.f32 0.0, %v2631
    %v2633 = vpop.f32.mrb[0].mxu0
    %2634 = vdwg.mxu0
    %v2635 = vmul.f32 %v2632, 0.25
    %v2636 = vadd.f32 %v2635, %v1015
    %v2637 = vsel %vm425, %v2636, -inf
    %2638 = vmax.xlane.f32.xlu0 %v2637
    %v2639 = vpop.xlane.xlu0 %2638
    %v2640 = vsub.f32 %v2636, %v2639
    %v2641 = vmul.f32 %v2640, 1.442695
    %v2642 = vpow.pop %v2641
    %v2643 = vsel %vm425, %v2642, 0.0
    %2644 = vadd.xlane.f32.xlu0 %v2643
    %v2645 = vpop.xlane.xlu0 %2644
    %v2646 = vrcp.pop %v2645
    %v2647 = vmul.f32 %v2642, %v2646
    %2648 = vrot.lane.b32.xlu0 %v342, 48
    %v2649 = vpop.permute.xlu0 %2648
    %v2652 = vsel %vm425, %v2647, 0
    %2654 = vmatprep.subr.mxu0 0.0
    %2655 = vmatpush1.msra.mxu0 %v2649
    %2656 = vmatprep.subr.mxu0 0.0
    %2657 = vmatpush1.msra.mxu0 0.0
    %2658 = vmatprep.subr.mxu0 0.0
    %2659 = vmatpush1.msra.mxu0 0.0
    %2660 = vmatprep.subr.mxu0 0.0
    %2661 = vmatpush1.msra.mxu0 0.0
    %2662 = vmatprep.subr.mxu0 0.0
    %2663 = vmatpush1.msra.mxu0 0.0
    %2664 = vmatprep.subr.mxu0 0.0
    %2665 = vmatpush1.msra.mxu0 0.0
    %2666 = vmatprep.subr.mxu0 0.0
    %2667 = vmatpush1.msra.mxu0 0.0
    %2668 = vmatprep.subr.mxu0 0.0
    %2669 = vmatpush1.msra.mxu0 0.0
    %2670 = vmatprep.subr.mxu0 0.0
    %2671 = vmatpush1.msra.mxu0 0.0
    %2672 = vmatprep.subr.mxu0 0.0
    %2673 = vmatpush1.msra.mxu0 0.0
    %2674 = vmatprep.subr.mxu0 0.0
    %2675 = vmatpush1.msra.mxu0 0.0
    %2676 = vmatprep.subr.mxu0 0.0
    %2677 = vmatpush1.msra.mxu0 0.0
    %2678 = vmatprep.subr.mxu0 0.0
    %2679 = vmatpush1.msra.mxu0 0.0
    %2680 = vmatprep.subr.mxu0 0.0
    %2681 = vmatpush1.msra.mxu0 0.0
    %2682 = vmatprep.subr.mxu0 0.0
    %2683 = vmatpush1.msra.mxu0 0.0
    %2684 = vmatprep.subr.mxu0 0.0
    %2685 = vmatpush1.msra.mxu0 0.0
    %2686 = vmatprep.subr.mxu0 0.0
    %2687 = vmatpush1.msra.mxu0 0.0
    %2688 = vmatprep.subr.mxu0 0.0
    %2689 = vmatpush1.msra.mxu0 0.0
    %2690 = vmatprep.subr.mxu0 0.0
    %2691 = vmatpush1.msra.mxu0 0.0
    %2692 = vmatprep.subr.mxu0 0.0
    %2693 = vmatpush1.msra.mxu0 0.0
    %2694 = vmatprep.subr.mxu0 0.0
    %2695 = vmatpush1.msra.mxu0 0.0
    %2696 = vmatprep.subr.mxu0 0.0
    %2697 = vmatpush1.msra.mxu0 0.0
    %2698 = vmatprep.subr.mxu0 0.0
    %2699 = vmatpush1.msra.mxu0 0.0
    %2700 = vmatprep.subr.mxu0 0.0
    %2701 = vmatpush1.msra.mxu0 0.0
    %2702 = vmatprep.subr.mxu0 0.0
    %2703 = vmatpush1.msra.mxu0 0.0
    %2704 = vmatprep.subr.mxu0 0.0
    %2705 = vmatpush1.msra.mxu0 0.0
    %2706 = vmatprep.subr.mxu0 0.0
    %2707 = vmatpush1.msra.mxu0 0.0
    %2708 = vmatprep.subr.mxu0 0.0
    %2709 = vmatpush1.msra.mxu0 0.0
    %2710 = vmatprep.subr.mxu0 0.0
    %2711 = vmatpush1.msra.mxu0 0.0
    %2712 = vmatprep.subr.mxu0 0.0
    %2713 = vmatpush1.msra.mxu0 0.0
    %2714 = vmatprep.subr.mxu0 0.0
    %2715 = vmatpush1.msra.mxu0 0.0
    %2716 = vmatprep.subr.mxu0 0.0
    %2717 = vmatpush1.msra.mxu0 0.0
    %2718 = vmatprep.mubr.f32.mxu0 0.0
    %2719 = vmatmul.mubr.f32.gmra.mrb[0].mxu0 %v2652
    %v2720 = vpop.f32.mrb[0].mxu0
    %v2721 = vadd.f32 0.0, %v2720
    %v2722 = vpop.f32.mrb[0].mxu0
    %2723 = vdwg.mxu0
    %2724 = vrot.lane.b32.xlu0 %v170, 32
    %v2725 = vpop.permute.xlu0 %2724
    %2726 = vrot.lane.b32.xlu0 %v256, 32
    %v2727 = vpop.permute.xlu0 %2726
    %v2728 = vsel %vm346, %v2725, 0
    %v2730 = vsel %vm346, %v2727, 0
    %2732 = vmatprep.subr.mxu0 0.0
    %2733 = vmatpush1.xpose.msra.mxu0 %v2730
    %2734 = vmatprep.subr.mxu0 0.0
    %2735 = vmatpush1.xpose.msra.mxu0 0.0
    %2736 = vmatprep.subr.mxu0 0.0
    %2737 = vmatpush1.xpose.msra.mxu0 0.0
    %2738 = vmatprep.subr.mxu0 0.0
    %2739 = vmatpush1.xpose.msra.mxu0 0.0
    %2740 = vmatprep.subr.mxu0 0.0
    %2741 = vmatpush1.xpose.msra.mxu0 0.0
    %2742 = vmatprep.subr.mxu0 0.0
    %2743 = vmatpush1.xpose.msra.mxu0 0.0
    %2744 = vmatprep.subr.mxu0 0.0
    %2745 = vmatpush1.xpose.msra.mxu0 0.0
    %2746 = vmatprep.subr.mxu0 0.0
    %2747 = vmatpush1.xpose.msra.mxu0 0.0
    %2748 = vmatprep.subr.mxu0 0.0
    %2749 = vmatpush1.xpose.msra.mxu0 0.0
    %2750 = vmatprep.subr.mxu0 0.0
    %2751 = vmatpush1.xpose.msra.mxu0 0.0
    %2752 = vmatprep.subr.mxu0 0.0
    %2753 = vmatpush1.xpose.msra.mxu0 0.0
    %2754 = vmatprep.subr.mxu0 0.0
    %2755 = vmatpush1.xpose.msra.mxu0 0.0
    %2756 = vmatprep.subr.mxu0 0.0
    %2757 = vmatpush1.xpose.msra.mxu0 0.0
    %2758 = vmatprep.subr.mxu0 0.0
    %2759 = vmatpush1.xpose.msra.mxu0 0.0
    %2760 = vmatprep.subr.mxu0 0.0
    %2761 = vmatpush1.xpose.msra.mxu0 0.0
    %2762 = vmatprep.subr.mxu0 0.0
    %2763 = vmatpush1.xpose.msra.mxu0 0.0
    %2764 = vmatprep.subr.mxu0 0.0
    %2765 = vmatpush1.xpose.msra.mxu0 0.0
    %2766 = vmatprep.subr.mxu0 0.0
    %2767 = vmatpush1.xpose.msra.mxu0 0.0
    %2768 = vmatprep.subr.mxu0 0.0
    %2769 = vmatpush1.xpose.msra.mxu0 0.0
    %2770 = vmatprep.subr.mxu0 0.0
    %2771 = vmatpush1.xpose.msra.mxu0 0.0
    %2772 = vmatprep.subr.mxu0 0.0
    %2773 = vmatpush1.xpose.msra.mxu0 0.0
    %2774 = vmatprep.subr.mxu0 0.0
    %2775 = vmatpush1.xpose.msra.mxu0 0.0
    %2776 = vmatprep.subr.mxu0 0.0
    %2777 = vmatpush1.xpose.msra.mxu0 0.0
    %2778 = vmatprep.subr.mxu0 0.0
    %2779 = vmatpush1.xpose.msra.mxu0 0.0
    %2780 = vmatprep.subr.mxu0 0.0
    %2781 = vmatpush1.xpose.msra.mxu0 0.0
    %2782 = vmatprep.subr.mxu0 0.0
    %2783 = vmatpush1.xpose.msra.mxu0 0.0
    %2784 = vmatprep.subr.mxu0 0.0
    %2785 = vmatpush1.xpose.msra.mxu0 0.0
    %2786 = vmatprep.subr.mxu0 0.0
    %2787 = vmatpush1.xpose.msra.mxu0 0.0
    %2788 = vmatprep.subr.mxu0 0.0
    %2789 = vmatpush1.xpose.msra.mxu0 0.0
    %2790 = vmatprep.subr.mxu0 0.0
    %2791 = vmatpush1.xpose.msra.mxu0 0.0
    %2792 = vmatprep.subr.mxu0 0.0
    %2793 = vmatpush1.xpose.msra.mxu0 0.0
    %2794 = vmatprep.subr.mxu0 0.0
    %2795 = vmatpush1.xpose.msra.mxu0 0.0
    %2796 = vmatprep.mubr.f32.mxu0 0.0
    %2797 = vmatmul.mubr.f32.gmra.mrb[0].mxu0 %v2728
    %v2798 = vpop.f32.mrb[0].mxu0
    %v2799 = vadd.f32 0.0, %v2798
    %v2800 = vpop.f32.mrb[0].mxu0
    %2801 = vdwg.mxu0
    %v2802 = vmul.f32 %v2799, 0.25
    %v2803 = vadd.f32 %v2802, %v1351
    %v2804 = vsel %vm425, %v2803, -inf
    %2805 = vmax.xlane.f32.xlu0 %v2804
    %v2806 = vpop.xlane.xlu0 %2805
    %v2807 = vsub.f32 %v2803, %v2806
    %v2808 = vmul.f32 %v2807, 1.442695
    %v2809 = vpow.pop %v2808
    %v2810 = vsel %vm425, %v2809, 0.0
    %2811 = vadd.xlane.f32.xlu0 %v2810
    %v2812 = vpop.xlane.xlu0 %2811
    %v2813 = vrcp.pop %v2812
    %v2814 = vmul.f32 %v2809, %v2813
    %2815 = vrot.lane.b32.xlu0 %v342, 32
    %v2816 = vpop.permute.xlu0 %2815
    %v2819 = vsel %vm425, %v2814, 0
    %2821 = vmatprep.subr.mxu0 0.0
    %2822 = vmatpush1.msra.mxu0 %v2816
    %2823 = vmatprep.subr.mxu0 0.0
    %2824 = vmatpush1.msra.mxu0 0.0
    %2825 = vmatprep.subr.mxu0 0.0
    %2826 = vmatpush1.msra.mxu0 0.0
    %2827 = vmatprep.subr.mxu0 0.0
    %2828 = vmatpush1.msra.mxu0 0.0
    %2829 = vmatprep.subr.mxu0 0.0
    %2830 = vmatpush1.msra.mxu0 0.0
    %2831 = vmatprep.subr.mxu0 0.0
    %2832 = vmatpush1.msra.mxu0 0.0
    %2833 = vmatprep.subr.mxu0 0.0
    %2834 = vmatpush1.msra.mxu0 0.0
    %2835 = vmatprep.subr.mxu0 0.0
    %2836 = vmatpush1.msra.mxu0 0.0
    %2837 = vmatprep.subr.mxu0 0.0
    %2838 = vmatpush1.msra.mxu0 0.0
    %2839 = vmatprep.subr.mxu0 0.0
    %2840 = vmatpush1.msra.mxu0 0.0
    %2841 = vmatprep.subr.mxu0 0.0
    %2842 = vmatpush1.msra.mxu0 0.0
    %2843 = vmatprep.subr.mxu0 0.0
    %2844 = vmatpush1.msra.mxu0 0.0
    %2845 = vmatprep.subr.mxu0 0.0
    %2846 = vmatpush1.msra.mxu0 0.0
    %2847 = vmatprep.subr.mxu0 0.0
    %2848 = vmatpush1.msra.mxu0 0.0
    %2849 = vmatprep.subr.mxu0 0.0
    %2850 = vmatpush1.msra.mxu0 0.0
    %2851 = vmatprep.subr.mxu0 0.0
    %2852 = vmatpush1.msra.mxu0 0.0
    %2853 = vmatprep.subr.mxu0 0.0
    %2854 = vmatpush1.msra.mxu0 0.0
    %2855 = vmatprep.subr.mxu0 0.0
    %2856 = vmatpush1.msra.mxu0 0.0
    %2857 = vmatprep.subr.mxu0 0.0
    %2858 = vmatpush1.msra.mxu0 0.0
    %2859 = vmatprep.subr.mxu0 0.0
    %2860 = vmatpush1.msra.mxu0 0.0
    %2861 = vmatprep.subr.mxu0 0.0
    %2862 = vmatpush1.msra.mxu0 0.0
    %2863 = vmatprep.subr.mxu0 0.0
    %2864 = vmatpush1.msra.mxu0 0.0
    %2865 = vmatprep.subr.mxu0 0.0
    %2866 = vmatpush1.msra.mxu0 0.0
    %2867 = vmatprep.subr.mxu0 0.0
    %2868 = vmatpush1.msra.mxu0 0.0
    %2869 = vmatprep.subr.mxu0 0.0
    %2870 = vmatpush1.msra.mxu0 0.0
    %2871 = vmatprep.subr.mxu0 0.0
    %2872 = vmatpush1.msra.mxu0 0.0
    %2873 = vmatprep.subr.mxu0 0.0
    %2874 = vmatpush1.msra.mxu0 0.0
    %2875 = vmatprep.subr.mxu0 0.0
    %2876 = vmatpush1.msra.mxu0 0.0
    %2877 = vmatprep.subr.mxu0 0.0
    %2878 = vmatpush1.msra.mxu0 0.0
    %2879 = vmatprep.subr.mxu0 0.0
    %2880 = vmatpush1.msra.mxu0 0.0
    %2881 = vmatprep.subr.mxu0 0.0
    %2882 = vmatpush1.msra.mxu0 0.0
    %2883 = vmatprep.subr.mxu0 0.0
    %2884 = vmatpush1.msra.mxu0 0.0
    %2885 = vmatprep.mubr.f32.mxu0 0.0
    %2886 = vmatmul.mubr.f32.gmra.mrb[0].mxu0 %v2819
    %v2887 = vpop.f32.mrb[0].mxu0
    %v2888 = vadd.f32 0.0, %v2887
    %v2889 = vpop.f32.mrb[0].mxu0
    %2890 = vdwg.mxu0
    %2891 = vrot.lane.b32.xlu0 %v170, 16
    %v2892 = vpop.permute.xlu0 %2891
    %2893 = vrot.lane.b32.xlu0 %v256, 16
    %v2894 = vpop.permute.xlu0 %2893
    %v2895 = vsel %vm346, %v2892, 0
    %v2897 = vsel %vm346, %v2894, 0
    %2899 = vmatprep.subr.mxu0 0.0
    %2900 = vmatpush1.xpose.msra.mxu0 %v2897
    %2901 = vmatprep.subr.mxu0 0.0
    %2902 = vmatpush1.xpose.msra.mxu0 0.0
    %2903 = vmatprep.subr.mxu0 0.0
    %2904 = vmatpush1.xpose.msra.mxu0 0.0
    %2905 = vmatprep.subr.mxu0 0.0
    %2906 = vmatpush1.xpose.msra.mxu0 0.0
    %2907 = vmatprep.subr.mxu0 0.0
    %2908 = vmatpush1.xpose.msra.mxu0 0.0
    %2909 = vmatprep.subr.mxu0 0.0
    %2910 = vmatpush1.xpose.msra.mxu0 0.0
    %2911 = vmatprep.subr.mxu0 0.0
    %2912 = vmatpush1.xpose.msra.mxu0 0.0
    %2913 = vmatprep.subr.mxu0 0.0
    %2914 = vmatpush1.xpose.msra.mxu0 0.0
    %2915 = vmatprep.subr.mxu0 0.0
    %2916 = vmatpush1.xpose.msra.mxu0 0.0
    %2917 = vmatprep.subr.mxu0 0.0
    %2918 = vmatpush1.xpose.msra.mxu0 0.0
    %2919 = vmatprep.subr.mxu0 0.0
    %2920 = vmatpush1.xpose.msra.mxu0 0.0
    %2921 = vmatprep.subr.mxu0 0.0
    %2922 = vmatpush1.xpose.msra.mxu0 0.0
    %2923 = vmatprep.subr.mxu0 0.0
    %2924 = vmatpush1.xpose.msra.mxu0 0.0
    %2925 = vmatprep.subr.mxu0 0.0
    %2926 = vmatpush1.xpose.msra.mxu0 0.0
    %2927 = vmatprep.subr.mxu0 0.0
    %2928 = vmatpush1.xpose.msra.mxu0 0.0
    %2929 = vmatprep.subr.mxu0 0.0
    %2930 = vmatpush1.xpose.msra.mxu0 0.0
    %2931 = vmatprep.subr.mxu0 0.0
    %2932 = vmatpush1.xpose.msra.mxu0 0.0
    %2933 = vmatprep.subr.mxu0 0.0
    %2934 = vmatpush1.xpose.msra.mxu0 0.0
    %2935 = vmatprep.subr.mxu0 0.0
    %2936 = vmatpush1.xpose.msra.mxu0 0.0
    %2937 = vmatprep.subr.mxu0 0.0
    %2938 = vmatpush1.xpose.msra.mxu0 0.0
    %2939 = vmatprep.subr.mxu0 0.0
    %2940 = vmatpush1.xpose.msra.mxu0 0.0
    %2941 = vmatprep.subr.mxu0 0.0
    %2942 = vmatpush1.xpose.msra.mxu0 0.0
    %2943 = vmatprep.subr.mxu0 0.0
    %2944 = vmatpush1.xpose.msra.mxu0 0.0
    %2945 = vmatprep.subr.mxu0 0.0
    %2946 = vmatpush1.xpose.msra.mxu0 0.0
    %2947 = vmatprep.subr.mxu0 0.0
    %2948 = vmatpush1.xpose.msra.mxu0 0.0
    %2949 = vmatprep.subr.mxu0 0.0
    %2950 = vmatpush1.xpose.msra.mxu0 0.0
    %2951 = vmatprep.subr.mxu0 0.0
    %2952 = vmatpush1.xpose.msra.mxu0 0.0
    %2953 = vmatprep.subr.mxu0 0.0
    %2954 = vmatpush1.xpose.msra.mxu0 0.0
    %2955 = vmatprep.subr.mxu0 0.0
    %2956 = vmatpush1.xpose.msra.mxu0 0.0
    %2957 = vmatprep.subr.mxu0 0.0
    %2958 = vmatpush1.xpose.msra.mxu0 0.0
    %2959 = vmatprep.subr.mxu0 0.0
    %2960 = vmatpush1.xpose.msra.mxu0 0.0
    %2961 = vmatprep.subr.mxu0 0.0
    %2962 = vmatpush1.xpose.msra.mxu0 0.0
    %2963 = vmatprep.mubr.f32.mxu0 0.0
    %2964 = vmatmul.mubr.f32.gmra.mrb[0].mxu0 %v2895
    %v2965 = vpop.f32.mrb[0].mxu0
    %v2966 = vadd.f32 0.0, %v2965
    %v2967 = vpop.f32.mrb[0].mxu0
    %2968 = vdwg.mxu0
    %v2969 = vmul.f32 %v2966, 0.25
    %v2970 = vadd.f32 %v2969, %v1351
    %v2971 = vsel %vm425, %v2970, -inf
    %2972 = vmax.xlane.f32.xlu0 %v2971
    %v2973 = vpop.xlane.xlu0 %2972
    %v2974 = vsub.f32 %v2970, %v2973
    %v2975 = vmul.f32 %v2974, 1.442695
    %v2976 = vpow.pop %v2975
    %v2977 = vsel %vm425, %v2976, 0.0
    %2978 = vadd.xlane.f32.xlu0 %v2977
    %v2979 = vpop.xlane.xlu0 %2978
    %v2980 = vrcp.pop %v2979
    %v2981 = vmul.f32 %v2976, %v2980
    %2982 = vrot.lane.b32.xlu0 %v342, 16
    %v2983 = vpop.permute.xlu0 %2982
    %v2986 = vsel %vm425, %v2981, 0
    %2988 = vmatprep.subr.mxu0 0.0
    %2989 = vmatpush1.msra.mxu0 %v2983
    %2990 = vmatprep.subr.mxu0 0.0
    %2991 = vmatpush1.msra.mxu0 0.0
    %2992 = vmatprep.subr.mxu0 0.0
    %2993 = vmatpush1.msra.mxu0 0.0
    %2994 = vmatprep.subr.mxu0 0.0
    %2995 = vmatpush1.msra.mxu0 0.0
    %2996 = vmatprep.subr.mxu0 0.0
    %2997 = vmatpush1.msra.mxu0 0.0
    %2998 = vmatprep.subr.mxu0 0.0
    %2999 = vmatpush1.msra.mxu0 0.0
    %3000 = vmatprep.subr.mxu0 0.0
    %3001 = vmatpush1.msra.mxu0 0.0
    %3002 = vmatprep.subr.mxu0 0.0
    %3003 = vmatpush1.msra.mxu0 0.0
    %3004 = vmatprep.subr.mxu0 0.0
    %3005 = vmatpush1.msra.mxu0 0.0
    %3006 = vmatprep.subr.mxu0 0.0
    %3007 = vmatpush1.msra.mxu0 0.0
    %3008 = vmatprep.subr.mxu0 0.0
    %3009 = vmatpush1.msra.mxu0 0.0
    %3010 = vmatprep.subr.mxu0 0.0
    %3011 = vmatpush1.msra.mxu0 0.0
    %3012 = vmatprep.subr.mxu0 0.0
    %3013 = vmatpush1.msra.mxu0 0.0
    %3014 = vmatprep.subr.mxu0 0.0
    %3015 = vmatpush1.msra.mxu0 0.0
    %3016 = vmatprep.subr.mxu0 0.0
    %3017 = vmatpush1.msra.mxu0 0.0
    %3018 = vmatprep.subr.mxu0 0.0
    %3019 = vmatpush1.msra.mxu0 0.0
    %3020 = vmatprep.subr.mxu0 0.0
    %3021 = vmatpush1.msra.mxu0 0.0
    %3022 = vmatprep.subr.mxu0 0.0
    %3023 = vmatpush1.msra.mxu0 0.0
    %3024 = vmatprep.subr.mxu0 0.0
    %3025 = vmatpush1.msra.mxu0 0.0
    %3026 = vmatprep.subr.mxu0 0.0
    %3027 = vmatpush1.msra.mxu0 0.0
    %3028 = vmatprep.subr.mxu0 0.0
    %3029 = vmatpush1.msra.mxu0 0.0
    %3030 = vmatprep.subr.mxu0 0.0
    %3031 = vmatpush1.msra.mxu0 0.0
    %3032 = vmatprep.subr.mxu0 0.0
    %3033 = vmatpush1.msra.mxu0 0.0
    %3034 = vmatprep.subr.mxu0 0.0
    %3035 = vmatpush1.msra.mxu0 0.0
    %3036 = vmatprep.subr.mxu0 0.0
    %3037 = vmatpush1.msra.mxu0 0.0
    %3038 = vmatprep.subr.mxu0 0.0
    %3039 = vmatpush1.msra.mxu0 0.0
    %3040 = vmatprep.subr.mxu0 0.0
    %3041 = vmatpush1.msra.mxu0 0.0
    %3042 = vmatprep.subr.mxu0 0.0
    %3043 = vmatpush1.msra.mxu0 0.0
    %3044 = vmatprep.subr.mxu0 0.0
    %3045 = vmatpush1.msra.mxu0 0.0
    %3046 = vmatprep.subr.mxu0 0.0
    %3047 = vmatpush1.msra.mxu0 0.0
    %3048 = vmatprep.subr.mxu0 0.0
    %3049 = vmatpush1.msra.mxu0 0.0
    %3050 = vmatprep.subr.mxu0 0.0
    %3051 = vmatpush1.msra.mxu0 0.0
    %3052 = vmatprep.mubr.f32.mxu0 0.0
    %3053 = vmatmul.mubr.f32.gmra.mrb[0].mxu0 %v2986
    %v3054 = vpop.f32.mrb[0].mxu0
    %v3055 = vadd.f32 0.0, %v3054
    %v3056 = vpop.f32.mrb[0].mxu0
    %3057 = vdwg.mxu0
    %3059 = vrot.lane.b32.xlu0 %v2053, 16
    %v3060 = vpop.permute.xlu0 %3059
    %3063 = vrot.lane.b32.xlu0 %v2220, 32
    %v3064 = vpop.permute.xlu0 %3063
    %3067 = vrot.lane.b32.xlu0 %v2387, 48
    %v3068 = vpop.permute.xlu0 %3067
    %3071 = vrot.lane.b32.xlu0 %v2554, 64
    %v3072 = vpop.permute.xlu0 %3071
    %3075 = vrot.lane.b32.xlu0 %v2721, 80
    %v3076 = vpop.permute.xlu0 %3075
    %3079 = vrot.lane.b32.xlu0 %v2888, 96
    %v3080 = vpop.permute.xlu0 %3079
    %3083 = vrot.lane.b32.xlu0 %v3055, 112
    %v3084 = vpop.permute.xlu0 %3083
    %v3086 = vsel %vm346, %v1885, %v3060
    %v3087 = vsel %vm91, %v3086, %v3064
    %v3088 = vsel %vm1716, %v3087, %v3068
    %v3089 = vsel %vm1718, %v3088, %v3072
    %v3090 = vsel %vm1720, %v3089, %v3076
    %v3091 = vsel %vm1722, %v3090, %v3080
    %v3092 = vsel %vm1724, %v3091, %v3084
    %v3093 = vld [vmem:[%s7] sm:$0xff]
    %v3094 = vld [vmem:[%s7 + $0x8] sm:$0xff]
    %v3095 = vld [vmem:[%s7 + $0x10] sm:$0xff]
    %v3096 = vld [vmem:[%s7 + $0x18] sm:$0xff]
    %v3097 = vld [vmem:[%s7 + $0x20] sm:$0xff]
    %v3098 = vld [vmem:[%s7 + $0x28] sm:$0xff]
    %v3099 = vld [vmem:[%s7 + $0x30] sm:$0xff]
    %v3100 = vld [vmem:[%s7 + $0x38] sm:$0xff]
    %v3101 = vld [vmem:[%s7 + $0x40] sm:$0xff]
    %v3102 = vld [vmem:[%s7 + $0x48] sm:$0xff]
    %v3103 = vld [vmem:[%s7 + $0x50] sm:$0xff]
    %v3104 = vld [vmem:[%s7 + $0x58] sm:$0xff]
    %v3105 = vld [vmem:[%s7 + $0x60] sm:$0xff]
    %v3106 = vld [vmem:[%s7 + $0x68] sm:$0xff]
    %v3107 = vld [vmem:[%s7 + $0x70] sm:$0xff]
    %v3108 = vld [vmem:[%s7 + $0x78] sm:$0xff]
    %v3109 = vld [vmem:[%s8] sm:$0x1]
    %v3111 = vlaneseq
    %v3112 = vshrl.u32 %v3111, 7
    %v3113 = vsub.s32 0, %v3112
    %v3114 = vrot.slane %v3109, %v3113
    %3116 = vmatprep.subr.mxu0 0.0
    %3117 = vmatpush1.msra.mxu0 %v3093
    %3118 = vmatprep.subr.mxu0 0.0
    %3119 = vmatpush1.msra.mxu0 %v3094
    %3120 = vmatprep.subr.mxu0 0.0
    %3121 = vmatpush1.msra.mxu0 %v3095
    %3122 = vmatprep.subr.mxu0 0.0
    %3123 = vmatpush1.msra.mxu0 %v3096
    %3124 = vmatprep.subr.mxu0 0.0
    %3125 = vmatpush1.msra.mxu0 %v3097
    %3126 = vmatprep.subr.mxu0 0.0
    %3127 = vmatpush1.msra.mxu0 %v3098
    %3128 = vmatprep.subr.mxu0 0.0
    %3129 = vmatpush1.msra.mxu0 %v3099
    %3130 = vmatprep.subr.mxu0 0.0
    %3131 = vmatpush1.msra.mxu0 %v3100
    %3132 = vmatprep.subr.mxu0 0.0
    %3133 = vmatpush1.msra.mxu0 %v3101
    %3134 = vmatprep.subr.mxu0 0.0
    %3135 = vmatpush1.msra.mxu0 %v3102
    %3136 = vmatprep.subr.mxu0 0.0
    %3137 = vmatpush1.msra.mxu0 %v3103
    %3138 = vmatprep.subr.mxu0 0.0
    %3139 = vmatpush1.msra.mxu0 %v3104
    %3140 = vmatprep.subr.mxu0 0.0
    %3141 = vmatpush1.msra.mxu0 %v3105
    %3142 = vmatprep.subr.mxu0 0.0
    %3143 = vmatpush1.msra.mxu0 %v3106
    %3144 = vmatprep.subr.mxu0 0.0
    %3145 = vmatpush1.msra.mxu0 %v3107
    %3146 = vmatprep.subr.mxu0 0.0
    %3147 = vmatpush1.msra.mxu0 %v3108
    %3148 = vmatprep.subr.mxu0 0.0
    %3149 = vmatpush1.msra.mxu0 0.0
    %3150 = vmatprep.subr.mxu0 0.0
    %3151 = vmatpush1.msra.mxu0 0.0
    %3152 = vmatprep.subr.mxu0 0.0
    %3153 = vmatpush1.msra.mxu0 0.0
    %3154 = vmatprep.subr.mxu0 0.0
    %3155 = vmatpush1.msra.mxu0 0.0
    %3156 = vmatprep.subr.mxu0 0.0
    %3157 = vmatpush1.msra.mxu0 0.0
    %3158 = vmatprep.subr.mxu0 0.0
    %3159 = vmatpush1.msra.mxu0 0.0
    %3160 = vmatprep.subr.mxu0 0.0
    %3161 = vmatpush1.msra.mxu0 0.0
    %3162 = vmatprep.subr.mxu0 0.0
    %3163 = vmatpush1.msra.mxu0 0.0
    %3164 = vmatprep.subr.mxu0 0.0
    %3165 = vmatpush1.msra.mxu0 0.0
    %3166 = vmatprep.subr.mxu0 0.0
    %3167 = vmatpush1.msra.mxu0 0.0
    %3168 = vmatprep.subr.mxu0 0.0
    %3169 = vmatpush1.msra.mxu0 0.0
    %3170 = vmatprep.subr.mxu0 0.0
    %3171 = vmatpush1.msra.mxu0 0.0
    %3172 = vmatprep.subr.mxu0 0.0
    %3173 = vmatpush1.msra.mxu0 0.0
    %3174 = vmatprep.subr.mxu0 0.0
    %3175 = vmatpush1.msra.mxu0 0.0
    %3176 = vmatprep.subr.mxu0 0.0
    %3177 = vmatpush1.msra.mxu0 0.0
    %3178 = vmatprep.subr.mxu0 0.0
    %3179 = vmatpush1.msra.mxu0 0.0
    %3180 = vmatprep.mubr.f32.mxu0 0.0
    %3181 = vmatmul.mubr.f32.gmra.mrb[0].mxu0 %v1725
    %v3182 = vpop.f32.mrb[0].mxu0
    %v3183 = vadd.f32 %v3114, %v3182
    %v3184 = vpop.f32.mrb[0].mxu0
    %3185 = vmatprep.mubr.f32.mxu0 0.0
    %3186 = vmatmul.mubr.f32.gmra.mrb[0].mxu0 %v3092
    %v3187 = vpop.f32.mrb[0].mxu0
    %v3188 = vadd.f32 %v3114, %v3187
    %v3189 = vpop.f32.mrb[0].mxu0
    %3190 = vdwg.mxu0
    %v3191 = vmul.f32 %v3183, 0.25
    %v3192 = vmul.f32 %v3188, 0.25
    %v3193 = vadd.f32 %v78, %v3191
    %v3194 = vadd.f32 %v79, %v3192
    %v3195 = vld [vmem:[%s10] sm:$0x1]
    %v3196 = vld [vmem:[%s11] sm:$0x1]
    %v3197 = vsel %vm91, %v3193, 0.0
    %3198 = vadd.xlane.f32.xlu0 %v3197
    %v3199 = vpop.xlane.xlu0 %3198
    %v3200 = vsel %vm91, %v3194, 0.0
    %3201 = vadd.xlane.f32.xlu0 %v3200
    %v3202 = vpop.xlane.xlu0 %3201
    %v3203 = vrcp.pop 32.0
    %v3204 = vmul.f32 %v3199, %v3203
    %v3205 = vmul.f32 %v3202, %v3203
    %v3206 = vsub.f32 %v3193, %v3204
    %v3207 = vsub.f32 %v3194, %v3205
    %v3208 = vmul.f32 %v3206, %v3206
    %v3209 = vmul.f32 %v3207, %v3207
    %v3210 = vsel %vm91, %v3208, 0.0
    %3211 = vadd.xlane.f32.xlu0 %v3210
    %v3212 = vpop.xlane.xlu0 %3211
    %v3213 = vsel %vm91, %v3209, 0.0
    %3214 = vadd.xlane.f32.xlu0 %v3213
    %v3215 = vpop.xlane.xlu0 %3214
    %v3216 = vmul.f32 %v3212, %v3203
    %v3217 = vmul.f32 %v3215, %v3203
    %v3218 = vadd.f32 %v3216, 1e-05
    %v3219 = vadd.f32 %v3217, 1e-05
    %v3220 = vrsqrt.pop %v3218
    %v3221 = vrsqrt.pop %v3219
    %v3222 = vmul.f32 %v3206, %v3220
    %v3223 = vmul.f32 %v3207, %v3221
    %v3225 = vlaneseq
    %v3226 = vshrl.u32 %v3225, 7
    %v3227 = vsub.s32 0, %v3226
    %v3228 = vrot.slane %v3195, %v3227
    %v3230 = vmul.f32 %v3222, %v3228
    %v3231 = vmul.f32 %v3223, %v3228
    %v3233 = vlaneseq
    %v3234 = vshrl.u32 %v3233, 7
    %v3235 = vsub.s32 0, %v3234
    %v3236 = vrot.slane %v3196, %v3235
    %v3238 = vadd.f32 %v3230, %v3236
    %v3239 = vadd.f32 %v3231, %v3236
    %v3240 = vld [vmem:[%s12] sm:$0xff]
    %v3241 = vld [vmem:[%s12 + $0x8] sm:$0xff]
    %v3242 = vld [vmem:[%s12 + $0x10] sm:$0xff]
    %v3243 = vld [vmem:[%s12 + $0x18] sm:$0xff]
    %v3244 = vld [vmem:[%s12 + $0x20] sm:$0xff]
    %v3245 = vld [vmem:[%s12 + $0x28] sm:$0xff]
    %v3246 = vld [vmem:[%s12 + $0x30] sm:$0xff]
    %v3247 = vld [vmem:[%s12 + $0x38] sm:$0xff]
    %v3248 = vld [vmem:[%s12 + $0x40] sm:$0xff]
    %v3249 = vld [vmem:[%s12 + $0x48] sm:$0xff]
    %v3250 = vld [vmem:[%s12 + $0x50] sm:$0xff]
    %v3251 = vld [vmem:[%s12 + $0x58] sm:$0xff]
    %v3252 = vld [vmem:[%s12 + $0x60] sm:$0xff]
    %v3253 = vld [vmem:[%s12 + $0x68] sm:$0xff]
    %v3254 = vld [vmem:[%s12 + $0x70] sm:$0xff]
    %v3255 = vld [vmem:[%s12 + $0x78] sm:$0xff]
    %v3256 = vld [vmem:[%s13] sm:$0xf]
    %v3258 = vlaneseq
    %v3259 = vshrl.u32 %v3258, 7
    %v3260 = vsub.s32 0, %v3259
    %v3261 = vrot.slane %v3256, %v3260
    %v3262 = vlaneseq
    %v3263 = vshrl.u32 %v3262, 7
    %v3264 = vsub.s32 1, %v3263
    %v3265 = vrot.slane %v3256, %v3264
    %v3266 = vlaneseq
    %v3267 = vshrl.u32 %v3266, 7
    %v3268 = vsub.s32 2, %v3267
    %v3269 = vrot.slane %v3256, %v3268
    %v3270 = vlaneseq
    %v3271 = vshrl.u32 %v3270, 7
    %v3272 = vsub.s32 3, %v3271
    %v3273 = vrot.slane %v3256, %v3272
    %v3279 = vsel %vm91, %v3238, 0
    %v3282 = vsel %vm91, %v3239, 0
    %3284 = vmatprep.subr.mxu0 %v3241
    %3285 = vmatpush1.msra.mxu0 %v3240
    %3286 = vmatprep.subr.mxu0 %v3245
    %3287 = vmatpush1.msra.mxu0 %v3244
    %3288 = vmatprep.subr.mxu0 %v3249
    %3289 = vmatpush1.msra.mxu0 %v3248
    %3290 = vmatprep.subr.mxu0 %v3253
    %3291 = vmatpush1.msra.mxu0 %v3252
    %3292 = vmatprep.subr.mxu0 0.0
    %3293 = vmatpush1.msra.mxu0 0.0
    %3294 = vmatprep.subr.mxu0 0.0
    %3295 = vmatpush1.msra.mxu0 0.0
    %3296 = vmatprep.subr.mxu0 0.0
    %3297 = vmatpush1.msra.mxu0 0.0
    %3298 = vmatprep.subr.mxu0 0.0
    %3299 = vmatpush1.msra.mxu0 0.0
    %3300 = vmatprep.subr.mxu0 0.0
    %3301 = vmatpush1.msra.mxu0 0.0
    %3302 = vmatprep.subr.mxu0 0.0
    %3303 = vmatpush1.msra.mxu0 0.0
    %3304 = vmatprep.subr.mxu0 0.0
    %3305 = vmatpush1.msra.mxu0 0.0
    %3306 = vmatprep.subr.mxu0 0.0
    %3307 = vmatpush1.msra.mxu0 0.0
    %3308 = vmatprep.subr.mxu0 0.0
    %3309 = vmatpush1.msra.mxu0 0.0
    %3310 = vmatprep.subr.mxu0 0.0
    %3311 = vmatpush1.msra.mxu0 0.0
    %3312 = vmatprep.subr.mxu0 0.0
    %3313 = vmatpush1.msra.mxu0 0.0
    %3314 = vmatprep.subr.mxu0 0.0
    %3315 = vmatpush1.msra.mxu0 0.0
    %3316 = vmatprep.subr.mxu0 0.0
    %3317 = vmatpush1.msra.mxu0 0.0
    %3318 = vmatprep.subr.mxu0 0.0
    %3319 = vmatpush1.msra.mxu0 0.0
    %3320 = vmatprep.subr.mxu0 0.0
    %3321 = vmatpush1.msra.mxu0 0.0
    %3322 = vmatprep.subr.mxu0 0.0
    %3323 = vmatpush1.msra.mxu0 0.0
    %3324 = vmatprep.subr.mxu0 0.0
    %3325 = vmatpush1.msra.mxu0 0.0
    %3326 = vmatprep.subr.mxu0 0.0
    %3327 = vmatpush1.msra.mxu0 0.0
    %3328 = vmatprep.subr.mxu0 0.0
    %3329 = vmatpush1.msra.mxu0 0.0
    %3330 = vmatprep.subr.mxu0 0.0
    %3331 = vmatpush1.msra.mxu0 0.0
    %3332 = vmatprep.subr.mxu0 0.0
    %3333 = vmatpush1.msra.mxu0 0.0
    %3334 = vmatprep.subr.mxu0 0.0
    %3335 = vmatpush1.msra.mxu0 0.0
    %3336 = vmatprep.subr.mxu0 0.0
    %3337 = vmatpush1.msra.mxu0 0.0
    %3338 = vmatprep.subr.mxu0 0.0
    %3339 = vmatpush1.msra.mxu0 0.0
    %3340 = vmatprep.subr.mxu0 0.0
    %3341 = vmatpush1.msra.mxu0 0.0
    %3342 = vmatprep.subr.mxu0 0.0
    %3343 = vmatpush1.msra.mxu0 0.0
    %3344 = vmatprep.subr.mxu0 0.0
    %3345 = vmatpush1.msra.mxu0 0.0
    %3346 = vmatprep.subr.mxu0 0.0
    %3347 = vmatpush1.msra.mxu0 0.0
    %3348 = vmatprep.mubr.f32.mxu0 0.0
    %3349 = vmatmul.mubr.f32.gmra.mrb[0].mxu0 %v3279
    %v3350 = vpop.f32.mrb[0].mxu0
    %v3351 = vadd.f32 %v3261, %v3350
    %v3352 = vpop.f32.mrb[0].mxu0
    %v3353 = vadd.f32 %v3265, %v3352
    %3354 = vmatprep.mubr.f32.mxu0 0.0
    %3355 = vmatmul.mubr.f32.gmra.mrb[0].mxu0 %v3282
    %v3356 = vpop.f32.mrb[0].mxu0
    %v3357 = vadd.f32 %v3261, %v3356
    %v3358 = vpop.f32.mrb[0].mxu0
    %v3359 = vadd.f32 %v3265, %v3358
    %3360 = vdwg.mxu0
    %3361 = vmatprep.subr.mxu0 %v3243
    %3362 = vmatpush1.msra.mxu0 %v3242
    %3363 = vmatprep.subr.mxu0 %v3247
    %3364 = vmatpush1.msra.mxu0 %v3246
    %3365 = vmatprep.subr.mxu0 %v3251
    %3366 = vmatpush1.msra.mxu0 %v3250
    %3367 = vmatprep.subr.mxu0 %v3255
    %3368 = vmatpush1.msra.mxu0 %v3254
    %3369 = vmatprep.subr.mxu0 0.0
    %3370 = vmatpush1.msra.mxu0 0.0
    %3371 = vmatprep.subr.mxu0 0.0
    %3372 = vmatpush1.msra.mxu0 0.0
    %3373 = vmatprep.subr.mxu0 0.0
    %3374 = vmatpush1.msra.mxu0 0.0
    %3375 = vmatprep.subr.mxu0 0.0
    %3376 = vmatpush1.msra.mxu0 0.0
    %3377 = vmatprep.subr.mxu0 0.0
    %3378 = vmatpush1.msra.mxu0 0.0
    %3379 = vmatprep.subr.mxu0 0.0
    %3380 = vmatpush1.msra.mxu0 0.0
    %3381 = vmatprep.subr.mxu0 0.0
    %3382 = vmatpush1.msra.mxu0 0.0
    %3383 = vmatprep.subr.mxu0 0.0
    %3384 = vmatpush1.msra.mxu0 0.0
    %3385 = vmatprep.subr.mxu0 0.0
    %3386 = vmatpush1.msra.mxu0 0.0
    %3387 = vmatprep.subr.mxu0 0.0
    %3388 = vmatpush1.msra.mxu0 0.0
    %3389 = vmatprep.subr.mxu0 0.0
    %3390 = vmatpush1.msra.mxu0 0.0
    %3391 = vmatprep.subr.mxu0 0.0
    %3392 = vmatpush1.msra.mxu0 0.0
    %3393 = vmatprep.subr.mxu0 0.0
    %3394 = vmatpush1.msra.mxu0 0.0
    %3395 = vmatprep.subr.mxu0 0.0
    %3396 = vmatpush1.msra.mxu0 0.0
    %3397 = vmatprep.subr.mxu0 0.0
    %3398 = vmatpush1.msra.mxu0 0.0
    %3399 = vmatprep.subr.mxu0 0.0
    %3400 = vmatpush1.msra.mxu0 0.0
    %3401 = vmatprep.subr.mxu0 0.0
    %3402 = vmatpush1.msra.mxu0 0.0
    %3403 = vmatprep.subr.mxu0 0.0
    %3404 = vmatpush1.msra.mxu0 0.0
    %3405 = vmatprep.subr.mxu0 0.0
    %3406 = vmatpush1.msra.mxu0 0.0
    %3407 = vmatprep.subr.mxu0 0.0
    %3408 = vmatpush1.msra.mxu0 0.0
    %3409 = vmatprep.subr.mxu0 0.0
    %3410 = vmatpush1.msra.mxu0 0.0
    %3411 = vmatprep.subr.mxu0 0.0
    %3412 = vmatpush1.msra.mxu0 0.0
    %3413 = vmatprep.subr.mxu0 0.0
    %3414 = vmatpush1.msra.mxu0 0.0
    %3415 = vmatprep.subr.mxu0 0.0
    %3416 = vmatpush1.msra.mxu0 0.0
    %3417 = vmatprep.subr.mxu0 0.0
    %3418 = vmatpush1.msra.mxu0 0.0
    %3419 = vmatprep.subr.mxu0 0.0
    %3420 = vmatpush1.msra.mxu0 0.0
    %3421 = vmatprep.subr.mxu0 0.0
    %3422 = vmatpush1.msra.mxu0 0.0
    %3423 = vmatprep.subr.mxu0 0.0
    %3424 = vmatpush1.msra.mxu0 0.0
    %3425 = vmatprep.mubr.f32.mxu0 0.0
    %3426 = vmatmul.mubr.f32.gmra.mrb[0].mxu0 %v3279
    %v3427 = vpop.f32.mrb[0].mxu0
    %v3428 = vadd.f32 %v3269, %v3427
    %v3429 = vpop.f32.mrb[0].mxu0
    %v3430 = vadd.f32 %v3273, %v3429
    %3431 = vmatprep.mubr.f32.mxu0 0.0
    %3432 = vmatmul.mubr.f32.gmra.mrb[0].mxu0 %v3282
    %v3433 = vpop.f32.mrb[0].mxu0
    %v3434 = vadd.f32 %v3269, %v3433
    %v3435 = vpop.f32.mrb[0].mxu0
    %v3436 = vadd.f32 %v3273, %v3435
    %3437 = vdwg.mxu0
    %v3438 = vmul.f32 %v3351, 0.5
    %v3439 = vmul.f32 %v3353, 0.5
    %v3440 = vmul.f32 %v3428, 0.5
    %v3441 = vmul.f32 %v3430, 0.5
    %v3442 = vmul.f32 %v3357, 0.5
    %v3443 = vmul.f32 %v3359, 0.5
    %v3444 = vmul.f32 %v3434, 0.5
    %v3445 = vmul.f32 %v3436, 0.5
    %v3446 = vmul.f32 %v3351, 0.70710677
    %v3447 = vmul.f32 %v3353, 0.70710677
    %v3448 = vmul.f32 %v3428, 0.70710677
    %v3449 = vmul.f32 %v3430, 0.70710677
    %v3450 = vmul.f32 %v3357, 0.70710677
    %v3451 = vmul.f32 %v3359, 0.70710677
    %v3452 = vmul.f32 %v3434, 0.70710677
    %v3453 = vmul.f32 %v3436, 0.70710677
    %v3454 = verf.f32.pop %v3446
    %v3455 = verf.f32.pop %v3447
    %v3456 = verf.f32.pop %v3448
    %v3457 = verf.f32.pop %v3449
    %v3458 = verf.f32.pop %v3450
    %v3459 = verf.f32.pop %v3451
    %v3460 = verf.f32.pop %v3452
    %v3461 = verf.f32.pop %v3453
    %v3462 = vadd.f32 %v3454, 1.0
    %v3463 = vadd.f32 %v3455, 1.0
    %v3464 = vadd.f32 %v3456, 1.0
    %v3465 = vadd.f32 %v3457, 1.0
    %v3466 = vadd.f32 %v3458, 1.0
    %v3467 = vadd.f32 %v3459, 1.0
    %v3468 = vadd.f32 %v3460, 1.0
    %v3469 = vadd.f32 %v3461, 1.0
    %v3470 = vmul.f32 %v3438, %v3462
    %v3471 = vmul.f32 %v3439, %v3463
    %v3472 = vmul.f32 %v3440, %v3464
    %v3473 = vmul.f32 %v3441, %v3465
    %v3474 = vmul.f32 %v3442, %v3466
    %v3475 = vmul.f32 %v3443, %v3467
    %v3476 = vmul.f32 %v3444, %v3468
    %v3477 = vmul.f32 %v3445, %v3469
    %v3478 = vld [vmem:[%s16] sm:$0xff]
    %v3479 = vld [vmem:[%s16 + $0x8] sm:$0xff]
    %v3480 = vld [vmem:[%s16 + $0x10] sm:$0xff]
    %v3481 = vld [vmem:[%s16 + $0x18] sm:$0xff]
    %v3482 = vld [vmem:[%s17] sm:$0x1]
    %v3484 = vlaneseq
    %v3485 = vshrl.u32 %v3484, 7
    %v3486 = vsub.s32 0, %v3485
    %v3487 = vrot.slane %v3482, %v3486
    %3489 = vmatprep.subr.mxu0 0.0
    %3490 = vmatpush1.msra.mxu0 %v3478
    %3491 = vmatprep.subr.mxu0 0.0
    %3492 = vmatpush1.msra.mxu0 %v3479
    %3493 = vmatprep.subr.mxu0 0.0
    %3494 = vmatpush1.msra.mxu0 %v3480
    %3495 = vmatprep.subr.mxu0 0.0
    %3496 = vmatpush1.msra.mxu0 %v3481
    %3497 = vmatprep.subr.mxu0 0.0
    %3498 = vmatpush1.msra.mxu0 0.0
    %3499 = vmatprep.subr.mxu0 0.0
    %3500 = vmatpush1.msra.mxu0 0.0
    %3501 = vmatprep.subr.mxu0 0.0
    %3502 = vmatpush1.msra.mxu0 0.0
    %3503 = vmatprep.subr.mxu0 0.0
    %3504 = vmatpush1.msra.mxu0 0.0
    %3505 = vmatprep.subr.mxu0 0.0
    %3506 = vmatpush1.msra.mxu0 0.0
    %3507 = vmatprep.subr.mxu0 0.0
    %3508 = vmatpush1.msra.mxu0 0.0
    %3509 = vmatprep.subr.mxu0 0.0
    %3510 = vmatpush1.msra.mxu0 0.0
    %3511 = vmatprep.subr.mxu0 0.0
    %3512 = vmatpush1.msra.mxu0 0.0
    %3513 = vmatprep.subr.mxu0 0.0
    %3514 = vmatpush1.msra.mxu0 0.0
    %3515 = vmatprep.subr.mxu0 0.0
    %3516 = vmatpush1.msra.mxu0 0.0
    %3517 = vmatprep.subr.mxu0 0.0
    %3518 = vmatpush1.msra.mxu0 0.0
    %3519 = vmatprep.subr.mxu0 0.0
    %3520 = vmatpush1.msra.mxu0 0.0
    %3521 = vmatprep.subr.mxu0 0.0
    %3522 = vmatpush1.msra.mxu0 0.0
    %3523 = vmatprep.subr.mxu0 0.0
    %3524 = vmatpush1.msra.mxu0 0.0
    %3525 = vmatprep.subr.mxu0 0.0
    %3526 = vmatpush1.msra.mxu0 0.0
    %3527 = vmatprep.subr.mxu0 0.0
    %3528 = vmatpush1.msra.mxu0 0.0
    %3529 = vmatprep.subr.mxu0 0.0
    %3530 = vmatpush1.msra.mxu0 0.0
    %3531 = vmatprep.subr.mxu0 0.0
    %3532 = vmatpush1.msra.mxu0 0.0
    %3533 = vmatprep.subr.mxu0 0.0
    %3534 = vmatpush1.msra.mxu0 0.0
    %3535 = vmatprep.subr.mxu0 0.0
    %3536 = vmatpush1.msra.mxu0 0.0
    %3537 = vmatprep.subr.mxu0 0.0
    %3538 = vmatpush1.msra.mxu0 0.0
    %3539 = vmatprep.subr.mxu0 0.0
    %3540 = vmatpush1.msra.mxu0 0.0
    %3541 = vmatprep.subr.mxu0 0.0
    %3542 = vmatpush1.msra.mxu0 0.0
    %3543 = vmatprep.subr.mxu0 0.0
    %3544 = vmatpush1.msra.mxu0 0.0
    %3545 = vmatprep.subr.mxu0 0.0
    %3546 = vmatpush1.msra.mxu0 0.0
    %3547 = vmatprep.subr.mxu0 0.0
    %3548 = vmatpush1.msra.mxu0 0.0
    %3549 = vmatprep.subr.mxu0 0.0
    %3550 = vmatpush1.msra.mxu0 0.0
    %3551 = vmatprep.subr.mxu0 0.0
    %3552 = vmatpush1.msra.mxu0 0.0
    %3553 = vmatprep.mubr.f32.mxu0 0.0
    %3554 = vmatmul.mubr.f32.gmra.mrb[0].mxu0 %v3279
    %v3555 = vpop.f32.mrb[0].mxu0
    %v3556 = vadd.f32 %v3487, %v3555
    %v3557 = vpop.f32.mrb[0].mxu0
    %3558 = vmatprep.mubr.f32.mxu0 0.0
    %3559 = vmatmul.mubr.f32.gmra.mrb[0].mxu0 %v3282
    %v3560 = vpop.f32.mrb[0].mxu0
    %v3561 = vadd.f32 %v3487, %v3560
    %v3562 = vpop.f32.mrb[0].mxu0
    %3563 = vdwg.mxu0
    %v3564 = vxor.u32 %v3556, 2147483648
    %v3565 = vxor.u32 %v3561, 2147483648
    %v3566 = vmul.f32 %v3564, 1.442695
    %v3567 = vpow.pop %v3566
    %v3568 = vmul.f32 %v3565, 1.442695
    %v3569 = vpow.pop %v3568
    %v3570 = vadd.f32 %v3567, 1.0
    %v3571 = vadd.f32 %v3569, 1.0
    %v3572 = vrcp.pop %v3570
    %v3573 = vmul.f32 1.0, %v3572
    %v3574 = vrcp.pop %v3571
    %v3575 = vmul.f32 1.0, %v3574
    %v3576 = vld [vmem:[%s14] sm:$0xff]
    %v3577 = vld [vmem:[%s14 + $0x8] sm:$0xff]
    %v3578 = vld [vmem:[%s14 + $0x10] sm:$0xff]
    %v3579 = vld [vmem:[%s14 + $0x18] sm:$0xff]
    %v3580 = vld [vmem:[%s14 + $0x20] sm:$0xff]
    %v3581 = vld [vmem:[%s14 + $0x28] sm:$0xff]
    %v3582 = vld [vmem:[%s14 + $0x30] sm:$0xff]
    %v3583 = vld [vmem:[%s14 + $0x38] sm:$0xff]
    %v3584 = vld [vmem:[%s14 + $0x40] sm:$0xff]
    %v3585 = vld [vmem:[%s14 + $0x48] sm:$0xff]
    %v3586 = vld [vmem:[%s14 + $0x50] sm:$0xff]
    %v3587 = vld [vmem:[%s14 + $0x58] sm:$0xff]
    %v3588 = vld [vmem:[%s14 + $0x60] sm:$0xff]
    %v3589 = vld [vmem:[%s14 + $0x68] sm:$0xff]
    %v3590 = vld [vmem:[%s14 + $0x70] sm:$0xff]
    %v3591 = vld [vmem:[%s14 + $0x78] sm:$0xff]
    %v3592 = vld [vmem:[%s15] sm:$0x1]
    %v3594 = vlaneseq
    %v3595 = vshrl.u32 %v3594, 7
    %v3596 = vsub.s32 0, %v3595
    %v3597 = vrot.slane %v3592, %v3596
    %3599 = vmatprep.subr.mxu0 0.0
    %3600 = vmatpush1.msra.mxu0 %v3576
    %3601 = vmatprep.subr.mxu0 0.0
    %3602 = vmatpush1.msra.mxu0 %v3577
    %3603 = vmatprep.subr.mxu0 0.0
    %3604 = vmatpush1.msra.mxu0 %v3578
    %3605 = vmatprep.subr.mxu0 0.0
    %3606 = vmatpush1.msra.mxu0 %v3579
    %3607 = vmatprep.subr.mxu0 0.0
    %3608 = vmatpush1.msra.mxu0 %v3580
    %3609 = vmatprep.subr.mxu0 0.0
    %3610 = vmatpush1.msra.mxu0 %v3581
    %3611 = vmatprep.subr.mxu0 0.0
    %3612 = vmatpush1.msra.mxu0 %v3582
    %3613 = vmatprep.subr.mxu0 0.0
    %3614 = vmatpush1.msra.mxu0 %v3583
    %3615 = vmatprep.subr.mxu0 0.0
    %3616 = vmatpush1.msra.mxu0 %v3584
    %3617 = vmatprep.subr.mxu0 0.0
    %3618 = vmatpush1.msra.mxu0 %v3585
    %3619 = vmatprep.subr.mxu0 0.0
    %3620 = vmatpush1.msra.mxu0 %v3586
    %3621 = vmatprep.subr.mxu0 0.0
    %3622 = vmatpush1.msra.mxu0 %v3587
    %3623 = vmatprep.subr.mxu0 0.0
    %3624 = vmatpush1.msra.mxu0 %v3588
    %3625 = vmatprep.subr.mxu0 0.0
    %3626 = vmatpush1.msra.mxu0 %v3589
    %3627 = vmatprep.subr.mxu0 0.0
    %3628 = vmatpush1.msra.mxu0 %v3590
    %3629 = vmatprep.subr.mxu0 0.0
    %3630 = vmatpush1.msra.mxu0 %v3591
    %3631 = vmatprep.subr.mxu0 0.0
    %3632 = vmatpush1.msra.mxu0 0.0
    %3633 = vmatprep.subr.mxu0 0.0
    %3634 = vmatpush1.msra.mxu0 0.0
    %3635 = vmatprep.subr.mxu0 0.0
    %3636 = vmatpush1.msra.mxu0 0.0
    %3637 = vmatprep.subr.mxu0 0.0
    %3638 = vmatpush1.msra.mxu0 0.0
    %3639 = vmatprep.subr.mxu0 0.0
    %3640 = vmatpush1.msra.mxu0 0.0
    %3641 = vmatprep.subr.mxu0 0.0
    %3642 = vmatpush1.msra.mxu0 0.0
    %3643 = vmatprep.subr.mxu0 0.0
    %3644 = vmatpush1.msra.mxu0 0.0
    %3645 = vmatprep.subr.mxu0 0.0
    %3646 = vmatpush1.msra.mxu0 0.0
    %3647 = vmatprep.subr.mxu0 0.0
    %3648 = vmatpush1.msra.mxu0 0.0
    %3649 = vmatprep.subr.mxu0 0.0
    %3650 = vmatpush1.msra.mxu0 0.0
    %3651 = vmatprep.subr.mxu0 0.0
    %3652 = vmatpush1.msra.mxu0 0.0
    %3653 = vmatprep.subr.mxu0 0.0
    %3654 = vmatpush1.msra.mxu0 0.0
    %3655 = vmatprep.subr.mxu0 0.0
    %3656 = vmatpush1.msra.mxu0 0.0
    %3657 = vmatprep.subr.mxu0 0.0
    %3658 = vmatpush1.msra.mxu0 0.0
    %3659 = vmatprep.subr.mxu0 0.0
    %3660 = vmatpush1.msra.mxu0 0.0
    %3661 = vmatprep.subr.mxu0 0.0
    %3662 = vmatpush1.msra.mxu0 0.0
    %3663 = vmatprep.mubr.f32.mxu0 0.0
    %3664 = vmatmul.mubr.f32.gmra.mrb[0].mxu0 %v3470
    %v3665 = vpop.f32.mrb[0].mxu0
    %v3666 = vadd.f32 %v3597, %v3665
    %v3667 = vpop.f32.mrb[0].mxu0
    %3668 = vmatprep.mubr.f32.mxu0 0.0
    %3669 = vmatmul.mubr.f32.gmra.mrb[0].mxu0 %v3474
    %v3670 = vpop.f32.mrb[0].mxu0
    %v3671 = vadd.f32 %v3597, %v3670
    %v3672 = vpop.f32.mrb[0].mxu0
    %3673 = vdwg.mxu0
    %v3674 = vmul.f32 %v3666, %v3573
    %v3675 = vmul.f32 %v3671, %v3575
    %v3676 = vld [vmem:[%s18] sm:$0x1]
    %v3677 = vld [vmem:[%s19] sm:$0x1]
    %v3678 = vsel %vm91, %v3674, 0.0
    %3679 = vadd.xlane.f32.xlu0 %v3678
    %v3680 = vpop.xlane.xlu0 %3679
    %v3681 = vsel %vm91, %v3675, 0.0
    %3682 = vadd.xlane.f32.xlu0 %v3681
    %v3683 = vpop.xlane.xlu0 %3682
    %v3684 = vmul.f32 %v3680, %v3203
    %v3685 = vmul.f32 %v3683, %v3203
    %v3686 = vsub.f32 %v3674, %v3684
    %v3687 = vsub.f32 %v3675, %v3685
    %v3688 = vmul.f32 %v3686, %v3686
    %v3689 = vmul.f32 %v3687, %v3687
    %v3690 = vsel %vm91, %v3688, 0.0
    %3691 = vadd.xlane.f32.xlu0 %v3690
    %v3692 = vpop.xlane.xlu0 %3691
    %v3693 = vsel %vm91, %v3689, 0.0
    %3694 = vadd.xlane.f32.xlu0 %v3693
    %v3695 = vpop.xlane.xlu0 %3694
    %v3696 = vmul.f32 %v3692, %v3203
    %v3697 = vmul.f32 %v3695, %v3203
    %v3698 = vadd.f32 %v3696, 1e-05
    %v3699 = vadd.f32 %v3697, 1e-05
    %v3700 = vrsqrt.pop %v3698
    %v3701 = vrsqrt.pop %v3699
    %v3702 = vmul.f32 %v3686, %v3700
    %v3703 = vmul.f32 %v3687, %v3701
    %v3705 = vlaneseq
    %v3706 = vshrl.u32 %v3705, 7
    %v3707 = vsub.s32 0, %v3706
    %v3708 = vrot.slane %v3676, %v3707
    %v3710 = vmul.f32 %v3702, %v3708
    %v3711 = vmul.f32 %v3703, %v3708
    %v3713 = vlaneseq
    %v3714 = vshrl.u32 %v3713, 7
    %v3715 = vsub.s32 0, %v3714
    %v3716 = vrot.slane %v3677, %v3715
    %v3718 = vadd.f32 %v3710, %v3716
    %v3719 = vadd.f32 %v3711, %v3716
    %v3720 = vadd.f32 %v3718, 0.0
    %v3721 = vadd.f32 %v3719, 0.0
    %s3722 = scalar_lea.vmem %s14, 128
    %v3723 = vld [vmem:[%s3722] sm:$0xff]
    %v3724 = vld [vmem:[%s3722 + $0x8] sm:$0xff]
    %v3725 = vld [vmem:[%s3722 + $0x10] sm:$0xff]
    %v3726 = vld [vmem:[%s3722 + $0x18] sm:$0xff]
    %v3727 = vld [vmem:[%s3722 + $0x20] sm:$0xff]
    %v3728 = vld [vmem:[%s3722 + $0x28] sm:$0xff]
    %v3729 = vld [vmem:[%s3722 + $0x30] sm:$0xff]
    %v3730 = vld [vmem:[%s3722 + $0x38] sm:$0xff]
    %v3731 = vld [vmem:[%s3722 + $0x40] sm:$0xff]
    %v3732 = vld [vmem:[%s3722 + $0x48] sm:$0xff]
    %v3733 = vld [vmem:[%s3722 + $0x50] sm:$0xff]
    %v3734 = vld [vmem:[%s3722 + $0x58] sm:$0xff]
    %v3735 = vld [vmem:[%s3722 + $0x60] sm:$0xff]
    %v3736 = vld [vmem:[%s3722 + $0x68] sm:$0xff]
    %v3737 = vld [vmem:[%s3722 + $0x70] sm:$0xff]
    %v3738 = vld [vmem:[%s3722 + $0x78] sm:$0xff]
    %s3739 = scalar_lea.vmem %s15, 1
    %v3740 = vld [vmem:[%s3739] sm:$0x1]
    %v3742 = vlaneseq
    %v3743 = vshrl.u32 %v3742, 7
    %v3744 = vsub.s32 0, %v3743
    %v3745 = vrot.slane %v3740, %v3744
    %3747 = vmatprep.subr.mxu0 0.0
    %3748 = vmatpush1.msra.mxu0 %v3723
    %3749 = vmatprep.subr.mxu0 0.0
    %3750 = vmatpush1.msra.mxu0 %v3724
    %3751 = vmatprep.subr.mxu0 0.0
    %3752 = vmatpush1.msra.mxu0 %v3725
    %3753 = vmatprep.subr.mxu0 0.0
    %3754 = vmatpush1.msra.mxu0 %v3726
    %3755 = vmatprep.subr.mxu0 0.0
    %3756 = vmatpush1.msra.mxu0 %v3727
    %3757 = vmatprep.subr.mxu0 0.0
    %3758 = vmatpush1.msra.mxu0 %v3728
    %3759 = vmatprep.subr.mxu0 0.0
    %3760 = vmatpush1.msra.mxu0 %v3729
    %3761 = vmatprep.subr.mxu0 0.0
    %3762 = vmatpush1.msra.mxu0 %v3730
    %3763 = vmatprep.subr.mxu0 0.0
    %3764 = vmatpush1.msra.mxu0 %v3731
    %3765 = vmatprep.subr.mxu0 0.0
    %3766 = vmatpush1.msra.mxu0 %v3732
    %3767 = vmatprep.subr.mxu0 0.0
    %3768 = vmatpush1.msra.mxu0 %v3733
    %3769 = vmatprep.subr.mxu0 0.0
    %3770 = vmatpush1.msra.mxu0 %v3734
    %3771 = vmatprep.subr.mxu0 0.0
    %3772 = vmatpush1.msra.mxu0 %v3735
    %3773 = vmatprep.subr.mxu0 0.0
    %3774 = vmatpush1.msra.mxu0 %v3736
    %3775 = vmatprep.subr.mxu0 0.0
    %3776 = vmatpush1.msra.mxu0 %v3737
    %3777 = vmatprep.subr.mxu0 0.0
    %3778 = vmatpush1.msra.mxu0 %v3738
    %3779 = vmatprep.subr.mxu0 0.0
    %3780 = vmatpush1.msra.mxu0 0.0
    %3781 = vmatprep.subr.mxu0 0.0
    %3782 = vmatpush1.msra.mxu0 0.0
    %3783 = vmatprep.subr.mxu0 0.0
    %3784 = vmatpush1.msra.mxu0 0.0
    %3785 = vmatprep.subr.mxu0 0.0
    %3786 = vmatpush1.msra.mxu0 0.0
    %3787 = vmatprep.subr.mxu0 0.0
    %3788 = vmatpush1.msra.mxu0 0.0
    %3789 = vmatprep.subr.mxu0 0.0
    %3790 = vmatpush1.msra.mxu0 0.0
    %3791 = vmatprep.subr.mxu0 0.0
    %3792 = vmatpush1.msra.mxu0 0.0
    %3793 = vmatprep.subr.mxu0 0.0
    %3794 = vmatpush1.msra.mxu0 0.0
    %3795 = vmatprep.subr.mxu0 0.0
    %3796 = vmatpush1.msra.mxu0 0.0
    %3797 = vmatprep.subr.mxu0 0.0
    %3798 = vmatpush1.msra.mxu0 0.0
    %3799 = vmatprep.subr.mxu0 0.0
    %3800 = vmatpush1.msra.mxu0 0.0
    %3801 = vmatprep.subr.mxu0 0.0
    %3802 = vmatpush1.msra.mxu0 0.0
    %3803 = vmatprep.subr.mxu0 0.0
    %3804 = vmatpush1.msra.mxu0 0.0
    %3805 = vmatprep.subr.mxu0 0.0
    %3806 = vmatpush1.msra.mxu0 0.0
    %3807 = vmatprep.subr.mxu0 0.0
    %3808 = vmatpush1.msra.mxu0 0.0
    %3809 = vmatprep.subr.mxu0 0.0
    %3810 = vmatpush1.msra.mxu0 0.0
    %3811 = vmatprep.mubr.f32.mxu0 0.0
    %3812 = vmatmul.mubr.f32.gmra.mrb[0].mxu0 %v3471
    %v3813 = vpop.f32.mrb[0].mxu0
    %v3814 = vadd.f32 %v3745, %v3813
    %v3815 = vpop.f32.mrb[0].mxu0
    %3816 = vmatprep.mubr.f32.mxu0 0.0
    %3817 = vmatmul.mubr.f32.gmra.mrb[0].mxu0 %v3475
    %v3818 = vpop.f32.mrb[0].mxu0
    %v3819 = vadd.f32 %v3745, %v3818
    %v3820 = vpop.f32.mrb[0].mxu0
    %3821 = vdwg.mxu0
    %3824 = vrot.lane.b32.xlu0 %v3573, 96
    %v3825 = vpop.permute.xlu0 %3824
    %3826 = vrot.lane.b32.xlu0 %v3575, 96
    %v3827 = vpop.permute.xlu0 %3826
    %v3830 = vmul.f32 %v3814, %v3825
    %v3831 = vmul.f32 %v3819, %v3827
    %s3832 = scalar_lea.vmem %s18, 1
    %v3833 = vld [vmem:[%s3832] sm:$0x1]
    %s3834 = scalar_lea.vmem %s19, 1
    %v3835 = vld [vmem:[%s3834] sm:$0x1]
    %v3836 = vsel %vm91, %v3830, 0.0
    %3837 = vadd.xlane.f32.xlu0 %v3836
    %v3838 = vpop.xlane.xlu0 %3837
    %v3839 = vsel %vm91, %v3831, 0.0
    %3840 = vadd.xlane.f32.xlu0 %v3839
    %v3841 = vpop.xlane.xlu0 %3840
    %v3842 = vmul.f32 %v3838, %v3203
    %v3843 = vmul.f32 %v3841, %v3203
    %v3844 = vsub.f32 %v3830, %v3842
    %v3845 = vsub.f32 %v3831, %v3843
    %v3846 = vmul.f32 %v3844, %v3844
    %v3847 = vmul.f32 %v3845, %v3845
    %v3848 = vsel %vm91, %v3846, 0.0
    %3849 = vadd.xlane.f32.xlu0 %v3848
    %v3850 = vpop.xlane.xlu0 %3849
    %v3851 = vsel %vm91, %v3847, 0.0
    %3852 = vadd.xlane.f32.xlu0 %v3851
    %v3853 = vpop.xlane.xlu0 %3852
    %v3854 = vmul.f32 %v3850, %v3203
    %v3855 = vmul.f32 %v3853, %v3203
    %v3856 = vadd.f32 %v3854, 1e-05
    %v3857 = vadd.f32 %v3855, 1e-05
    %v3858 = vrsqrt.pop %v3856
    %v3859 = vrsqrt.pop %v3857
    %v3860 = vmul.f32 %v3844, %v3858
    %v3861 = vmul.f32 %v3845, %v3859
    %v3863 = vlaneseq
    %v3864 = vshrl.u32 %v3863, 7
    %v3865 = vsub.s32 0, %v3864
    %v3866 = vrot.slane %v3833, %v3865
    %v3868 = vmul.f32 %v3860, %v3866
    %v3869 = vmul.f32 %v3861, %v3866
    %v3871 = vlaneseq
    %v3872 = vshrl.u32 %v3871, 7
    %v3873 = vsub.s32 0, %v3872
    %v3874 = vrot.slane %v3835, %v3873
    %v3876 = vadd.f32 %v3868, %v3874
    %v3877 = vadd.f32 %v3869, %v3874
    %v3878 = vadd.f32 %v3720, %v3876
    %v3879 = vadd.f32 %v3721, %v3877
    %s3880 = scalar_lea.vmem %s14, 256
    %v3881 = vld [vmem:[%s3880] sm:$0xff]
    %v3882 = vld [vmem:[%s3880 + $0x8] sm:$0xff]
    %v3883 = vld [vmem:[%s3880 + $0x10] sm:$0xff]
    %v3884 = vld [vmem:[%s3880 + $0x18] sm:$0xff]
    %v3885 = vld [vmem:[%s3880 + $0x20] sm:$0xff]
    %v3886 = vld [vmem:[%s3880 + $0x28] sm:$0xff]
    %v3887 = vld [vmem:[%s3880 + $0x30] sm:$0xff]
    %v3888 = vld [vmem:[%s3880 + $0x38] sm:$0xff]
    %v3889 = vld [vmem:[%s3880 + $0x40] sm:$0xff]
    %v3890 = vld [vmem:[%s3880 + $0x48] sm:$0xff]
    %v3891 = vld [vmem:[%s3880 + $0x50] sm:$0xff]
    %v3892 = vld [vmem:[%s3880 + $0x58] sm:$0xff]
    %v3893 = vld [vmem:[%s3880 + $0x60] sm:$0xff]
    %v3894 = vld [vmem:[%s3880 + $0x68] sm:$0xff]
    %v3895 = vld [vmem:[%s3880 + $0x70] sm:$0xff]
    %v3896 = vld [vmem:[%s3880 + $0x78] sm:$0xff]
    %s3897 = scalar_lea.vmem %s15, 2
    %v3898 = vld [vmem:[%s3897] sm:$0x1]
    %v3900 = vlaneseq
    %v3901 = vshrl.u32 %v3900, 7
    %v3902 = vsub.s32 0, %v3901
    %v3903 = vrot.slane %v3898, %v3902
    %3905 = vmatprep.subr.mxu0 0.0
    %3906 = vmatpush1.msra.mxu0 %v3881
    %3907 = vmatprep.subr.mxu0 0.0
    %3908 = vmatpush1.msra.mxu0 %v3882
    %3909 = vmatprep.subr.mxu0 0.0
    %3910 = vmatpush1.msra.mxu0 %v3883
    %3911 = vmatprep.subr.mxu0 0.0
    %3912 = vmatpush1.msra.mxu0 %v3884
    %3913 = vmatprep.subr.mxu0 0.0
    %3914 = vmatpush1.msra.mxu0 %v3885
    %3915 = vmatprep.subr.mxu0 0.0
    %3916 = vmatpush1.msra.mxu0 %v3886
    %3917 = vmatprep.subr.mxu0 0.0
    %3918 = vmatpush1.msra.mxu0 %v3887
    %3919 = vmatprep.subr.mxu0 0.0
    %3920 = vmatpush1.msra.mxu0 %v3888
    %3921 = vmatprep.subr.mxu0 0.0
    %3922 = vmatpush1.msra.mxu0 %v3889
    %3923 = vmatprep.subr.mxu0 0.0
    %3924 = vmatpush1.msra.mxu0 %v3890
    %3925 = vmatprep.subr.mxu0 0.0
    %3926 = vmatpush1.msra.mxu0 %v3891
    %3927 = vmatprep.subr.mxu0 0.0
    %3928 = vmatpush1.msra.mxu0 %v3892
    %3929 = vmatprep.subr.mxu0 0.0
    %3930 = vmatpush1.msra.mxu0 %v3893
    %3931 = vmatprep.subr.mxu0 0.0
    %3932 = vmatpush1.msra.mxu0 %v3894
    %3933 = vmatprep.subr.mxu0 0.0
    %3934 = vmatpush1.msra.mxu0 %v3895
    %3935 = vmatprep.subr.mxu0 0.0
    %3936 = vmatpush1.msra.mxu0 %v3896
    %3937 = vmatprep.subr.mxu0 0.0
    %3938 = vmatpush1.msra.mxu0 0.0
    %3939 = vmatprep.subr.mxu0 0.0
    %3940 = vmatpush1.msra.mxu0 0.0
    %3941 = vmatprep.subr.mxu0 0.0
    %3942 = vmatpush1.msra.mxu0 0.0
    %3943 = vmatprep.subr.mxu0 0.0
    %3944 = vmatpush1.msra.mxu0 0.0
    %3945 = vmatprep.subr.mxu0 0.0
    %3946 = vmatpush1.msra.mxu0 0.0
    %3947 = vmatprep.subr.mxu0 0.0
    %3948 = vmatpush1.msra.mxu0 0.0
    %3949 = vmatprep.subr.mxu0 0.0
    %3950 = vmatpush1.msra.mxu0 0.0
    %3951 = vmatprep.subr.mxu0 0.0
    %3952 = vmatpush1.msra.mxu0 0.0
    %3953 = vmatprep.subr.mxu0 0.0
    %3954 = vmatpush1.msra.mxu0 0.0
    %3955 = vmatprep.subr.mxu0 0.0
    %3956 = vmatpush1.msra.mxu0 0.0
    %3957 = vmatprep.subr.mxu0 0.0
    %3958 = vmatpush1.msra.mxu0 0.0
    %3959 = vmatprep.subr.mxu0 0.0
    %3960 = vmatpush1.msra.mxu0 0.0
    %3961 = vmatprep.subr.mxu0 0.0
    %3962 = vmatpush1.msra.mxu0 0.0
    %3963 = vmatprep.subr.mxu0 0.0
    %3964 = vmatpush1.msra.mxu0 0.0
    %3965 = vmatprep.subr.mxu0 0.0
    %3966 = vmatpush1.msra.mxu0 0.0
    %3967 = vmatprep.subr.mxu0 0.0
    %3968 = vmatpush1.msra.mxu0 0.0
    %3969 = vmatprep.mubr.f32.mxu0 0.0
    %3970 = vmatmul.mubr.f32.gmra.mrb[0].mxu0 %v3472
    %v3971 = vpop.f32.mrb[0].mxu0
    %v3972 = vadd.f32 %v3903, %v3971
    %v3973 = vpop.f32.mrb[0].mxu0
    %3974 = vmatprep.mubr.f32.mxu0 0.0
    %3975 = vmatmul.mubr.f32.gmra.mrb[0].mxu0 %v3476
    %v3976 = vpop.f32.mrb[0].mxu0
    %v3977 = vadd.f32 %v3903, %v3976
    %v3978 = vpop.f32.mrb[0].mxu0
    %3979 = vdwg.mxu0
    %3980 = vrot.lane.b32.xlu0 %v3573, 64
    %v3981 = vpop.permute.xlu0 %3980
    %3982 = vrot.lane.b32.xlu0 %v3575, 64
    %v3983 = vpop.permute.xlu0 %3982
    %v3986 = vmul.f32 %v3972, %v3981
    %v3987 = vmul.f32 %v3977, %v3983
    %s3988 = scalar_lea.vmem %s18, 2
    %v3989 = vld [vmem:[%s3988] sm:$0x1]
    %s3990 = scalar_lea.vmem %s19, 2
    %v3991 = vld [vmem:[%s3990] sm:$0x1]
    %v3992 = vsel %vm91, %v3986, 0.0
    %3993 = vadd.xlane.f32.xlu0 %v3992
    %v3994 = vpop.xlane.xlu0 %3993
    %v3995 = vsel %vm91, %v3987, 0.0
    %3996 = vadd.xlane.f32.xlu0 %v3995
    %v3997 = vpop.xlane.xlu0 %3996
    %v3998 = vmul.f32 %v3994, %v3203
    %v3999 = vmul.f32 %v3997, %v3203
    %v4000 = vsub.f32 %v3986, %v3998
    %v4001 = vsub.f32 %v3987, %v3999
    %v4002 = vmul.f32 %v4000, %v4000
    %v4003 = vmul.f32 %v4001, %v4001
    %v4004 = vsel %vm91, %v4002, 0.0
    %4005 = vadd.xlane.f32.xlu0 %v4004
    %v4006 = vpop.xlane.xlu0 %4005
    %v4007 = vsel %vm91, %v4003, 0.0
    %4008 = vadd.xlane.f32.xlu0 %v4007
    %v4009 = vpop.xlane.xlu0 %4008
    %v4010 = vmul.f32 %v4006, %v3203
    %v4011 = vmul.f32 %v4009, %v3203
    %v4012 = vadd.f32 %v4010, 1e-05
    %v4013 = vadd.f32 %v4011, 1e-05
    %v4014 = vrsqrt.pop %v4012
    %v4015 = vrsqrt.pop %v4013
    %v4016 = vmul.f32 %v4000, %v4014
    %v4017 = vmul.f32 %v4001, %v4015
    %v4019 = vlaneseq
    %v4020 = vshrl.u32 %v4019, 7
    %v4021 = vsub.s32 0, %v4020
    %v4022 = vrot.slane %v3989, %v4021
    %v4024 = vmul.f32 %v4016, %v4022
    %v4025 = vmul.f32 %v4017, %v4022
    %v4027 = vlaneseq
    %v4028 = vshrl.u32 %v4027, 7
    %v4029 = vsub.s32 0, %v4028
    %v4030 = vrot.slane %v3991, %v4029
    %v4032 = vadd.f32 %v4024, %v4030
    %v4033 = vadd.f32 %v4025, %v4030
    %v4034 = vadd.f32 %v3878, %v4032
    %v4035 = vadd.f32 %v3879, %v4033
    %s4036 = scalar_lea.vmem %s14, 384
    %v4037 = vld [vmem:[%s4036] sm:$0xff]
    %v4038 = vld [vmem:[%s4036 + $0x8] sm:$0xff]
    %v4039 = vld [vmem:[%s4036 + $0x10] sm:$0xff]
    %v4040 = vld [vmem:[%s4036 + $0x18] sm:$0xff]
    %v4041 = vld [vmem:[%s4036 + $0x20] sm:$0xff]
    %v4042 = vld [vmem:[%s4036 + $0x28] sm:$0xff]
    %v4043 = vld [vmem:[%s4036 + $0x30] sm:$0xff]
    %v4044 = vld [vmem:[%s4036 + $0x38] sm:$0xff]
    %v4045 = vld [vmem:[%s4036 + $0x40] sm:$0xff]
    %v4046 = vld [vmem:[%s4036 + $0x48] sm:$0xff]
    %v4047 = vld [vmem:[%s4036 + $0x50] sm:$0xff]
    %v4048 = vld [vmem:[%s4036 + $0x58] sm:$0xff]
    %v4049 = vld [vmem:[%s4036 + $0x60] sm:$0xff]
    %v4050 = vld [vmem:[%s4036 + $0x68] sm:$0xff]
    %v4051 = vld [vmem:[%s4036 + $0x70] sm:$0xff]
    %v4052 = vld [vmem:[%s4036 + $0x78] sm:$0xff]
    %s4053 = scalar_lea.vmem %s15, 3
    %v4054 = vld [vmem:[%s4053] sm:$0x1]
    %v4056 = vlaneseq
    %v4057 = vshrl.u32 %v4056, 7
    %v4058 = vsub.s32 0, %v4057
    %v4059 = vrot.slane %v4054, %v4058
    %4061 = vmatprep.subr.mxu0 0.0
    %4062 = vmatpush1.msra.mxu0 %v4037
    %4063 = vmatprep.subr.mxu0 0.0
    %4064 = vmatpush1.msra.mxu0 %v4038
    %4065 = vmatprep.subr.mxu0 0.0
    %4066 = vmatpush1.msra.mxu0 %v4039
    %4067 = vmatprep.subr.mxu0 0.0
    %4068 = vmatpush1.msra.mxu0 %v4040
    %4069 = vmatprep.subr.mxu0 0.0
    %4070 = vmatpush1.msra.mxu0 %v4041
    %4071 = vmatprep.subr.mxu0 0.0
    %4072 = vmatpush1.msra.mxu0 %v4042
    %4073 = vmatprep.subr.mxu0 0.0
    %4074 = vmatpush1.msra.mxu0 %v4043
    %4075 = vmatprep.subr.mxu0 0.0
    %4076 = vmatpush1.msra.mxu0 %v4044
    %4077 = vmatprep.subr.mxu0 0.0
    %4078 = vmatpush1.msra.mxu0 %v4045
    %4079 = vmatprep.subr.mxu0 0.0
    %4080 = vmatpush1.msra.mxu0 %v4046
    %4081 = vmatprep.subr.mxu0 0.0
    %4082 = vmatpush1.msra.mxu0 %v4047
    %4083 = vmatprep.subr.mxu0 0.0
    %4084 = vmatpush1.msra.mxu0 %v4048
    %4085 = vmatprep.subr.mxu0 0.0
    %4086 = vmatpush1.msra.mxu0 %v4049
    %4087 = vmatprep.subr.mxu0 0.0
    %4088 = vmatpush1.msra.mxu0 %v4050
    %4089 = vmatprep.subr.mxu0 0.0
    %4090 = vmatpush1.msra.mxu0 %v4051
    %4091 = vmatprep.subr.mxu0 0.0
    %4092 = vmatpush1.msra.mxu0 %v4052
    %4093 = vmatprep.subr.mxu0 0.0
    %4094 = vmatpush1.msra.mxu0 0.0
    %4095 = vmatprep.subr.mxu0 0.0
    %4096 = vmatpush1.msra.mxu0 0.0
    %4097 = vmatprep.subr.mxu0 0.0
    %4098 = vmatpush1.msra.mxu0 0.0
    %4099 = vmatprep.subr.mxu0 0.0
    %4100 = vmatpush1.msra.mxu0 0.0
    %4101 = vmatprep.subr.mxu0 0.0
    %4102 = vmatpush1.msra.mxu0 0.0
    %4103 = vmatprep.subr.mxu0 0.0
    %4104 = vmatpush1.msra.mxu0 0.0
    %4105 = vmatprep.subr.mxu0 0.0
    %4106 = vmatpush1.msra.mxu0 0.0
    %4107 = vmatprep.subr.mxu0 0.0
    %4108 = vmatpush1.msra.mxu0 0.0
    %4109 = vmatprep.subr.mxu0 0.0
    %4110 = vmatpush1.msra.mxu0 0.0
    %4111 = vmatprep.subr.mxu0 0.0
    %4112 = vmatpush1.msra.mxu0 0.0
    %4113 = vmatprep.subr.mxu0 0.0
    %4114 = vmatpush1.msra.mxu0 0.0
    %4115 = vmatprep.subr.mxu0 0.0
    %4116 = vmatpush1.msra.mxu0 0.0
    %4117 = vmatprep.subr.mxu0 0.0
    %4118 = vmatpush1.msra.mxu0 0.0
    %4119 = vmatprep.subr.mxu0 0.0
    %4120 = vmatpush1.msra.mxu0 0.0
    %4121 = vmatprep.subr.mxu0 0.0
    %4122 = vmatpush1.msra.mxu0 0.0
    %4123 = vmatprep.subr.mxu0 0.0
    %4124 = vmatpush1.msra.mxu0 0.0
    %4125 = vmatprep.mubr.f32.mxu0 0.0
    %4126 = vmatmul.mubr.f32.gmra.mrb[0].mxu0 %v3473
    %v4127 = vpop.f32.mrb[0].mxu0
    %v4128 = vadd.f32 %v4059, %v4127
    %v4129 = vpop.f32.mrb[0].mxu0
    %4130 = vmatprep.mubr.f32.mxu0 0.0
    %4131 = vmatmul.mubr.f32.gmra.mrb[0].mxu0 %v3477
    %v4132 = vpop.f32.mrb[0].mxu0
    %v4133 = vadd.f32 %v4059, %v4132
    %v4134 = vpop.f32.mrb[0].mxu0
    %4135 = vdwg.mxu0
    %4136 = vrot.lane.b32.xlu0 %v3573, 32
    %v4137 = vpop.permute.xlu0 %4136
    %4138 = vrot.lane.b32.xlu0 %v3575, 32
    %v4139 = vpop.permute.xlu0 %4138
    %v4142 = vmul.f32 %v4128, %v4137
    %v4143 = vmul.f32 %v4133, %v4139
    %s4144 = scalar_lea.vmem %s18, 3
    %v4145 = vld [vmem:[%s4144] sm:$0x1]
    %s4146 = scalar_lea.vmem %s19, 3
    %v4147 = vld [vmem:[%s4146] sm:$0x1]
    %v4148 = vsel %vm91, %v4142, 0.0
    %4149 = vadd.xlane.f32.xlu0 %v4148
    %v4150 = vpop.xlane.xlu0 %4149
    %v4151 = vsel %vm91, %v4143, 0.0
    %4152 = vadd.xlane.f32.xlu0 %v4151
    %v4153 = vpop.xlane.xlu0 %4152
    %v4154 = vmul.f32 %v4150, %v3203
    %v4155 = vmul.f32 %v4153, %v3203
    %v4156 = vsub.f32 %v4142, %v4154
    %v4157 = vsub.f32 %v4143, %v4155
    %v4158 = vmul.f32 %v4156, %v4156
    %v4159 = vmul.f32 %v4157, %v4157
    %v4160 = vsel %vm91, %v4158, 0.0
    %4161 = vadd.xlane.f32.xlu0 %v4160
    %v4162 = vpop.xlane.xlu0 %4161
    %v4163 = vsel %vm91, %v4159, 0.0
    %4164 = vadd.xlane.f32.xlu0 %v4163
    %v4165 = vpop.xlane.xlu0 %4164
    %v4166 = vmul.f32 %v4162, %v3203
    %v4167 = vmul.f32 %v4165, %v3203
    %v4168 = vadd.f32 %v4166, 1e-05
    %v4169 = vadd.f32 %v4167, 1e-05
    %v4170 = vrsqrt.pop %v4168
    %v4171 = vrsqrt.pop %v4169
    %v4172 = vmul.f32 %v4156, %v4170
    %v4173 = vmul.f32 %v4157, %v4171
    %v4175 = vlaneseq
    %v4176 = vshrl.u32 %v4175, 7
    %v4177 = vsub.s32 0, %v4176
    %v4178 = vrot.slane %v4145, %v4177
    %v4180 = vmul.f32 %v4172, %v4178
    %v4181 = vmul.f32 %v4173, %v4178
    %v4183 = vlaneseq
    %v4184 = vshrl.u32 %v4183, 7
    %v4185 = vsub.s32 0, %v4184
    %v4186 = vrot.slane %v4147, %v4185
    %v4188 = vadd.f32 %v4180, %v4186
    %v4189 = vadd.f32 %v4181, %v4186
    %v4190 = vadd.f32 %v4034, %v4188
    %v4191 = vadd.f32 %v4035, %v4189
    %v4192 = vmul.f32 %v4190, 0.25
    %v4193 = vmul.f32 %v4191, 0.25
    %v4194 = vadd.f32 %v3238, %v4192
    %v4195 = vadd.f32 %v3239, %v4193
    %v4196 = vld [vmem:[%s20] sm:$0x1]
    %v4197 = vld [vmem:[%s21] sm:$0x1]
    %v4198 = vsel %vm91, %v4194, 0.0
    %4199 = vadd.xlane.f32.xlu0 %v4198
    %v4200 = vpop.xlane.xlu0 %4199
    %v4201 = vsel %vm91, %v4195, 0.0
    %4202 = vadd.xlane.f32.xlu0 %v4201
    %v4203 = vpop.xlane.xlu0 %4202
    %v4204 = vmul.f32 %v4200, %v3203
    %v4205 = vmul.f32 %v4203, %v3203
    %v4206 = vsub.f32 %v4194, %v4204
    %v4207 = vsub.f32 %v4195, %v4205
    %v4208 = vmul.f32 %v4206, %v4206
    %v4209 = vmul.f32 %v4207, %v4207
    %v4210 = vsel %vm91, %v4208, 0.0
    %4211 = vadd.xlane.f32.xlu0 %v4210
    %v4212 = vpop.xlane.xlu0 %4211
    %v4213 = vsel %vm91, %v4209, 0.0
    %4214 = vadd.xlane.f32.xlu0 %v4213
    %v4215 = vpop.xlane.xlu0 %4214
    %v4216 = vmul.f32 %v4212, %v3203
    %v4217 = vmul.f32 %v4215, %v3203
    %v4218 = vadd.f32 %v4216, 1e-05
    %v4219 = vadd.f32 %v4217, 1e-05
    %v4220 = vrsqrt.pop %v4218
    %v4221 = vrsqrt.pop %v4219
    %v4222 = vmul.f32 %v4206, %v4220
    %v4223 = vmul.f32 %v4207, %v4221
    %v4225 = vlaneseq
    %v4226 = vshrl.u32 %v4225, 7
    %v4227 = vsub.s32 0, %v4226
    %v4228 = vrot.slane %v4196, %v4227
    %v4230 = vmul.f32 %v4222, %v4228
    %v4231 = vmul.f32 %v4223, %v4228
    %v4233 = vlaneseq
    %v4234 = vshrl.u32 %v4233, 7
    %v4235 = vsub.s32 0, %v4234
    %v4236 = vrot.slane %v4197, %v4235
    %v4238 = vadd.f32 %v4230, %v4236
    %v4239 = vadd.f32 %v4231, %v4236
    %s4240 = scalar_lea.vmem %s1, 32
    %v4241 = vld [vmem:[%s4240] sm:$0xff]
    %v4242 = vld [vmem:[%s4240 + $0x8] sm:$0xff]
    %v4243 = vld [vmem:[%s4240 + $0x10] sm:$0xff]
    %v4244 = vld [vmem:[%s4240 + $0x18] sm:$0xff]
    %s4245 = scalar_lea.vmem %s2, 1
    %v4246 = vld [vmem:[%s4245] sm:$0x1]
    %v4248 = vlaneseq
    %v4249 = vshrl.u32 %v4248, 7
    %v4250 = vsub.s32 0, %v4249
    %v4251 = vrot.slane %v4246, %v4250
    %v4254 = vsel %vm91, %v4238, 0
    %v4257 = vsel %vm91, %v4239, 0
    %4259 = vmatprep.subr.mxu0 0.0
    %4260 = vmatpush1.msra.mxu0 %v4241
    %4261 = vmatprep.subr.mxu0 0.0
    %4262 = vmatpush1.msra.mxu0 %v4242
    %4263 = vmatprep.subr.mxu0 0.0
    %4264 = vmatpush1.msra.mxu0 %v4243
    %4265 = vmatprep.subr.mxu0 0.0
    %4266 = vmatpush1.msra.mxu0 %v4244
    %4267 = vmatprep.subr.mxu0 0.0
    %4268 = vmatpush1.msra.mxu0 0.0
    %4269 = vmatprep.subr.mxu0 0.0
    %4270 = vmatpush1.msra.mxu0 0.0
    %4271 = vmatprep.subr.mxu0 0.0
    %4272 = vmatpush1.msra.mxu0 0.0
    %4273 = vmatprep.subr.mxu0 0.0
    %4274 = vmatpush1.msra.mxu0 0.0
    %4275 = vmatprep.subr.mxu0 0.0
    %4276 = vmatpush1.msra.mxu0 0.0
    %4277 = vmatprep.subr.mxu0 0.0
    %4278 = vmatpush1.msra.mxu0 0.0
    %4279 = vmatprep.subr.mxu0 0.0
    %4280 = vmatpush1.msra.mxu0 0.0
    %4281 = vmatprep.subr.mxu0 0.0
    %4282 = vmatpush1.msra.mxu0 0.0
    %4283 = vmatprep.subr.mxu0 0.0
    %4284 = vmatpush1.msra.mxu0 0.0
    %4285 = vmatprep.subr.mxu0 0.0
    %4286 = vmatpush1.msra.mxu0 0.0
    %4287 = vmatprep.subr.mxu0 0.0
    %4288 = vmatpush1.msra.mxu0 0.0
    %4289 = vmatprep.subr.mxu0 0.0
    %4290 = vmatpush1.msra.mxu0 0.0
    %4291 = vmatprep.subr.mxu0 0.0
    %4292 = vmatpush1.msra.mxu0 0.0
    %4293 = vmatprep.subr.mxu0 0.0
    %4294 = vmatpush1.msra.mxu0 0.0
    %4295 = vmatprep.subr.mxu0 0.0
    %4296 = vmatpush1.msra.mxu0 0.0
    %4297 = vmatprep.subr.mxu0 0.0
    %4298 = vmatpush1.msra.mxu0 0.0
    %4299 = vmatprep.subr.mxu0 0.0
    %4300 = vmatpush1.msra.mxu0 0.0
    %4301 = vmatprep.subr.mxu0 0.0
    %4302 = vmatpush1.msra.mxu0 0.0
    %4303 = vmatprep.subr.mxu0 0.0
    %4304 = vmatpush1.msra.mxu0 0.0
    %4305 = vmatprep.subr.mxu0 0.0
    %4306 = vmatpush1.msra.mxu0 0.0
    %4307 = vmatprep.subr.mxu0 0.0
    %4308 = vmatpush1.msra.mxu0 0.0
    %4309 = vmatprep.subr.mxu0 0.0
    %4310 = vmatpush1.msra.mxu0 0.0
    %4311 = vmatprep.subr.mxu0 0.0
    %4312 = vmatpush1.msra.mxu0 0.0
    %4313 = vmatprep.subr.mxu0 0.0
    %4314 = vmatpush1.msra.mxu0 0.0
    %4315 = vmatprep.subr.mxu0 0.0
    %4316 = vmatpush1.msra.mxu0 0.0
    %4317 = vmatprep.subr.mxu0 0.0
    %4318 = vmatpush1.msra.mxu0 0.0
    %4319 = vmatprep.subr.mxu0 0.0
    %4320 = vmatpush1.msra.mxu0 0.0
    %4321 = vmatprep.subr.mxu0 0.0
    %4322 = vmatpush1.msra.mxu0 0.0
    %4323 = vmatprep.mubr.f32.mxu0 0.0
    %4324 = vmatmul.mubr.f32.gmra.mrb[0].mxu0 %v4254
    %v4325 = vpop.f32.mrb[0].mxu0
    %v4326 = vadd.f32 %v4251, %v4325
    %v4327 = vpop.f32.mrb[0].mxu0
    %4328 = vmatprep.mubr.f32.mxu0 0.0
    %4329 = vmatmul.mubr.f32.gmra.mrb[0].mxu0 %v4257
    %v4330 = vpop.f32.mrb[0].mxu0
    %v4331 = vadd.f32 %v4251, %v4330
    %v4332 = vpop.f32.mrb[0].mxu0
    %4333 = vdwg.mxu0
    %s4334 = scalar_lea.vmem %s3, 32
    %v4335 = vld [vmem:[%s4334] sm:$0xff]
    %v4336 = vld [vmem:[%s4334 + $0x8] sm:$0xff]
    %v4337 = vld [vmem:[%s4334 + $0x10] sm:$0xff]
    %v4338 = vld [vmem:[%s4334 + $0x18] sm:$0xff]
    %s4339 = scalar_lea.vmem %s4, 1
    %v4340 = vld [vmem:[%s4339] sm:$0x1]
    %v4342 = vlaneseq
    %v4343 = vshrl.u32 %v4342, 7
    %v4344 = vsub.s32 0, %v4343
    %v4345 = vrot.slane %v4340, %v4344
    %4347 = vmatprep.subr.mxu0 0.0
    %4348 = vmatpush1.msra.mxu0 %v4335
    %4349 = vmatprep.subr.mxu0 0.0
    %4350 = vmatpush1.msra.mxu0 %v4336
    %4351 = vmatprep.subr.mxu0 0.0
    %4352 = vmatpush1.msra.mxu0 %v4337
    %4353 = vmatprep.subr.mxu0 0.0
    %4354 = vmatpush1.msra.mxu0 %v4338
    %4355 = vmatprep.subr.mxu0 0.0
    %4356 = vmatpush1.msra.mxu0 0.0
    %4357 = vmatprep.subr.mxu0 0.0
    %4358 = vmatpush1.msra.mxu0 0.0
    %4359 = vmatprep.subr.mxu0 0.0
    %4360 = vmatpush1.msra.mxu0 0.0
    %4361 = vmatprep.subr.mxu0 0.0
    %4362 = vmatpush1.msra.mxu0 0.0
    %4363 = vmatprep.subr.mxu0 0.0
    %4364 = vmatpush1.msra.mxu0 0.0
    %4365 = vmatprep.subr.mxu0 0.0
    %4366 = vmatpush1.msra.mxu0 0.0
    %4367 = vmatprep.subr.mxu0 0.0
    %4368 = vmatpush1.msra.mxu0 0.0
    %4369 = vmatprep.subr.mxu0 0.0
    %4370 = vmatpush1.msra.mxu0 0.0
    %4371 = vmatprep.subr.mxu0 0.0
    %4372 = vmatpush1.msra.mxu0 0.0
    %4373 = vmatprep.subr.mxu0 0.0
    %4374 = vmatpush1.msra.mxu0 0.0
    %4375 = vmatprep.subr.mxu0 0.0
    %4376 = vmatpush1.msra.mxu0 0.0
    %4377 = vmatprep.subr.mxu0 0.0
    %4378 = vmatpush1.msra.mxu0 0.0
    %4379 = vmatprep.subr.mxu0 0.0
    %4380 = vmatpush1.msra.mxu0 0.0
    %4381 = vmatprep.subr.mxu0 0.0
    %4382 = vmatpush1.msra.mxu0 0.0
    %4383 = vmatprep.subr.mxu0 0.0
    %4384 = vmatpush1.msra.mxu0 0.0
    %4385 = vmatprep.subr.mxu0 0.0
    %4386 = vmatpush1.msra.mxu0 0.0
    %4387 = vmatprep.subr.mxu0 0.0
    %4388 = vmatpush1.msra.mxu0 0.0
    %4389 = vmatprep.subr.mxu0 0.0
    %4390 = vmatpush1.msra.mxu0 0.0
    %4391 = vmatprep.subr.mxu0 0.0
    %4392 = vmatpush1.msra.mxu0 0.0
    %4393 = vmatprep.subr.mxu0 0.0
    %4394 = vmatpush1.msra.mxu0 0.0
    %4395 = vmatprep.subr.mxu0 0.0
    %4396 = vmatpush1.msra.mxu0 0.0
    %4397 = vmatprep.subr.mxu0 0.0
    %4398 = vmatpush1.msra.mxu0 0.0
    %4399 = vmatprep.subr.mxu0 0.0
    %4400 = vmatpush1.msra.mxu0 0.0
    %4401 = vmatprep.subr.mxu0 0.0
    %4402 = vmatpush1.msra.mxu0 0.0
    %4403 = vmatprep.subr.mxu0 0.0
    %4404 = vmatpush1.msra.mxu0 0.0
    %4405 = vmatprep.subr.mxu0 0.0
    %4406 = vmatpush1.msra.mxu0 0.0
    %4407 = vmatprep.subr.mxu0 0.0
    %4408 = vmatpush1.msra.mxu0 0.0
    %4409 = vmatprep.subr.mxu0 0.0
    %4410 = vmatpush1.msra.mxu0 0.0
    %4411 = vmatprep.mubr.f32.mxu0 0.0
    %4412 = vmatmul.mubr.f32.gmra.mrb[0].mxu0 %v4254
    %v4413 = vpop.f32.mrb[0].mxu0
    %v4414 = vadd.f32 %v4345, %v4413
    %v4415 = vpop.f32.mrb[0].mxu0
    %4416 = vmatprep.mubr.f32.mxu0 0.0
    %4417 = vmatmul.mubr.f32.gmra.mrb[0].mxu0 %v4257
    %v4418 = vpop.f32.mrb[0].mxu0
    %v4419 = vadd.f32 %v4345, %v4418
    %v4420 = vpop.f32.mrb[0].mxu0
    %4421 = vdwg.mxu0
    %s4422 = scalar_lea.vmem %s5, 32
    %v4423 = vld [vmem:[%s4422] sm:$0xff]
    %v4424 = vld [vmem:[%s4422 + $0x8] sm:$0xff]
    %v4425 = vld [vmem:[%s4422 + $0x10] sm:$0xff]
    %v4426 = vld [vmem:[%s4422 + $0x18] sm:$0xff]
    %s4427 = scalar_lea.vmem %s6, 1
    %v4428 = vld [vmem:[%s4427] sm:$0x1]
    %v4430 = vlaneseq
    %v4431 = vshrl.u32 %v4430, 7
    %v4432 = vsub.s32 0, %v4431
    %v4433 = vrot.slane %v4428, %v4432
    %4435 = vmatprep.subr.mxu0 0.0
    %4436 = vmatpush1.msra.mxu0 %v4423
    %4437 = vmatprep.subr.mxu0 0.0
    %4438 = vmatpush1.msra.mxu0 %v4424
    %4439 = vmatprep.subr.mxu0 0.0
    %4440 = vmatpush1.msra.mxu0 %v4425
    %4441 = vmatprep.subr.mxu0 0.0
    %4442 = vmatpush1.msra.mxu0 %v4426
    %4443 = vmatprep.subr.mxu0 0.0
    %4444 = vmatpush1.msra.mxu0 0.0
    %4445 = vmatprep.subr.mxu0 0.0
    %4446 = vmatpush1.msra.mxu0 0.0
    %4447 = vmatprep.subr.mxu0 0.0
    %4448 = vmatpush1.msra.mxu0 0.0
    %4449 = vmatprep.subr.mxu0 0.0
    %4450 = vmatpush1.msra.mxu0 0.0
    %4451 = vmatprep.subr.mxu0 0.0
    %4452 = vmatpush1.msra.mxu0 0.0
    %4453 = vmatprep.subr.mxu0 0.0
    %4454 = vmatpush1.msra.mxu0 0.0
    %4455 = vmatprep.subr.mxu0 0.0
    %4456 = vmatpush1.msra.mxu0 0.0
    %4457 = vmatprep.subr.mxu0 0.0
    %4458 = vmatpush1.msra.mxu0 0.0
    %4459 = vmatprep.subr.mxu0 0.0
    %4460 = vmatpush1.msra.mxu0 0.0
    %4461 = vmatprep.subr.mxu0 0.0
    %4462 = vmatpush1.msra.mxu0 0.0
    %4463 = vmatprep.subr.mxu0 0.0
    %4464 = vmatpush1.msra.mxu0 0.0
    %4465 = vmatprep.subr.mxu0 0.0
    %4466 = vmatpush1.msra.mxu0 0.0
    %4467 = vmatprep.subr.mxu0 0.0
    %4468 = vmatpush1.msra.mxu0 0.0
    %4469 = vmatprep.subr.mxu0 0.0
    %4470 = vmatpush1.msra.mxu0 0.0
    %4471 = vmatprep.subr.mxu0 0.0
    %4472 = vmatpush1.msra.mxu0 0.0
    %4473 = vmatprep.subr.mxu0 0.0
    %4474 = vmatpush1.msra.mxu0 0.0
    %4475 = vmatprep.subr.mxu0 0.0
    %4476 = vmatpush1.msra.mxu0 0.0
    %4477 = vmatprep.subr.mxu0 0.0
    %4478 = vmatpush1.msra.mxu0 0.0
    %4479 = vmatprep.subr.mxu0 0.0
    %4480 = vmatpush1.msra.mxu0 0.0
    %4481 = vmatprep.subr.mxu0 0.0
    %4482 = vmatpush1.msra.mxu0 0.0
    %4483 = vmatprep.subr.mxu0 0.0
    %4484 = vmatpush1.msra.mxu0 0.0
    %4485 = vmatprep.subr.mxu0 0.0
    %4486 = vmatpush1.msra.mxu0 0.0
    %4487 = vmatprep.subr.mxu0 0.0
    %4488 = vmatpush1.msra.mxu0 0.0
    %4489 = vmatprep.subr.mxu0 0.0
    %4490 = vmatpush1.msra.mxu0 0.0
    %4491 = vmatprep.subr.mxu0 0.0
    %4492 = vmatpush1.msra.mxu0 0.0
    %4493 = vmatprep.subr.mxu0 0.0
    %4494 = vmatpush1.msra.mxu0 0.0
    %4495 = vmatprep.subr.mxu0 0.0
    %4496 = vmatpush1.msra.mxu0 0.0
    %4497 = vmatprep.subr.mxu0 0.0
    %4498 = vmatpush1.msra.mxu0 0.0
    %4499 = vmatprep.mubr.f32.mxu0 0.0
    %4500 = vmatmul.mubr.f32.gmra.mrb[0].mxu0 %v4254
    %v4501 = vpop.f32.mrb[0].mxu0
    %v4502 = vadd.f32 %v4433, %v4501
    %v4503 = vpop.f32.mrb[0].mxu0
    %4504 = vmatprep.mubr.f32.mxu0 0.0
    %4505 = vmatmul.mubr.f32.gmra.mrb[0].mxu0 %v4257
    %v4506 = vpop.f32.mrb[0].mxu0
    %v4507 = vadd.f32 %v4433, %v4506
    %v4508 = vpop.f32.mrb[0].mxu0
    %4509 = vdwg.mxu0
    %s4510 = scalar_lea.vmem %s9, 32
    %v4511 = vld [vmem:[%s4510] sm:$0xff]
    %v4513 = vsel %vm346, %v4326, 0
    %v4516 = vsel %vm346, %v4414, 0
    %4518 = vmatprep.subr.mxu0 0.0
    %4519 = vmatpush1.xpose.msra.mxu0 %v4516
    %4520 = vmatprep.subr.mxu0 0.0
    %4521 = vmatpush1.xpose.msra.mxu0 0.0
    %4522 = vmatprep.subr.mxu0 0.0
    %4523 = vmatpush1.xpose.msra.mxu0 0.0
    %4524 = vmatprep.subr.mxu0 0.0
    %4525 = vmatpush1.xpose.msra.mxu0 0.0
    %4526 = vmatprep.subr.mxu0 0.0
    %4527 = vmatpush1.xpose.msra.mxu0 0.0
    %4528 = vmatprep.subr.mxu0 0.0
    %4529 = vmatpush1.xpose.msra.mxu0 0.0
    %4530 = vmatprep.subr.mxu0 0.0
    %4531 = vmatpush1.xpose.msra.mxu0 0.0
    %4532 = vmatprep.subr.mxu0 0.0
    %4533 = vmatpush1.xpose.msra.mxu0 0.0
    %4534 = vmatprep.subr.mxu0 0.0
    %4535 = vmatpush1.xpose.msra.mxu0 0.0
    %4536 = vmatprep.subr.mxu0 0.0
    %4537 = vmatpush1.xpose.msra.mxu0 0.0
    %4538 = vmatprep.subr.mxu0 0.0
    %4539 = vmatpush1.xpose.msra.mxu0 0.0
    %4540 = vmatprep.subr.mxu0 0.0
    %4541 = vmatpush1.xpose.msra.mxu0 0.0
    %4542 = vmatprep.subr.mxu0 0.0
    %4543 = vmatpush1.xpose.msra.mxu0 0.0
    %4544 = vmatprep.subr.mxu0 0.0
    %4545 = vmatpush1.xpose.msra.mxu0 0.0
    %4546 = vmatprep.subr.mxu0 0.0
    %4547 = vmatpush1.xpose.msra.mxu0 0.0
    %4548 = vmatprep.subr.mxu0 0.0
    %4549 = vmatpush1.xpose.msra.mxu0 0.0
    %4550 = vmatprep.subr.mxu0 0.0
    %4551 = vmatpush1.xpose.msra.mxu0 0.0
    %4552 = vmatprep.subr.mxu0 0.0
    %4553 = vmatpush1.xpose.msra.mxu0 0.0
    %4554 = vmatprep.subr.mxu0 0.0
    %4555 = vmatpush1.xpose.msra.mxu0 0.0
    %4556 = vmatprep.subr.mxu0 0.0
    %4557 = vmatpush1.xpose.msra.mxu0 0.0
    %4558 = vmatprep.subr.mxu0 0.0
    %4559 = vmatpush1.xpose.msra.mxu0 0.0
    %4560 = vmatprep.subr.mxu0 0.0
    %4561 = vmatpush1.xpose.msra.mxu0 0.0
    %4562 = vmatprep.subr.mxu0 0.0
    %4563 = vmatpush1.xpose.msra.mxu0 0.0
    %4564 = vmatprep.subr.mxu0 0.0
    %4565 = vmatpush1.xpose.msra.mxu0 0.0
    %4566 = vmatprep.subr.mxu0 0.0
    %4567 = vmatpush1.xpose.msra.mxu0 0.0
    %4568 = vmatprep.subr.mxu0 0.0
    %4569 = vmatpush1.xpose.msra.mxu0 0.0
    %4570 = vmatprep.subr.mxu0 0.0
    %4571 = vmatpush1.xpose.msra.mxu0 0.0
    %4572 = vmatprep.subr.mxu0 0.0
    %4573 = vmatpush1.xpose.msra.mxu0 0.0
    %4574 = vmatprep.subr.mxu0 0.0
    %4575 = vmatpush1.xpose.msra.mxu0 0.0
    %4576 = vmatprep.subr.mxu0 0.0
    %4577 = vmatpush1.xpose.msra.mxu0 0.0
    %4578 = vmatprep.subr.mxu0 0.0
    %4579 = vmatpush1.xpose.msra.mxu0 0.0
    %4580 = vmatprep.subr.mxu0 0.0
    %4581 = vmatpush1.xpose.msra.mxu0 0.0
    %4582 = vmatprep.mubr.f32.mxu0 0.0
    %4583 = vmatmul.mubr.f32.gmra.mrb[0].mxu0 %v4513
    %v4584 = vpop.f32.mrb[0].mxu0
    %v4585 = vadd.f32 0.0, %v4584
    %v4586 = vpop.f32.mrb[0].mxu0
    %4587 = vdwg.mxu0
    %v4588 = vmul.f32 %v4585, 0.25
    %v4589 = vadd.f32 %v4588, %v4511
    %v4590 = vsel %vm425, %v4589, -inf
    %4591 = vmax.xlane.f32.xlu0 %v4590
    %v4592 = vpop.xlane.xlu0 %4591
    %v4593 = vsub.f32 %v4589, %v4592
    %v4594 = vmul.f32 %v4593, 1.442695
    %v4595 = vpow.pop %v4594
    %v4596 = vsel %vm425, %v4595, 0.0
    %4597 = vadd.xlane.f32.xlu0 %v4596
    %v4598 = vpop.xlane.xlu0 %4597
    %v4599 = vrcp.pop %v4598
    %v4600 = vmul.f32 %v4595, %v4599
    %v4602 = vsel %vm425, %v4600, 0
    %4604 = vmatprep.subr.mxu0 0.0
    %4605 = vmatpush1.msra.mxu0 %v4502
    %4606 = vmatprep.subr.mxu0 0.0
    %4607 = vmatpush1.msra.mxu0 0.0
    %4608 = vmatprep.subr.mxu0 0.0
    %4609 = vmatpush1.msra.mxu0 0.0
    %4610 = vmatprep.subr.mxu0 0.0
    %4611 = vmatpush1.msra.mxu0 0.0
    %4612 = vmatprep.subr.mxu0 0.0
    %4613 = vmatpush1.msra.mxu0 0.0
    %4614 = vmatprep.subr.mxu0 0.0
    %4615 = vmatpush1.msra.mxu0 0.0
    %4616 = vmatprep.subr.mxu0 0.0
    %4617 = vmatpush1.msra.mxu0 0.0
    %4618 = vmatprep.subr.mxu0 0.0
    %4619 = vmatpush1.msra.mxu0 0.0
    %4620 = vmatprep.subr.mxu0 0.0
    %4621 = vmatpush1.msra.mxu0 0.0
    %4622 = vmatprep.subr.mxu0 0.0
    %4623 = vmatpush1.msra.mxu0 0.0
    %4624 = vmatprep.subr.mxu0 0.0
    %4625 = vmatpush1.msra.mxu0 0.0
    %4626 = vmatprep.subr.mxu0 0.0
    %4627 = vmatpush1.msra.mxu0 0.0
    %4628 = vmatprep.subr.mxu0 0.0
    %4629 = vmatpush1.msra.mxu0 0.0
    %4630 = vmatprep.subr.mxu0 0.0
    %4631 = vmatpush1.msra.mxu0 0.0
    %4632 = vmatprep.subr.mxu0 0.0
    %4633 = vmatpush1.msra.mxu0 0.0
    %4634 = vmatprep.subr.mxu0 0.0
    %4635 = vmatpush1.msra.mxu0 0.0
    %4636 = vmatprep.subr.mxu0 0.0
    %4637 = vmatpush1.msra.mxu0 0.0
    %4638 = vmatprep.subr.mxu0 0.0
    %4639 = vmatpush1.msra.mxu0 0.0
    %4640 = vmatprep.subr.mxu0 0.0
    %4641 = vmatpush1.msra.mxu0 0.0
    %4642 = vmatprep.subr.mxu0 0.0
    %4643 = vmatpush1.msra.mxu0 0.0
    %4644 = vmatprep.subr.mxu0 0.0
    %4645 = vmatpush1.msra.mxu0 0.0
    %4646 = vmatprep.subr.mxu0 0.0
    %4647 = vmatpush1.msra.mxu0 0.0
    %4648 = vmatprep.subr.mxu0 0.0
    %4649 = vmatpush1.msra.mxu0 0.0
    %4650 = vmatprep.subr.mxu0 0.0
    %4651 = vmatpush1.msra.mxu0 0.0
    %4652 = vmatprep.subr.mxu0 0.0
    %4653 = vmatpush1.msra.mxu0 0.0
    %4654 = vmatprep.subr.mxu0 0.0
    %4655 = vmatpush1.msra.mxu0 0.0
    %4656 = vmatprep.subr.mxu0 0.0
    %4657 = vmatpush1.msra.mxu0 0.0
    %4658 = vmatprep.subr.mxu0 0.0
    %4659 = vmatpush1.msra.mxu0 0.0
    %4660 = vmatprep.subr.mxu0 0.0
    %4661 = vmatpush1.msra.mxu0 0.0
    %4662 = vmatprep.subr.mxu0 0.0
    %4663 = vmatpush1.msra.mxu0 0.0
    %4664 = vmatprep.subr.mxu0 0.0
    %4665 = vmatpush1.msra.mxu0 0.0
    %4666 = vmatprep.subr.mxu0 0.0
    %4667 = vmatpush1.msra.mxu0 0.0
    %4668 = vmatprep.mubr.f32.mxu0 0.0
    %4669 = vmatmul.mubr.f32.gmra.mrb[0].mxu0 %v4602
    %v4670 = vpop.f32.mrb[0].mxu0
    %v4671 = vadd.f32 0.0, %v4670
    %v4672 = vpop.f32.mrb[0].mxu0
    %4673 = vdwg.mxu0
    %4674 = vrot.lane.b32.xlu0 %v4326, 112
    %v4675 = vpop.permute.xlu0 %4674
    %4676 = vrot.lane.b32.xlu0 %v4414, 112
    %v4677 = vpop.permute.xlu0 %4676
    %v4678 = vsel %vm346, %v4675, 0
    %v4680 = vsel %vm346, %v4677, 0
    %4682 = vmatprep.subr.mxu0 0.0
    %4683 = vmatpush1.xpose.msra.mxu0 %v4680
    %4684 = vmatprep.subr.mxu0 0.0
    %4685 = vmatpush1.xpose.msra.mxu0 0.0
    %4686 = vmatprep.subr.mxu0 0.0
    %4687 = vmatpush1.xpose.msra.mxu0 0.0
    %4688 = vmatprep.subr.mxu0 0.0
    %4689 = vmatpush1.xpose.msra.mxu0 0.0
    %4690 = vmatprep.subr.mxu0 0.0
    %4691 = vmatpush1.xpose.msra.mxu0 0.0
    %4692 = vmatprep.subr.mxu0 0.0
    %4693 = vmatpush1.xpose.msra.mxu0 0.0
    %4694 = vmatprep.subr.mxu0 0.0
    %4695 = vmatpush1.xpose.msra.mxu0 0.0
    %4696 = vmatprep.subr.mxu0 0.0
    %4697 = vmatpush1.xpose.msra.mxu0 0.0
    %4698 = vmatprep.subr.mxu0 0.0
    %4699 = vmatpush1.xpose.msra.mxu0 0.0
    %4700 = vmatprep.subr.mxu0 0.0
    %4701 = vmatpush1.xpose.msra.mxu0 0.0
    %4702 = vmatprep.subr.mxu0 0.0
    %4703 = vmatpush1.xpose.msra.mxu0 0.0
    %4704 = vmatprep.subr.mxu0 0.0
    %4705 = vmatpush1.xpose.msra.mxu0 0.0
    %4706 = vmatprep.subr.mxu0 0.0
    %4707 = vmatpush1.xpose.msra.mxu0 0.0
    %4708 = vmatprep.subr.mxu0 0.0
    %4709 = vmatpush1.xpose.msra.mxu0 0.0
    %4710 = vmatprep.subr.mxu0 0.0
    %4711 = vmatpush1.xpose.msra.mxu0 0.0
    %4712 = vmatprep.subr.mxu0 0.0
    %4713 = vmatpush1.xpose.msra.mxu0 0.0
    %4714 = vmatprep.subr.mxu0 0.0
    %4715 = vmatpush1.xpose.msra.mxu0 0.0
    %4716 = vmatprep.subr.mxu0 0.0
    %4717 = vmatpush1.xpose.msra.mxu0 0.0
    %4718 = vmatprep.subr.mxu0 0.0
    %4719 = vmatpush1.xpose.msra.mxu0 0.0
    %4720 = vmatprep.subr.mxu0 0.0
    %4721 = vmatpush1.xpose.msra.mxu0 0.0
    %4722 = vmatprep.subr.mxu0 0.0
    %4723 = vmatpush1.xpose.msra.mxu0 0.0
    %4724 = vmatprep.subr.mxu0 0.0
    %4725 = vmatpush1.xpose.msra.mxu0 0.0
    %4726 = vmatprep.subr.mxu0 0.0
    %4727 = vmatpush1.xpose.msra.mxu0 0.0
    %4728 = vmatprep.subr.mxu0 0.0
    %4729 = vmatpush1.xpose.msra.mxu0 0.0
    %4730 = vmatprep.subr.mxu0 0.0
    %4731 = vmatpush1.xpose.msra.mxu0 0.0
    %4732 = vmatprep.subr.mxu0 0.0
    %4733 = vmatpush1.xpose.msra.mxu0 0.0
    %4734 = vmatprep.subr.mxu0 0.0
    %4735 = vmatpush1.xpose.msra.mxu0 0.0
    %4736 = vmatprep.subr.mxu0 0.0
    %4737 = vmatpush1.xpose.msra.mxu0 0.0
    %4738 = vmatprep.subr.mxu0 0.0
    %4739 = vmatpush1.xpose.msra.mxu0 0.0
    %4740 = vmatprep.subr.mxu0 0.0
    %4741 = vmatpush1.xpose.msra.mxu0 0.0
    %4742 = vmatprep.subr.mxu0 0.0
    %4743 = vmatpush1.xpose.msra.mxu0 0.0
    %4744 = vmatprep.subr.mxu0 0.0
    %4745 = vmatpush1.xpose.msra.mxu0 0.0
    %4746 = vmatprep.mubr.f32.mxu0 0.0
    %4747 = vmatmul.mubr.f32.gmra.mrb[0].mxu0 %v4678
    %v4748 = vpop.f32.mrb[0].mxu0
    %v4749 = vadd.f32 0.0, %v4748
    %v4750 = vpop.f32.mrb[0].mxu0
    %4751 = vdwg.mxu0
    %v4752 = vmul.f32 %v4749, 0.25
    %v4753 = vadd.f32 %v4752, %v4511
    %v4754 = vsel %vm425, %v4753, -inf
    %4755 = vmax.xlane.f32.xlu0 %v4754
    %v4756 = vpop.xlane.xlu0 %4755
    %v4757 = vsub.f32 %v4753, %v4756
    %v4758 = vmul.f32 %v4757, 1.442695
    %v4759 = vpow.pop %v4758
    %v4760 = vsel %vm425, %v4759, 0.0
    %4761 = vadd.xlane.f32.xlu0 %v4760
    %v4762 = vpop.xlane.xlu0 %4761
    %v4763 = vrcp.pop %v4762
    %v4764 = vmul.f32 %v4759, %v4763
    %4766 = vrot.lane.b32.xlu0 %v4502, 112
    %v4767 = vpop.permute.xlu0 %4766
    %v4770 = vsel %vm425, %v4764, 0
    %4772 = vmatprep.subr.mxu0 0.0
    %4773 = vmatpush1.msra.mxu0 %v4767
    %4774 = vmatprep.subr.mxu0 0.0
    %4775 = vmatpush1.msra.mxu0 0.0
    %4776 = vmatprep.subr.mxu0 0.0
    %4777 = vmatpush1.msra.mxu0 0.0
    %4778 = vmatprep.subr.mxu0 0.0
    %4779 = vmatpush1.msra.mxu0 0.0
    %4780 = vmatprep.subr.mxu0 0.0
    %4781 = vmatpush1.msra.mxu0 0.0
    %4782 = vmatprep.subr.mxu0 0.0
    %4783 = vmatpush1.msra.mxu0 0.0
    %4784 = vmatprep.subr.mxu0 0.0
    %4785 = vmatpush1.msra.mxu0 0.0
    %4786 = vmatprep.subr.mxu0 0.0
    %4787 = vmatpush1.msra.mxu0 0.0
    %4788 = vmatprep.subr.mxu0 0.0
    %4789 = vmatpush1.msra.mxu0 0.0
    %4790 = vmatprep.subr.mxu0 0.0
    %4791 = vmatpush1.msra.mxu0 0.0
    %4792 = vmatprep.subr.mxu0 0.0
    %4793 = vmatpush1.msra.mxu0 0.0
    %4794 = vmatprep.subr.mxu0 0.0
    %4795 = vmatpush1.msra.mxu0 0.0
    %4796 = vmatprep.subr.mxu0 0.0
    %4797 = vmatpush1.msra.mxu0 0.0
    %4798 = vmatprep.subr.mxu0 0.0
    %4799 = vmatpush1.msra.mxu0 0.0
    %4800 = vmatprep.subr.mxu0 0.0
    %4801 = vmatpush1.msra.mxu0 0.0
    %4802 = vmatprep.subr.mxu0 0.0
    %4803 = vmatpush1.msra.mxu0 0.0
    %4804 = vmatprep.subr.mxu0 0.0
    %4805 = vmatpush1.msra.mxu0 0.0
    %4806 = vmatprep.subr.mxu0 0.0
    %4807 = vmatpush1.msra.mxu0 0.0
    %4808 = vmatprep.subr.mxu0 0.0
    %4809 = vmatpush1.msra.mxu0 0.0
    %4810 = vmatprep.subr.mxu0 0.0
    %4811 = vmatpush1.msra.mxu0 0.0
    %4812 = vmatprep.subr.mxu0 0.0
    %4813 = vmatpush1.msra.mxu0 0.0
    %4814 = vmatprep.subr.mxu0 0.0
    %4815 = vmatpush1.msra.mxu0 0.0
    %4816 = vmatprep.subr.mxu0 0.0
    %4817 = vmatpush1.msra.mxu0 0.0
    %4818 = vmatprep.subr.mxu0 0.0
    %4819 = vmatpush1.msra.mxu0 0.0
    %4820 = vmatprep.subr.mxu0 0.0
    %4821 = vmatpush1.msra.mxu0 0.0
    %4822 = vmatprep.subr.mxu0 0.0
    %4823 = vmatpush1.msra.mxu0 0.0
    %4824 = vmatprep.subr.mxu0 0.0
    %4825 = vmatpush1.msra.mxu0 0.0
    %4826 = vmatprep.subr.mxu0 0.0
    %4827 = vmatpush1.msra.mxu0 0.0
    %4828 = vmatprep.subr.mxu0 0.0
    %4829 = vmatpush1.msra.mxu0 0.0
    %4830 = vmatprep.subr.mxu0 0.0
    %4831 = vmatpush1.msra.mxu0 0.0
    %4832 = vmatprep.subr.mxu0 0.0
    %4833 = vmatpush1.msra.mxu0 0.0
    %4834 = vmatprep.subr.mxu0 0.0
    %4835 = vmatpush1.msra.mxu0 0.0
    %4836 = vmatprep.mubr.f32.mxu0 0.0
    %4837 = vmatmul.mubr.f32.gmra.mrb[0].mxu0 %v4770
    %v4838 = vpop.f32.mrb[0].mxu0
    %v4839 = vadd.f32 0.0, %v4838
    %v4840 = vpop.f32.mrb[0].mxu0
    %4841 = vdwg.mxu0
    %s4842 = scalar_lea.vmem %s9, 40
    %v4843 = vld [vmem:[%s4842] sm:$0xff]
    %4844 = vrot.lane.b32.xlu0 %v4326, 96
    %v4845 = vpop.permute.xlu0 %4844
    %4846 = vrot.lane.b32.xlu0 %v4414, 96
    %v4847 = vpop.permute.xlu0 %4846
    %v4848 = vsel %vm346, %v4845, 0
    %v4850 = vsel %vm346, %v4847, 0
    %4852 = vmatprep.subr.mxu0 0.0
    %4853 = vmatpush1.xpose.msra.mxu0 %v4850
    %4854 = vmatprep.subr.mxu0 0.0
    %4855 = vmatpush1.xpose.msra.mxu0 0.0
    %4856 = vmatprep.subr.mxu0 0.0
    %4857 = vmatpush1.xpose.msra.mxu0 0.0
    %4858 = vmatprep.subr.mxu0 0.0
    %4859 = vmatpush1.xpose.msra.mxu0 0.0
    %4860 = vmatprep.subr.mxu0 0.0
    %4861 = vmatpush1.xpose.msra.mxu0 0.0
    %4862 = vmatprep.subr.mxu0 0.0
    %4863 = vmatpush1.xpose.msra.mxu0 0.0
    %4864 = vmatprep.subr.mxu0 0.0
    %4865 = vmatpush1.xpose.msra.mxu0 0.0
    %4866 = vmatprep.subr.mxu0 0.0
    %4867 = vmatpush1.xpose.msra.mxu0 0.0
    %4868 = vmatprep.subr.mxu0 0.0
    %4869 = vmatpush1.xpose.msra.mxu0 0.0
    %4870 = vmatprep.subr.mxu0 0.0
    %4871 = vmatpush1.xpose.msra.mxu0 0.0
    %4872 = vmatprep.subr.mxu0 0.0
    %4873 = vmatpush1.xpose.msra.mxu0 0.0
    %4874 = vmatprep.subr.mxu0 0.0
    %4875 = vmatpush1.xpose.msra.mxu0 0.0
    %4876 = vmatprep.subr.mxu0 0.0
    %4877 = vmatpush1.xpose.msra.mxu0 0.0
    %4878 = vmatprep.subr.mxu0 0.0
    %4879 = vmatpush1.xpose.msra.mxu0 0.0
    %4880 = vmatprep.subr.mxu0 0.0
    %4881 = vmatpush1.xpose.msra.mxu0 0.0
    %4882 = vmatprep.subr.mxu0 0.0
    %4883 = vmatpush1.xpose.msra.mxu0 0.0
    %4884 = vmatprep.subr.mxu0 0.0
    %4885 = vmatpush1.xpose.msra.mxu0 0.0
    %4886 = vmatprep.subr.mxu0 0.0
    %4887 = vmatpush1.xpose.msra.mxu0 0.0
    %4888 = vmatprep.subr.mxu0 0.0
    %4889 = vmatpush1.xpose.msra.mxu0 0.0
    %4890 = vmatprep.subr.mxu0 0.0
    %4891 = vmatpush1.xpose.msra.mxu0 0.0
    %4892 = vmatprep.subr.mxu0 0.0
    %4893 = vmatpush1.xpose.msra.mxu0 0.0
    %4894 = vmatprep.subr.mxu0 0.0
    %4895 = vmatpush1.xpose.msra.mxu0 0.0
    %4896 = vmatprep.subr.mxu0 0.0
    %4897 = vmatpush1.xpose.msra.mxu0 0.0
    %4898 = vmatprep.subr.mxu0 0.0
    %4899 = vmatpush1.xpose.msra.mxu0 0.0
    %4900 = vmatprep.subr.mxu0 0.0
    %4901 = vmatpush1.xpose.msra.mxu0 0.0
    %4902 = vmatprep.subr.mxu0 0.0
    %4903 = vmatpush1.xpose.msra.mxu0 0.0
    %4904 = vmatprep.subr.mxu0 0.0
    %4905 = vmatpush1.xpose.msra.mxu0 0.0
    %4906 = vmatprep.subr.mxu0 0.0
    %4907 = vmatpush1.xpose.msra.mxu0 0.0
    %4908 = vmatprep.subr.mxu0 0.0
    %4909 = vmatpush1.xpose.msra.mxu0 0.0
    %4910 = vmatprep.subr.mxu0 0.0
    %4911 = vmatpush1.xpose.msra.mxu0 0.0
    %4912 = vmatprep.subr.mxu0 0.0
    %4913 = vmatpush1.xpose.msra.mxu0 0.0
    %4914 = vmatprep.subr.mxu0 0.0
    %4915 = vmatpush1.xpose.msra.mxu0 0.0
    %4916 = vmatprep.mubr.f32.mxu0 0.0
    %4917 = vmatmul.mubr.f32.gmra.mrb[0].mxu0 %v4848
    %v4918 = vpop.f32.mrb[0].mxu0
    %v4919 = vadd.f32 0.0, %v4918
    %v4920 = vpop.f32.mrb[0].mxu0
    %4921 = vdwg.mxu0
    %v4922 = vmul.f32 %v4919, 0.25
    %v4923 = vadd.f32 %v4922, %v4843
    %v4924 = vsel %vm425, %v4923, -inf
    %4925 = vmax.xlane.f32.xlu0 %v4924
    %v4926 = vpop.xlane.xlu0 %4925
    %v4927 = vsub.f32 %v4923, %v4926
    %v4928 = vmul.f32 %v4927, 1.442695
    %v4929 = vpow.pop %v4928
    %v4930 = vsel %vm425, %v4929, 0.0
    %4931 = vadd.xlane.f32.xlu0 %v4930
    %v4932 = vpop.xlane.xlu0 %4931
    %v4933 = vrcp.pop %v4932
    %v4934 = vmul.f32 %v4929, %v4933
    %4935 = vrot.lane.b32.xlu0 %v4502, 96
    %v4936 = vpop.permute.xlu0 %4935
    %v4939 = vsel %vm425, %v4934, 0
    %4941 = vmatprep.subr.mxu0 0.0
    %4942 = vmatpush1.msra.mxu0 %v4936
    %4943 = vmatprep.subr.mxu0 0.0
    %4944 = vmatpush1.msra.mxu0 0.0
    %4945 = vmatprep.subr.mxu0 0.0
    %4946 = vmatpush1.msra.mxu0 0.0
    %4947 = vmatprep.subr.mxu0 0.0
    %4948 = vmatpush1.msra.mxu0 0.0
    %4949 = vmatprep.subr.mxu0 0.0
    %4950 = vmatpush1.msra.mxu0 0.0
    %4951 = vmatprep.subr.mxu0 0.0
    %4952 = vmatpush1.msra.mxu0 0.0
    %4953 = vmatprep.subr.mxu0 0.0
    %4954 = vmatpush1.msra.mxu0 0.0
    %4955 = vmatprep.subr.mxu0 0.0
    %4956 = vmatpush1.msra.mxu0 0.0
    %4957 = vmatprep.subr.mxu0 0.0
    %4958 = vmatpush1.msra.mxu0 0.0
    %4959 = vmatprep.subr.mxu0 0.0
    %4960 = vmatpush1.msra.mxu0 0.0
    %4961 = vmatprep.subr.mxu0 0.0
    %4962 = vmatpush1.msra.mxu0 0.0
    %4963 = vmatprep.subr.mxu0 0.0
    %4964 = vmatpush1.msra.mxu0 0.0
    %4965 = vmatprep.subr.mxu0 0.0
    %4966 = vmatpush1.msra.mxu0 0.0
    %4967 = vmatprep.subr.mxu0 0.0
    %4968 = vmatpush1.msra.mxu0 0.0
    %4969 = vmatprep.subr.mxu0 0.0
    %4970 = vmatpush1.msra.mxu0 0.0
    %4971 = vmatprep.subr.mxu0 0.0
    %4972 = vmatpush1.msra.mxu0 0.0
    %4973 = vmatprep.subr.mxu0 0.0
    %4974 = vmatpush1.msra.mxu0 0.0
    %4975 = vmatprep.subr.mxu0 0.0
    %4976 = vmatpush1.msra.mxu0 0.0
    %4977 = vmatprep.subr.mxu0 0.0
    %4978 = vmatpush1.msra.mxu0 0.0
    %4979 = vmatprep.subr.mxu0 0.0
    %4980 = vmatpush1.msra.mxu0 0.0
    %4981 = vmatprep.subr.mxu0 0.0
    %4982 = vmatpush1.msra.mxu0 0.0
    %4983 = vmatprep.subr.mxu0 0.0
    %4984 = vmatpush1.msra.mxu0 0.0
    %4985 = vmatprep.subr.mxu0 0.0
    %4986 = vmatpush1.msra.mxu0 0.0
    %4987 = vmatprep.subr.mxu0 0.0
    %4988 = vmatpush1.msra.mxu0 0.0
    %4989 = vmatprep.subr.mxu0 0.0
    %4990 = vmatpush1.msra.mxu0 0.0
    %4991 = vmatprep.subr.mxu0 0.0
    %4992 = vmatpush1.msra.mxu0 0.0
    %4993 = vmatprep.subr.mxu0 0.0
    %4994 = vmatpush1.msra.mxu0 0.0
    %4995 = vmatprep.subr.mxu0 0.0
    %4996 = vmatpush1.msra.mxu0 0.0
    %4997 = vmatprep.subr.mxu0 0.0
    %4998 = vmatpush1.msra.mxu0 0.0
    %4999 = vmatprep.subr.mxu0 0.0
    %5000 = vmatpush1.msra.mxu0 0.0
    %5001 = vmatprep.subr.mxu0 0.0
    %5002 = vmatpush1.msra.mxu0 0.0
    %5003 = vmatprep.subr.mxu0 0.0
    %5004 = vmatpush1.msra.mxu0 0.0
    %5005 = vmatprep.mubr.f32.mxu0 0.0
    %5006 = vmatmul.mubr.f32.gmra.mrb[0].mxu0 %v4939
    %v5007 = vpop.f32.mrb[0].mxu0
    %v5008 = vadd.f32 0.0, %v5007
    %v5009 = vpop.f32.mrb[0].mxu0
    %5010 = vdwg.mxu0
    %5011 = vrot.lane.b32.xlu0 %v4326, 80
    %v5012 = vpop.permute.xlu0 %5011
    %5013 = vrot.lane.b32.xlu0 %v4414, 80
    %v5014 = vpop.permute.xlu0 %5013
    %v5015 = vsel %vm346, %v5012, 0
    %v5017 = vsel %vm346, %v5014, 0
    %5019 = vmatprep.subr.mxu0 0.0
    %5020 = vmatpush1.xpose.msra.mxu0 %v5017
    %5021 = vmatprep.subr.mxu0 0.0
    %5022 = vmatpush1.xpose.msra.mxu0 0.0
    %5023 = vmatprep.subr.mxu0 0.0
    %5024 = vmatpush1.xpose.msra.mxu0 0.0
    %5025 = vmatprep.subr.mxu0 0.0
    %5026 = vmatpush1.xpose.msra.mxu0 0.0
    %5027 = vmatprep.subr.mxu0 0.0
    %5028 = vmatpush1.xpose.msra.mxu0 0.0
    %5029 = vmatprep.subr.mxu0 0.0
    %5030 = vmatpush1.xpose.msra.mxu0 0.0
    %5031 = vmatprep.subr.mxu0 0.0
    %5032 = vmatpush1.xpose.msra.mxu0 0.0
    %5033 = vmatprep.subr.mxu0 0.0
    %5034 = vmatpush1.xpose.msra.mxu0 0.0
    %5035 = vmatprep.subr.mxu0 0.0
    %5036 = vmatpush1.xpose.msra.mxu0 0.0
    %5037 = vmatprep.subr.mxu0 0.0
    %5038 = vmatpush1.xpose.msra.mxu0 0.0
    %5039 = vmatprep.subr.mxu0 0.0
    %5040 = vmatpush1.xpose.msra.mxu0 0.0
    %5041 = vmatprep.subr.mxu0 0.0
    %5042 = vmatpush1.xpose.msra.mxu0 0.0
    %5043 = vmatprep.subr.mxu0 0.0
    %5044 = vmatpush1.xpose.msra.mxu0 0.0
    %5045 = vmatprep.subr.mxu0 0.0
    %5046 = vmatpush1.xpose.msra.mxu0 0.0
    %5047 = vmatprep.subr.mxu0 0.0
    %5048 = vmatpush1.xpose.msra.mxu0 0.0
    %5049 = vmatprep.subr.mxu0 0.0
    %5050 = vmatpush1.xpose.msra.mxu0 0.0
    %5051 = vmatprep.subr.mxu0 0.0
    %5052 = vmatpush1.xpose.msra.mxu0 0.0
    %5053 = vmatprep.subr.mxu0 0.0
    %5054 = vmatpush1.xpose.msra.mxu0 0.0
    %5055 = vmatprep.subr.mxu0 0.0
    %5056 = vmatpush1.xpose.msra.mxu0 0.0
    %5057 = vmatprep.subr.mxu0 0.0
    %5058 = vmatpush1.xpose.msra.mxu0 0.0
    %5059 = vmatprep.subr.mxu0 0.0
    %5060 = vmatpush1.xpose.msra.mxu0 0.0
    %5061 = vmatprep.subr.mxu0 0.0
    %5062 = vmatpush1.xpose.msra.mxu0 0.0
    %5063 = vmatprep.subr.mxu0 0.0
    %5064 = vmatpush1.xpose.msra.mxu0 0.0
    %5065 = vmatprep.subr.mxu0 0.0
    %5066 = vmatpush1.xpose.msra.mxu0 0.0
    %5067 = vmatprep.subr.mxu0 0.0
    %5068 = vmatpush1.xpose.msra.mxu0 0.0
    %5069 = vmatprep.subr.mxu0 0.0
    %5070 = vmatpush1.xpose.msra.mxu0 0.0
    %5071 = vmatprep.subr.mxu0 0.0
    %5072 = vmatpush1.xpose.msra.mxu0 0.0
    %5073 = vmatprep.subr.mxu0 0.0
    %5074 = vmatpush1.xpose.msra.mxu0 0.0
    %5075 = vmatprep.subr.mxu0 0.0
    %5076 = vmatpush1.xpose.msra.mxu0 0.0
    %5077 = vmatprep.subr.mxu0 0.0
    %5078 = vmatpush1.xpose.msra.mxu0 0.0
    %5079 = vmatprep.subr.mxu0 0.0
    %5080 = vmatpush1.xpose.msra.mxu0 0.0
    %5081 = vmatprep.subr.mxu0 0.0
    %5082 = vmatpush1.xpose.msra.mxu0 0.0
    %5083 = vmatprep.mubr.f32.mxu0 0.0
    %5084 = vmatmul.mubr.f32.gmra.mrb[0].mxu0 %v5015
    %v5085 = vpop.f32.mrb[0].mxu0
    %v5086 = vadd.f32 0.0, %v5085
    %v5087 = vpop.f32.mrb[0].mxu0
    %5088 = vdwg.mxu0
    %v5089 = vmul.f32 %v5086, 0.25
    %v5090 = vadd.f32 %v5089, %v4843
    %v5091 = vsel %vm425, %v5090, -inf
    %5092 = vmax.xlane.f32.xlu0 %v5091
    %v5093 = vpop.xlane.xlu0 %5092
    %v5094 = vsub.f32 %v5090, %v5093
    %v5095 = vmul.f32 %v5094, 1.442695
    %v5096 = vpow.pop %v5095
    %v5097 = vsel %vm425, %v5096, 0.0
    %5098 = vadd.xlane.f32.xlu0 %v5097
    %v5099 = vpop.xlane.xlu0 %5098
    %v5100 = vrcp.pop %v5099
    %v5101 = vmul.f32 %v5096, %v5100
    %5102 = vrot.lane.b32.xlu0 %v4502, 80
    %v5103 = vpop.permute.xlu0 %5102
    %v5106 = vsel %vm425, %v5101, 0
    %5108 = vmatprep.subr.mxu0 0.0
    %5109 = vmatpush1.msra.mxu0 %v5103
    %5110 = vmatprep.subr.mxu0 0.0
    %5111 = vmatpush1.msra.mxu0 0.0
    %5112 = vmatprep.subr.mxu0 0.0
    %5113 = vmatpush1.msra.mxu0 0.0
    %5114 = vmatprep.subr.mxu0 0.0
    %5115 = vmatpush1.msra.mxu0 0.0
    %5116 = vmatprep.subr.mxu0 0.0
    %5117 = vmatpush1.msra.mxu0 0.0
    %5118 = vmatprep.subr.mxu0 0.0
    %5119 = vmatpush1.msra.mxu0 0.0
    %5120 = vmatprep.subr.mxu0 0.0
    %5121 = vmatpush1.msra.mxu0 0.0
    %5122 = vmatprep.subr.mxu0 0.0
    %5123 = vmatpush1.msra.mxu0 0.0
    %5124 = vmatprep.subr.mxu0 0.0
    %5125 = vmatpush1.msra.mxu0 0.0
    %5126 = vmatprep.subr.mxu0 0.0
    %5127 = vmatpush1.msra.mxu0 0.0
    %5128 = vmatprep.subr.mxu0 0.0
    %5129 = vmatpush1.msra.mxu0 0.0
    %5130 = vmatprep.subr.mxu0 0.0
    %5131 = vmatpush1.msra.mxu0 0.0
    %5132 = vmatprep.subr.mxu0 0.0
    %5133 = vmatpush1.msra.mxu0 0.0
    %5134 = vmatprep.subr.mxu0 0.0
    %5135 = vmatpush1.msra.mxu0 0.0
    %5136 = vmatprep.subr.mxu0 0.0
    %5137 = vmatpush1.msra.mxu0 0.0
    %5138 = vmatprep.subr.mxu0 0.0
    %5139 = vmatpush1.msra.mxu0 0.0
    %5140 = vmatprep.subr.mxu0 0.0
    %5141 = vmatpush1.msra.mxu0 0.0
    %5142 = vmatprep.subr.mxu0 0.0
    %5143 = vmatpush1.msra.mxu0 0.0
    %5144 = vmatprep.subr.mxu0 0.0
    %5145 = vmatpush1.msra.mxu0 0.0
    %5146 = vmatprep.subr.mxu0 0.0
    %5147 = vmatpush1.msra.mxu0 0.0
    %5148 = vmatprep.subr.mxu0 0.0
    %5149 = vmatpush1.msra.mxu0 0.0
    %5150 = vmatprep.subr.mxu0 0.0
    %5151 = vmatpush1.msra.mxu0 0.0
    %5152 = vmatprep.subr.mxu0 0.0
    %5153 = vmatpush1.msra.mxu0 0.0
    %5154 = vmatprep.subr.mxu0 0.0
    %5155 = vmatpush1.msra.mxu0 0.0
    %5156 = vmatprep.subr.mxu0 0.0
    %5157 = vmatpush1.msra.mxu0 0.0
    %5158 = vmatprep.subr.mxu0 0.0
    %5159 = vmatpush1.msra.mxu0 0.0
    %5160 = vmatprep.subr.mxu0 0.0
    %5161 = vmatpush1.msra.mxu0 0.0
    %5162 = vmatprep.subr.mxu0 0.0
    %5163 = vmatpush1.msra.mxu0 0.0
    %5164 = vmatprep.subr.mxu0 0.0
    %5165 = vmatpush1.msra.mxu0 0.0
    %5166 = vmatprep.subr.mxu0 0.0
    %5167 = vmatpush1.msra.mxu0 0.0
    %5168 = vmatprep.subr.mxu0 0.0
    %5169 = vmatpush1.msra.mxu0 0.0
    %5170 = vmatprep.subr.mxu0 0.0
    %5171 = vmatpush1.msra.mxu0 0.0
    %5172 = vmatprep.mubr.f32.mxu0 0.0
    %5173 = vmatmul.mubr.f32.gmra.mrb[0].mxu0 %v5106
    %v5174 = vpop.f32.mrb[0].mxu0
    %v5175 = vadd.f32 0.0, %v5174
    %v5176 = vpop.f32.mrb[0].mxu0
    %5177 = vdwg.mxu0
    %s5178 = scalar_lea.vmem %s9, 48
    %v5179 = vld [vmem:[%s5178] sm:$0xff]
    %5180 = vrot.lane.b32.xlu0 %v4326, 64
    %v5181 = vpop.permute.xlu0 %5180
    %5182 = vrot.lane.b32.xlu0 %v4414, 64
    %v5183 = vpop.permute.xlu0 %5182
    %v5184 = vsel %vm346, %v5181, 0
    %v5186 = vsel %vm346, %v5183, 0
    %5188 = vmatprep.subr.mxu0 0.0
    %5189 = vmatpush1.xpose.msra.mxu0 %v5186
    %5190 = vmatprep.subr.mxu0 0.0
    %5191 = vmatpush1.xpose.msra.mxu0 0.0
    %5192 = vmatprep.subr.mxu0 0.0
    %5193 = vmatpush1.xpose.msra.mxu0 0.0
    %5194 = vmatprep.subr.mxu0 0.0
    %5195 = vmatpush1.xpose.msra.mxu0 0.0
    %5196 = vmatprep.subr.mxu0 0.0
    %5197 = vmatpush1.xpose.msra.mxu0 0.0
    %5198 = vmatprep.subr.mxu0 0.0
    %5199 = vmatpush1.xpose.msra.mxu0 0.0
    %5200 = vmatprep.subr.mxu0 0.0
    %5201 = vmatpush1.xpose.msra.mxu0 0.0
    %5202 = vmatprep.subr.mxu0 0.0
    %5203 = vmatpush1.xpose.msra.mxu0 0.0
    %5204 = vmatprep.subr.mxu0 0.0
    %5205 = vmatpush1.xpose.msra.mxu0 0.0
    %5206 = vmatprep.subr.mxu0 0.0
    %5207 = vmatpush1.xpose.msra.mxu0 0.0
    %5208 = vmatprep.subr.mxu0 0.0
    %5209 = vmatpush1.xpose.msra.mxu0 0.0
    %5210 = vmatprep.subr.mxu0 0.0
    %5211 = vmatpush1.xpose.msra.mxu0 0.0
    %5212 = vmatprep.subr.mxu0 0.0
    %5213 = vmatpush1.xpose.msra.mxu0 0.0
    %5214 = vmatprep.subr.mxu0 0.0
    %5215 = vmatpush1.xpose.msra.mxu0 0.0
    %5216 = vmatprep.subr.mxu0 0.0
    %5217 = vmatpush1.xpose.msra.mxu0 0.0
    %5218 = vmatprep.subr.mxu0 0.0
    %5219 = vmatpush1.xpose.msra.mxu0 0.0
    %5220 = vmatprep.subr.mxu0 0.0
    %5221 = vmatpush1.xpose.msra.mxu0 0.0
    %5222 = vmatprep.subr.mxu0 0.0
    %5223 = vmatpush1.xpose.msra.mxu0 0.0
    %5224 = vmatprep.subr.mxu0 0.0
    %5225 = vmatpush1.xpose.msra.mxu0 0.0
    %5226 = vmatprep.subr.mxu0 0.0
    %5227 = vmatpush1.xpose.msra.mxu0 0.0
    %5228 = vmatprep.subr.mxu0 0.0
    %5229 = vmatpush1.xpose.msra.mxu0 0.0
    %5230 = vmatprep.subr.mxu0 0.0
    %5231 = vmatpush1.xpose.msra.mxu0 0.0
    %5232 = vmatprep.subr.mxu0 0.0
    %5233 = vmatpush1.xpose.msra.mxu0 0.0
    %5234 = vmatprep.subr.mxu0 0.0
    %5235 = vmatpush1.xpose.msra.mxu0 0.0
    %5236 = vmatprep.subr.mxu0 0.0
    %5237 = vmatpush1.xpose.msra.mxu0 0.0
    %5238 = vmatprep.subr.mxu0 0.0
    %5239 = vmatpush1.xpose.msra.mxu0 0.0
    %5240 = vmatprep.subr.mxu0 0.0
    %5241 = vmatpush1.xpose.msra.mxu0 0.0
    %5242 = vmatprep.subr.mxu0 0.0
    %5243 = vmatpush1.xpose.msra.mxu0 0.0
    %5244 = vmatprep.subr.mxu0 0.0
    %5245 = vmatpush1.xpose.msra.mxu0 0.0
    %5246 = vmatprep.subr.mxu0 0.0
    %5247 = vmatpush1.xpose.msra.mxu0 0.0
    %5248 = vmatprep.subr.mxu0 0.0
    %5249 = vmatpush1.xpose.msra.mxu0 0.0
    %5250 = vmatprep.subr.mxu0 0.0
    %5251 = vmatpush1.xpose.msra.mxu0 0.0
    %5252 = vmatprep.mubr.f32.mxu0 0.0
    %5253 = vmatmul.mubr.f32.gmra.mrb[0].mxu0 %v5184
    %v5254 = vpop.f32.mrb[0].mxu0
    %v5255 = vadd.f32 0.0, %v5254
    %v5256 = vpop.f32.mrb[0].mxu0
    %5257 = vdwg.mxu0
    %v5258 = vmul.f32 %v5255, 0.25
    %v5259 = vadd.f32 %v5258, %v5179
    %v5260 = vsel %vm425, %v5259, -inf
    %5261 = vmax.xlane.f32.xlu0 %v5260
    %v5262 = vpop.xlane.xlu0 %5261
    %v5263 = vsub.f32 %v5259, %v5262
    %v5264 = vmul.f32 %v5263, 1.442695
    %v5265 = vpow.pop %v5264
    %v5266 = vsel %vm425, %v5265, 0.0
    %5267 = vadd.xlane.f32.xlu0 %v5266
    %v5268 = vpop.xlane.xlu0 %5267
    %v5269 = vrcp.pop %v5268
    %v5270 = vmul.f32 %v5265, %v5269
    %5271 = vrot.lane.b32.xlu0 %v4502, 64
    %v5272 = vpop.permute.xlu0 %5271
    %v5275 = vsel %vm425, %v5270, 0
    %5277 = vmatprep.subr.mxu0 0.0
    %5278 = vmatpush1.msra.mxu0 %v5272
    %5279 = vmatprep.subr.mxu0 0.0
    %5280 = vmatpush1.msra.mxu0 0.0
    %5281 = vmatprep.subr.mxu0 0.0
    %5282 = vmatpush1.msra.mxu0 0.0
    %5283 = vmatprep.subr.mxu0 0.0
    %5284 = vmatpush1.msra.mxu0 0.0
    %5285 = vmatprep.subr.mxu0 0.0
    %5286 = vmatpush1.msra.mxu0 0.0
    %5287 = vmatprep.subr.mxu0 0.0
    %5288 = vmatpush1.msra.mxu0 0.0
    %5289 = vmatprep.subr.mxu0 0.0
    %5290 = vmatpush1.msra.mxu0 0.0
    %5291 = vmatprep.subr.mxu0 0.0
    %5292 = vmatpush1.msra.mxu0 0.0
    %5293 = vmatprep.subr.mxu0 0.0
    %5294 = vmatpush1.msra.mxu0 0.0
    %5295 = vmatprep.subr.mxu0 0.0
    %5296 = vmatpush1.msra.mxu0 0.0
    %5297 = vmatprep.subr.mxu0 0.0
    %5298 = vmatpush1.msra.mxu0 0.0
    %5299 = vmatprep.subr.mxu0 0.0
    %5300 = vmatpush1.msra.mxu0 0.0
    %5301 = vmatprep.subr.mxu0 0.0
    %5302 = vmatpush1.msra.mxu0 0.0
    %5303 = vmatprep.subr.mxu0 0.0
    %5304 = vmatpush1.msra.mxu0 0.0
    %5305 = vmatprep.subr.mxu0 0.0
    %5306 = vmatpush1.msra.mxu0 0.0
    %5307 = vmatprep.subr.mxu0 0.0
    %5308 = vmatpush1.msra.mxu0 0.0
    %5309 = vmatprep.subr.mxu0 0.0
    %5310 = vmatpush1.msra.mxu0 0.0
    %5311 = vmatprep.subr.mxu0 0.0
    %5312 = vmatpush1.msra.mxu0 0.0
    %5313 = vmatprep.subr.mxu0 0.0
    %5314 = vmatpush1.msra.mxu0 0.0
    %5315 = vmatprep.subr.mxu0 0.0
    %5316 = vmatpush1.msra.mxu0 0.0
    %5317 = vmatprep.subr.mxu0 0.0
    %5318 = vmatpush1.msra.mxu0 0.0
    %5319 = vmatprep.subr.mxu0 0.0
    %5320 = vmatpush1.msra.mxu0 0.0
    %5321 = vmatprep.subr.mxu0 0.0
    %5322 = vmatpush1.msra.mxu0 0.0
    %5323 = vmatprep.subr.mxu0 0.0
    %5324 = vmatpush1.msra.mxu0 0.0
    %5325 = vmatprep.subr.mxu0 0.0
    %5326 = vmatpush1.msra.mxu0 0.0
    %5327 = vmatprep.subr.mxu0 0.0
    %5328 = vmatpush1.msra.mxu0 0.0
    %5329 = vmatprep.subr.mxu0 0.0
    %5330 = vmatpush1.msra.mxu0 0.0
    %5331 = vmatprep.subr.mxu0 0.0
    %5332 = vmatpush1.msra.mxu0 0.0
    %5333 = vmatprep.subr.mxu0 0.0
    %5334 = vmatpush1.msra.mxu0 0.0
    %5335 = vmatprep.subr.mxu0 0.0
    %5336 = vmatpush1.msra.mxu0 0.0
    %5337 = vmatprep.subr.mxu0 0.0
    %5338 = vmatpush1.msra.mxu0 0.0
    %5339 = vmatprep.subr.mxu0 0.0
    %5340 = vmatpush1.msra.mxu0 0.0
    %5341 = vmatprep.mubr.f32.mxu0 0.0
    %5342 = vmatmul.mubr.f32.gmra.mrb[0].mxu0 %v5275
    %v5343 = vpop.f32.mrb[0].mxu0
    %v5344 = vadd.f32 0.0, %v5343
    %v5345 = vpop.f32.mrb[0].mxu0
    %5346 = vdwg.mxu0
    %5347 = vrot.lane.b32.xlu0 %v4326, 48
    %v5348 = vpop.permute.xlu0 %5347
    %5349 = vrot.lane.b32.xlu0 %v4414, 48
    %v5350 = vpop.permute.xlu0 %5349
    %v5351 = vsel %vm346, %v5348, 0
    %v5353 = vsel %vm346, %v5350, 0
    %5355 = vmatprep.subr.mxu0 0.0
    %5356 = vmatpush1.xpose.msra.mxu0 %v5353
    %5357 = vmatprep.subr.mxu0 0.0
    %5358 = vmatpush1.xpose.msra.mxu0 0.0
    %5359 = vmatprep.subr.mxu0 0.0
    %5360 = vmatpush1.xpose.msra.mxu0 0.0
    %5361 = vmatprep.subr.mxu0 0.0
    %5362 = vmatpush1.xpose.msra.mxu0 0.0
    %5363 = vmatprep.subr.mxu0 0.0
    %5364 = vmatpush1.xpose.msra.mxu0 0.0
    %5365 = vmatprep.subr.mxu0 0.0
    %5366 = vmatpush1.xpose.msra.mxu0 0.0
    %5367 = vmatprep.subr.mxu0 0.0
    %5368 = vmatpush1.xpose.msra.mxu0 0.0
    %5369 = vmatprep.subr.mxu0 0.0
    %5370 = vmatpush1.xpose.msra.mxu0 0.0
    %5371 = vmatprep.subr.mxu0 0.0
    %5372 = vmatpush1.xpose.msra.mxu0 0.0
    %5373 = vmatprep.subr.mxu0 0.0
    %5374 = vmatpush1.xpose.msra.mxu0 0.0
    %5375 = vmatprep.subr.mxu0 0.0
    %5376 = vmatpush1.xpose.msra.mxu0 0.0
    %5377 = vmatprep.subr.mxu0 0.0
    %5378 = vmatpush1.xpose.msra.mxu0 0.0
    %5379 = vmatprep.subr.mxu0 0.0
    %5380 = vmatpush1.xpose.msra.mxu0 0.0
    %5381 = vmatprep.subr.mxu0 0.0
    %5382 = vmatpush1.xpose.msra.mxu0 0.0
    %5383 = vmatprep.subr.mxu0 0.0
    %5384 = vmatpush1.xpose.msra.mxu0 0.0
    %5385 = vmatprep.subr.mxu0 0.0
    %5386 = vmatpush1.xpose.msra.mxu0 0.0
    %5387 = vmatprep.subr.mxu0 0.0
    %5388 = vmatpush1.xpose.msra.mxu0 0.0
    %5389 = vmatprep.subr.mxu0 0.0
    %5390 = vmatpush1.xpose.msra.mxu0 0.0
    %5391 = vmatprep.subr.mxu0 0.0
    %5392 = vmatpush1.xpose.msra.mxu0 0.0
    %5393 = vmatprep.subr.mxu0 0.0
    %5394 = vmatpush1.xpose.msra.mxu0 0.0
    %5395 = vmatprep.subr.mxu0 0.0
    %5396 = vmatpush1.xpose.msra.mxu0 0.0
    %5397 = vmatprep.subr.mxu0 0.0
    %5398 = vmatpush1.xpose.msra.mxu0 0.0
    %5399 = vmatprep.subr.mxu0 0.0
    %5400 = vmatpush1.xpose.msra.mxu0 0.0
    %5401 = vmatprep.subr.mxu0 0.0
    %5402 = vmatpush1.xpose.msra.mxu0 0.0
    %5403 = vmatprep.subr.mxu0 0.0
    %5404 = vmatpush1.xpose.msra.mxu0 0.0
    %5405 = vmatprep.subr.mxu0 0.0
    %5406 = vmatpush1.xpose.msra.mxu0 0.0
    %5407 = vmatprep.subr.mxu0 0.0
    %5408 = vmatpush1.xpose.msra.mxu0 0.0
    %5409 = vmatprep.subr.mxu0 0.0
    %5410 = vmatpush1.xpose.msra.mxu0 0.0
    %5411 = vmatprep.subr.mxu0 0.0
    %5412 = vmatpush1.xpose.msra.mxu0 0.0
    %5413 = vmatprep.subr.mxu0 0.0
    %5414 = vmatpush1.xpose.msra.mxu0 0.0
    %5415 = vmatprep.subr.mxu0 0.0
    %5416 = vmatpush1.xpose.msra.mxu0 0.0
    %5417 = vmatprep.subr.mxu0 0.0
    %5418 = vmatpush1.xpose.msra.mxu0 0.0
    %5419 = vmatprep.mubr.f32.mxu0 0.0
    %5420 = vmatmul.mubr.f32.gmra.mrb[0].mxu0 %v5351
    %v5421 = vpop.f32.mrb[0].mxu0
    %v5422 = vadd.f32 0.0, %v5421
    %v5423 = vpop.f32.mrb[0].mxu0
    %5424 = vdwg.mxu0
    %v5425 = vmul.f32 %v5422, 0.25
    %v5426 = vadd.f32 %v5425, %v5179
    %v5427 = vsel %vm425, %v5426, -inf
    %5428 = vmax.xlane.f32.xlu0 %v5427
    %v5429 = vpop.xlane.xlu0 %5428
    %v5430 = vsub.f32 %v5426, %v5429
    %v5431 = vmul.f32 %v5430, 1.442695
    %v5432 = vpow.pop %v5431
    %v5433 = vsel %vm425, %v5432, 0.0
    %5434 = vadd.xlane.f32.xlu0 %v5433
    %v5435 = vpop.xlane.xlu0 %5434
    %v5436 = vrcp.pop %v5435
    %v5437 = vmul.f32 %v5432, %v5436
    %5438 = vrot.lane.b32.xlu0 %v4502, 48
    %v5439 = vpop.permute.xlu0 %5438
    %v5442 = vsel %vm425, %v5437, 0
    %5444 = vmatprep.subr.mxu0 0.0
    %5445 = vmatpush1.msra.mxu0 %v5439
    %5446 = vmatprep.subr.mxu0 0.0
    %5447 = vmatpush1.msra.mxu0 0.0
    %5448 = vmatprep.subr.mxu0 0.0
    %5449 = vmatpush1.msra.mxu0 0.0
    %5450 = vmatprep.subr.mxu0 0.0
    %5451 = vmatpush1.msra.mxu0 0.0
    %5452 = vmatprep.subr.mxu0 0.0
    %5453 = vmatpush1.msra.mxu0 0.0
    %5454 = vmatprep.subr.mxu0 0.0
    %5455 = vmatpush1.msra.mxu0 0.0
    %5456 = vmatprep.subr.mxu0 0.0
    %5457 = vmatpush1.msra.mxu0 0.0
    %5458 = vmatprep.subr.mxu0 0.0
    %5459 = vmatpush1.msra.mxu0 0.0
    %5460 = vmatprep.subr.mxu0 0.0
    %5461 = vmatpush1.msra.mxu0 0.0
    %5462 = vmatprep.subr.mxu0 0.0
    %5463 = vmatpush1.msra.mxu0 0.0
    %5464 = vmatprep.subr.mxu0 0.0
    %5465 = vmatpush1.msra.mxu0 0.0
    %5466 = vmatprep.subr.mxu0 0.0
    %5467 = vmatpush1.msra.mxu0 0.0
    %5468 = vmatprep.subr.mxu0 0.0
    %5469 = vmatpush1.msra.mxu0 0.0
    %5470 = vmatprep.subr.mxu0 0.0
    %5471 = vmatpush1.msra.mxu0 0.0
    %5472 = vmatprep.subr.mxu0 0.0
    %5473 = vmatpush1.msra.mxu0 0.0
    %5474 = vmatprep.subr.mxu0 0.0
    %5475 = vmatpush1.msra.mxu0 0.0
    %5476 = vmatprep.subr.mxu0 0.0
    %5477 = vmatpush1.msra.mxu0 0.0
    %5478 = vmatprep.subr.mxu0 0.0
    %5479 = vmatpush1.msra.mxu0 0.0
    %5480 = vmatprep.subr.mxu0 0.0
    %5481 = vmatpush1.msra.mxu0 0.0
    %5482 = vmatprep.subr.mxu0 0.0
    %5483 = vmatpush1.msra.mxu0 0.0
    %5484 = vmatprep.subr.mxu0 0.0
    %5485 = vmatpush1.msra.mxu0 0.0
    %5486 = vmatprep.subr.mxu0 0.0
    %5487 = vmatpush1.msra.mxu0 0.0
    %5488 = vmatprep.subr.mxu0 0.0
    %5489 = vmatpush1.msra.mxu0 0.0
    %5490 = vmatprep.subr.mxu0 0.0
    %5491 = vmatpush1.msra.mxu0 0.0
    %5492 = vmatprep.subr.mxu0 0.0
    %5493 = vmatpush1.msra.mxu0 0.0
    %5494 = vmatprep.subr.mxu0 0.0
    %5495 = vmatpush1.msra.mxu0 0.0
    %5496 = vmatprep.subr.mxu0 0.0
    %5497 = vmatpush1.msra.mxu0 0.0
    %5498 = vmatprep.subr.mxu0 0.0
    %5499 = vmatpush1.msra.mxu0 0.0
    %5500 = vmatprep.subr.mxu0 0.0
    %5501 = vmatpush1.msra.mxu0 0.0
    %5502 = vmatprep.subr.mxu0 0.0
    %5503 = vmatpush1.msra.mxu0 0.0
    %5504 = vmatprep.subr.mxu0 0.0
    %5505 = vmatpush1.msra.mxu0 0.0
    %5506 = vmatprep.subr.mxu0 0.0
    %5507 = vmatpush1.msra.mxu0 0.0
    %5508 = vmatprep.mubr.f32.mxu0 0.0
    %5509 = vmatmul.mubr.f32.gmra.mrb[0].mxu0 %v5442
    %v5510 = vpop.f32.mrb[0].mxu0
    %v5511 = vadd.f32 0.0, %v5510
    %v5512 = vpop.f32.mrb[0].mxu0
    %5513 = vdwg.mxu0
    %s5514 = scalar_lea.vmem %s9, 56
    %v5515 = vld [vmem:[%s5514] sm:$0xff]
    %5516 = vrot.lane.b32.xlu0 %v4326, 32
    %v5517 = vpop.permute.xlu0 %5516
    %5518 = vrot.lane.b32.xlu0 %v4414, 32
    %v5519 = vpop.permute.xlu0 %5518
    %v5520 = vsel %vm346, %v5517, 0
    %v5522 = vsel %vm346, %v5519, 0
    %5524 = vmatprep.subr.mxu0 0.0
    %5525 = vmatpush1.xpose.msra.mxu0 %v5522
    %5526 = vmatprep.subr.mxu0 0.0
    %5527 = vmatpush1.xpose.msra.mxu0 0.0
    %5528 = vmatprep.subr.mxu0 0.0
    %5529 = vmatpush1.xpose.msra.mxu0 0.0
    %5530 = vmatprep.subr.mxu0 0.0
    %5531 = vmatpush1.xpose.msra.mxu0 0.0
    %5532 = vmatprep.subr.mxu0 0.0
    %5533 = vmatpush1.xpose.msra.mxu0 0.0
    %5534 = vmatprep.subr.mxu0 0.0
    %5535 = vmatpush1.xpose.msra.mxu0 0.0
    %5536 = vmatprep.subr.mxu0 0.0
    %5537 = vmatpush1.xpose.msra.mxu0 0.0
    %5538 = vmatprep.subr.mxu0 0.0
    %5539 = vmatpush1.xpose.msra.mxu0 0.0
    %5540 = vmatprep.subr.mxu0 0.0
    %5541 = vmatpush1.xpose.msra.mxu0 0.0
    %5542 = vmatprep.subr.mxu0 0.0
    %5543 = vmatpush1.xpose.msra.mxu0 0.0
    %5544 = vmatprep.subr.mxu0 0.0
    %5545 = vmatpush1.xpose.msra.mxu0 0.0
    %5546 = vmatprep.subr.mxu0 0.0
    %5547 = vmatpush1.xpose.msra.mxu0 0.0
    %5548 = vmatprep.subr.mxu0 0.0
    %5549 = vmatpush1.xpose.msra.mxu0 0.0
    %5550 = vmatprep.subr.mxu0 0.0
    %5551 = vmatpush1.xpose.msra.mxu0 0.0
    %5552 = vmatprep.subr.mxu0 0.0
    %5553 = vmatpush1.xpose.msra.mxu0 0.0
    %5554 = vmatprep.subr.mxu0 0.0
    %5555 = vmatpush1.xpose.msra.mxu0 0.0
    %5556 = vmatprep.subr.mxu0 0.0
    %5557 = vmatpush1.xpose.msra.mxu0 0.0
    %5558 = vmatprep.subr.mxu0 0.0
    %5559 = vmatpush1.xpose.msra.mxu0 0.0
    %5560 = vmatprep.subr.mxu0 0.0
    %5561 = vmatpush1.xpose.msra.mxu0 0.0
    %5562 = vmatprep.subr.mxu0 0.0
    %5563 = vmatpush1.xpose.msra.mxu0 0.0
    %5564 = vmatprep.subr.mxu0 0.0
    %5565 = vmatpush1.xpose.msra.mxu0 0.0
    %5566 = vmatprep.subr.mxu0 0.0
    %5567 = vmatpush1.xpose.msra.mxu0 0.0
    %5568 = vmatprep.subr.mxu0 0.0
    %5569 = vmatpush1.xpose.msra.mxu0 0.0
    %5570 = vmatprep.subr.mxu0 0.0
    %5571 = vmatpush1.xpose.msra.mxu0 0.0
    %5572 = vmatprep.subr.mxu0 0.0
    %5573 = vmatpush1.xpose.msra.mxu0 0.0
    %5574 = vmatprep.subr.mxu0 0.0
    %5575 = vmatpush1.xpose.msra.mxu0 0.0
    %5576 = vmatprep.subr.mxu0 0.0
    %5577 = vmatpush1.xpose.msra.mxu0 0.0
    %5578 = vmatprep.subr.mxu0 0.0
    %5579 = vmatpush1.xpose.msra.mxu0 0.0
    %5580 = vmatprep.subr.mxu0 0.0
    %5581 = vmatpush1.xpose.msra.mxu0 0.0
    %5582 = vmatprep.subr.mxu0 0.0
    %5583 = vmatpush1.xpose.msra.mxu0 0.0
    %5584 = vmatprep.subr.mxu0 0.0
    %5585 = vmatpush1.xpose.msra.mxu0 0.0
    %5586 = vmatprep.subr.mxu0 0.0
    %5587 = vmatpush1.xpose.msra.mxu0 0.0
    %5588 = vmatprep.mubr.f32.mxu0 0.0
    %5589 = vmatmul.mubr.f32.gmra.mrb[0].mxu0 %v5520
    %v5590 = vpop.f32.mrb[0].mxu0
    %v5591 = vadd.f32 0.0, %v5590
    %v5592 = vpop.f32.mrb[0].mxu0
    %5593 = vdwg.mxu0
    %v5594 = vmul.f32 %v5591, 0.25
    %v5595 = vadd.f32 %v5594, %v5515
    %v5596 = vsel %vm425, %v5595, -inf
    %5597 = vmax.xlane.f32.xlu0 %v5596
    %v5598 = vpop.xlane.xlu0 %5597
    %v5599 = vsub.f32 %v5595, %v5598
    %v5600 = vmul.f32 %v5599, 1.442695
    %v5601 = vpow.pop %v5600
    %v5602 = vsel %vm425, %v5601, 0.0
    %5603 = vadd.xlane.f32.xlu0 %v5602
    %v5604 = vpop.xlane.xlu0 %5603
    %v5605 = vrcp.pop %v5604
    %v5606 = vmul.f32 %v5601, %v5605
    %5607 = vrot.lane.b32.xlu0 %v4502, 32
    %v5608 = vpop.permute.xlu0 %5607
    %v5611 = vsel %vm425, %v5606, 0
    %5613 = vmatprep.subr.mxu0 0.0
    %5614 = vmatpush1.msra.mxu0 %v5608
    %5615 = vmatprep.subr.mxu0 0.0
    %5616 = vmatpush1.msra.mxu0 0.0
    %5617 = vmatprep.subr.mxu0 0.0
    %5618 = vmatpush1.msra.mxu0 0.0
    %5619 = vmatprep.subr.mxu0 0.0
    %5620 = vmatpush1.msra.mxu0 0.0
    %5621 = vmatprep.subr.mxu0 0.0
    %5622 = vmatpush1.msra.mxu0 0.0
    %5623 = vmatprep.subr.mxu0 0.0
    %5624 = vmatpush1.msra.mxu0 0.0
    %5625 = vmatprep.subr.mxu0 0.0
    %5626 = vmatpush1.msra.mxu0 0.0
    %5627 = vmatprep.subr.mxu0 0.0
    %5628 = vmatpush1.msra.mxu0 0.0
    %5629 = vmatprep.subr.mxu0 0.0
    %5630 = vmatpush1.msra.mxu0 0.0
    %5631 = vmatprep.subr.mxu0 0.0
    %5632 = vmatpush1.msra.mxu0 0.0
    %5633 = vmatprep.subr.mxu0 0.0
    %5634 = vmatpush1.msra.mxu0 0.0
    %5635 = vmatprep.subr.mxu0 0.0
    %5636 = vmatpush1.msra.mxu0 0.0
    %5637 = vmatprep.subr.mxu0 0.0
    %5638 = vmatpush1.msra.mxu0 0.0
    %5639 = vmatprep.subr.mxu0 0.0
    %5640 = vmatpush1.msra.mxu0 0.0
    %5641 = vmatprep.subr.mxu0 0.0
    %5642 = vmatpush1.msra.mxu0 0.0
    %5643 = vmatprep.subr.mxu0 0.0
    %5644 = vmatpush1.msra.mxu0 0.0
    %5645 = vmatprep.subr.mxu0 0.0
    %5646 = vmatpush1.msra.mxu0 0.0
    %5647 = vmatprep.subr.mxu0 0.0
    %5648 = vmatpush1.msra.mxu0 0.0
    %5649 = vmatprep.subr.mxu0 0.0
    %5650 = vmatpush1.msra.mxu0 0.0
    %5651 = vmatprep.subr.mxu0 0.0
    %5652 = vmatpush1.msra.mxu0 0.0
    %5653 = vmatprep.subr.mxu0 0.0
    %5654 = vmatpush1.msra.mxu0 0.0
    %5655 = vmatprep.subr.mxu0 0.0
    %5656 = vmatpush1.msra.mxu0 0.0
    %5657 = vmatprep.subr.mxu0 0.0
    %5658 = vmatpush1.msra.mxu0 0.0
    %5659 = vmatprep.subr.mxu0 0.0
    %5660 = vmatpush1.msra.mxu0 0.0
    %5661 = vmatprep.subr.mxu0 0.0
    %5662 = vmatpush1.msra.mxu0 0.0
    %5663 = vmatprep.subr.mxu0 0.0
    %5664 = vmatpush1.msra.mxu0 0.0
    %5665 = vmatprep.subr.mxu0 0.0
    %5666 = vmatpush1.msra.mxu0 0.0
    %5667 = vmatprep.subr.mxu0 0.0
    %5668 = vmatpush1.msra.mxu0 0.0
    %5669 = vmatprep.subr.mxu0 0.0
    %5670 = vmatpush1.msra.mxu0 0.0
    %5671 = vmatprep.subr.mxu0 0.0
    %5672 = vmatpush1.msra.mxu0 0.0
    %5673 = vmatprep.subr.mxu0 0.0
    %5674 = vmatpush1.msra.mxu0 0.0
    %5675 = vmatprep.subr.mxu0 0.0
    %5676 = vmatpush1.msra.mxu0 0.0
    %5677 = vmatprep.mubr.f32.mxu0 0.0
    %5678 = vmatmul.mubr.f32.gmra.mrb[0].mxu0 %v5611
    %v5679 = vpop.f32.mrb[0].mxu0
    %v5680 = vadd.f32 0.0, %v5679
    %v5681 = vpop.f32.mrb[0].mxu0
    %5682 = vdwg.mxu0
    %5683 = vrot.lane.b32.xlu0 %v4326, 16
    %v5684 = vpop.permute.xlu0 %5683
    %5685 = vrot.lane.b32.xlu0 %v4414, 16
    %v5686 = vpop.permute.xlu0 %5685
    %v5687 = vsel %vm346, %v5684, 0
    %v5689 = vsel %vm346, %v5686, 0
    %5691 = vmatprep.subr.mxu0 0.0
    %5692 = vmatpush1.xpose.msra.mxu0 %v5689
    %5693 = vmatprep.subr.mxu0 0.0
    %5694 = vmatpush1.xpose.msra.mxu0 0.0
    %5695 = vmatprep.subr.mxu0 0.0
    %5696 = vmatpush1.xpose.msra.mxu0 0.0
    %5697 = vmatprep.subr.mxu0 0.0
    %5698 = vmatpush1.xpose.msra.mxu0 0.0
    %5699 = vmatprep.subr.mxu0 0.0
    %5700 = vmatpush1.xpose.msra.mxu0 0.0
    %5701 = vmatprep.subr.mxu0 0.0
    %5702 = vmatpush1.xpose.msra.mxu0 0.0
    %5703 = vmatprep.subr.mxu0 0.0
    %5704 = vmatpush1.xpose.msra.mxu0 0.0
    %5705 = vmatprep.subr.mxu0 0.0
    %5706 = vmatpush1.xpose.msra.mxu0 0.0
    %5707 = vmatprep.subr.mxu0 0.0
    %5708 = vmatpush1.xpose.msra.mxu0 0.0
    %5709 = vmatprep.subr.mxu0 0.0
    %5710 = vmatpush1.xpose.msra.mxu0 0.0
    %5711 = vmatprep.subr.mxu0 0.0
    %5712 = vmatpush1.xpose.msra.mxu0 0.0
    %5713 = vmatprep.subr.mxu0 0.0
    %5714 = vmatpush1.xpose.msra.mxu0 0.0
    %5715 = vmatprep.subr.mxu0 0.0
    %5716 = vmatpush1.xpose.msra.mxu0 0.0
    %5717 = vmatprep.subr.mxu0 0.0
    %5718 = vmatpush1.xpose.msra.mxu0 0.0
    %5719 = vmatprep.subr.mxu0 0.0
    %5720 = vmatpush1.xpose.msra.mxu0 0.0
    %5721 = vmatprep.subr.mxu0 0.0
    %5722 = vmatpush1.xpose.msra.mxu0 0.0
    %5723 = vmatprep.subr.mxu0 0.0
    %5724 = vmatpush1.xpose.msra.mxu0 0.0
    %5725 = vmatprep.subr.mxu0 0.0
    %5726 = vmatpush1.xpose.msra.mxu0 0.0
    %5727 = vmatprep.subr.mxu0 0.0
    %5728 = vmatpush1.xpose.msra.mxu0 0.0
    %5729 = vmatprep.subr.mxu0 0.0
    %5730 = vmatpush1.xpose.msra.mxu0 0.0
    %5731 = vmatprep.subr.mxu0 0.0
    %5732 = vmatpush1.xpose.msra.mxu0 0.0
    %5733 = vmatprep.subr.mxu0 0.0
    %5734 = vmatpush1.xpose.msra.mxu0 0.0
    %5735 = vmatprep.subr.mxu0 0.0
    %5736 = vmatpush1.xpose.msra.mxu0 0.0
    %5737 = vmatprep.subr.mxu0 0.0
    %5738 = vmatpush1.xpose.msra.mxu0 0.0
    %5739 = vmatprep.subr.mxu0 0.0
    %5740 = vmatpush1.xpose.msra.mxu0 0.0
    %5741 = vmatprep.subr.mxu0 0.0
    %5742 = vmatpush1.xpose.msra.mxu0 0.0
    %5743 = vmatprep.subr.mxu0 0.0
    %5744 = vmatpush1.xpose.msra.mxu0 0.0
    %5745 = vmatprep.subr.mxu0 0.0
    %5746 = vmatpush1.xpose.msra.mxu0 0.0
    %5747 = vmatprep.subr.mxu0 0.0
    %5748 = vmatpush1.xpose.msra.mxu0 0.0
    %5749 = vmatprep.subr.mxu0 0.0
    %5750 = vmatpush1.xpose.msra.mxu0 0.0
    %5751 = vmatprep.subr.mxu0 0.0
    %5752 = vmatpush1.xpose.msra.mxu0 0.0
    %5753 = vmatprep.subr.mxu0 0.0
    %5754 = vmatpush1.xpose.msra.mxu0 0.0
    %5755 = vmatprep.mubr.f32.mxu0 0.0
    %5756 = vmatmul.mubr.f32.gmra.mrb[0].mxu0 %v5687
    %v5757 = vpop.f32.mrb[0].mxu0
    %v5758 = vadd.f32 0.0, %v5757
    %v5759 = vpop.f32.mrb[0].mxu0
    %5760 = vdwg.mxu0
    %v5761 = vmul.f32 %v5758, 0.25
    %v5762 = vadd.f32 %v5761, %v5515
    %v5763 = vsel %vm425, %v5762, -inf
    %5764 = vmax.xlane.f32.xlu0 %v5763
    %v5765 = vpop.xlane.xlu0 %5764
    %v5766 = vsub.f32 %v5762, %v5765
    %v5767 = vmul.f32 %v5766, 1.442695
    %v5768 = vpow.pop %v5767
    %v5769 = vsel %vm425, %v5768, 0.0
    %5770 = vadd.xlane.f32.xlu0 %v5769
    %v5771 = vpop.xlane.xlu0 %5770
    %v5772 = vrcp.pop %v5771
    %v5773 = vmul.f32 %v5768, %v5772
    %5774 = vrot.lane.b32.xlu0 %v4502, 16
    %v5775 = vpop.permute.xlu0 %5774
    %v5778 = vsel %vm425, %v5773, 0
    %5780 = vmatprep.subr.mxu0 0.0
    %5781 = vmatpush1.msra.mxu0 %v5775
    %5782 = vmatprep.subr.mxu0 0.0
    %5783 = vmatpush1.msra.mxu0 0.0
    %5784 = vmatprep.subr.mxu0 0.0
    %5785 = vmatpush1.msra.mxu0 0.0
    %5786 = vmatprep.subr.mxu0 0.0
    %5787 = vmatpush1.msra.mxu0 0.0
    %5788 = vmatprep.subr.mxu0 0.0
    %5789 = vmatpush1.msra.mxu0 0.0
    %5790 = vmatprep.subr.mxu0 0.0
    %5791 = vmatpush1.msra.mxu0 0.0
    %5792 = vmatprep.subr.mxu0 0.0
    %5793 = vmatpush1.msra.mxu0 0.0
    %5794 = vmatprep.subr.mxu0 0.0
    %5795 = vmatpush1.msra.mxu0 0.0
    %5796 = vmatprep.subr.mxu0 0.0
    %5797 = vmatpush1.msra.mxu0 0.0
    %5798 = vmatprep.subr.mxu0 0.0
    %5799 = vmatpush1.msra.mxu0 0.0
    %5800 = vmatprep.subr.mxu0 0.0
    %5801 = vmatpush1.msra.mxu0 0.0
    %5802 = vmatprep.subr.mxu0 0.0
    %5803 = vmatpush1.msra.mxu0 0.0
    %5804 = vmatprep.subr.mxu0 0.0
    %5805 = vmatpush1.msra.mxu0 0.0
    %5806 = vmatprep.subr.mxu0 0.0
    %5807 = vmatpush1.msra.mxu0 0.0
    %5808 = vmatprep.subr.mxu0 0.0
    %5809 = vmatpush1.msra.mxu0 0.0
    %5810 = vmatprep.subr.mxu0 0.0
    %5811 = vmatpush1.msra.mxu0 0.0
    %5812 = vmatprep.subr.mxu0 0.0
    %5813 = vmatpush1.msra.mxu0 0.0
    %5814 = vmatprep.subr.mxu0 0.0
    %5815 = vmatpush1.msra.mxu0 0.0
    %5816 = vmatprep.subr.mxu0 0.0
    %5817 = vmatpush1.msra.mxu0 0.0
    %5818 = vmatprep.subr.mxu0 0.0
    %5819 = vmatpush1.msra.mxu0 0.0
    %5820 = vmatprep.subr.mxu0 0.0
    %5821 = vmatpush1.msra.mxu0 0.0
    %5822 = vmatprep.subr.mxu0 0.0
    %5823 = vmatpush1.msra.mxu0 0.0
    %5824 = vmatprep.subr.mxu0 0.0
    %5825 = vmatpush1.msra.mxu0 0.0
    %5826 = vmatprep.subr.mxu0 0.0
    %5827 = vmatpush1.msra.mxu0 0.0
    %5828 = vmatprep.subr.mxu0 0.0
    %5829 = vmatpush1.msra.mxu0 0.0
    %5830 = vmatprep.subr.mxu0 0.0
    %5831 = vmatpush1.msra.mxu0 0.0
    %5832 = vmatprep.subr.mxu0 0.0
    %5833 = vmatpush1.msra.mxu0 0.0
    %5834 = vmatprep.subr.mxu0 0.0
    %5835 = vmatpush1.msra.mxu0 0.0
    %5836 = vmatprep.subr.mxu0 0.0
    %5837 = vmatpush1.msra.mxu0 0.0
    %5838 = vmatprep.subr.mxu0 0.0
    %5839 = vmatpush1.msra.mxu0 0.0
    %5840 = vmatprep.subr.mxu0 0.0
    %5841 = vmatpush1.msra.mxu0 0.0
    %5842 = vmatprep.subr.mxu0 0.0
    %5843 = vmatpush1.msra.mxu0 0.0
    %5844 = vmatprep.mubr.f32.mxu0 0.0
    %5845 = vmatmul.mubr.f32.gmra.mrb[0].mxu0 %v5778
    %v5846 = vpop.f32.mrb[0].mxu0
    %v5847 = vadd.f32 0.0, %v5846
    %v5848 = vpop.f32.mrb[0].mxu0
    %5849 = vdwg.mxu0
    %5851 = vrot.lane.b32.xlu0 %v4839, 16
    %v5852 = vpop.permute.xlu0 %5851
    %5855 = vrot.lane.b32.xlu0 %v5008, 32
    %v5856 = vpop.permute.xlu0 %5855
    %5859 = vrot.lane.b32.xlu0 %v5175, 48
    %v5860 = vpop.permute.xlu0 %5859
    %5863 = vrot.lane.b32.xlu0 %v5344, 64
    %v5864 = vpop.permute.xlu0 %5863
    %5867 = vrot.lane.b32.xlu0 %v5511, 80
    %v5868 = vpop.permute.xlu0 %5867
    %5871 = vrot.lane.b32.xlu0 %v5680, 96
    %v5872 = vpop.permute.xlu0 %5871
    %5875 = vrot.lane.b32.xlu0 %v5847, 112
    %v5876 = vpop.permute.xlu0 %5875
    %v5878 = vsel %vm346, %v4671, %v5852
    %v5879 = vsel %vm91, %v5878, %v5856
    %v5880 = vsel %vm1716, %v5879, %v5860
    %v5881 = vsel %vm1718, %v5880, %v5864
    %v5882 = vsel %vm1720, %v5881, %v5868
    %v5883 = vsel %vm1722, %v5882, %v5872
    %v5884 = vsel %vm1724, %v5883, %v5876
    %v5886 = vsel %vm346, %v4331, 0
    %v5889 = vsel %vm346, %v4419, 0
    %5891 = vmatprep.subr.mxu0 0.0
    %5892 = vmatpush1.xpose.msra.mxu0 %v5889
    %5893 = vmatprep.subr.mxu0 0.0
    %5894 = vmatpush1.xpose.msra.mxu0 0.0
    %5895 = vmatprep.subr.mxu0 0.0
    %5896 = vmatpush1.xpose.msra.mxu0 0.0
    %5897 = vmatprep.subr.mxu0 0.0
    %5898 = vmatpush1.xpose.msra.mxu0 0.0
    %5899 = vmatprep.subr.mxu0 0.0
    %5900 = vmatpush1.xpose.msra.mxu0 0.0
    %5901 = vmatprep.subr.mxu0 0.0
    %5902 = vmatpush1.xpose.msra.mxu0 0.0
    %5903 = vmatprep.subr.mxu0 0.0
    %5904 = vmatpush1.xpose.msra.mxu0 0.0
    %5905 = vmatprep.subr.mxu0 0.0
    %5906 = vmatpush1.xpose.msra.mxu0 0.0
    %5907 = vmatprep.subr.mxu0 0.0
    %5908 = vmatpush1.xpose.msra.mxu0 0.0
    %5909 = vmatprep.subr.mxu0 0.0
    %5910 = vmatpush1.xpose.msra.mxu0 0.0
    %5911 = vmatprep.subr.mxu0 0.0
    %5912 = vmatpush1.xpose.msra.mxu0 0.0
    %5913 = vmatprep.subr.mxu0 0.0
    %5914 = vmatpush1.xpose.msra.mxu0 0.0
    %5915 = vmatprep.subr.mxu0 0.0
    %5916 = vmatpush1.xpose.msra.mxu0 0.0
    %5917 = vmatprep.subr.mxu0 0.0
    %5918 = vmatpush1.xpose.msra.mxu0 0.0
    %5919 = vmatprep.subr.mxu0 0.0
    %5920 = vmatpush1.xpose.msra.mxu0 0.0
    %5921 = vmatprep.subr.mxu0 0.0
    %5922 = vmatpush1.xpose.msra.mxu0 0.0
    %5923 = vmatprep.subr.mxu0 0.0
    %5924 = vmatpush1.xpose.msra.mxu0 0.0
    %5925 = vmatprep.subr.mxu0 0.0
    %5926 = vmatpush1.xpose.msra.mxu0 0.0
    %5927 = vmatprep.subr.mxu0 0.0
    %5928 = vmatpush1.xpose.msra.mxu0 0.0
    %5929 = vmatprep.subr.mxu0 0.0
    %5930 = vmatpush1.xpose.msra.mxu0 0.0
    %5931 = vmatprep.subr.mxu0 0.0
    %5932 = vmatpush1.xpose.msra.mxu0 0.0
    %5933 = vmatprep.subr.mxu0 0.0
    %5934 = vmatpush1.xpose.msra.mxu0 0.0
    %5935 = vmatprep.subr.mxu0 0.0
    %5936 = vmatpush1.xpose.msra.mxu0 0.0
    %5937 = vmatprep.subr.mxu0 0.0
    %5938 = vmatpush1.xpose.msra.mxu0 0.0
    %5939 = vmatprep.subr.mxu0 0.0
    %5940 = vmatpush1.xpose.msra.mxu0 0.0
    %5941 = vmatprep.subr.mxu0 0.0
    %5942 = vmatpush1.xpose.msra.mxu0 0.0
    %5943 = vmatprep.subr.mxu0 0.0
    %5944 = vmatpush1.xpose.msra.mxu0 0.0
    %5945 = vmatprep.subr.mxu0 0.0
    %5946 = vmatpush1.xpose.msra.mxu0 0.0
    %5947 = vmatprep.subr.mxu0 0.0
    %5948 = vmatpush1.xpose.msra.mxu0 0.0
    %5949 = vmatprep.subr.mxu0 0.0
    %5950 = vmatpush1.xpose.msra.mxu0 0.0
    %5951 = vmatprep.subr.mxu0 0.0
    %5952 = vmatpush1.xpose.msra.mxu0 0.0
    %5953 = vmatprep.subr.mxu0 0.0
    %5954 = vmatpush1.xpose.msra.mxu0 0.0
    %5955 = vmatprep.mubr.f32.mxu0 0.0
    %5956 = vmatmul.mubr.f32.gmra.mrb[0].mxu0 %v5886
    %v5957 = vpop.f32.mrb[0].mxu0
    %v5958 = vadd.f32 0.0, %v5957
    %v5959 = vpop.f32.mrb[0].mxu0
    %5960 = vdwg.mxu0
    %v5961 = vmul.f32 %v5958, 0.25
    %v5962 = vadd.f32 %v5961, %v4511
    %v5963 = vsel %vm425, %v5962, -inf
    %5964 = vmax.xlane.f32.xlu0 %v5963
    %v5965 = vpop.xlane.xlu0 %5964
    %v5966 = vsub.f32 %v5962, %v5965
    %v5967 = vmul.f32 %v5966, 1.442695
    %v5968 = vpow.pop %v5967
    %v5969 = vsel %vm425, %v5968, 0.0
    %5970 = vadd.xlane.f32.xlu0 %v5969
    %v5971 = vpop.xlane.xlu0 %5970
    %v5972 = vrcp.pop %v5971
    %v5973 = vmul.f32 %v5968, %v5972
    %v5975 = vsel %vm425, %v5973, 0
    %5977 = vmatprep.subr.mxu0 0.0
    %5978 = vmatpush1.msra.mxu0 %v4507
    %5979 = vmatprep.subr.mxu0 0.0
    %5980 = vmatpush1.msra.mxu0 0.0
    %5981 = vmatprep.subr.mxu0 0.0
    %5982 = vmatpush1.msra.mxu0 0.0
    %5983 = vmatprep.subr.mxu0 0.0
    %5984 = vmatpush1.msra.mxu0 0.0
    %5985 = vmatprep.subr.mxu0 0.0
    %5986 = vmatpush1.msra.mxu0 0.0
    %5987 = vmatprep.subr.mxu0 0.0
    %5988 = vmatpush1.msra.mxu0 0.0
    %5989 = vmatprep.subr.mxu0 0.0
    %5990 = vmatpush1.msra.mxu0 0.0
    %5991 = vmatprep.subr.mxu0 0.0
    %5992 = vmatpush1.msra.mxu0 0.0
    %5993 = vmatprep.subr.mxu0 0.0
    %5994 = vmatpush1.msra.mxu0 0.0
    %5995 = vmatprep.subr.mxu0 0.0
    %5996 = vmatpush1.msra.mxu0 0.0
    %5997 = vmatprep.subr.mxu0 0.0
    %5998 = vmatpush1.msra.mxu0 0.0
    %5999 = vmatprep.subr.mxu0 0.0
    %6000 = vmatpush1.msra.mxu0 0.0
    %6001 = vmatprep.subr.mxu0 0.0
    %6002 = vmatpush1.msra.mxu0 0.0
    %6003 = vmatprep.subr.mxu0 0.0
    %6004 = vmatpush1.msra.mxu0 0.0
    %6005 = vmatprep.subr.mxu0 0.0
    %6006 = vmatpush1.msra.mxu0 0.0
    %6007 = vmatprep.subr.mxu0 0.0
    %6008 = vmatpush1.msra.mxu0 0.0
    %6009 = vmatprep.subr.mxu0 0.0
    %6010 = vmatpush1.msra.mxu0 0.0
    %6011 = vmatprep.subr.mxu0 0.0
    %6012 = vmatpush1.msra.mxu0 0.0
    %6013 = vmatprep.subr.mxu0 0.0
    %6014 = vmatpush1.msra.mxu0 0.0
    %6015 = vmatprep.subr.mxu0 0.0
    %6016 = vmatpush1.msra.mxu0 0.0
    %6017 = vmatprep.subr.mxu0 0.0
    %6018 = vmatpush1.msra.mxu0 0.0
    %6019 = vmatprep.subr.mxu0 0.0
    %6020 = vmatpush1.msra.mxu0 0.0
    %6021 = vmatprep.subr.mxu0 0.0
    %6022 = vmatpush1.msra.mxu0 0.0
    %6023 = vmatprep.subr.mxu0 0.0
    %6024 = vmatpush1.msra.mxu0 0.0
    %6025 = vmatprep.subr.mxu0 0.0
    %6026 = vmatpush1.msra.mxu0 0.0
    %6027 = vmatprep.subr.mxu0 0.0
    %6028 = vmatpush1.msra.mxu0 0.0
    %6029 = vmatprep.subr.mxu0 0.0
    %6030 = vmatpush1.msra.mxu0 0.0
    %6031 = vmatprep.subr.mxu0 0.0
    %6032 = vmatpush1.msra.mxu0 0.0
    %6033 = vmatprep.subr.mxu0 0.0
    %6034 = vmatpush1.msra.mxu0 0.0
    %6035 = vmatprep.subr.mxu0 0.0
    %6036 = vmatpush1.msra.mxu0 0.0
    %6037 = vmatprep.subr.mxu0 0.0
    %6038 = vmatpush1.msra.mxu0 0.0
    %6039 = vmatprep.subr.mxu0 0.0
    %6040 = vmatpush1.msra.mxu0 0.0
    %6041 = vmatprep.mubr.f32.mxu0 0.0
    %6042 = vmatmul.mubr.f32.gmra.mrb[0].mxu0 %v5975
    %v6043 = vpop.f32.mrb[0].mxu0
    %v6044 = vadd.f32 0.0, %v6043
    %v6045 = vpop.f32.mrb[0].mxu0
    %6046 = vdwg.mxu0
    %6047 = vrot.lane.b32.xlu0 %v4331, 112
    %v6048 = vpop.permute.xlu0 %6047
    %6049 = vrot.lane.b32.xlu0 %v4419, 112
    %v6050 = vpop.permute.xlu0 %6049
    %v6051 = vsel %vm346, %v6048, 0
    %v6053 = vsel %vm346, %v6050, 0
    %6055 = vmatprep.subr.mxu0 0.0
    %6056 = vmatpush1.xpose.msra.mxu0 %v6053
    %6057 = vmatprep.subr.mxu0 0.0
    %6058 = vmatpush1.xpose.msra.mxu0 0.0
    %6059 = vmatprep.subr.mxu0 0.0
    %6060 = vmatpush1.xpose.msra.mxu0 0.0
    %6061 = vmatprep.subr.mxu0 0.0
    %6062 = vmatpush1.xpose.msra.mxu0 0.0
    %6063 = vmatprep.subr.mxu0 0.0
    %6064 = vmatpush1.xpose.msra.mxu0 0.0
    %6065 = vmatprep.subr.mxu0 0.0
    %6066 = vmatpush1.xpose.msra.mxu0 0.0
    %6067 = vmatprep.subr.mxu0 0.0
    %6068 = vmatpush1.xpose.msra.mxu0 0.0
    %6069 = vmatprep.subr.mxu0 0.0
    %6070 = vmatpush1.xpose.msra.mxu0 0.0
    %6071 = vmatprep.subr.mxu0 0.0
    %6072 = vmatpush1.xpose.msra.mxu0 0.0
    %6073 = vmatprep.subr.mxu0 0.0
    %6074 = vmatpush1.xpose.msra.mxu0 0.0
    %6075 = vmatprep.subr.mxu0 0.0
    %6076 = vmatpush1.xpose.msra.mxu0 0.0
    %6077 = vmatprep.subr.mxu0 0.0
    %6078 = vmatpush1.xpose.msra.mxu0 0.0
    %6079 = vmatprep.subr.mxu0 0.0
    %6080 = vmatpush1.xpose.msra.mxu0 0.0
    %6081 = vmatprep.subr.mxu0 0.0
    %6082 = vmatpush1.xpose.msra.mxu0 0.0
    %6083 = vmatprep.subr.mxu0 0.0
    %6084 = vmatpush1.xpose.msra.mxu0 0.0
    %6085 = vmatprep.subr.mxu0 0.0
    %6086 = vmatpush1.xpose.msra.mxu0 0.0
    %6087 = vmatprep.subr.mxu0 0.0
    %6088 = vmatpush1.xpose.msra.mxu0 0.0
    %6089 = vmatprep.subr.mxu0 0.0
    %6090 = vmatpush1.xpose.msra.mxu0 0.0
    %6091 = vmatprep.subr.mxu0 0.0
    %6092 = vmatpush1.xpose.msra.mxu0 0.0
    %6093 = vmatprep.subr.mxu0 0.0
    %6094 = vmatpush1.xpose.msra.mxu0 0.0
    %6095 = vmatprep.subr.mxu0 0.0
    %6096 = vmatpush1.xpose.msra.mxu0 0.0
    %6097 = vmatprep.subr.mxu0 0.0
    %6098 = vmatpush1.xpose.msra.mxu0 0.0
    %6099 = vmatprep.subr.mxu0 0.0
    %6100 = vmatpush1.xpose.msra.mxu0 0.0
    %6101 = vmatprep.subr.mxu0 0.0
    %6102 = vmatpush1.xpose.msra.mxu0 0.0
    %6103 = vmatprep.subr.mxu0 0.0
    %6104 = vmatpush1.xpose.msra.mxu0 0.0
    %6105 = vmatprep.subr.mxu0 0.0
    %6106 = vmatpush1.xpose.msra.mxu0 0.0
    %6107 = vmatprep.subr.mxu0 0.0
    %6108 = vmatpush1.xpose.msra.mxu0 0.0
    %6109 = vmatprep.subr.mxu0 0.0
    %6110 = vmatpush1.xpose.msra.mxu0 0.0
    %6111 = vmatprep.subr.mxu0 0.0
    %6112 = vmatpush1.xpose.msra.mxu0 0.0
    %6113 = vmatprep.subr.mxu0 0.0
    %6114 = vmatpush1.xpose.msra.mxu0 0.0
    %6115 = vmatprep.subr.mxu0 0.0
    %6116 = vmatpush1.xpose.msra.mxu0 0.0
    %6117 = vmatprep.subr.mxu0 0.0
    %6118 = vmatpush1.xpose.msra.mxu0 0.0
    %6119 = vmatprep.mubr.f32.mxu0 0.0
    %6120 = vmatmul.mubr.f32.gmra.mrb[0].mxu0 %v6051
    %v6121 = vpop.f32.mrb[0].mxu0
    %v6122 = vadd.f32 0.0, %v6121
    %v6123 = vpop.f32.mrb[0].mxu0
    %6124 = vdwg.mxu0
    %v6125 = vmul.f32 %v6122, 0.25
    %v6126 = vadd.f32 %v6125, %v4511
    %v6127 = vsel %vm425, %v6126, -inf
    %6128 = vmax.xlane.f32.xlu0 %v6127
    %v6129 = vpop.xlane.xlu0 %6128
    %v6130 = vsub.f32 %v6126, %v6129
    %v6131 = vmul.f32 %v6130, 1.442695
    %v6132 = vpow.pop %v6131
    %v6133 = vsel %vm425, %v6132, 0.0
    %6134 = vadd.xlane.f32.xlu0 %v6133
    %v6135 = vpop.xlane.xlu0 %6134
    %v6136 = vrcp.pop %v6135
    %v6137 = vmul.f32 %v6132, %v6136
    %6139 = vrot.lane.b32.xlu0 %v4507, 112
    %v6140 = vpop.permute.xlu0 %6139
    %v6143 = vsel %vm425, %v6137, 0
    %6145 = vmatprep.subr.mxu0 0.0
    %6146 = vmatpush1.msra.mxu0 %v6140
    %6147 = vmatprep.subr.mxu0 0.0
    %6148 = vmatpush1.msra.mxu0 0.0
    %6149 = vmatprep.subr.mxu0 0.0
    %6150 = vmatpush1.msra.mxu0 0.0
    %6151 = vmatprep.subr.mxu0 0.0
    %6152 = vmatpush1.msra.mxu0 0.0
    %6153 = vmatprep.subr.mxu0 0.0
    %6154 = vmatpush1.msra.mxu0 0.0
    %6155 = vmatprep.subr.mxu0 0.0
    %6156 = vmatpush1.msra.mxu0 0.0
    %6157 = vmatprep.subr.mxu0 0.0
    %6158 = vmatpush1.msra.mxu0 0.0
    %6159 = vmatprep.subr.mxu0 0.0
    %6160 = vmatpush1.msra.mxu0 0.0
    %6161 = vmatprep.subr.mxu0 0.0
    %6162 = vmatpush1.msra.mxu0 0.0
    %6163 = vmatprep.subr.mxu0 0.0
    %6164 = vmatpush1.msra.mxu0 0.0
    %6165 = vmatprep.subr.mxu0 0.0
    %6166 = vmatpush1.msra.mxu0 0.0
    %6167 = vmatprep.subr.mxu0 0.0
    %6168 = vmatpush1.msra.mxu0 0.0
    %6169 = vmatprep.subr.mxu0 0.0
    %6170 = vmatpush1.msra.mxu0 0.0
    %6171 = vmatprep.subr.mxu0 0.0
    %6172 = vmatpush1.msra.mxu0 0.0
    %6173 = vmatprep.subr.mxu0 0.0
    %6174 = vmatpush1.msra.mxu0 0.0
    %6175 = vmatprep.subr.mxu0 0.0
    %6176 = vmatpush1.msra.mxu0 0.0
    %6177 = vmatprep.subr.mxu0 0.0
    %6178 = vmatpush1.msra.mxu0 0.0
    %6179 = vmatprep.subr.mxu0 0.0
    %6180 = vmatpush1.msra.mxu0 0.0
    %6181 = vmatprep.subr.mxu0 0.0
    %6182 = vmatpush1.msra.mxu0 0.0
    %6183 = vmatprep.subr.mxu0 0.0
    %6184 = vmatpush1.msra.mxu0 0.0
    %6185 = vmatprep.subr.mxu0 0.0
    %6186 = vmatpush1.msra.mxu0 0.0
    %6187 = vmatprep.subr.mxu0 0.0
    %6188 = vmatpush1.msra.mxu0 0.0
    %6189 = vmatprep.subr.mxu0 0.0
    %6190 = vmatpush1.msra.mxu0 0.0
    %6191 = vmatprep.subr.mxu0 0.0
    %6192 = vmatpush1.msra.mxu0 0.0
    %6193 = vmatprep.subr.mxu0 0.0
    %6194 = vmatpush1.msra.mxu0 0.0
    %6195 = vmatprep.subr.mxu0 0.0
    %6196 = vmatpush1.msra.mxu0 0.0
    %6197 = vmatprep.subr.mxu0 0.0
    %6198 = vmatpush1.msra.mxu0 0.0
    %6199 = vmatprep.subr.mxu0 0.0
    %6200 = vmatpush1.msra.mxu0 0.0
    %6201 = vmatprep.subr.mxu0 0.0
    %6202 = vmatpush1.msra.mxu0 0.0
    %6203 = vmatprep.subr.mxu0 0.0
    %6204 = vmatpush1.msra.mxu0 0.0
    %6205 = vmatprep.subr.mxu0 0.0
    %6206 = vmatpush1.msra.mxu0 0.0
    %6207 = vmatprep.subr.mxu0 0.0
    %6208 = vmatpush1.msra.mxu0 0.0
    %6209 = vmatprep.mubr.f32.mxu0 0.0
    %6210 = vmatmul.mubr.f32.gmra.mrb[0].mxu0 %v6143
    %v6211 = vpop.f32.mrb[0].mxu0
    %v6212 = vadd.f32 0.0, %v6211
    %v6213 = vpop.f32.mrb[0].mxu0
    %6214 = vdwg.mxu0
    %6215 = vrot.lane.b32.xlu0 %v4331, 96
    %v6216 = vpop.permute.xlu0 %6215
    %6217 = vrot.lane.b32.xlu0 %v4419, 96
    %v6218 = vpop.permute.xlu0 %6217
    %v6219 = vsel %vm346, %v6216, 0
    %v6221 = vsel %vm346, %v6218, 0
    %6223 = vmatprep.subr.mxu0 0.0
    %6224 = vmatpush1.xpose.msra.mxu0 %v6221
    %6225 = vmatprep.subr.mxu0 0.0
    %6226 = vmatpush1.xpose.msra.mxu0 0.0
    %6227 = vmatprep.subr.mxu0 0.0
    %6228 = vmatpush1.xpose.msra.mxu0 0.0
    %6229 = vmatprep.subr.mxu0 0.0
    %6230 = vmatpush1.xpose.msra.mxu0 0.0
    %6231 = vmatprep.subr.mxu0 0.0
    %6232 = vmatpush1.xpose.msra.mxu0 0.0
    %6233 = vmatprep.subr.mxu0 0.0
    %6234 = vmatpush1.xpose.msra.mxu0 0.0
    %6235 = vmatprep.subr.mxu0 0.0
    %6236 = vmatpush1.xpose.msra.mxu0 0.0
    %6237 = vmatprep.subr.mxu0 0.0
    %6238 = vmatpush1.xpose.msra.mxu0 0.0
    %6239 = vmatprep.subr.mxu0 0.0
    %6240 = vmatpush1.xpose.msra.mxu0 0.0
    %6241 = vmatprep.subr.mxu0 0.0
    %6242 = vmatpush1.xpose.msra.mxu0 0.0
    %6243 = vmatprep.subr.mxu0 0.0
    %6244 = vmatpush1.xpose.msra.mxu0 0.0
    %6245 = vmatprep.subr.mxu0 0.0
    %6246 = vmatpush1.xpose.msra.mxu0 0.0
    %6247 = vmatprep.subr.mxu0 0.0
    %6248 = vmatpush1.xpose.msra.mxu0 0.0
    %6249 = vmatprep.subr.mxu0 0.0
    %6250 = vmatpush1.xpose.msra.mxu0 0.0
    %6251 = vmatprep.subr.mxu0 0.0
    %6252 = vmatpush1.xpose.msra.mxu0 0.0
    %6253 = vmatprep.subr.mxu0 0.0
    %6254 = vmatpush1.xpose.msra.mxu0 0.0
    %6255 = vmatprep.subr.mxu0 0.0
    %6256 = vmatpush1.xpose.msra.mxu0 0.0
    %6257 = vmatprep.subr.mxu0 0.0
    %6258 = vmatpush1.xpose.msra.mxu0 0.0
    %6259 = vmatprep.subr.mxu0 0.0
    %6260 = vmatpush1.xpose.msra.mxu0 0.0
    %6261 = vmatprep.subr.mxu0 0.0
    %6262 = vmatpush1.xpose.msra.mxu0 0.0
    %6263 = vmatprep.subr.mxu0 0.0
    %6264 = vmatpush1.xpose.msra.mxu0 0.0
    %6265 = vmatprep.subr.mxu0 0.0
    %6266 = vmatpush1.xpose.msra.mxu0 0.0
    %6267 = vmatprep.subr.mxu0 0.0
    %6268 = vmatpush1.xpose.msra.mxu0 0.0
    %6269 = vmatprep.subr.mxu0 0.0
    %6270 = vmatpush1.xpose.msra.mxu0 0.0
    %6271 = vmatprep.subr.mxu0 0.0
    %6272 = vmatpush1.xpose.msra.mxu0 0.0
    %6273 = vmatprep.subr.mxu0 0.0
    %6274 = vmatpush1.xpose.msra.mxu0 0.0
    %6275 = vmatprep.subr.mxu0 0.0
    %6276 = vmatpush1.xpose.msra.mxu0 0.0
    %6277 = vmatprep.subr.mxu0 0.0
    %6278 = vmatpush1.xpose.msra.mxu0 0.0
    %6279 = vmatprep.subr.mxu0 0.0
    %6280 = vmatpush1.xpose.msra.mxu0 0.0
    %6281 = vmatprep.subr.mxu0 0.0
    %6282 = vmatpush1.xpose.msra.mxu0 0.0
    %6283 = vmatprep.subr.mxu0 0.0
    %6284 = vmatpush1.xpose.msra.mxu0 0.0
    %6285 = vmatprep.subr.mxu0 0.0
    %6286 = vmatpush1.xpose.msra.mxu0 0.0
    %6287 = vmatprep.mubr.f32.mxu0 0.0
    %6288 = vmatmul.mubr.f32.gmra.mrb[0].mxu0 %v6219
    %v6289 = vpop.f32.mrb[0].mxu0
    %v6290 = vadd.f32 0.0, %v6289
    %v6291 = vpop.f32.mrb[0].mxu0
    %6292 = vdwg.mxu0
    %v6293 = vmul.f32 %v6290, 0.25
    %v6294 = vadd.f32 %v6293, %v4843
    %v6295 = vsel %vm425, %v6294, -inf
    %6296 = vmax.xlane.f32.xlu0 %v6295
    %v6297 = vpop.xlane.xlu0 %6296
    %v6298 = vsub.f32 %v6294, %v6297
    %v6299 = vmul.f32 %v6298, 1.442695
    %v6300 = vpow.pop %v6299
    %v6301 = vsel %vm425, %v6300, 0.0
    %6302 = vadd.xlane.f32.xlu0 %v6301
    %v6303 = vpop.xlane.xlu0 %6302
    %v6304 = vrcp.pop %v6303
    %v6305 = vmul.f32 %v6300, %v6304
    %6306 = vrot.lane.b32.xlu0 %v4507, 96
    %v6307 = vpop.permute.xlu0 %6306
    %v6310 = vsel %vm425, %v6305, 0
    %6312 = vmatprep.subr.mxu0 0.0
    %6313 = vmatpush1.msra.mxu0 %v6307
    %6314 = vmatprep.subr.mxu0 0.0
    %6315 = vmatpush1.msra.mxu0 0.0
    %6316 = vmatprep.subr.mxu0 0.0
    %6317 = vmatpush1.msra.mxu0 0.0
    %6318 = vmatprep.subr.mxu0 0.0
    %6319 = vmatpush1.msra.mxu0 0.0
    %6320 = vmatprep.subr.mxu0 0.0
    %6321 = vmatpush1.msra.mxu0 0.0
    %6322 = vmatprep.subr.mxu0 0.0
    %6323 = vmatpush1.msra.mxu0 0.0
    %6324 = vmatprep.subr.mxu0 0.0
    %6325 = vmatpush1.msra.mxu0 0.0
    %6326 = vmatprep.subr.mxu0 0.0
    %6327 = vmatpush1.msra.mxu0 0.0
    %6328 = vmatprep.subr.mxu0 0.0
    %6329 = vmatpush1.msra.mxu0 0.0
    %6330 = vmatprep.subr.mxu0 0.0
    %6331 = vmatpush1.msra.mxu0 0.0
    %6332 = vmatprep.subr.mxu0 0.0
    %6333 = vmatpush1.msra.mxu0 0.0
    %6334 = vmatprep.subr.mxu0 0.0
    %6335 = vmatpush1.msra.mxu0 0.0
    %6336 = vmatprep.subr.mxu0 0.0
    %6337 = vmatpush1.msra.mxu0 0.0
    %6338 = vmatprep.subr.mxu0 0.0
    %6339 = vmatpush1.msra.mxu0 0.0
    %6340 = vmatprep.subr.mxu0 0.0
    %6341 = vmatpush1.msra.mxu0 0.0
    %6342 = vmatprep.subr.mxu0 0.0
    %6343 = vmatpush1.msra.mxu0 0.0
    %6344 = vmatprep.subr.mxu0 0.0
    %6345 = vmatpush1.msra.mxu0 0.0
    %6346 = vmatprep.subr.mxu0 0.0
    %6347 = vmatpush1.msra.mxu0 0.0
    %6348 = vmatprep.subr.mxu0 0.0
    %6349 = vmatpush1.msra.mxu0 0.0
    %6350 = vmatprep.subr.mxu0 0.0
    %6351 = vmatpush1.msra.mxu0 0.0
    %6352 = vmatprep.subr.mxu0 0.0
    %6353 = vmatpush1.msra.mxu0 0.0
    %6354 = vmatprep.subr.mxu0 0.0
    %6355 = vmatpush1.msra.mxu0 0.0
    %6356 = vmatprep.subr.mxu0 0.0
    %6357 = vmatpush1.msra.mxu0 0.0
    %6358 = vmatprep.subr.mxu0 0.0
    %6359 = vmatpush1.msra.mxu0 0.0
    %6360 = vmatprep.subr.mxu0 0.0
    %6361 = vmatpush1.msra.mxu0 0.0
    %6362 = vmatprep.subr.mxu0 0.0
    %6363 = vmatpush1.msra.mxu0 0.0
    %6364 = vmatprep.subr.mxu0 0.0
    %6365 = vmatpush1.msra.mxu0 0.0
    %6366 = vmatprep.subr.mxu0 0.0
    %6367 = vmatpush1.msra.mxu0 0.0
    %6368 = vmatprep.subr.mxu0 0.0
    %6369 = vmatpush1.msra.mxu0 0.0
    %6370 = vmatprep.subr.mxu0 0.0
    %6371 = vmatpush1.msra.mxu0 0.0
    %6372 = vmatprep.subr.mxu0 0.0
    %6373 = vmatpush1.msra.mxu0 0.0
    %6374 = vmatprep.subr.mxu0 0.0
    %6375 = vmatpush1.msra.mxu0 0.0
    %6376 = vmatprep.mubr.f32.mxu0 0.0
    %6377 = vmatmul.mubr.f32.gmra.mrb[0].mxu0 %v6310
    %v6378 = vpop.f32.mrb[0].mxu0
    %v6379 = vadd.f32 0.0, %v6378
    %v6380 = vpop.f32.mrb[0].mxu0
    %6381 = vdwg.mxu0
    %6382 = vrot.lane.b32.xlu0 %v4331, 80
    %v6383 = vpop.permute.xlu0 %6382
    %6384 = vrot.lane.b32.xlu0 %v4419, 80
    %v6385 = vpop.permute.xlu0 %6384
    %v6386 = vsel %vm346, %v6383, 0
    %v6388 = vsel %vm346, %v6385, 0
    %6390 = vmatprep.subr.mxu0 0.0
    %6391 = vmatpush1.xpose.msra.mxu0 %v6388
    %6392 = vmatprep.subr.mxu0 0.0
    %6393 = vmatpush1.xpose.msra.mxu0 0.0
    %6394 = vmatprep.subr.mxu0 0.0
    %6395 = vmatpush1.xpose.msra.mxu0 0.0
    %6396 = vmatprep.subr.mxu0 0.0
    %6397 = vmatpush1.xpose.msra.mxu0 0.0
    %6398 = vmatprep.subr.mxu0 0.0
    %6399 = vmatpush1.xpose.msra.mxu0 0.0
    %6400 = vmatprep.subr.mxu0 0.0
    %6401 = vmatpush1.xpose.msra.mxu0 0.0
    %6402 = vmatprep.subr.mxu0 0.0
    %6403 = vmatpush1.xpose.msra.mxu0 0.0
    %6404 = vmatprep.subr.mxu0 0.0
    %6405 = vmatpush1.xpose.msra.mxu0 0.0
    %6406 = vmatprep.subr.mxu0 0.0
    %6407 = vmatpush1.xpose.msra.mxu0 0.0
    %6408 = vmatprep.subr.mxu0 0.0
    %6409 = vmatpush1.xpose.msra.mxu0 0.0
    %6410 = vmatprep.subr.mxu0 0.0
    %6411 = vmatpush1.xpose.msra.mxu0 0.0
    %6412 = vmatprep.subr.mxu0 0.0
    %6413 = vmatpush1.xpose.msra.mxu0 0.0
    %6414 = vmatprep.subr.mxu0 0.0
    %6415 = vmatpush1.xpose.msra.mxu0 0.0
    %6416 = vmatprep.subr.mxu0 0.0
    %6417 = vmatpush1.xpose.msra.mxu0 0.0
    %6418 = vmatprep.subr.mxu0 0.0
    %6419 = vmatpush1.xpose.msra.mxu0 0.0
    %6420 = vmatprep.subr.mxu0 0.0
    %6421 = vmatpush1.xpose.msra.mxu0 0.0
    %6422 = vmatprep.subr.mxu0 0.0
    %6423 = vmatpush1.xpose.msra.mxu0 0.0
    %6424 = vmatprep.subr.mxu0 0.0
    %6425 = vmatpush1.xpose.msra.mxu0 0.0
    %6426 = vmatprep.subr.mxu0 0.0
    %6427 = vmatpush1.xpose.msra.mxu0 0.0
    %6428 = vmatprep.subr.mxu0 0.0
    %6429 = vmatpush1.xpose.msra.mxu0 0.0
    %6430 = vmatprep.subr.mxu0 0.0
    %6431 = vmatpush1.xpose.msra.mxu0 0.0
    %6432 = vmatprep.subr.mxu0 0.0
    %6433 = vmatpush1.xpose.msra.mxu0 0.0
    %6434 = vmatprep.subr.mxu0 0.0
    %6435 = vmatpush1.xpose.msra.mxu0 0.0
    %6436 = vmatprep.subr.mxu0 0.0
    %6437 = vmatpush1.xpose.msra.mxu0 0.0
    %6438 = vmatprep.subr.mxu0 0.0
    %6439 = vmatpush1.xpose.msra.mxu0 0.0
    %6440 = vmatprep.subr.mxu0 0.0
    %6441 = vmatpush1.xpose.msra.mxu0 0.0
    %6442 = vmatprep.subr.mxu0 0.0
    %6443 = vmatpush1.xpose.msra.mxu0 0.0
    %6444 = vmatprep.subr.mxu0 0.0
    %6445 = vmatpush1.xpose.msra.mxu0 0.0
    %6446 = vmatprep.subr.mxu0 0.0
    %6447 = vmatpush1.xpose.msra.mxu0 0.0
    %6448 = vmatprep.subr.mxu0 0.0
    %6449 = vmatpush1.xpose.msra.mxu0 0.0
    %6450 = vmatprep.subr.mxu0 0.0
    %6451 = vmatpush1.xpose.msra.mxu0 0.0
    %6452 = vmatprep.subr.mxu0 0.0
    %6453 = vmatpush1.xpose.msra.mxu0 0.0
    %6454 = vmatprep.mubr.f32.mxu0 0.0
    %6455 = vmatmul.mubr.f32.gmra.mrb[0].mxu0 %v6386
    %v6456 = vpop.f32.mrb[0].mxu0
    %v6457 = vadd.f32 0.0, %v6456
    %v6458 = vpop.f32.mrb[0].mxu0
    %6459 = vdwg.mxu0
    %v6460 = vmul.f32 %v6457, 0.25
    %v6461 = vadd.f32 %v6460, %v4843
    %v6462 = vsel %vm425, %v6461, -inf
    %6463 = vmax.xlane.f32.xlu0 %v6462
    %v6464 = vpop.xlane.xlu0 %6463
    %v6465 = vsub.f32 %v6461, %v6464
    %v6466 = vmul.f32 %v6465, 1.442695
    %v6467 = vpow.pop %v6466
    %v6468 = vsel %vm425, %v6467, 0.0
    %6469 = vadd.xlane.f32.xlu0 %v6468
    %v6470 = vpop.xlane.xlu0 %6469
    %v6471 = vrcp.pop %v6470
    %v6472 = vmul.f32 %v6467, %v6471
    %6473 = vrot.lane.b32.xlu0 %v4507, 80
    %v6474 = vpop.permute.xlu0 %6473
    %v6477 = vsel %vm425, %v6472, 0
    %6479 = vmatprep.subr.mxu0 0.0
    %6480 = vmatpush1.msra.mxu0 %v6474
    %6481 = vmatprep.subr.mxu0 0.0
    %6482 = vmatpush1.msra.mxu0 0.0
    %6483 = vmatprep.subr.mxu0 0.0
    %6484 = vmatpush1.msra.mxu0 0.0
    %6485 = vmatprep.subr.mxu0 0.0
    %6486 = vmatpush1.msra.mxu0 0.0
    %6487 = vmatprep.subr.mxu0 0.0
    %6488 = vmatpush1.msra.mxu0 0.0
    %6489 = vmatprep.subr.mxu0 0.0
    %6490 = vmatpush1.msra.mxu0 0.0
    %6491 = vmatprep.subr.mxu0 0.0
    %6492 = vmatpush1.msra.mxu0 0.0
    %6493 = vmatprep.subr.mxu0 0.0
    %6494 = vmatpush1.msra.mxu0 0.0
    %6495 = vmatprep.subr.mxu0 0.0
    %6496 = vmatpush1.msra.mxu0 0.0
    %6497 = vmatprep.subr.mxu0 0.0
    %6498 = vmatpush1.msra.mxu0 0.0
    %6499 = vmatprep.subr.mxu0 0.0
    %6500 = vmatpush1.msra.mxu0 0.0
    %6501 = vmatprep.subr.mxu0 0.0
    %6502 = vmatpush1.msra.mxu0 0.0
    %6503 = vmatprep.subr.mxu0 0.0
    %6504 = vmatpush1.msra.mxu0 0.0
    %6505 = vmatprep.subr.mxu0 0.0
    %6506 = vmatpush1.msra.mxu0 0.0
    %6507 = vmatprep.subr.mxu0 0.0
    %6508 = vmatpush1.msra.mxu0 0.0
    %6509 = vmatprep.subr.mxu0 0.0
    %6510 = vmatpush1.msra.mxu0 0.0
    %6511 = vmatprep.subr.mxu0 0.0
    %6512 = vmatpush1.msra.mxu0 0.0
    %6513 = vmatprep.subr.mxu0 0.0
    %6514 = vmatpush1.msra.mxu0 0.0
    %6515 = vmatprep.subr.mxu0 0.0
    %6516 = vmatpush1.msra.mxu0 0.0
    %6517 = vmatprep.subr.mxu0 0.0
    %6518 = vmatpush1.msra.mxu0 0.0
    %6519 = vmatprep.subr.mxu0 0.0
    %6520 = vmatpush1.msra.mxu0 0.0
    %6521 = vmatprep.subr.mxu0 0.0
    %6522 = vmatpush1.msra.mxu0 0.0
    %6523 = vmatprep.subr.mxu0 0.0
    %6524 = vmatpush1.msra.mxu0 0.0
    %6525 = vmatprep.subr.mxu0 0.0
    %6526 = vmatpush1.msra.mxu0 0.0
    %6527 = vmatprep.subr.mxu0 0.0
    %6528 = vmatpush1.msra.mxu0 0.0
    %6529 = vmatprep.subr.mxu0 0.0
    %6530 = vmatpush1.msra.mxu0 0.0
    %6531 = vmatprep.subr.mxu0 0.0
    %6532 = vmatpush1.msra.mxu0 0.0
    %6533 = vmatprep.subr.mxu0 0.0
    %6534 = vmatpush1.msra.mxu0 0.0
    %6535 = vmatprep.subr.mxu0 0.0
    %6536 = vmatpush1.msra.mxu0 0.0
    %6537 = vmatprep.subr.mxu0 0.0
    %6538 = vmatpush1.msra.mxu0 0.0
    %6539 = vmatprep.subr.mxu0 0.0
    %6540 = vmatpush1.msra.mxu0 0.0
    %6541 = vmatprep.subr.mxu0 0.0
    %6542 = vmatpush1.msra.mxu0 0.0
    %6543 = vmatprep.mubr.f32.mxu0 0.0
    %6544 = vmatmul.mubr.f32.gmra.mrb[0].mxu0 %v6477
    %v6545 = vpop.f32.mrb[0].mxu0
    %v6546 = vadd.f32 0.0, %v6545
    %v6547 = vpop.f32.mrb[0].mxu0
    %6548 = vdwg.mxu0
    %6549 = vrot.lane.b32.xlu0 %v4331, 64
    %v6550 = vpop.permute.xlu0 %6549
    %6551 = vrot.lane.b32.xlu0 %v4419, 64
    %v6552 = vpop.permute.xlu0 %6551
    %v6553 = vsel %vm346, %v6550, 0
    %v6555 = vsel %vm346, %v6552, 0
    %6557 = vmatprep.subr.mxu0 0.0
    %6558 = vmatpush1.xpose.msra.mxu0 %v6555
    %6559 = vmatprep.subr.mxu0 0.0
    %6560 = vmatpush1.xpose.msra.mxu0 0.0
    %6561 = vmatprep.subr.mxu0 0.0
    %6562 = vmatpush1.xpose.msra.mxu0 0.0
    %6563 = vmatprep.subr.mxu0 0.0
    %6564 = vmatpush1.xpose.msra.mxu0 0.0
    %6565 = vmatprep.subr.mxu0 0.0
    %6566 = vmatpush1.xpose.msra.mxu0 0.0
    %6567 = vmatprep.subr.mxu0 0.0
    %6568 = vmatpush1.xpose.msra.mxu0 0.0
    %6569 = vmatprep.subr.mxu0 0.0
    %6570 = vmatpush1.xpose.msra.mxu0 0.0
    %6571 = vmatprep.subr.mxu0 0.0
    %6572 = vmatpush1.xpose.msra.mxu0 0.0
    %6573 = vmatprep.subr.mxu0 0.0
    %6574 = vmatpush1.xpose.msra.mxu0 0.0
    %6575 = vmatprep.subr.mxu0 0.0
    %6576 = vmatpush1.xpose.msra.mxu0 0.0
    %6577 = vmatprep.subr.mxu0 0.0
    %6578 = vmatpush1.xpose.msra.mxu0 0.0
    %6579 = vmatprep.subr.mxu0 0.0
    %6580 = vmatpush1.xpose.msra.mxu0 0.0
    %6581 = vmatprep.subr.mxu0 0.0
    %6582 = vmatpush1.xpose.msra.mxu0 0.0
    %6583 = vmatprep.subr.mxu0 0.0
    %6584 = vmatpush1.xpose.msra.mxu0 0.0
    %6585 = vmatprep.subr.mxu0 0.0
    %6586 = vmatpush1.xpose.msra.mxu0 0.0
    %6587 = vmatprep.subr.mxu0 0.0
    %6588 = vmatpush1.xpose.msra.mxu0 0.0
    %6589 = vmatprep.subr.mxu0 0.0
    %6590 = vmatpush1.xpose.msra.mxu0 0.0
    %6591 = vmatprep.subr.mxu0 0.0
    %6592 = vmatpush1.xpose.msra.mxu0 0.0
    %6593 = vmatprep.subr.mxu0 0.0
    %6594 = vmatpush1.xpose.msra.mxu0 0.0
    %6595 = vmatprep.subr.mxu0 0.0
    %6596 = vmatpush1.xpose.msra.mxu0 0.0
    %6597 = vmatprep.subr.mxu0 0.0
    %6598 = vmatpush1.xpose.msra.mxu0 0.0
    %6599 = vmatprep.subr.mxu0 0.0
    %6600 = vmatpush1.xpose.msra.mxu0 0.0
    %6601 = vmatprep.subr.mxu0 0.0
    %6602 = vmatpush1.xpose.msra.mxu0 0.0
    %6603 = vmatprep.subr.mxu0 0.0
    %6604 = vmatpush1.xpose.msra.mxu0 0.0
    %6605 = vmatprep.subr.mxu0 0.0
    %6606 = vmatpush1.xpose.msra.mxu0 0.0
    %6607 = vmatprep.subr.mxu0 0.0
    %6608 = vmatpush1.xpose.msra.mxu0 0.0
    %6609 = vmatprep.subr.mxu0 0.0
    %6610 = vmatpush1.xpose.msra.mxu0 0.0
    %6611 = vmatprep.subr.mxu0 0.0
    %6612 = vmatpush1.xpose.msra.mxu0 0.0
    %6613 = vmatprep.subr.mxu0 0.0
    %6614 = vmatpush1.xpose.msra.mxu0 0.0
    %6615 = vmatprep.subr.mxu0 0.0
    %6616 = vmatpush1.xpose.msra.mxu0 0.0
    %6617 = vmatprep.subr.mxu0 0.0
    %6618 = vmatpush1.xpose.msra.mxu0 0.0
    %6619 = vmatprep.subr.mxu0 0.0
    %6620 = vmatpush1.xpose.msra.mxu0 0.0
    %6621 = vmatprep.mubr.f32.mxu0 0.0
    %6622 = vmatmul.mubr.f32.gmra.mrb[0].mxu0 %v6553
    %v6623 = vpop.f32.mrb[0].mxu0
    %v6624 = vadd.f32 0.0, %v6623
    %v6625 = vpop.f32.mrb[0].mxu0
    %6626 = vdwg.mxu0
    %v6627 = vmul.f32 %v6624, 0.25
    %v6628 = vadd.f32 %v6627, %v5179
    %v6629 = vsel %vm425, %v6628, -inf
    %6630 = vmax.xlane.f32.xlu0 %v6629
    %v6631 = vpop.xlane.xlu0 %6630
    %v6632 = vsub.f32 %v6628, %v6631
    %v6633 = vmul.f32 %v6632, 1.442695
    %v6634 = vpow.pop %v6633
    %v6635 = vsel %vm425, %v6634, 0.0
    %6636 = vadd.xlane.f32.xlu0 %v6635
    %v6637 = vpop.xlane.xlu0 %6636
    %v6638 = vrcp.pop %v6637
    %v6639 = vmul.f32 %v6634, %v6638
    %6640 = vrot.lane.b32.xlu0 %v4507, 64
    %v6641 = vpop.permute.xlu0 %6640
    %v6644 = vsel %vm425, %v6639, 0
    %6646 = vmatprep.subr.mxu0 0.0
    %6647 = vmatpush1.msra.mxu0 %v6641
    %6648 = vmatprep.subr.mxu0 0.0
    %6649 = vmatpush1.msra.mxu0 0.0
    %6650 = vmatprep.subr.mxu0 0.0
    %6651 = vmatpush1.msra.mxu0 0.0
    %6652 = vmatprep.subr.mxu0 0.0
    %6653 = vmatpush1.msra.mxu0 0.0
    %6654 = vmatprep.subr.mxu0 0.0
    %6655 = vmatpush1.msra.mxu0 0.0
    %6656 = vmatprep.subr.mxu0 0.0
    %6657 = vmatpush1.msra.mxu0 0.0
    %6658 = vmatprep.subr.mxu0 0.0
    %6659 = vmatpush1.msra.mxu0 0.0
    %6660 = vmatprep.subr.mxu0 0.0
    %6661 = vmatpush1.msra.mxu0 0.0
    %6662 = vmatprep.subr.mxu0 0.0
    %6663 = vmatpush1.msra.mxu0 0.0
    %6664 = vmatprep.subr.mxu0 0.0
    %6665 = vmatpush1.msra.mxu0 0.0
    %6666 = vmatprep.subr.mxu0 0.0
    %6667 = vmatpush1.msra.mxu0 0.0
    %6668 = vmatprep.subr.mxu0 0.0
    %6669 = vmatpush1.msra.mxu0 0.0
    %6670 = vmatprep.subr.mxu0 0.0
    %6671 = vmatpush1.msra.mxu0 0.0
    %6672 = vmatprep.subr.mxu0 0.0
    %6673 = vmatpush1.msra.mxu0 0.0
    %6674 = vmatprep.subr.mxu0 0.0
    %6675 = vmatpush1.msra.mxu0 0.0
    %6676 = vmatprep.subr.mxu0 0.0
    %6677 = vmatpush1.msra.mxu0 0.0
    %6678 = vmatprep.subr.mxu0 0.0
    %6679 = vmatpush1.msra.mxu0 0.0
    %6680 = vmatprep.subr.mxu0 0.0
    %6681 = vmatpush1.msra.mxu0 0.0
    %6682 = vmatprep.subr.mxu0 0.0
    %6683 = vmatpush1.msra.mxu0 0.0
    %6684 = vmatprep.subr.mxu0 0.0
    %6685 = vmatpush1.msra.mxu0 0.0
    %6686 = vmatprep.subr.mxu0 0.0
    %6687 = vmatpush1.msra.mxu0 0.0
    %6688 = vmatprep.subr.mxu0 0.0
    %6689 = vmatpush1.msra.mxu0 0.0
    %6690 = vmatprep.subr.mxu0 0.0
    %6691 = vmatpush1.msra.mxu0 0.0
    %6692 = vmatprep.subr.mxu0 0.0
    %6693 = vmatpush1.msra.mxu0 0.0
    %6694 = vmatprep.subr.mxu0 0.0
    %6695 = vmatpush1.msra.mxu0 0.0
    %6696 = vmatprep.subr.mxu0 0.0
    %6697 = vmatpush1.msra.mxu0 0.0
    %6698 = vmatprep.subr.mxu0 0.0
    %6699 = vmatpush1.msra.mxu0 0.0
    %6700 = vmatprep.subr.mxu0 0.0
    %6701 = vmatpush1.msra.mxu0 0.0
    %6702 = vmatprep.subr.mxu0 0.0
    %6703 = vmatpush1.msra.mxu0 0.0
    %6704 = vmatprep.subr.mxu0 0.0
    %6705 = vmatpush1.msra.mxu0 0.0
    %6706 = vmatprep.subr.mxu0 0.0
    %6707 = vmatpush1.msra.mxu0 0.0
    %6708 = vmatprep.subr.mxu0 0.0
    %6709 = vmatpush1.msra.mxu0 0.0
    %6710 = vmatprep.mubr.f32.mxu0 0.0
    %6711 = vmatmul.mubr.f32.gmra.mrb[0].mxu0 %v6644
    %v6712 = vpop.f32.mrb[0].mxu0
    %v6713 = vadd.f32 0.0, %v6712
    %v6714 = vpop.f32.mrb[0].mxu0
    %6715 = vdwg.mxu0
    %6716 = vrot.lane.b32.xlu0 %v4331, 48
    %v6717 = vpop.permute.xlu0 %6716
    %6718 = vrot.lane.b32.xlu0 %v4419, 48
    %v6719 = vpop.permute.xlu0 %6718
    %v6720 = vsel %vm346, %v6717, 0
    %v6722 = vsel %vm346, %v6719, 0
    %6724 = vmatprep.subr.mxu0 0.0
    %6725 = vmatpush1.xpose.msra.mxu0 %v6722
    %6726 = vmatprep.subr.mxu0 0.0
    %6727 = vmatpush1.xpose.msra.mxu0 0.0
    %6728 = vmatprep.subr.mxu0 0.0
    %6729 = vmatpush1.xpose.msra.mxu0 0.0
    %6730 = vmatprep.subr.mxu0 0.0
    %6731 = vmatpush1.xpose.msra.mxu0 0.0
    %6732 = vmatprep.subr.mxu0 0.0
    %6733 = vmatpush1.xpose.msra.mxu0 0.0
    %6734 = vmatprep.subr.mxu0 0.0
    %6735 = vmatpush1.xpose.msra.mxu0 0.0
    %6736 = vmatprep.subr.mxu0 0.0
    %6737 = vmatpush1.xpose.msra.mxu0 0.0
    %6738 = vmatprep.subr.mxu0 0.0
    %6739 = vmatpush1.xpose.msra.mxu0 0.0
    %6740 = vmatprep.subr.mxu0 0.0
    %6741 = vmatpush1.xpose.msra.mxu0 0.0
    %6742 = vmatprep.subr.mxu0 0.0
    %6743 = vmatpush1.xpose.msra.mxu0 0.0
    %6744 = vmatprep.subr.mxu0 0.0
    %6745 = vmatpush1.xpose.msra.mxu0 0.0
    %6746 = vmatprep.subr.mxu0 0.0
    %6747 = vmatpush1.xpose.msra.mxu0 0.0
    %6748 = vmatprep.subr.mxu0 0.0
    %6749 = vmatpush1.xpose.msra.mxu0 0.0
    %6750 = vmatprep.subr.mxu0 0.0
    %6751 = vmatpush1.xpose.msra.mxu0 0.0
    %6752 = vmatprep.subr.mxu0 0.0
    %6753 = vmatpush1.xpose.msra.mxu0 0.0
    %6754 = vmatprep.subr.mxu0 0.0
    %6755 = vmatpush1.xpose.msra.mxu0 0.0
    %6756 = vmatprep.subr.mxu0 0.0
    %6757 = vmatpush1.xpose.msra.mxu0 0.0
    %6758 = vmatprep.subr.mxu0 0.0
    %6759 = vmatpush1.xpose.msra.mxu0 0.0
    %6760 = vmatprep.subr.mxu0 0.0
    %6761 = vmatpush1.xpose.msra.mxu0 0.0
    %6762 = vmatprep.subr.mxu0 0.0
    %6763 = vmatpush1.xpose.msra.mxu0 0.0
    %6764 = vmatprep.subr.mxu0 0.0
    %6765 = vmatpush1.xpose.msra.mxu0 0.0
    %6766 = vmatprep.subr.mxu0 0.0
    %6767 = vmatpush1.xpose.msra.mxu0 0.0
    %6768 = vmatprep.subr.mxu0 0.0
    %6769 = vmatpush1.xpose.msra.mxu0 0.0
    %6770 = vmatprep.subr.mxu0 0.0
    %6771 = vmatpush1.xpose.msra.mxu0 0.0
    %6772 = vmatprep.subr.mxu0 0.0
    %6773 = vmatpush1.xpose.msra.mxu0 0.0
    %6774 = vmatprep.subr.mxu0 0.0
    %6775 = vmatpush1.xpose.msra.mxu0 0.0
    %6776 = vmatprep.subr.mxu0 0.0
    %6777 = vmatpush1.xpose.msra.mxu0 0.0
    %6778 = vmatprep.subr.mxu0 0.0
    %6779 = vmatpush1.xpose.msra.mxu0 0.0
    %6780 = vmatprep.subr.mxu0 0.0
    %6781 = vmatpush1.xpose.msra.mxu0 0.0
    %6782 = vmatprep.subr.mxu0 0.0
    %6783 = vmatpush1.xpose.msra.mxu0 0.0
    %6784 = vmatprep.subr.mxu0 0.0
    %6785 = vmatpush1.xpose.msra.mxu0 0.0
    %6786 = vmatprep.subr.mxu0 0.0
    %6787 = vmatpush1.xpose.msra.mxu0 0.0
    %6788 = vmatprep.mubr.f32.mxu0 0.0
    %6789 = vmatmul.mubr.f32.gmra.mrb[0].mxu0 %v6720
    %v6790 = vpop.f32.mrb[0].mxu0
    %v6791 = vadd.f32 0.0, %v6790
    %v6792 = vpop.f32.mrb[0].mxu0
    %6793 = vdwg.mxu0
    %v6794 = vmul.f32 %v6791, 0.25
    %v6795 = vadd.f32 %v6794, %v5179
    %v6796 = vsel %vm425, %v6795, -inf
    %6797 = vmax.xlane.f32.xlu0 %v6796
    %v6798 = vpop.xlane.xlu0 %6797
    %v6799 = vsub.f32 %v6795, %v6798
    %v6800 = vmul.f32 %v6799, 1.442695
    %v6801 = vpow.pop %v6800
    %v6802 = vsel %vm425, %v6801, 0.0
    %6803 = vadd.xlane.f32.xlu0 %v6802
    %v6804 = vpop.xlane.xlu0 %6803
    %v6805 = vrcp.pop %v6804
    %v6806 = vmul.f32 %v6801, %v6805
    %6807 = vrot.lane.b32.xlu0 %v4507, 48
    %v6808 = vpop.permute.xlu0 %6807
    %v6811 = vsel %vm425, %v6806, 0
    %6813 = vmatprep.subr.mxu0 0.0
    %6814 = vmatpush1.msra.mxu0 %v6808
    %6815 = vmatprep.subr.mxu0 0.0
    %6816 = vmatpush1.msra.mxu0 0.0
    %6817 = vmatprep.subr.mxu0 0.0
    %6818 = vmatpush1.msra.mxu0 0.0
    %6819 = vmatprep.subr.mxu0 0.0
    %6820 = vmatpush1.msra.mxu0 0.0
    %6821 = vmatprep.subr.mxu0 0.0
    %6822 = vmatpush1.msra.mxu0 0.0
    %6823 = vmatprep.subr.mxu0 0.0
    %6824 = vmatpush1.msra.mxu0 0.0
    %6825 = vmatprep.subr.mxu0 0.0
    %6826 = vmatpush1.msra.mxu0 0.0
    %6827 = vmatprep.subr.mxu0 0.0
    %6828 = vmatpush1.msra.mxu0 0.0
    %6829 = vmatprep.subr.mxu0 0.0
    %6830 = vmatpush1.msra.mxu0 0.0
    %6831 = vmatprep.subr.mxu0 0.0
    %6832 = vmatpush1.msra.mxu0 0.0
    %6833 = vmatprep.subr.mxu0 0.0
    %6834 = vmatpush1.msra.mxu0 0.0
    %6835 = vmatprep.subr.mxu0 0.0
    %6836 = vmatpush1.msra.mxu0 0.0
    %6837 = vmatprep.subr.mxu0 0.0
    %6838 = vmatpush1.msra.mxu0 0.0
    %6839 = vmatprep.subr.mxu0 0.0
    %6840 = vmatpush1.msra.mxu0 0.0
    %6841 = vmatprep.subr.mxu0 0.0
    %6842 = vmatpush1.msra.mxu0 0.0
    %6843 = vmatprep.subr.mxu0 0.0
    %6844 = vmatpush1.msra.mxu0 0.0
    %6845 = vmatprep.subr.mxu0 0.0
    %6846 = vmatpush1.msra.mxu0 0.0
    %6847 = vmatprep.subr.mxu0 0.0
    %6848 = vmatpush1.msra.mxu0 0.0
    %6849 = vmatprep.subr.mxu0 0.0
    %6850 = vmatpush1.msra.mxu0 0.0
    %6851 = vmatprep.subr.mxu0 0.0
    %6852 = vmatpush1.msra.mxu0 0.0
    %6853 = vmatprep.subr.mxu0 0.0
    %6854 = vmatpush1.msra.mxu0 0.0
    %6855 = vmatprep.subr.mxu0 0.0
    %6856 = vmatpush1.msra.mxu0 0.0
    %6857 = vmatprep.subr.mxu0 0.0
    %6858 = vmatpush1.msra.mxu0 0.0
    %6859 = vmatprep.subr.mxu0 0.0
    %6860 = vmatpush1.msra.mxu0 0.0
    %6861 = vmatprep.subr.mxu0 0.0
    %6862 = vmatpush1.msra.mxu0 0.0
    %6863 = vmatprep.subr.mxu0 0.0
    %6864 = vmatpush1.msra.mxu0 0.0
    %6865 = vmatprep.subr.mxu0 0.0
    %6866 = vmatpush1.msra.mxu0 0.0
    %6867 = vmatprep.subr.mxu0 0.0
    %6868 = vmatpush1.msra.mxu0 0.0
    %6869 = vmatprep.subr.mxu0 0.0
    %6870 = vmatpush1.msra.mxu0 0.0
    %6871 = vmatprep.subr.mxu0 0.0
    %6872 = vmatpush1.msra.mxu0 0.0
    %6873 = vmatprep.subr.mxu0 0.0
    %6874 = vmatpush1.msra.mxu0 0.0
    %6875 = vmatprep.subr.mxu0 0.0
    %6876 = vmatpush1.msra.mxu0 0.0
    %6877 = vmatprep.mubr.f32.mxu0 0.0
    %6878 = vmatmul.mubr.f32.gmra.mrb[0].mxu0 %v6811
    %v6879 = vpop.f32.mrb[0].mxu0
    %v6880 = vadd.f32 0.0, %v6879
    %v6881 = vpop.f32.mrb[0].mxu0
    %6882 = vdwg.mxu0
    %6883 = vrot.lane.b32.xlu0 %v4331, 32
    %v6884 = vpop.permute.xlu0 %6883
    %6885 = vrot.lane.b32.xlu0 %v4419, 32
    %v6886 = vpop.permute.xlu0 %6885
    %v6887 = vsel %vm346, %v6884, 0
    %v6889 = vsel %vm346, %v6886, 0
    %6891 = vmatprep.subr.mxu0 0.0
    %6892 = vmatpush1.xpose.msra.mxu0 %v6889
    %6893 = vmatprep.subr.mxu0 0.0
    %6894 = vmatpush1.xpose.msra.mxu0 0.0
    %6895 = vmatprep.subr.mxu0 0.0
    %6896 = vmatpush1.xpose.msra.mxu0 0.0
    %6897 = vmatprep.subr.mxu0 0.0
    %6898 = vmatpush1.xpose.msra.mxu0 0.0
    %6899 = vmatprep.subr.mxu0 0.0
    %6900 = vmatpush1.xpose.msra.mxu0 0.0
    %6901 = vmatprep.subr.mxu0 0.0
    %6902 = vmatpush1.xpose.msra.mxu0 0.0
    %6903 = vmatprep.subr.mxu0 0.0
    %6904 = vmatpush1.xpose.msra.mxu0 0.0
    %6905 = vmatprep.subr.mxu0 0.0
    %6906 = vmatpush1.xpose.msra.mxu0 0.0
    %6907 = vmatprep.subr.mxu0 0.0
    %6908 = vmatpush1.xpose.msra.mxu0 0.0
    %6909 = vmatprep.subr.mxu0 0.0
    %6910 = vmatpush1.xpose.msra.mxu0 0.0
    %6911 = vmatprep.subr.mxu0 0.0
    %6912 = vmatpush1.xpose.msra.mxu0 0.0
    %6913 = vmatprep.subr.mxu0 0.0
    %6914 = vmatpush1.xpose.msra.mxu0 0.0
    %6915 = vmatprep.subr.mxu0 0.0
    %6916 = vmatpush1.xpose.msra.mxu0 0.0
    %6917 = vmatprep.subr.mxu0 0.0
    %6918 = vmatpush1.xpose.msra.mxu0 0.0
    %6919 = vmatprep.subr.mxu0 0.0
    %6920 = vmatpush1.xpose.msra.mxu0 0.0
    %6921 = vmatprep.subr.mxu0 0.0
    %6922 = vmatpush1.xpose.msra.mxu0 0.0
    %6923 = vmatprep.subr.mxu0 0.0
    %6924 = vmatpush1.xpose.msra.mxu0 0.0
    %6925 = vmatprep.subr.mxu0 0.0
    %6926 = vmatpush1.xpose.msra.mxu0 0.0
    %6927 = vmatprep.subr.mxu0 0.0
    %6928 = vmatpush1.xpose.msra.mxu0 0.0
    %6929 = vmatprep.subr.mxu0 0.0
    %6930 = vmatpush1.xpose.msra.mxu0 0.0
    %6931 = vmatprep.subr.mxu0 0.0
    %6932 = vmatpush1.xpose.msra.mxu0 0.0
    %6933 = vmatprep.subr.mxu0 0.0
    %6934 = vmatpush1.xpose.msra.mxu0 0.0
    %6935 = vmatprep.subr.mxu0 0.0
    %6936 = vmatpush1.xpose.msra.mxu0 0.0
    %6937 = vmatprep.subr.mxu0 0.0
    %6938 = vmatpush1.xpose.msra.mxu0 0.0
    %6939 = vmatprep.subr.mxu0 0.0
    %6940 = vmatpush1.xpose.msra.mxu0 0.0
    %6941 = vmatprep.subr.mxu0 0.0
    %6942 = vmatpush1.xpose.msra.mxu0 0.0
    %6943 = vmatprep.subr.mxu0 0.0
    %6944 = vmatpush1.xpose.msra.mxu0 0.0
    %6945 = vmatprep.subr.mxu0 0.0
    %6946 = vmatpush1.xpose.msra.mxu0 0.0
    %6947 = vmatprep.subr.mxu0 0.0
    %6948 = vmatpush1.xpose.msra.mxu0 0.0
    %6949 = vmatprep.subr.mxu0 0.0
    %6950 = vmatpush1.xpose.msra.mxu0 0.0
    %6951 = vmatprep.subr.mxu0 0.0
    %6952 = vmatpush1.xpose.msra.mxu0 0.0
    %6953 = vmatprep.subr.mxu0 0.0
    %6954 = vmatpush1.xpose.msra.mxu0 0.0
    %6955 = vmatprep.mubr.f32.mxu0 0.0
    %6956 = vmatmul.mubr.f32.gmra.mrb[0].mxu0 %v6887
    %v6957 = vpop.f32.mrb[0].mxu0
    %v6958 = vadd.f32 0.0, %v6957
    %v6959 = vpop.f32.mrb[0].mxu0
    %6960 = vdwg.mxu0
    %v6961 = vmul.f32 %v6958, 0.25
    %v6962 = vadd.f32 %v6961, %v5515
    %v6963 = vsel %vm425, %v6962, -inf
    %6964 = vmax.xlane.f32.xlu0 %v6963
    %v6965 = vpop.xlane.xlu0 %6964
    %v6966 = vsub.f32 %v6962, %v6965
    %v6967 = vmul.f32 %v6966, 1.442695
    %v6968 = vpow.pop %v6967
    %v6969 = vsel %vm425, %v6968, 0.0
    %6970 = vadd.xlane.f32.xlu0 %v6969
    %v6971 = vpop.xlane.xlu0 %6970
    %v6972 = vrcp.pop %v6971
    %v6973 = vmul.f32 %v6968, %v6972
    %6974 = vrot.lane.b32.xlu0 %v4507, 32
    %v6975 = vpop.permute.xlu0 %6974
    %v6978 = vsel %vm425, %v6973, 0
    %6980 = vmatprep.subr.mxu0 0.0
    %6981 = vmatpush1.msra.mxu0 %v6975
    %6982 = vmatprep.subr.mxu0 0.0
    %6983 = vmatpush1.msra.mxu0 0.0
    %6984 = vmatprep.subr.mxu0 0.0
    %6985 = vmatpush1.msra.mxu0 0.0
    %6986 = vmatprep.subr.mxu0 0.0
    %6987 = vmatpush1.msra.mxu0 0.0
    %6988 = vmatprep.subr.mxu0 0.0
    %6989 = vmatpush1.msra.mxu0 0.0
    %6990 = vmatprep.subr.mxu0 0.0
    %6991 = vmatpush1.msra.mxu0 0.0
    %6992 = vmatprep.subr.mxu0 0.0
    %6993 = vmatpush1.msra.mxu0 0.0
    %6994 = vmatprep.subr.mxu0 0.0
    %6995 = vmatpush1.msra.mxu0 0.0
    %6996 = vmatprep.subr.mxu0 0.0
    %6997 = vmatpush1.msra.mxu0 0.0
    %6998 = vmatprep.subr.mxu0 0.0
    %6999 = vmatpush1.msra.mxu0 0.0
    %7000 = vmatprep.subr.mxu0 0.0
    %7001 = vmatpush1.msra.mxu0 0.0
    %7002 = vmatprep.subr.mxu0 0.0
    %7003 = vmatpush1.msra.mxu0 0.0
    %7004 = vmatprep.subr.mxu0 0.0
    %7005 = vmatpush1.msra.mxu0 0.0
    %7006 = vmatprep.subr.mxu0 0.0
    %7007 = vmatpush1.msra.mxu0 0.0
    %7008 = vmatprep.subr.mxu0 0.0
    %7009 = vmatpush1.msra.mxu0 0.0
    %7010 = vmatprep.subr.mxu0 0.0
    %7011 = vmatpush1.msra.mxu0 0.0
    %7012 = vmatprep.subr.mxu0 0.0
    %7013 = vmatpush1.msra.mxu0 0.0
    %7014 = vmatprep.subr.mxu0 0.0
    %7015 = vmatpush1.msra.mxu0 0.0
    %7016 = vmatprep.subr.mxu0 0.0
    %7017 = vmatpush1.msra.mxu0 0.0
    %7018 = vmatprep.subr.mxu0 0.0
    %7019 = vmatpush1.msra.mxu0 0.0
    %7020 = vmatprep.subr.mxu0 0.0
    %7021 = vmatpush1.msra.mxu0 0.0
    %7022 = vmatprep.subr.mxu0 0.0
    %7023 = vmatpush1.msra.mxu0 0.0
    %7024 = vmatprep.subr.mxu0 0.0
    %7025 = vmatpush1.msra.mxu0 0.0
    %7026 = vmatprep.subr.mxu0 0.0
    %7027 = vmatpush1.msra.mxu0 0.0
    %7028 = vmatprep.subr.mxu0 0.0
    %7029 = vmatpush1.msra.mxu0 0.0
    %7030 = vmatprep.subr.mxu0 0.0
    %7031 = vmatpush1.msra.mxu0 0.0
    %7032 = vmatprep.subr.mxu0 0.0
    %7033 = vmatpush1.msra.mxu0 0.0
    %7034 = vmatprep.subr.mxu0 0.0
    %7035 = vmatpush1.msra.mxu0 0.0
    %7036 = vmatprep.subr.mxu0 0.0
    %7037 = vmatpush1.msra.mxu0 0.0
    %7038 = vmatprep.subr.mxu0 0.0
    %7039 = vmatpush1.msra.mxu0 0.0
    %7040 = vmatprep.subr.mxu0 0.0
    %7041 = vmatpush1.msra.mxu0 0.0
    %7042 = vmatprep.subr.mxu0 0.0
    %7043 = vmatpush1.msra.mxu0 0.0
    %7044 = vmatprep.mubr.f32.mxu0 0.0
    %7045 = vmatmul.mubr.f32.gmra.mrb[0].mxu0 %v6978
    %v7046 = vpop.f32.mrb[0].mxu0
    %v7047 = vadd.f32 0.0, %v7046
    %v7048 = vpop.f32.mrb[0].mxu0
    %7049 = vdwg.mxu0
    %7050 = vrot.lane.b32.xlu0 %v4331, 16
    %v7051 = vpop.permute.xlu0 %7050
    %7052 = vrot.lane.b32.xlu0 %v4419, 16
    %v7053 = vpop.permute.xlu0 %7052
    %v7054 = vsel %vm346, %v7051, 0
    %v7056 = vsel %vm346, %v7053, 0
    %7058 = vmatprep.subr.mxu0 0.0
    %7059 = vmatpush1.xpose.msra.mxu0 %v7056
    %7060 = vmatprep.subr.mxu0 0.0
    %7061 = vmatpush1.xpose.msra.mxu0 0.0
    %7062 = vmatprep.subr.mxu0 0.0
    %7063 = vmatpush1.xpose.msra.mxu0 0.0
    %7064 = vmatprep.subr.mxu0 0.0
    %7065 = vmatpush1.xpose.msra.mxu0 0.0
    %7066 = vmatprep.subr.mxu0 0.0
    %7067 = vmatpush1.xpose.msra.mxu0 0.0
    %7068 = vmatprep.subr.mxu0 0.0
    %7069 = vmatpush1.xpose.msra.mxu0 0.0
    %7070 = vmatprep.subr.mxu0 0.0
    %7071 = vmatpush1.xpose.msra.mxu0 0.0
    %7072 = vmatprep.subr.mxu0 0.0
    %7073 = vmatpush1.xpose.msra.mxu0 0.0
    %7074 = vmatprep.subr.mxu0 0.0
    %7075 = vmatpush1.xpose.msra.mxu0 0.0
    %7076 = vmatprep.subr.mxu0 0.0
    %7077 = vmatpush1.xpose.msra.mxu0 0.0
    %7078 = vmatprep.subr.mxu0 0.0
    %7079 = vmatpush1.xpose.msra.mxu0 0.0
    %7080 = vmatprep.subr.mxu0 0.0
    %7081 = vmatpush1.xpose.msra.mxu0 0.0
    %7082 = vmatprep.subr.mxu0 0.0
    %7083 = vmatpush1.xpose.msra.mxu0 0.0
    %7084 = vmatprep.subr.mxu0 0.0
    %7085 = vmatpush1.xpose.msra.mxu0 0.0
    %7086 = vmatprep.subr.mxu0 0.0
    %7087 = vmatpush1.xpose.msra.mxu0 0.0
    %7088 = vmatprep.subr.mxu0 0.0
    %7089 = vmatpush1.xpose.msra.mxu0 0.0
    %7090 = vmatprep.subr.mxu0 0.0
    %7091 = vmatpush1.xpose.msra.mxu0 0.0
    %7092 = vmatprep.subr.mxu0 0.0
    %7093 = vmatpush1.xpose.msra.mxu0 0.0
    %7094 = vmatprep.subr.mxu0 0.0
    %7095 = vmatpush1.xpose.msra.mxu0 0.0
    %7096 = vmatprep.subr.mxu0 0.0
    %7097 = vmatpush1.xpose.msra.mxu0 0.0
    %7098 = vmatprep.subr.mxu0 0.0
    %7099 = vmatpush1.xpose.msra.mxu0 0.0
    %7100 = vmatprep.subr.mxu0 0.0
    %7101 = vmatpush1.xpose.msra.mxu0 0.0
    %7102 = vmatprep.subr.mxu0 0.0
    %7103 = vmatpush1.xpose.msra.mxu0 0.0
    %7104 = vmatprep.subr.mxu0 0.0
    %7105 = vmatpush1.xpose.msra.mxu0 0.0
    %7106 = vmatprep.subr.mxu0 0.0
    %7107 = vmatpush1.xpose.msra.mxu0 0.0
    %7108 = vmatprep.subr.mxu0 0.0
    %7109 = vmatpush1.xpose.msra.mxu0 0.0
    %7110 = vmatprep.subr.mxu0 0.0
    %7111 = vmatpush1.xpose.msra.mxu0 0.0
    %7112 = vmatprep.subr.mxu0 0.0
    %7113 = vmatpush1.xpose.msra.mxu0 0.0
    %7114 = vmatprep.subr.mxu0 0.0
    %7115 = vmatpush1.xpose.msra.mxu0 0.0
    %7116 = vmatprep.subr.mxu0 0.0
    %7117 = vmatpush1.xpose.msra.mxu0 0.0
    %7118 = vmatprep.subr.mxu0 0.0
    %7119 = vmatpush1.xpose.msra.mxu0 0.0
    %7120 = vmatprep.subr.mxu0 0.0
    %7121 = vmatpush1.xpose.msra.mxu0 0.0
    %7122 = vmatprep.mubr.f32.mxu0 0.0
    %7123 = vmatmul.mubr.f32.gmra.mrb[0].mxu0 %v7054
    %v7124 = vpop.f32.mrb[0].mxu0
    %v7125 = vadd.f32 0.0, %v7124
    %v7126 = vpop.f32.mrb[0].mxu0
    %7127 = vdwg.mxu0
    %v7128 = vmul.f32 %v7125, 0.25
    %v7129 = vadd.f32 %v7128, %v5515
    %v7130 = vsel %vm425, %v7129, -inf
    %7131 = vmax.xlane.f32.xlu0 %v7130
    %v7132 = vpop.xlane.xlu0 %7131
    %v7133 = vsub.f32 %v7129, %v7132
    %v7134 = vmul.f32 %v7133, 1.442695
    %v7135 = vpow.pop %v7134
    %v7136 = vsel %vm425, %v7135, 0.0
    %7137 = vadd.xlane.f32.xlu0 %v7136
    %v7138 = vpop.xlane.xlu0 %7137
    %v7139 = vrcp.pop %v7138
    %v7140 = vmul.f32 %v7135, %v7139
    %7141 = vrot.lane.b32.xlu0 %v4507, 16
    %v7142 = vpop.permute.xlu0 %7141
    %v7145 = vsel %vm425, %v7140, 0
    %7147 = vmatprep.subr.mxu0 0.0
    %7148 = vmatpush1.msra.mxu0 %v7142
    %7149 = vmatprep.subr.mxu0 0.0
    %7150 = vmatpush1.msra.mxu0 0.0
    %7151 = vmatprep.subr.mxu0 0.0
    %7152 = vmatpush1.msra.mxu0 0.0
    %7153 = vmatprep.subr.mxu0 0.0
    %7154 = vmatpush1.msra.mxu0 0.0
    %7155 = vmatprep.subr.mxu0 0.0
    %7156 = vmatpush1.msra.mxu0 0.0
    %7157 = vmatprep.subr.mxu0 0.0
    %7158 = vmatpush1.msra.mxu0 0.0
    %7159 = vmatprep.subr.mxu0 0.0
    %7160 = vmatpush1.msra.mxu0 0.0
    %7161 = vmatprep.subr.mxu0 0.0
    %7162 = vmatpush1.msra.mxu0 0.0
    %7163 = vmatprep.subr.mxu0 0.0
    %7164 = vmatpush1.msra.mxu0 0.0
    %7165 = vmatprep.subr.mxu0 0.0
    %7166 = vmatpush1.msra.mxu0 0.0
    %7167 = vmatprep.subr.mxu0 0.0
    %7168 = vmatpush1.msra.mxu0 0.0
    %7169 = vmatprep.subr.mxu0 0.0
    %7170 = vmatpush1.msra.mxu0 0.0
    %7171 = vmatprep.subr.mxu0 0.0
    %7172 = vmatpush1.msra.mxu0 0.0
    %7173 = vmatprep.subr.mxu0 0.0
    %7174 = vmatpush1.msra.mxu0 0.0
    %7175 = vmatprep.subr.mxu0 0.0
    %7176 = vmatpush1.msra.mxu0 0.0
    %7177 = vmatprep.subr.mxu0 0.0
    %7178 = vmatpush1.msra.mxu0 0.0
    %7179 = vmatprep.subr.mxu0 0.0
    %7180 = vmatpush1.msra.mxu0 0.0
    %7181 = vmatprep.subr.mxu0 0.0
    %7182 = vmatpush1.msra.mxu0 0.0
    %7183 = vmatprep.subr.mxu0 0.0
    %7184 = vmatpush1.msra.mxu0 0.0
    %7185 = vmatprep.subr.mxu0 0.0
    %7186 = vmatpush1.msra.mxu0 0.0
    %7187 = vmatprep.subr.mxu0 0.0
    %7188 = vmatpush1.msra.mxu0 0.0
    %7189 = vmatprep.subr.mxu0 0.0
    %7190 = vmatpush1.msra.mxu0 0.0
    %7191 = vmatprep.subr.mxu0 0.0
    %7192 = vmatpush1.msra.mxu0 0.0
    %7193 = vmatprep.subr.mxu0 0.0
    %7194 = vmatpush1.msra.mxu0 0.0
    %7195 = vmatprep.subr.mxu0 0.0
    %7196 = vmatpush1.msra.mxu0 0.0
    %7197 = vmatprep.subr.mxu0 0.0
    %7198 = vmatpush1.msra.mxu0 0.0
    %7199 = vmatprep.subr.mxu0 0.0
    %7200 = vmatpush1.msra.mxu0 0.0
    %7201 = vmatprep.subr.mxu0 0.0
    %7202 = vmatpush1.msra.mxu0 0.0
    %7203 = vmatprep.subr.mxu0 0.0
    %7204 = vmatpush1.msra.mxu0 0.0
    %7205 = vmatprep.subr.mxu0 0.0
    %7206 = vmatpush1.msra.mxu0 0.0
    %7207 = vmatprep.subr.mxu0 0.0
    %7208 = vmatpush1.msra.mxu0 0.0
    %7209 = vmatprep.subr.mxu0 0.0
    %7210 = vmatpush1.msra.mxu0 0.0
    %7211 = vmatprep.mubr.f32.mxu0 0.0
    %7212 = vmatmul.mubr.f32.gmra.mrb[0].mxu0 %v7145
    %v7213 = vpop.f32.mrb[0].mxu0
    %v7214 = vadd.f32 0.0, %v7213
    %v7215 = vpop.f32.mrb[0].mxu0
    %7216 = vdwg.mxu0
    %7218 = vrot.lane.b32.xlu0 %v6212, 16
    %v7219 = vpop.permute.xlu0 %7218
    %7222 = vrot.lane.b32.xlu0 %v6379, 32
    %v7223 = vpop.permute.xlu0 %7222
    %7226 = vrot.lane.b32.xlu0 %v6546, 48
    %v7227 = vpop.permute.xlu0 %7226
    %7230 = vrot.lane.b32.xlu0 %v6713, 64
    %v7231 = vpop.permute.xlu0 %7230
    %7234 = vrot.lane.b32.xlu0 %v6880, 80
    %v7235 = vpop.permute.xlu0 %7234
    %7238 = vrot.lane.b32.xlu0 %v7047, 96
    %v7239 = vpop.permute.xlu0 %7238
    %7242 = vrot.lane.b32.xlu0 %v7214, 112
    %v7243 = vpop.permute.xlu0 %7242
    %v7245 = vsel %vm346, %v6044, %v7219
    %v7246 = vsel %vm91, %v7245, %v7223
    %v7247 = vsel %vm1716, %v7246, %v7227
    %v7248 = vsel %vm1718, %v7247, %v7231
    %v7249 = vsel %vm1720, %v7248, %v7235
    %v7250 = vsel %vm1722, %v7249, %v7239
    %v7251 = vsel %vm1724, %v7250, %v7243
    %s7252 = scalar_lea.vmem %s7, 128
    %v7253 = vld [vmem:[%s7252] sm:$0xff]
    %v7254 = vld [vmem:[%s7252 + $0x8] sm:$0xff]
    %v7255 = vld [vmem:[%s7252 + $0x10] sm:$0xff]
    %v7256 = vld [vmem:[%s7252 + $0x18] sm:$0xff]
    %v7257 = vld [vmem:[%s7252 + $0x20] sm:$0xff]
    %v7258 = vld [vmem:[%s7252 + $0x28] sm:$0xff]
    %v7259 = vld [vmem:[%s7252 + $0x30] sm:$0xff]
    %v7260 = vld [vmem:[%s7252 + $0x38] sm:$0xff]
    %v7261 = vld [vmem:[%s7252 + $0x40] sm:$0xff]
    %v7262 = vld [vmem:[%s7252 + $0x48] sm:$0xff]
    %v7263 = vld [vmem:[%s7252 + $0x50] sm:$0xff]
    %v7264 = vld [vmem:[%s7252 + $0x58] sm:$0xff]
    %v7265 = vld [vmem:[%s7252 + $0x60] sm:$0xff]
    %v7266 = vld [vmem:[%s7252 + $0x68] sm:$0xff]
    %v7267 = vld [vmem:[%s7252 + $0x70] sm:$0xff]
    %v7268 = vld [vmem:[%s7252 + $0x78] sm:$0xff]
    %s7269 = scalar_lea.vmem %s8, 1
    %v7270 = vld [vmem:[%s7269] sm:$0x1]
    %v7272 = vlaneseq
    %v7273 = vshrl.u32 %v7272, 7
    %v7274 = vsub.s32 0, %v7273
    %v7275 = vrot.slane %v7270, %v7274
    %7277 = vmatprep.subr.mxu0 0.0
    %7278 = vmatpush1.msra.mxu0 %v7253
    %7279 = vmatprep.subr.mxu0 0.0
    %7280 = vmatpush1.msra.mxu0 %v7254
    %7281 = vmatprep.subr.mxu0 0.0
    %7282 = vmatpush1.msra.mxu0 %v7255
    %7283 = vmatprep.subr.mxu0 0.0
    %7284 = vmatpush1.msra.mxu0 %v7256
    %7285 = vmatprep.subr.mxu0 0.0
    %7286 = vmatpush1.msra.mxu0 %v7257
    %7287 = vmatprep.subr.mxu0 0.0
    %7288 = vmatpush1.msra.mxu0 %v7258
    %7289 = vmatprep.subr.mxu0 0.0
    %7290 = vmatpush1.msra.mxu0 %v7259
    %7291 = vmatprep.subr.mxu0 0.0
    %7292 = vmatpush1.msra.mxu0 %v7260
    %7293 = vmatprep.subr.mxu0 0.0
    %7294 = vmatpush1.msra.mxu0 %v7261
    %7295 = vmatprep.subr.mxu0 0.0
    %7296 = vmatpush1.msra.mxu0 %v7262
    %7297 = vmatprep.subr.mxu0 0.0
    %7298 = vmatpush1.msra.mxu0 %v7263
    %7299 = vmatprep.subr.mxu0 0.0
    %7300 = vmatpush1.msra.mxu0 %v7264
    %7301 = vmatprep.subr.mxu0 0.0
    %7302 = vmatpush1.msra.mxu0 %v7265
    %7303 = vmatprep.subr.mxu0 0.0
    %7304 = vmatpush1.msra.mxu0 %v7266
    %7305 = vmatprep.subr.mxu0 0.0
    %7306 = vmatpush1.msra.mxu0 %v7267
    %7307 = vmatprep.subr.mxu0 0.0
    %7308 = vmatpush1.msra.mxu0 %v7268
    %7309 = vmatprep.subr.mxu0 0.0
    %7310 = vmatpush1.msra.mxu0 0.0
    %7311 = vmatprep.subr.mxu0 0.0
    %7312 = vmatpush1.msra.mxu0 0.0
    %7313 = vmatprep.subr.mxu0 0.0
    %7314 = vmatpush1.msra.mxu0 0.0
    %7315 = vmatprep.subr.mxu0 0.0
    %7316 = vmatpush1.msra.mxu0 0.0
    %7317 = vmatprep.subr.mxu0 0.0
    %7318 = vmatpush1.msra.mxu0 0.0
    %7319 = vmatprep.subr.mxu0 0.0
    %7320 = vmatpush1.msra.mxu0 0.0
    %7321 = vmatprep.subr.mxu0 0.0
    %7322 = vmatpush1.msra.mxu0 0.0
    %7323 = vmatprep.subr.mxu0 0.0
    %7324 = vmatpush1.msra.mxu0 0.0
    %7325 = vmatprep.subr.mxu0 0.0
    %7326 = vmatpush1.msra.mxu0 0.0
    %7327 = vmatprep.subr.mxu0 0.0
    %7328 = vmatpush1.msra.mxu0 0.0
    %7329 = vmatprep.subr.mxu0 0.0
    %7330 = vmatpush1.msra.mxu0 0.0
    %7331 = vmatprep.subr.mxu0 0.0
    %7332 = vmatpush1.msra.mxu0 0.0
    %7333 = vmatprep.subr.mxu0 0.0
    %7334 = vmatpush1.msra.mxu0 0.0
    %7335 = vmatprep.subr.mxu0 0.0
    %7336 = vmatpush1.msra.mxu0 0.0
    %7337 = vmatprep.subr.mxu0 0.0
    %7338 = vmatpush1.msra.mxu0 0.0
    %7339 = vmatprep.subr.mxu0 0.0
    %7340 = vmatpush1.msra.mxu0 0.0
    %7341 = vmatprep.mubr.f32.mxu0 0.0
    %7342 = vmatmul.mubr.f32.gmra.mrb[0].mxu0 %v5884
    %v7343 = vpop.f32.mrb[0].mxu0
    %v7344 = vadd.f32 %v7275, %v7343
    %v7345 = vpop.f32.mrb[0].mxu0
    %7346 = vmatprep.mubr.f32.mxu0 0.0
    %7347 = vmatmul.mubr.f32.gmra.mrb[0].mxu0 %v7251
    %v7348 = vpop.f32.mrb[0].mxu0
    %v7349 = vadd.f32 %v7275, %v7348
    %v7350 = vpop.f32.mrb[0].mxu0
    %7351 = vdwg.mxu0
    %v7352 = vmul.f32 %v7344, 0.25
    %v7353 = vmul.f32 %v7349, 0.25
    %v7354 = vadd.f32 %v4238, %v7352
    %v7355 = vadd.f32 %v4239, %v7353
    %s7356 = scalar_lea.vmem %s10, 1
    %v7357 = vld [vmem:[%s7356] sm:$0x1]
    %s7358 = scalar_lea.vmem %s11, 1
    %v7359 = vld [vmem:[%s7358] sm:$0x1]
    %v7360 = vsel %vm91, %v7354, 0.0
    %7361 = vadd.xlane.f32.xlu0 %v7360
    %v7362 = vpop.xlane.xlu0 %7361
    %v7363 = vsel %vm91, %v7355, 0.0
    %7364 = vadd.xlane.f32.xlu0 %v7363
    %v7365 = vpop.xlane.xlu0 %7364
    %v7366 = vmul.f32 %v7362, %v3203
    %v7367 = vmul.f32 %v7365, %v3203
    %v7368 = vsub.f32 %v7354, %v7366
    %v7369 = vsub.f32 %v7355, %v7367
    %v7370 = vmul.f32 %v7368, %v7368
    %v7371 = vmul.f32 %v7369, %v7369
    %v7372 = vsel %vm91, %v7370, 0.0
    %7373 = vadd.xlane.f32.xlu0 %v7372
    %v7374 = vpop.xlane.xlu0 %7373
    %v7375 = vsel %vm91, %v7371, 0.0
    %7376 = vadd.xlane.f32.xlu0 %v7375
    %v7377 = vpop.xlane.xlu0 %7376
    %v7378 = vmul.f32 %v7374, %v3203
    %v7379 = vmul.f32 %v7377, %v3203
    %v7380 = vadd.f32 %v7378, 1e-05
    %v7381 = vadd.f32 %v7379, 1e-05
    %v7382 = vrsqrt.pop %v7380
    %v7383 = vrsqrt.pop %v7381
    %v7384 = vmul.f32 %v7368, %v7382
    %v7385 = vmul.f32 %v7369, %v7383
    %v7387 = vlaneseq
    %v7388 = vshrl.u32 %v7387, 7
    %v7389 = vsub.s32 0, %v7388
    %v7390 = vrot.slane %v7357, %v7389
    %v7392 = vmul.f32 %v7384, %v7390
    %v7393 = vmul.f32 %v7385, %v7390
    %v7395 = vlaneseq
    %v7396 = vshrl.u32 %v7395, 7
    %v7397 = vsub.s32 0, %v7396
    %v7398 = vrot.slane %v7359, %v7397
    %v7400 = vadd.f32 %v7392, %v7398
    %v7401 = vadd.f32 %v7393, %v7398
    %s7402 = scalar_lea.vmem %s12, 128
    %v7403 = vld [vmem:[%s7402] sm:$0xff]
    %v7404 = vld [vmem:[%s7402 + $0x8] sm:$0xff]
    %v7405 = vld [vmem:[%s7402 + $0x10] sm:$0xff]
    %v7406 = vld [vmem:[%s7402 + $0x18] sm:$0xff]
    %v7407 = vld [vmem:[%s7402 + $0x20] sm:$0xff]
    %v7408 = vld [vmem:[%s7402 + $0x28] sm:$0xff]
    %v7409 = vld [vmem:[%s7402 + $0x30] sm:$0xff]
    %v7410 = vld [vmem:[%s7402 + $0x38] sm:$0xff]
    %v7411 = vld [vmem:[%s7402 + $0x40] sm:$0xff]
    %v7412 = vld [vmem:[%s7402 + $0x48] sm:$0xff]
    %v7413 = vld [vmem:[%s7402 + $0x50] sm:$0xff]
    %v7414 = vld [vmem:[%s7402 + $0x58] sm:$0xff]
    %v7415 = vld [vmem:[%s7402 + $0x60] sm:$0xff]
    %v7416 = vld [vmem:[%s7402 + $0x68] sm:$0xff]
    %v7417 = vld [vmem:[%s7402 + $0x70] sm:$0xff]
    %v7418 = vld [vmem:[%s7402 + $0x78] sm:$0xff]
    %s7419 = scalar_lea.vmem %s13, 4
    %v7420 = vld [vmem:[%s7419] sm:$0xf]
    %v7422 = vlaneseq
    %v7423 = vshrl.u32 %v7422, 7
    %v7424 = vsub.s32 0, %v7423
    %v7425 = vrot.slane %v7420, %v7424
    %v7426 = vlaneseq
    %v7427 = vshrl.u32 %v7426, 7
    %v7428 = vsub.s32 1, %v7427
    %v7429 = vrot.slane %v7420, %v7428
    %v7430 = vlaneseq
    %v7431 = vshrl.u32 %v7430, 7
    %v7432 = vsub.s32 2, %v7431
    %v7433 = vrot.slane %v7420, %v7432
    %v7434 = vlaneseq
    %v7435 = vshrl.u32 %v7434, 7
    %v7436 = vsub.s32 3, %v7435
    %v7437 = vrot.slane %v7420, %v7436
    %v7443 = vsel %vm91, %v7400, 0
    %v7446 = vsel %vm91, %v7401, 0
    %7448 = vmatprep.subr.mxu0 %v7404
    %7449 = vmatpush1.msra.mxu0 %v7403
    %7450 = vmatprep.subr.mxu0 %v7408
    %7451 = vmatpush1.msra.mxu0 %v7407
    %7452 = vmatprep.subr.mxu0 %v7412
    %7453 = vmatpush1.msra.mxu0 %v7411
    %7454 = vmatprep.subr.mxu0 %v7416
    %7455 = vmatpush1.msra.mxu0 %v7415
    %7456 = vmatprep.subr.mxu0 0.0
    %7457 = vmatpush1.msra.mxu0 0.0
    %7458 = vmatprep.subr.mxu0 0.0
    %7459 = vmatpush1.msra.mxu0 0.0
    %7460 = vmatprep.subr.mxu0 0.0
    %7461 = vmatpush1.msra.mxu0 0.0
    %7462 = vmatprep.subr.mxu0 0.0
    %7463 = vmatpush1.msra.mxu0 0.0
    %7464 = vmatprep.subr.mxu0 0.0
    %7465 = vmatpush1.msra.mxu0 0.0
    %7466 = vmatprep.subr.mxu0 0.0
    %7467 = vmatpush1.msra.mxu0 0.0
    %7468 = vmatprep.subr.mxu0 0.0
    %7469 = vmatpush1.msra.mxu0 0.0
    %7470 = vmatprep.subr.mxu0 0.0
    %7471 = vmatpush1.msra.mxu0 0.0
    %7472 = vmatprep.subr.mxu0 0.0
    %7473 = vmatpush1.msra.mxu0 0.0
    %7474 = vmatprep.subr.mxu0 0.0
    %7475 = vmatpush1.msra.mxu0 0.0
    %7476 = vmatprep.subr.mxu0 0.0
    %7477 = vmatpush1.msra.mxu0 0.0
    %7478 = vmatprep.subr.mxu0 0.0
    %7479 = vmatpush1.msra.mxu0 0.0
    %7480 = vmatprep.subr.mxu0 0.0
    %7481 = vmatpush1.msra.mxu0 0.0
    %7482 = vmatprep.subr.mxu0 0.0
    %7483 = vmatpush1.msra.mxu0 0.0
    %7484 = vmatprep.subr.mxu0 0.0
    %7485 = vmatpush1.msra.mxu0 0.0
    %7486 = vmatprep.subr.mxu0 0.0
    %7487 = vmatpush1.msra.mxu0 0.0
    %7488 = vmatprep.subr.mxu0 0.0
    %7489 = vmatpush1.msra.mxu0 0.0
    %7490 = vmatprep.subr.mxu0 0.0
    %7491 = vmatpush1.msra.mxu0 0.0
    %7492 = vmatprep.subr.mxu0 0.0
    %7493 = vmatpush1.msra.mxu0 0.0
    %7494 = vmatprep.subr.mxu0 0.0
    %7495 = vmatpush1.msra.mxu0 0.0
    %7496 = vmatprep.subr.mxu0 0.0
    %7497 = vmatpush1.msra.mxu0 0.0
    %7498 = vmatprep.subr.mxu0 0.0
    %7499 = vmatpush1.msra.mxu0 0.0
    %7500 = vmatprep.subr.mxu0 0.0
    %7501 = vmatpush1.msra.mxu0 0.0
    %7502 = vmatprep.subr.mxu0 0.0
    %7503 = vmatpush1.msra.mxu0 0.0
    %7504 = vmatprep.subr.mxu0 0.0
    %7505 = vmatpush1.msra.mxu0 0.0
    %7506 = vmatprep.subr.mxu0 0.0
    %7507 = vmatpush1.msra.mxu0 0.0
    %7508 = vmatprep.subr.mxu0 0.0
    %7509 = vmatpush1.msra.mxu0 0.0
    %7510 = vmatprep.subr.mxu0 0.0
    %7511 = vmatpush1.msra.mxu0 0.0
    %7512 = vmatprep.mubr.f32.mxu0 0.0
    %7513 = vmatmul.mubr.f32.gmra.mrb[0].mxu0 %v7443
    %v7514 = vpop.f32.mrb[0].mxu0
    %v7515 = vadd.f32 %v7425, %v7514
    %v7516 = vpop.f32.mrb[0].mxu0
    %v7517 = vadd.f32 %v7429, %v7516
    %7518 = vmatprep.mubr.f32.mxu0 0.0
    %7519 = vmatmul.mubr.f32.gmra.mrb[0].mxu0 %v7446
    %v7520 = vpop.f32.mrb[0].mxu0
    %v7521 = vadd.f32 %v7425, %v7520
    %v7522 = vpop.f32.mrb[0].mxu0
    %v7523 = vadd.f32 %v7429, %v7522
    %7524 = vdwg.mxu0
    %7525 = vmatprep.subr.mxu0 %v7406
    %7526 = vmatpush1.msra.mxu0 %v7405
    %7527 = vmatprep.subr.mxu0 %v7410
    %7528 = vmatpush1.msra.mxu0 %v7409
    %7529 = vmatprep.subr.mxu0 %v7414
    %7530 = vmatpush1.msra.mxu0 %v7413
    %7531 = vmatprep.subr.mxu0 %v7418
    %7532 = vmatpush1.msra.mxu0 %v7417
    %7533 = vmatprep.subr.mxu0 0.0
    %7534 = vmatpush1.msra.mxu0 0.0
    %7535 = vmatprep.subr.mxu0 0.0
    %7536 = vmatpush1.msra.mxu0 0.0
    %7537 = vmatprep.subr.mxu0 0.0
    %7538 = vmatpush1.msra.mxu0 0.0
    %7539 = vmatprep.subr.mxu0 0.0
    %7540 = vmatpush1.msra.mxu0 0.0
    %7541 = vmatprep.subr.mxu0 0.0
    %7542 = vmatpush1.msra.mxu0 0.0
    %7543 = vmatprep.subr.mxu0 0.0
    %7544 = vmatpush1.msra.mxu0 0.0
    %7545 = vmatprep.subr.mxu0 0.0
    %7546 = vmatpush1.msra.mxu0 0.0
    %7547 = vmatprep.subr.mxu0 0.0
    %7548 = vmatpush1.msra.mxu0 0.0
    %7549 = vmatprep.subr.mxu0 0.0
    %7550 = vmatpush1.msra.mxu0 0.0
    %7551 = vmatprep.subr.mxu0 0.0
    %7552 = vmatpush1.msra.mxu0 0.0
    %7553 = vmatprep.subr.mxu0 0.0
    %7554 = vmatpush1.msra.mxu0 0.0
    %7555 = vmatprep.subr.mxu0 0.0
    %7556 = vmatpush1.msra.mxu0 0.0
    %7557 = vmatprep.subr.mxu0 0.0
    %7558 = vmatpush1.msra.mxu0 0.0
    %7559 = vmatprep.subr.mxu0 0.0
    %7560 = vmatpush1.msra.mxu0 0.0
    %7561 = vmatprep.subr.mxu0 0.0
    %7562 = vmatpush1.msra.mxu0 0.0
    %7563 = vmatprep.subr.mxu0 0.0
    %7564 = vmatpush1.msra.mxu0 0.0
    %7565 = vmatprep.subr.mxu0 0.0
    %7566 = vmatpush1.msra.mxu0 0.0
    %7567 = vmatprep.subr.mxu0 0.0
    %7568 = vmatpush1.msra.mxu0 0.0
    %7569 = vmatprep.subr.mxu0 0.0
    %7570 = vmatpush1.msra.mxu0 0.0
    %7571 = vmatprep.subr.mxu0 0.0
    %7572 = vmatpush1.msra.mxu0 0.0
    %7573 = vmatprep.subr.mxu0 0.0
    %7574 = vmatpush1.msra.mxu0 0.0
    %7575 = vmatprep.subr.mxu0 0.0
    %7576 = vmatpush1.msra.mxu0 0.0
    %7577 = vmatprep.subr.mxu0 0.0
    %7578 = vmatpush1.msra.mxu0 0.0
    %7579 = vmatprep.subr.mxu0 0.0
    %7580 = vmatpush1.msra.mxu0 0.0
    %7581 = vmatprep.subr.mxu0 0.0
    %7582 = vmatpush1.msra.mxu0 0.0
    %7583 = vmatprep.subr.mxu0 0.0
    %7584 = vmatpush1.msra.mxu0 0.0
    %7585 = vmatprep.subr.mxu0 0.0
    %7586 = vmatpush1.msra.mxu0 0.0
    %7587 = vmatprep.subr.mxu0 0.0
    %7588 = vmatpush1.msra.mxu0 0.0
    %7589 = vmatprep.mubr.f32.mxu0 0.0
    %7590 = vmatmul.mubr.f32.gmra.mrb[0].mxu0 %v7443
    %v7591 = vpop.f32.mrb[0].mxu0
    %v7592 = vadd.f32 %v7433, %v7591
    %v7593 = vpop.f32.mrb[0].mxu0
    %v7594 = vadd.f32 %v7437, %v7593
    %7595 = vmatprep.mubr.f32.mxu0 0.0
    %7596 = vmatmul.mubr.f32.gmra.mrb[0].mxu0 %v7446
    %v7597 = vpop.f32.mrb[0].mxu0
    %v7598 = vadd.f32 %v7433, %v7597
    %v7599 = vpop.f32.mrb[0].mxu0
    %v7600 = vadd.f32 %v7437, %v7599
    %7601 = vdwg.mxu0
    %v7602 = vmul.f32 %v7515, 0.5
    %v7603 = vmul.f32 %v7517, 0.5
    %v7604 = vmul.f32 %v7592, 0.5
    %v7605 = vmul.f32 %v7594, 0.5
    %v7606 = vmul.f32 %v7521, 0.5
    %v7607 = vmul.f32 %v7523, 0.5
    %v7608 = vmul.f32 %v7598, 0.5
    %v7609 = vmul.f32 %v7600, 0.5
    %v7610 = vmul.f32 %v7515, 0.70710677
    %v7611 = vmul.f32 %v7517, 0.70710677
    %v7612 = vmul.f32 %v7592, 0.70710677
    %v7613 = vmul.f32 %v7594, 0.70710677
    %v7614 = vmul.f32 %v7521, 0.70710677
    %v7615 = vmul.f32 %v7523, 0.70710677
    %v7616 = vmul.f32 %v7598, 0.70710677
    %v7617 = vmul.f32 %v7600, 0.70710677
    %v7618 = verf.f32.pop %v7610
    %v7619 = verf.f32.pop %v7611
    %v7620 = verf.f32.pop %v7612
    %v7621 = verf.f32.pop %v7613
    %v7622 = verf.f32.pop %v7614
    %v7623 = verf.f32.pop %v7615
    %v7624 = verf.f32.pop %v7616
    %v7625 = verf.f32.pop %v7617
    %v7626 = vadd.f32 %v7618, 1.0
    %v7627 = vadd.f32 %v7619, 1.0
    %v7628 = vadd.f32 %v7620, 1.0
    %v7629 = vadd.f32 %v7621, 1.0
    %v7630 = vadd.f32 %v7622, 1.0
    %v7631 = vadd.f32 %v7623, 1.0
    %v7632 = vadd.f32 %v7624, 1.0
    %v7633 = vadd.f32 %v7625, 1.0
    %v7634 = vmul.f32 %v7602, %v7626
    %v7635 = vmul.f32 %v7603, %v7627
    %v7636 = vmul.f32 %v7604, %v7628
    %v7637 = vmul.f32 %v7605, %v7629
    %v7638 = vmul.f32 %v7606, %v7630
    %v7639 = vmul.f32 %v7607, %v7631
    %v7640 = vmul.f32 %v7608, %v7632
    %v7641 = vmul.f32 %v7609, %v7633
    %s7642 = scalar_lea.vmem %s16, 32
    %v7643 = vld [vmem:[%s7642] sm:$0xff]
    %v7644 = vld [vmem:[%s7642 + $0x8] sm:$0xff]
    %v7645 = vld [vmem:[%s7642 + $0x10] sm:$0xff]
    %v7646 = vld [vmem:[%s7642 + $0x18] sm:$0xff]
    %s7647 = scalar_lea.vmem %s17, 1
    %v7648 = vld [vmem:[%s7647] sm:$0x1]
    %v7650 = vlaneseq
    %v7651 = vshrl.u32 %v7650, 7
    %v7652 = vsub.s32 0, %v7651
    %v7653 = vrot.slane %v7648, %v7652
    %7655 = vmatprep.subr.mxu0 0.0
    %7656 = vmatpush1.msra.mxu0 %v7643
    %7657 = vmatprep.subr.mxu0 0.0
    %7658 = vmatpush1.msra.mxu0 %v7644
    %7659 = vmatprep.subr.mxu0 0.0
    %7660 = vmatpush1.msra.mxu0 %v7645
    %7661 = vmatprep.subr.mxu0 0.0
    %7662 = vmatpush1.msra.mxu0 %v7646
    %7663 = vmatprep.subr.mxu0 0.0
    %7664 = vmatpush1.msra.mxu0 0.0
    %7665 = vmatprep.subr.mxu0 0.0
    %7666 = vmatpush1.msra.mxu0 0.0
    %7667 = vmatprep.subr.mxu0 0.0
    %7668 = vmatpush1.msra.mxu0 0.0
    %7669 = vmatprep.subr.mxu0 0.0
    %7670 = vmatpush1.msra.mxu0 0.0
    %7671 = vmatprep.subr.mxu0 0.0
    %7672 = vmatpush1.msra.mxu0 0.0
    %7673 = vmatprep.subr.mxu0 0.0
    %7674 = vmatpush1.msra.mxu0 0.0
    %7675 = vmatprep.subr.mxu0 0.0
    %7676 = vmatpush1.msra.mxu0 0.0
    %7677 = vmatprep.subr.mxu0 0.0
    %7678 = vmatpush1.msra.mxu0 0.0
    %7679 = vmatprep.subr.mxu0 0.0
    %7680 = vmatpush1.msra.mxu0 0.0
    %7681 = vmatprep.subr.mxu0 0.0
    %7682 = vmatpush1.msra.mxu0 0.0
    %7683 = vmatprep.subr.mxu0 0.0
    %7684 = vmatpush1.msra.mxu0 0.0
    %7685 = vmatprep.subr.mxu0 0.0
    %7686 = vmatpush1.msra.mxu0 0.0
    %7687 = vmatprep.subr.mxu0 0.0
    %7688 = vmatpush1.msra.mxu0 0.0
    %7689 = vmatprep.subr.mxu0 0.0
    %7690 = vmatpush1.msra.mxu0 0.0
    %7691 = vmatprep.subr.mxu0 0.0
    %7692 = vmatpush1.msra.mxu0 0.0
    %7693 = vmatprep.subr.mxu0 0.0
    %7694 = vmatpush1.msra.mxu0 0.0
    %7695 = vmatprep.subr.mxu0 0.0
    %7696 = vmatpush1.msra.mxu0 0.0
    %7697 = vmatprep.subr.mxu0 0.0
    %7698 = vmatpush1.msra.mxu0 0.0
    %7699 = vmatprep.subr.mxu0 0.0
    %7700 = vmatpush1.msra.mxu0 0.0
    %7701 = vmatprep.subr.mxu0 0.0
    %7702 = vmatpush1.msra.mxu0 0.0
    %7703 = vmatprep.subr.mxu0 0.0
    %7704 = vmatpush1.msra.mxu0 0.0
    %7705 = vmatprep.subr.mxu0 0.0
    %7706 = vmatpush1.msra.mxu0 0.0
    %7707 = vmatprep.subr.mxu0 0.0
    %7708 = vmatpush1.msra.mxu0 0.0
    %7709 = vmatprep.subr.mxu0 0.0
    %7710 = vmatpush1.msra.mxu0 0.0
    %7711 = vmatprep.subr.mxu0 0.0
    %7712 = vmatpush1.msra.mxu0 0.0
    %7713 = vmatprep.subr.mxu0 0.0
    %7714 = vmatpush1.msra.mxu0 0.0
    %7715 = vmatprep.subr.mxu0 0.0
    %7716 = vmatpush1.msra.mxu0 0.0
    %7717 = vmatprep.subr.mxu0 0.0
    %7718 = vmatpush1.msra.mxu0 0.0
    %7719 = vmatprep.mubr.f32.mxu0 0.0
    %7720 = vmatmul.mubr.f32.gmra.mrb[0].mxu0 %v7443
    %v7721 = vpop.f32.mrb[0].mxu0
    %v7722 = vadd.f32 %v7653, %v7721
    %v7723 = vpop.f32.mrb[0].mxu0
    %7724 = vmatprep.mubr.f32.mxu0 0.0
    %7725 = vmatmul.mubr.f32.gmra.mrb[0].mxu0 %v7446
    %v7726 = vpop.f32.mrb[0].mxu0
    %v7727 = vadd.f32 %v7653, %v7726
    %v7728 = vpop.f32.mrb[0].mxu0
    %7729 = vdwg.mxu0
    %v7730 = vxor.u32 %v7722, 2147483648
    %v7731 = vxor.u32 %v7727, 2147483648
    %v7732 = vmul.f32 %v7730, 1.442695
    %v7733 = vpow.pop %v7732
    %v7734 = vmul.f32 %v7731, 1.442695
    %v7735 = vpow.pop %v7734
    %v7736 = vadd.f32 %v7733, 1.0
    %v7737 = vadd.f32 %v7735, 1.0
    %v7738 = vrcp.pop %v7736
    %v7739 = vmul.f32 1.0, %v7738
    %v7740 = vrcp.pop %v7737
    %v7741 = vmul.f32 1.0, %v7740
    %s7742 = scalar_lea.vmem %s14, 512
    %v7743 = vld [vmem:[%s7742] sm:$0xff]
    %v7744 = vld [vmem:[%s7742 + $0x8] sm:$0xff]
    %v7745 = vld [vmem:[%s7742 + $0x10] sm:$0xff]
    %v7746 = vld [vmem:[%s7742 + $0x18] sm:$0xff]
    %v7747 = vld [vmem:[%s7742 + $0x20] sm:$0xff]
    %v7748 = vld [vmem:[%s7742 + $0x28] sm:$0xff]
    %v7749 = vld [vmem:[%s7742 + $0x30] sm:$0xff]
    %v7750 = vld [vmem:[%s7742 + $0x38] sm:$0xff]
    %v7751 = vld [vmem:[%s7742 + $0x40] sm:$0xff]
    %v7752 = vld [vmem:[%s7742 + $0x48] sm:$0xff]
    %v7753 = vld [vmem:[%s7742 + $0x50] sm:$0xff]
    %v7754 = vld [vmem:[%s7742 + $0x58] sm:$0xff]
    %v7755 = vld [vmem:[%s7742 + $0x60] sm:$0xff]
    %v7756 = vld [vmem:[%s7742 + $0x68] sm:$0xff]
    %v7757 = vld [vmem:[%s7742 + $0x70] sm:$0xff]
    %v7758 = vld [vmem:[%s7742 + $0x78] sm:$0xff]
    %s7759 = scalar_lea.vmem %s15, 4
    %v7760 = vld [vmem:[%s7759] sm:$0x1]
    %v7762 = vlaneseq
    %v7763 = vshrl.u32 %v7762, 7
    %v7764 = vsub.s32 0, %v7763
    %v7765 = vrot.slane %v7760, %v7764
    %7767 = vmatprep.subr.mxu0 0.0
    %7768 = vmatpush1.msra.mxu0 %v7743
    %7769 = vmatprep.subr.mxu0 0.0
    %7770 = vmatpush1.msra.mxu0 %v7744
    %7771 = vmatprep.subr.mxu0 0.0
    %7772 = vmatpush1.msra.mxu0 %v7745
    %7773 = vmatprep.subr.mxu0 0.0
    %7774 = vmatpush1.msra.mxu0 %v7746
    %7775 = vmatprep.subr.mxu0 0.0
    %7776 = vmatpush1.msra.mxu0 %v7747
    %7777 = vmatprep.subr.mxu0 0.0
    %7778 = vmatpush1.msra.mxu0 %v7748
    %7779 = vmatprep.subr.mxu0 0.0
    %7780 = vmatpush1.msra.mxu0 %v7749
    %7781 = vmatprep.subr.mxu0 0.0
    %7782 = vmatpush1.msra.mxu0 %v7750
    %7783 = vmatprep.subr.mxu0 0.0
    %7784 = vmatpush1.msra.mxu0 %v7751
    %7785 = vmatprep.subr.mxu0 0.0
    %7786 = vmatpush1.msra.mxu0 %v7752
    %7787 = vmatprep.subr.mxu0 0.0
    %7788 = vmatpush1.msra.mxu0 %v7753
    %7789 = vmatprep.subr.mxu0 0.0
    %7790 = vmatpush1.msra.mxu0 %v7754
    %7791 = vmatprep.subr.mxu0 0.0
    %7792 = vmatpush1.msra.mxu0 %v7755
    %7793 = vmatprep.subr.mxu0 0.0
    %7794 = vmatpush1.msra.mxu0 %v7756
    %7795 = vmatprep.subr.mxu0 0.0
    %7796 = vmatpush1.msra.mxu0 %v7757
    %7797 = vmatprep.subr.mxu0 0.0
    %7798 = vmatpush1.msra.mxu0 %v7758
    %7799 = vmatprep.subr.mxu0 0.0
    %7800 = vmatpush1.msra.mxu0 0.0
    %7801 = vmatprep.subr.mxu0 0.0
    %7802 = vmatpush1.msra.mxu0 0.0
    %7803 = vmatprep.subr.mxu0 0.0
    %7804 = vmatpush1.msra.mxu0 0.0
    %7805 = vmatprep.subr.mxu0 0.0
    %7806 = vmatpush1.msra.mxu0 0.0
    %7807 = vmatprep.subr.mxu0 0.0
    %7808 = vmatpush1.msra.mxu0 0.0
    %7809 = vmatprep.subr.mxu0 0.0
    %7810 = vmatpush1.msra.mxu0 0.0
    %7811 = vmatprep.subr.mxu0 0.0
    %7812 = vmatpush1.msra.mxu0 0.0
    %7813 = vmatprep.subr.mxu0 0.0
    %7814 = vmatpush1.msra.mxu0 0.0
    %7815 = vmatprep.subr.mxu0 0.0
    %7816 = vmatpush1.msra.mxu0 0.0
    %7817 = vmatprep.subr.mxu0 0.0
    %7818 = vmatpush1.msra.mxu0 0.0
    %7819 = vmatprep.subr.mxu0 0.0
    %7820 = vmatpush1.msra.mxu0 0.0
    %7821 = vmatprep.subr.mxu0 0.0
    %7822 = vmatpush1.msra.mxu0 0.0
    %7823 = vmatprep.subr.mxu0 0.0
    %7824 = vmatpush1.msra.mxu0 0.0
    %7825 = vmatprep.subr.mxu0 0.0
    %7826 = vmatpush1.msra.mxu0 0.0
    %7827 = vmatprep.subr.mxu0 0.0
    %7828 = vmatpush1.msra.mxu0 0.0
    %7829 = vmatprep.subr.mxu0 0.0
    %7830 = vmatpush1.msra.mxu0 0.0
    %7831 = vmatprep.mubr.f32.mxu0 0.0
    %7832 = vmatmul.mubr.f32.gmra.mrb[0].mxu0 %v7634
    %v7833 = vpop.f32.mrb[0].mxu0
    %v7834 = vadd.f32 %v7765, %v7833
    %v7835 = vpop.f32.mrb[0].mxu0
    %7836 = vmatprep.mubr.f32.mxu0 0.0
    %7837 = vmatmul.mubr.f32.gmra.mrb[0].mxu0 %v7638
    %v7838 = vpop.f32.mrb[0].mxu0
    %v7839 = vadd.f32 %v7765, %v7838
    %v7840 = vpop.f32.mrb[0].mxu0
    %7841 = vdwg.mxu0
    %v7842 = vmul.f32 %v7834, %v7739
    %v7843 = vmul.f32 %v7839, %v7741
    %s7844 = scalar_lea.vmem %s18, 4
    %v7845 = vld [vmem:[%s7844] sm:$0x1]
    %s7846 = scalar_lea.vmem %s19, 4
    %v7847 = vld [vmem:[%s7846] sm:$0x1]
    %v7848 = vsel %vm91, %v7842, 0.0
    %7849 = vadd.xlane.f32.xlu0 %v7848
    %v7850 = vpop.xlane.xlu0 %7849
    %v7851 = vsel %vm91, %v7843, 0.0
    %7852 = vadd.xlane.f32.xlu0 %v7851
    %v7853 = vpop.xlane.xlu0 %7852
    %v7854 = vmul.f32 %v7850, %v3203
    %v7855 = vmul.f32 %v7853, %v3203
    %v7856 = vsub.f32 %v7842, %v7854
    %v7857 = vsub.f32 %v7843, %v7855
    %v7858 = vmul.f32 %v7856, %v7856
    %v7859 = vmul.f32 %v7857, %v7857
    %v7860 = vsel %vm91, %v7858, 0.0
    %7861 = vadd.xlane.f32.xlu0 %v7860
    %v7862 = vpop.xlane.xlu0 %7861
    %v7863 = vsel %vm91, %v7859, 0.0
    %7864 = vadd.xlane.f32.xlu0 %v7863
    %v7865 = vpop.xlane.xlu0 %7864
    %v7866 = vmul.f32 %v7862, %v3203
    %v7867 = vmul.f32 %v7865, %v3203
    %v7868 = vadd.f32 %v7866, 1e-05
    %v7869 = vadd.f32 %v7867, 1e-05
    %v7870 = vrsqrt.pop %v7868
    %v7871 = vrsqrt.pop %v7869
    %v7872 = vmul.f32 %v7856, %v7870
    %v7873 = vmul.f32 %v7857, %v7871
    %v7875 = vlaneseq
    %v7876 = vshrl.u32 %v7875, 7
    %v7877 = vsub.s32 0, %v7876
    %v7878 = vrot.slane %v7845, %v7877
    %v7880 = vmul.f32 %v7872, %v7878
    %v7881 = vmul.f32 %v7873, %v7878
    %v7883 = vlaneseq
    %v7884 = vshrl.u32 %v7883, 7
    %v7885 = vsub.s32 0, %v7884
    %v7886 = vrot.slane %v7847, %v7885
    %v7888 = vadd.f32 %v7880, %v7886
    %v7889 = vadd.f32 %v7881, %v7886
    %v7890 = vadd.f32 %v7888, 0.0
    %v7891 = vadd.f32 %v7889, 0.0
    %s7892 = scalar_lea.vmem %s14, 640
    %v7893 = vld [vmem:[%s7892] sm:$0xff]
    %v7894 = vld [vmem:[%s7892 + $0x8] sm:$0xff]
    %v7895 = vld [vmem:[%s7892 + $0x10] sm:$0xff]
    %v7896 = vld [vmem:[%s7892 + $0x18] sm:$0xff]
    %v7897 = vld [vmem:[%s7892 + $0x20] sm:$0xff]
    %v7898 = vld [vmem:[%s7892 + $0x28] sm:$0xff]
    %v7899 = vld [vmem:[%s7892 + $0x30] sm:$0xff]
    %v7900 = vld [vmem:[%s7892 + $0x38] sm:$0xff]
    %v7901 = vld [vmem:[%s7892 + $0x40] sm:$0xff]
    %v7902 = vld [vmem:[%s7892 + $0x48] sm:$0xff]
    %v7903 = vld [vmem:[%s7892 + $0x50] sm:$0xff]
    %v7904 = vld [vmem:[%s7892 + $0x58] sm:$0xff]
    %v7905 = vld [vmem:[%s7892 + $0x60] sm:$0xff]
    %v7906 = vld [vmem:[%s7892 + $0x68] sm:$0xff]
    %v7907 = vld [vmem:[%s7892 + $0x70] sm:$0xff]
    %v7908 = vld [vmem:[%s7892 + $0x78] sm:$0xff]
    %s7909 = scalar_lea.vmem %s15, 5
    %v7910 = vld [vmem:[%s7909] sm:$0x1]
    %v7912 = vlaneseq
    %v7913 = vshrl.u32 %v7912, 7
    %v7914 = vsub.s32 0, %v7913
    %v7915 = vrot.slane %v7910, %v7914
    %7917 = vmatprep.subr.mxu0 0.0
    %7918 = vmatpush1.msra.mxu0 %v7893
    %7919 = vmatprep.subr.mxu0 0.0
    %7920 = vmatpush1.msra.mxu0 %v7894
    %7921 = vmatprep.subr.mxu0 0.0
    %7922 = vmatpush1.msra.mxu0 %v7895
    %7923 = vmatprep.subr.mxu0 0.0
    %7924 = vmatpush1.msra.mxu0 %v7896
    %7925 = vmatprep.subr.mxu0 0.0
    %7926 = vmatpush1.msra.mxu0 %v7897
    %7927 = vmatprep.subr.mxu0 0.0
    %7928 = vmatpush1.msra.mxu0 %v7898
    %7929 = vmatprep.subr.mxu0 0.0
    %7930 = vmatpush1.msra.mxu0 %v7899
    %7931 = vmatprep.subr.mxu0 0.0
    %7932 = vmatpush1.msra.mxu0 %v7900
    %7933 = vmatprep.subr.mxu0 0.0
    %7934 = vmatpush1.msra.mxu0 %v7901
    %7935 = vmatprep.subr.mxu0 0.0
    %7936 = vmatpush1.msra.mxu0 %v7902
    %7937 = vmatprep.subr.mxu0 0.0
    %7938 = vmatpush1.msra.mxu0 %v7903
    %7939 = vmatprep.subr.mxu0 0.0
    %7940 = vmatpush1.msra.mxu0 %v7904
    %7941 = vmatprep.subr.mxu0 0.0
    %7942 = vmatpush1.msra.mxu0 %v7905
    %7943 = vmatprep.subr.mxu0 0.0
    %7944 = vmatpush1.msra.mxu0 %v7906
    %7945 = vmatprep.subr.mxu0 0.0
    %7946 = vmatpush1.msra.mxu0 %v7907
    %7947 = vmatprep.subr.mxu0 0.0
    %7948 = vmatpush1.msra.mxu0 %v7908
    %7949 = vmatprep.subr.mxu0 0.0
    %7950 = vmatpush1.msra.mxu0 0.0
    %7951 = vmatprep.subr.mxu0 0.0
    %7952 = vmatpush1.msra.mxu0 0.0
    %7953 = vmatprep.subr.mxu0 0.0
    %7954 = vmatpush1.msra.mxu0 0.0
    %7955 = vmatprep.subr.mxu0 0.0
    %7956 = vmatpush1.msra.mxu0 0.0
    %7957 = vmatprep.subr.mxu0 0.0
    %7958 = vmatpush1.msra.mxu0 0.0
    %7959 = vmatprep.subr.mxu0 0.0
    %7960 = vmatpush1.msra.mxu0 0.0
    %7961 = vmatprep.subr.mxu0 0.0
    %7962 = vmatpush1.msra.mxu0 0.0
    %7963 = vmatprep.subr.mxu0 0.0
    %7964 = vmatpush1.msra.mxu0 0.0
    %7965 = vmatprep.subr.mxu0 0.0
    %7966 = vmatpush1.msra.mxu0 0.0
    %7967 = vmatprep.subr.mxu0 0.0
    %7968 = vmatpush1.msra.mxu0 0.0
    %7969 = vmatprep.subr.mxu0 0.0
    %7970 = vmatpush1.msra.mxu0 0.0
    %7971 = vmatprep.subr.mxu0 0.0
    %7972 = vmatpush1.msra.mxu0 0.0
    %7973 = vmatprep.subr.mxu0 0.0
    %7974 = vmatpush1.msra.mxu0 0.0
    %7975 = vmatprep.subr.mxu0 0.0
    %7976 = vmatpush1.msra.mxu0 0.0
    %7977 = vmatprep.subr.mxu0 0.0
    %7978 = vmatpush1.msra.mxu0 0.0
    %7979 = vmatprep.subr.mxu0 0.0
    %7980 = vmatpush1.msra.mxu0 0.0
    %7981 = vmatprep.mubr.f32.mxu0 0.0
    %7982 = vmatmul.mubr.f32.gmra.mrb[0].mxu0 %v7635
    %v7983 = vpop.f32.mrb[0].mxu0
    %v7984 = vadd.f32 %v7915, %v7983
    %v7985 = vpop.f32.mrb[0].mxu0
    %7986 = vmatprep.mubr.f32.mxu0 0.0
    %7987 = vmatmul.mubr.f32.gmra.mrb[0].mxu0 %v7639
    %v7988 = vpop.f32.mrb[0].mxu0
    %v7989 = vadd.f32 %v7915, %v7988
    %v7990 = vpop.f32.mrb[0].mxu0
    %7991 = vdwg.mxu0
    %7994 = vrot.lane.b32.xlu0 %v7739, 96
    %v7995 = vpop.permute.xlu0 %7994
    %7996 = vrot.lane.b32.xlu0 %v7741, 96
    %v7997 = vpop.permute.xlu0 %7996
    %v8000 = vmul.f32 %v7984, %v7995
    %v8001 = vmul.f32 %v7989, %v7997
    %s8002 = scalar_lea.vmem %s18, 5
    %v8003 = vld [vmem:[%s8002] sm:$0x1]
    %s8004 = scalar_lea.vmem %s19, 5
    %v8005 = vld [vmem:[%s8004] sm:$0x1]
    %v8006 = vsel %vm91, %v8000, 0.0
    %8007 = vadd.xlane.f32.xlu0 %v8006
    %v8008 = vpop.xlane.xlu0 %8007
    %v8009 = vsel %vm91, %v8001, 0.0
    %8010 = vadd.xlane.f32.xlu0 %v8009
    %v8011 = vpop.xlane.xlu0 %8010
    %v8012 = vmul.f32 %v8008, %v3203
    %v8013 = vmul.f32 %v8011, %v3203
    %v8014 = vsub.f32 %v8000, %v8012
    %v8015 = vsub.f32 %v8001, %v8013
    %v8016 = vmul.f32 %v8014, %v8014
    %v8017 = vmul.f32 %v8015, %v8015
    %v8018 = vsel %vm91, %v8016, 0.0
    %8019 = vadd.xlane.f32.xlu0 %v8018
    %v8020 = vpop.xlane.xlu0 %8019
    %v8021 = vsel %vm91, %v8017, 0.0
    %8022 = vadd.xlane.f32.xlu0 %v8021
    %v8023 = vpop.xlane.xlu0 %8022
    %v8024 = vmul.f32 %v8020, %v3203
    %v8025 = vmul.f32 %v8023, %v3203
    %v8026 = vadd.f32 %v8024, 1e-05
    %v8027 = vadd.f32 %v8025, 1e-05
    %v8028 = vrsqrt.pop %v8026
    %v8029 = vrsqrt.pop %v8027
    %v8030 = vmul.f32 %v8014, %v8028
    %v8031 = vmul.f32 %v8015, %v8029
    %v8033 = vlaneseq
    %v8034 = vshrl.u32 %v8033, 7
    %v8035 = vsub.s32 0, %v8034
    %v8036 = vrot.slane %v8003, %v8035
    %v8038 = vmul.f32 %v8030, %v8036
    %v8039 = vmul.f32 %v8031, %v8036
    %v8041 = vlaneseq
    %v8042 = vshrl.u32 %v8041, 7
    %v8043 = vsub.s32 0, %v8042
    %v8044 = vrot.slane %v8005, %v8043
    %v8046 = vadd.f32 %v8038, %v8044
    %v8047 = vadd.f32 %v8039, %v8044
    %v8048 = vadd.f32 %v7890, %v8046
    %v8049 = vadd.f32 %v7891, %v8047
    %s8050 = scalar_lea.vmem %s14, 768
    %v8051 = vld [vmem:[%s8050] sm:$0xff]
    %v8052 = vld [vmem:[%s8050 + $0x8] sm:$0xff]
    %v8053 = vld [vmem:[%s8050 + $0x10] sm:$0xff]
    %v8054 = vld [vmem:[%s8050 + $0x18] sm:$0xff]
    %v8055 = vld [vmem:[%s8050 + $0x20] sm:$0xff]
    %v8056 = vld [vmem:[%s8050 + $0x28] sm:$0xff]
    %v8057 = vld [vmem:[%s8050 + $0x30] sm:$0xff]
    %v8058 = vld [vmem:[%s8050 + $0x38] sm:$0xff]
    %v8059 = vld [vmem:[%s8050 + $0x40] sm:$0xff]
    %v8060 = vld [vmem:[%s8050 + $0x48] sm:$0xff]
    %v8061 = vld [vmem:[%s8050 + $0x50] sm:$0xff]
    %v8062 = vld [vmem:[%s8050 + $0x58] sm:$0xff]
    %v8063 = vld [vmem:[%s8050 + $0x60] sm:$0xff]
    %v8064 = vld [vmem:[%s8050 + $0x68] sm:$0xff]
    %v8065 = vld [vmem:[%s8050 + $0x70] sm:$0xff]
    %v8066 = vld [vmem:[%s8050 + $0x78] sm:$0xff]
    %s8067 = scalar_lea.vmem %s15, 6
    %v8068 = vld [vmem:[%s8067] sm:$0x1]
    %v8070 = vlaneseq
    %v8071 = vshrl.u32 %v8070, 7
    %v8072 = vsub.s32 0, %v8071
    %v8073 = vrot.slane %v8068, %v8072
    %8075 = vmatprep.subr.mxu0 0.0
    %8076 = vmatpush1.msra.mxu0 %v8051
    %8077 = vmatprep.subr.mxu0 0.0
    %8078 = vmatpush1.msra.mxu0 %v8052
    %8079 = vmatprep.subr.mxu0 0.0
    %8080 = vmatpush1.msra.mxu0 %v8053
    %8081 = vmatprep.subr.mxu0 0.0
    %8082 = vmatpush1.msra.mxu0 %v8054
    %8083 = vmatprep.subr.mxu0 0.0
    %8084 = vmatpush1.msra.mxu0 %v8055
    %8085 = vmatprep.subr.mxu0 0.0
    %8086 = vmatpush1.msra.mxu0 %v8056
    %8087 = vmatprep.subr.mxu0 0.0
    %8088 = vmatpush1.msra.mxu0 %v8057
    %8089 = vmatprep.subr.mxu0 0.0
    %8090 = vmatpush1.msra.mxu0 %v8058
    %8091 = vmatprep.subr.mxu0 0.0
    %8092 = vmatpush1.msra.mxu0 %v8059
    %8093 = vmatprep.subr.mxu0 0.0
    %8094 = vmatpush1.msra.mxu0 %v8060
    %8095 = vmatprep.subr.mxu0 0.0
    %8096 = vmatpush1.msra.mxu0 %v8061
    %8097 = vmatprep.subr.mxu0 0.0
    %8098 = vmatpush1.msra.mxu0 %v8062
    %8099 = vmatprep.subr.mxu0 0.0
    %8100 = vmatpush1.msra.mxu0 %v8063
    %8101 = vmatprep.subr.mxu0 0.0
    %8102 = vmatpush1.msra.mxu0 %v8064
    %8103 = vmatprep.subr.mxu0 0.0
    %8104 = vmatpush1.msra.mxu0 %v8065
    %8105 = vmatprep.subr.mxu0 0.0
    %8106 = vmatpush1.msra.mxu0 %v8066
    %8107 = vmatprep.subr.mxu0 0.0
    %8108 = vmatpush1.msra.mxu0 0.0
    %8109 = vmatprep.subr.mxu0 0.0
    %8110 = vmatpush1.msra.mxu0 0.0
    %8111 = vmatprep.subr.mxu0 0.0
    %8112 = vmatpush1.msra.mxu0 0.0
    %8113 = vmatprep.subr.mxu0 0.0
    %8114 = vmatpush1.msra.mxu0 0.0
    %8115 = vmatprep.subr.mxu0 0.0
    %8116 = vmatpush1.msra.mxu0 0.0
    %8117 = vmatprep.subr.mxu0 0.0
    %8118 = vmatpush1.msra.mxu0 0.0
    %8119 = vmatprep.subr.mxu0 0.0
    %8120 = vmatpush1.msra.mxu0 0.0
    %8121 = vmatprep.subr.mxu0 0.0
    %8122 = vmatpush1.msra.mxu0 0.0
    %8123 = vmatprep.subr.mxu0 0.0
    %8124 = vmatpush1.msra.mxu0 0.0
    %8125 = vmatprep.subr.mxu0 0.0
    %8126 = vmatpush1.msra.mxu0 0.0
    %8127 = vmatprep.subr.mxu0 0.0
    %8128 = vmatpush1.msra.mxu0 0.0
    %8129 = vmatprep.subr.mxu0 0.0
    %8130 = vmatpush1.msra.mxu0 0.0
    %8131 = vmatprep.subr.mxu0 0.0
    %8132 = vmatpush1.msra.mxu0 0.0
    %8133 = vmatprep.subr.mxu0 0.0
    %8134 = vmatpush1.msra.mxu0 0.0
    %8135 = vmatprep.subr.mxu0 0.0
    %8136 = vmatpush1.msra.mxu0 0.0
    %8137 = vmatprep.subr.mxu0 0.0
    %8138 = vmatpush1.msra.mxu0 0.0
    %8139 = vmatprep.mubr.f32.mxu0 0.0
    %8140 = vmatmul.mubr.f32.gmra.mrb[0].mxu0 %v7636
    %v8141 = vpop.f32.mrb[0].mxu0
    %v8142 = vadd.f32 %v8073, %v8141
    %v8143 = vpop.f32.mrb[0].mxu0
    %8144 = vmatprep.mubr.f32.mxu0 0.0
    %8145 = vmatmul.mubr.f32.gmra.mrb[0].mxu0 %v7640
    %v8146 = vpop.f32.mrb[0].mxu0
    %v8147 = vadd.f32 %v8073, %v8146
    %v8148 = vpop.f32.mrb[0].mxu0
    %8149 = vdwg.mxu0
    %8150 = vrot.lane.b32.xlu0 %v7739, 64
    %v8151 = vpop.permute.xlu0 %8150
    %8152 = vrot.lane.b32.xlu0 %v7741, 64
    %v8153 = vpop.permute.xlu0 %8152
    %v8156 = vmul.f32 %v8142, %v8151
    %v8157 = vmul.f32 %v8147, %v8153
    %s8158 = scalar_lea.vmem %s18, 6
    %v8159 = vld [vmem:[%s8158] sm:$0x1]
    %s8160 = scalar_lea.vmem %s19, 6
    %v8161 = vld [vmem:[%s8160] sm:$0x1]
    %v8162 = vsel %vm91, %v8156, 0.0
    %8163 = vadd.xlane.f32.xlu0 %v8162
    %v8164 = vpop.xlane.xlu0 %8163
    %v8165 = vsel %vm91, %v8157, 0.0
    %8166 = vadd.xlane.f32.xlu0 %v8165
    %v8167 = vpop.xlane.xlu0 %8166
    %v8168 = vmul.f32 %v8164, %v3203
    %v8169 = vmul.f32 %v8167, %v3203
    %v8170 = vsub.f32 %v8156, %v8168
    %v8171 = vsub.f32 %v8157, %v8169
    %v8172 = vmul.f32 %v8170, %v8170
    %v8173 = vmul.f32 %v8171, %v8171
    %v8174 = vsel %vm91, %v8172, 0.0
    %8175 = vadd.xlane.f32.xlu0 %v8174
    %v8176 = vpop.xlane.xlu0 %8175
    %v8177 = vsel %vm91, %v8173, 0.0
    %8178 = vadd.xlane.f32.xlu0 %v8177
    %v8179 = vpop.xlane.xlu0 %8178
    %v8180 = vmul.f32 %v8176, %v3203
    %v8181 = vmul.f32 %v8179, %v3203
    %v8182 = vadd.f32 %v8180, 1e-05
    %v8183 = vadd.f32 %v8181, 1e-05
    %v8184 = vrsqrt.pop %v8182
    %v8185 = vrsqrt.pop %v8183
    %v8186 = vmul.f32 %v8170, %v8184
    %v8187 = vmul.f32 %v8171, %v8185
    %v8189 = vlaneseq
    %v8190 = vshrl.u32 %v8189, 7
    %v8191 = vsub.s32 0, %v8190
    %v8192 = vrot.slane %v8159, %v8191
    %v8194 = vmul.f32 %v8186, %v8192
    %v8195 = vmul.f32 %v8187, %v8192
    %v8197 = vlaneseq
    %v8198 = vshrl.u32 %v8197, 7
    %v8199 = vsub.s32 0, %v8198
    %v8200 = vrot.slane %v8161, %v8199
    %v8202 = vadd.f32 %v8194, %v8200
    %v8203 = vadd.f32 %v8195, %v8200
    %v8204 = vadd.f32 %v8048, %v8202
    %v8205 = vadd.f32 %v8049, %v8203
    %s8206 = scalar_lea.vmem %s14, 896
    %v8207 = vld [vmem:[%s8206] sm:$0xff]
    %v8208 = vld [vmem:[%s8206 + $0x8] sm:$0xff]
    %v8209 = vld [vmem:[%s8206 + $0x10] sm:$0xff]
    %v8210 = vld [vmem:[%s8206 + $0x18] sm:$0xff]
    %v8211 = vld [vmem:[%s8206 + $0x20] sm:$0xff]
    %v8212 = vld [vmem:[%s8206 + $0x28] sm:$0xff]
    %v8213 = vld [vmem:[%s8206 + $0x30] sm:$0xff]
    %v8214 = vld [vmem:[%s8206 + $0x38] sm:$0xff]
    %v8215 = vld [vmem:[%s8206 + $0x40] sm:$0xff]
    %v8216 = vld [vmem:[%s8206 + $0x48] sm:$0xff]
    %v8217 = vld [vmem:[%s8206 + $0x50] sm:$0xff]
    %v8218 = vld [vmem:[%s8206 + $0x58] sm:$0xff]
    %v8219 = vld [vmem:[%s8206 + $0x60] sm:$0xff]
    %v8220 = vld [vmem:[%s8206 + $0x68] sm:$0xff]
    %v8221 = vld [vmem:[%s8206 + $0x70] sm:$0xff]
    %v8222 = vld [vmem:[%s8206 + $0x78] sm:$0xff]
    %s8223 = scalar_lea.vmem %s15, 7
    %v8224 = vld [vmem:[%s8223] sm:$0x1]
    %v8226 = vlaneseq
    %v8227 = vshrl.u32 %v8226, 7
    %v8228 = vsub.s32 0, %v8227
    %v8229 = vrot.slane %v8224, %v8228
    %8231 = vmatprep.subr.mxu0 0.0
    %8232 = vmatpush1.msra.mxu0 %v8207
    %8233 = vmatprep.subr.mxu0 0.0
    %8234 = vmatpush1.msra.mxu0 %v8208
    %8235 = vmatprep.subr.mxu0 0.0
    %8236 = vmatpush1.msra.mxu0 %v8209
    %8237 = vmatprep.subr.mxu0 0.0
    %8238 = vmatpush1.msra.mxu0 %v8210
    %8239 = vmatprep.subr.mxu0 0.0
    %8240 = vmatpush1.msra.mxu0 %v8211
    %8241 = vmatprep.subr.mxu0 0.0
    %8242 = vmatpush1.msra.mxu0 %v8212
    %8243 = vmatprep.subr.mxu0 0.0
    %8244 = vmatpush1.msra.mxu0 %v8213
    %8245 = vmatprep.subr.mxu0 0.0
    %8246 = vmatpush1.msra.mxu0 %v8214
    %8247 = vmatprep.subr.mxu0 0.0
    %8248 = vmatpush1.msra.mxu0 %v8215
    %8249 = vmatprep.subr.mxu0 0.0
    %8250 = vmatpush1.msra.mxu0 %v8216
    %8251 = vmatprep.subr.mxu0 0.0
    %8252 = vmatpush1.msra.mxu0 %v8217
    %8253 = vmatprep.subr.mxu0 0.0
    %8254 = vmatpush1.msra.mxu0 %v8218
    %8255 = vmatprep.subr.mxu0 0.0
    %8256 = vmatpush1.msra.mxu0 %v8219
    %8257 = vmatprep.subr.mxu0 0.0
    %8258 = vmatpush1.msra.mxu0 %v8220
    %8259 = vmatprep.subr.mxu0 0.0
    %8260 = vmatpush1.msra.mxu0 %v8221
    %8261 = vmatprep.subr.mxu0 0.0
    %8262 = vmatpush1.msra.mxu0 %v8222
    %8263 = vmatprep.subr.mxu0 0.0
    %8264 = vmatpush1.msra.mxu0 0.0
    %8265 = vmatprep.subr.mxu0 0.0
    %8266 = vmatpush1.msra.mxu0 0.0
    %8267 = vmatprep.subr.mxu0 0.0
    %8268 = vmatpush1.msra.mxu0 0.0
    %8269 = vmatprep.subr.mxu0 0.0
    %8270 = vmatpush1.msra.mxu0 0.0
    %8271 = vmatprep.subr.mxu0 0.0
    %8272 = vmatpush1.msra.mxu0 0.0
    %8273 = vmatprep.subr.mxu0 0.0
    %8274 = vmatpush1.msra.mxu0 0.0
    %8275 = vmatprep.subr.mxu0 0.0
    %8276 = vmatpush1.msra.mxu0 0.0
    %8277 = vmatprep.subr.mxu0 0.0
    %8278 = vmatpush1.msra.mxu0 0.0
    %8279 = vmatprep.subr.mxu0 0.0
    %8280 = vmatpush1.msra.mxu0 0.0
    %8281 = vmatprep.subr.mxu0 0.0
    %8282 = vmatpush1.msra.mxu0 0.0
    %8283 = vmatprep.subr.mxu0 0.0
    %8284 = vmatpush1.msra.mxu0 0.0
    %8285 = vmatprep.subr.mxu0 0.0
    %8286 = vmatpush1.msra.mxu0 0.0
    %8287 = vmatprep.subr.mxu0 0.0
    %8288 = vmatpush1.msra.mxu0 0.0
    %8289 = vmatprep.subr.mxu0 0.0
    %8290 = vmatpush1.msra.mxu0 0.0
    %8291 = vmatprep.subr.mxu0 0.0
    %8292 = vmatpush1.msra.mxu0 0.0
    %8293 = vmatprep.subr.mxu0 0.0
    %8294 = vmatpush1.msra.mxu0 0.0
    %8295 = vmatprep.mubr.f32.mxu0 0.0
    %8296 = vmatmul.mubr.f32.gmra.mrb[0].mxu0 %v7637
    %v8297 = vpop.f32.mrb[0].mxu0
    %v8298 = vadd.f32 %v8229, %v8297
    %v8299 = vpop.f32.mrb[0].mxu0
    %8300 = vmatprep.mubr.f32.mxu0 0.0
    %8301 = vmatmul.mubr.f32.gmra.mrb[0].mxu0 %v7641
    %v8302 = vpop.f32.mrb[0].mxu0
    %v8303 = vadd.f32 %v8229, %v8302
    %v8304 = vpop.f32.mrb[0].mxu0
    %8305 = vdwg.mxu0
    %8306 = vrot.lane.b32.xlu0 %v7739, 32
    %v8307 = vpop.permute.xlu0 %8306
    %8308 = vrot.lane.b32.xlu0 %v7741, 32
    %v8309 = vpop.permute.xlu0 %8308
    %v8312 = vmul.f32 %v8298, %v8307
    %v8313 = vmul.f32 %v8303, %v8309
    %s8314 = scalar_lea.vmem %s18, 7
    %v8315 = vld [vmem:[%s8314] sm:$0x1]
    %s8316 = scalar_lea.vmem %s19, 7
    %v8317 = vld [vmem:[%s8316] sm:$0x1]
    %v8318 = vsel %vm91, %v8312, 0.0
    %8319 = vadd.xlane.f32.xlu0 %v8318
    %v8320 = vpop.xlane.xlu0 %8319
    %v8321 = vsel %vm91, %v8313, 0.0
    %8322 = vadd.xlane.f32.xlu0 %v8321
    %v8323 = vpop.xlane.xlu0 %8322
    %v8324 = vmul.f32 %v8320, %v3203
    %v8325 = vmul.f32 %v8323, %v3203
    %v8326 = vsub.f32 %v8312, %v8324
    %v8327 = vsub.f32 %v8313, %v8325
    %v8328 = vmul.f32 %v8326, %v8326
    %v8329 = vmul.f32 %v8327, %v8327
    %v8330 = vsel %vm91, %v8328, 0.0
    %8331 = vadd.xlane.f32.xlu0 %v8330
    %v8332 = vpop.xlane.xlu0 %8331
    %v8333 = vsel %vm91, %v8329, 0.0
    %8334 = vadd.xlane.f32.xlu0 %v8333
    %v8335 = vpop.xlane.xlu0 %8334
    %v8336 = vmul.f32 %v8332, %v3203
    %v8337 = vmul.f32 %v8335, %v3203
    %v8338 = vadd.f32 %v8336, 1e-05
    %v8339 = vadd.f32 %v8337, 1e-05
    %v8340 = vrsqrt.pop %v8338
    %v8341 = vrsqrt.pop %v8339
    %v8342 = vmul.f32 %v8326, %v8340
    %v8343 = vmul.f32 %v8327, %v8341
    %v8345 = vlaneseq
    %v8346 = vshrl.u32 %v8345, 7
    %v8347 = vsub.s32 0, %v8346
    %v8348 = vrot.slane %v8315, %v8347
    %v8350 = vmul.f32 %v8342, %v8348
    %v8351 = vmul.f32 %v8343, %v8348
    %v8353 = vlaneseq
    %v8354 = vshrl.u32 %v8353, 7
    %v8355 = vsub.s32 0, %v8354
    %v8356 = vrot.slane %v8317, %v8355
    %v8358 = vadd.f32 %v8350, %v8356
    %v8359 = vadd.f32 %v8351, %v8356
    %v8360 = vadd.f32 %v8204, %v8358
    %v8361 = vadd.f32 %v8205, %v8359
    %v8362 = vmul.f32 %v8360, 0.25
    %v8363 = vmul.f32 %v8361, 0.25
    %v8364 = vadd.f32 %v7400, %v8362
    %v8365 = vadd.f32 %v7401, %v8363
    %s8366 = scalar_lea.vmem %s20, 1
    %v8367 = vld [vmem:[%s8366] sm:$0x1]
    %s8368 = scalar_lea.vmem %s21, 1
    %v8369 = vld [vmem:[%s8368] sm:$0x1]
    %v8370 = vsel %vm91, %v8364, 0.0
    %8371 = vadd.xlane.f32.xlu0 %v8370
    %v8372 = vpop.xlane.xlu0 %8371
    %v8373 = vsel %vm91, %v8365, 0.0
    %8374 = vadd.xlane.f32.xlu0 %v8373
    %v8375 = vpop.xlane.xlu0 %8374
    %v8376 = vmul.f32 %v8372, %v3203
    %v8377 = vmul.f32 %v8375, %v3203
    %v8378 = vsub.f32 %v8364, %v8376
    %v8379 = vsub.f32 %v8365, %v8377
    %v8380 = vmul.f32 %v8378, %v8378
    %v8381 = vmul.f32 %v8379, %v8379
    %v8382 = vsel %vm91, %v8380, 0.0
    %8383 = vadd.xlane.f32.xlu0 %v8382
    %v8384 = vpop.xlane.xlu0 %8383
    %v8385 = vsel %vm91, %v8381, 0.0
    %8386 = vadd.xlane.f32.xlu0 %v8385
    %v8387 = vpop.xlane.xlu0 %8386
    %v8388 = vmul.f32 %v8384, %v3203
    %v8389 = vmul.f32 %v8387, %v3203
    %v8390 = vadd.f32 %v8388, 1e-05
    %v8391 = vadd.f32 %v8389, 1e-05
    %v8392 = vrsqrt.pop %v8390
    %v8393 = vrsqrt.pop %v8391
    %v8394 = vmul.f32 %v8378, %v8392
    %v8395 = vmul.f32 %v8379, %v8393
    %v8397 = vlaneseq
    %v8398 = vshrl.u32 %v8397, 7
    %v8399 = vsub.s32 0, %v8398
    %v8400 = vrot.slane %v8367, %v8399
    %v8402 = vmul.f32 %v8394, %v8400
    %v8403 = vmul.f32 %v8395, %v8400
    %v8405 = vlaneseq
    %v8406 = vshrl.u32 %v8405, 7
    %v8407 = vsub.s32 0, %v8406
    %v8408 = vrot.slane %v8369, %v8407
    %v8410 = vadd.f32 %v8402, %v8408
    %v8411 = vadd.f32 %v8403, %v8408
    %v8412 = vld [vmem:[%s22] sm:$0xff]
    %v8413 = vld [vmem:[%s22 + $0x8] sm:$0xff]
    %v8414 = vld [vmem:[%s22 + $0x10] sm:$0xff]
    %v8415 = vld [vmem:[%s22 + $0x18] sm:$0xff]
    %v8416 = vld [vmem:[%s23] sm:$0x1]
    %v8418 = vlaneseq
    %v8419 = vshrl.u32 %v8418, 7
    %v8420 = vsub.s32 0, %v8419
    %v8421 = vrot.slane %v8416, %v8420
    %v8424 = vsel %vm91, %v8410, 0
    %v8427 = vsel %vm91, %v8411, 0
    %8429 = vmatprep.subr.mxu0 0.0
    %8430 = vmatpush1.msra.mxu0 %v8412
    %8431 = vmatprep.subr.mxu0 0.0
    %8432 = vmatpush1.msra.mxu0 %v8413
    %8433 = vmatprep.subr.mxu0 0.0
    %8434 = vmatpush1.msra.mxu0 %v8414
    %8435 = vmatprep.subr.mxu0 0.0
    %8436 = vmatpush1.msra.mxu0 %v8415
    %8437 = vmatprep.subr.mxu0 0.0
    %8438 = vmatpush1.msra.mxu0 0.0
    %8439 = vmatprep.subr.mxu0 0.0
    %8440 = vmatpush1.msra.mxu0 0.0
    %8441 = vmatprep.subr.mxu0 0.0
    %8442 = vmatpush1.msra.mxu0 0.0
    %8443 = vmatprep.subr.mxu0 0.0
    %8444 = vmatpush1.msra.mxu0 0.0
    %8445 = vmatprep.subr.mxu0 0.0
    %8446 = vmatpush1.msra.mxu0 0.0
    %8447 = vmatprep.subr.mxu0 0.0
    %8448 = vmatpush1.msra.mxu0 0.0
    %8449 = vmatprep.subr.mxu0 0.0
    %8450 = vmatpush1.msra.mxu0 0.0
    %8451 = vmatprep.subr.mxu0 0.0
    %8452 = vmatpush1.msra.mxu0 0.0
    %8453 = vmatprep.subr.mxu0 0.0
    %8454 = vmatpush1.msra.mxu0 0.0
    %8455 = vmatprep.subr.mxu0 0.0
    %8456 = vmatpush1.msra.mxu0 0.0
    %8457 = vmatprep.subr.mxu0 0.0
    %8458 = vmatpush1.msra.mxu0 0.0
    %8459 = vmatprep.subr.mxu0 0.0
    %8460 = vmatpush1.msra.mxu0 0.0
    %8461 = vmatprep.subr.mxu0 0.0
    %8462 = vmatpush1.msra.mxu0 0.0
    %8463 = vmatprep.subr.mxu0 0.0
    %8464 = vmatpush1.msra.mxu0 0.0
    %8465 = vmatprep.subr.mxu0 0.0
    %8466 = vmatpush1.msra.mxu0 0.0
    %8467 = vmatprep.subr.mxu0 0.0
    %8468 = vmatpush1.msra.mxu0 0.0
    %8469 = vmatprep.subr.mxu0 0.0
    %8470 = vmatpush1.msra.mxu0 0.0
    %8471 = vmatprep.subr.mxu0 0.0
    %8472 = vmatpush1.msra.mxu0 0.0
    %8473 = vmatprep.subr.mxu0 0.0
    %8474 = vmatpush1.msra.mxu0 0.0
    %8475 = vmatprep.subr.mxu0 0.0
    %8476 = vmatpush1.msra.mxu0 0.0
    %8477 = vmatprep.subr.mxu0 0.0
    %8478 = vmatpush1.msra.mxu0 0.0
    %8479 = vmatprep.subr.mxu0 0.0
    %8480 = vmatpush1.msra.mxu0 0.0
    %8481 = vmatprep.subr.mxu0 0.0
    %8482 = vmatpush1.msra.mxu0 0.0
    %8483 = vmatprep.subr.mxu0 0.0
    %8484 = vmatpush1.msra.mxu0 0.0
    %8485 = vmatprep.subr.mxu0 0.0
    %8486 = vmatpush1.msra.mxu0 0.0
    %8487 = vmatprep.subr.mxu0 0.0
    %8488 = vmatpush1.msra.mxu0 0.0
    %8489 = vmatprep.subr.mxu0 0.0
    %8490 = vmatpush1.msra.mxu0 0.0
    %8491 = vmatprep.subr.mxu0 0.0
    %8492 = vmatpush1.msra.mxu0 0.0
    %8493 = vmatprep.mubr.f32.mxu0 0.0
    %8494 = vmatmul.mubr.f32.gmra.mrb[0].mxu0 %v8424
    %v8495 = vpop.f32.mrb[0].mxu0
    %v8496 = vadd.f32 %v8421, %v8495
    %v8497 = vpop.f32.mrb[0].mxu0
    %8498 = vmatprep.mubr.f32.mxu0 0.0
    %8499 = vmatmul.mubr.f32.gmra.mrb[0].mxu0 %v8427
    %v8500 = vpop.f32.mrb[0].mxu0
    %v8501 = vadd.f32 %v8421, %v8500
    %v8502 = vpop.f32.mrb[0].mxu0
    %8503 = vdwg.mxu0
    %8504 = vst [vmem:[#allocation2] sm:$0xff] %v8496
    %8505 = vst [vmem:[#allocation2 + $0x8] sm:$0xff] %v8501
    // Predicated region
    $region98: #{hypergraph_transformer_forward.1} parent=1 // pred_check
      _
    $region99: #{hypergraph_transformer_forward.1} parent=1 // pred_check_branch
      %8507 = sbr.rel (0) target = $region101
    $region100: #{hypergraph_transformer_forward.1} parent=1 // pred_region
      %s8509 = ssub.s32 256, 256
      %8510 = vsyncadd [#allocation3], %s8509
      %s8511 = sshll.u32 [#allocation2], 4
      %s8512 = int_to_ptr.vmem [resolvable:$true] %s8511
      %8517 = dma.vmem_to_hbm [thread:$0]  %s8512, 256, %s24, [#allocation3], 128, 128, 8
    $region101: #{hypergraph_transformer_forward.1} parent=1 // pred_fallthru
      _
    // Predicated region
    $region102: #{hypergraph_transformer_forward.1} parent=1 // pred_check
      _
    $region103: #{hypergraph_transformer_forward.1} parent=1 // pred_check_branch
      %8519 = sbr.rel (0) target = $region105
    $region104: #{hypergraph_transformer_forward.1} parent=1 // pred_region
      %8520 = dma.done [#allocation3], 256
    $region105: #{hypergraph_transformer_forward.1} parent=1 // pred_fallthru
      _
    %8521 = vsyncpa [#allocation3], 1

</llo_original>
